<compile_context>
chip_gen: v7x
topology: tpu7x:2x2x1
jax: 0.10.0
libtpu: 0.0.40
codegen_flags: <defaults>
</compile_context>

<pallas_src>
import functools

import jax
import jax.numpy as jnp
from jax.experimental import pallas as pl
from jax.experimental.pallas import tpu as pltpu


def _round_up(x, m):
    return ((x + m - 1) // m) * m


def _decoder_kernel(num_layers, hidden_p, time_block, seq_len, needs_guard,
                    gx0_ref, h0_ref, hctx_ref,
                    w_ihr_ref, b_ihr_ref, w_hh_ref, b_hh_ref,
                    wa1_ref, wa2c_ref, wa2q_ref,
                    out_ref, h_ref):
    """time_block decoder timesteps per grid iteration; grid = (batch, time)."""
    L, Hp, TB = num_layers, hidden_p, time_block
    t_blk = pl.program_id(1)
    wdt = w_hh_ref.dtype          # matmul-operand dtype (bf16 or f32)

    # Initialize the carried hidden state from h0 at the first time block.
    @pl.when(t_blk == 0)
    def _():
        h_ref[...] = h0_ref[...]

    Hb = hctx_ref[...]            # (BT, S, Hp) encoder context, batch-major

    def step(tb):
        # ---- StackingGRUCell (PyTorch GRUCell gate order: r, z, n) ----
        x = None
        for i in range(L):
            h_prev = h_ref[i]                                    # (BT, Hp) f32
            if i == 0:
                gx = gx0_ref[tb]                                 # hoisted projection
            else:
                gx = jnp.dot(x.astype(wdt), w_ihr_ref[i - 1],
                             preferred_element_type=jnp.float32) + b_ihr_ref[i - 1]
            gh = jnp.dot(h_prev.astype(wdt), w_hh_ref[i],
                         preferred_element_type=jnp.float32) + b_hh_ref[i]
            # Hp is a multiple of 128, so these slices are lane-aligned.
            r = jax.nn.sigmoid(gx[:, 0:Hp] + gh[:, 0:Hp])
            z = jax.nn.sigmoid(gx[:, Hp:2 * Hp] + gh[:, Hp:2 * Hp])
            n = jnp.tanh(gx[:, 2 * Hp:3 * Hp] + r * gh[:, 2 * Hp:3 * Hp])
            h_new = (1.0 - z) * n + z * h_prev
            h_ref[i] = h_new
            x = h_new                        # inter-layer dropout = identity (eval)

        # ---- GlobalAttention (contractions pushed to the MXU) ----
        q = x                                                    # (BT, Hp) f32
        qc = q.astype(wdt)
        q1 = jnp.dot(qc, wa1_ref[...], preferred_element_type=jnp.float32)
        s = jnp.einsum('bqh,bsh->bqs', q1[:, None, :].astype(wdt), Hb,
                       preferred_element_type=jnp.float32)       # (BT, 1, S)
        s = s - jnp.max(s, axis=-1, keepdims=True)
        e = jnp.exp(s)
        inv = pl.reciprocal(jnp.sum(e, axis=-1, keepdims=True), approx=True)
        attn = (e * inv).astype(wdt)                             # softmax over S
        c = jnp.einsum('bqs,bsh->bqh', attn, Hb,
                       preferred_element_type=jnp.float32)[:, 0, :]  # (BT, Hp)
        # tanh(W2 [c, q]) with W2 pre-split -> no per-step concat
        o = jnp.tanh(jnp.dot(c.astype(wdt), wa2c_ref[...],
                             preferred_element_type=jnp.float32)
                     + jnp.dot(qc, wa2q_ref[...],
                               preferred_element_type=jnp.float32))
        # final dropout = identity (eval); lane-dense (BT, Hp) store
        out_ref[tb] = o.astype(out_ref.dtype)

    for tb in range(TB):
        if needs_guard:
            pl.when(t_blk * TB + tb < seq_len)(functools.partial(step, tb))
        else:
            step(tb)


def decoder_forward(tokens, h0, Hctx, params, *, num_layers, hidden_size,
                    time_block=4, batch_block=8, param_dtype=jnp.bfloat16):
    """tokens (T, B) int32; h0 (L, B, Hd); Hctx (S_enc, B, Hd)."""
    T, B = tokens.shape
    L, Hd = num_layers, hidden_size
    S = Hctx.shape[0]
    Lr = max(L - 1, 1)

    # Padded sizes: lanes (last dim) multiple of 128, batch multiple of 8.
    Hp = _round_up(Hd, 128)
    BT = _round_up(min(max(batch_block, 1), max(B, 1)), 8)
    Bp = _round_up(B, BT)
    TB = min(max(time_block, 1), T)
    Tp = _round_up(T, TB)

    # ---- glue (plain XLA): embedding lookup + hoisted layer-0 input projection
    embed = params["embedding"][tokens]                               # (T, B, I) f32
    gx0 = jnp.matmul(embed, params["w_ih0"]) + params["b_ih0"][0]     # (T, B, 3*Hd)
    gx0 = gx0.reshape(T, B, 3, Hd)
    gx0 = jnp.pad(gx0, ((0, Tp - T), (0, Bp - B), (0, 0), (0, Hp - Hd)))
    gx0 = gx0.reshape(Tp, Bp, 3 * Hp).astype(jnp.float32)

    # ---- pad / repack weights (per-gate, so r/z/n slices are 128-aligned)
    def pad_gate_w(w):      # (..., Hd, 3*Hd) -> (..., Hp, 3*Hp)
        lead = w.shape[:-2]
        w = w.reshape(*lead, Hd, 3, Hd)
        w = jnp.pad(w, [(0, 0)] * len(lead) + [(0, Hp - Hd), (0, 0), (0, Hp - Hd)])
        return w.reshape(*lead, Hp, 3 * Hp).astype(param_dtype)

    def pad_gate_b(b):      # (..., 1, 3*Hd) -> (..., 1, 3*Hp)
        lead = b.shape[:-1]
        b = b.reshape(*lead, 3, Hd)
        b = jnp.pad(b, [(0, 0)] * (len(lead) + 1) + [(0, Hp - Hd)])
        return b.reshape(*lead, 3 * Hp).astype(jnp.float32)

    w_ihr_p = pad_gate_w(params["w_ihr"])                             # (Lr, Hp, 3Hp)
    w_hh_p = pad_gate_w(params["w_hh"])                               # (L,  Hp, 3Hp)
    b_ihr_p = pad_gate_b(params["b_ihr"])                             # (Lr, 1, 3Hp)
    b_hh_p = pad_gate_b(params["b_hh"])                               # (L,  1, 3Hp)

    wa1_p = jnp.pad(params["wa1"], ((0, Hp - Hd), (0, Hp - Hd))).astype(param_dtype)
    wa2 = params["wa2"]                                               # (2*Hd, Hd)
    wa2c_p = jnp.pad(wa2[:Hd], ((0, Hp - Hd), (0, Hp - Hd))).astype(param_dtype)
    wa2q_p = jnp.pad(wa2[Hd:], ((0, Hp - Hd), (0, Hp - Hd))).astype(param_dtype)

    h0_p = jnp.pad(h0, ((0, 0), (0, Bp - B), (0, Hp - Hd))).astype(jnp.float32)
    Hb = jnp.transpose(Hctx, (1, 0, 2))                               # == H.transpose(0,1)
    Hb = jnp.pad(Hb, ((0, Bp - B), (0, 0), (0, Hp - Hd))).astype(param_dtype)

    kernel = functools.partial(_decoder_kernel, L, Hp, TB, T, Tp != T)
    grid = (Bp // BT, Tp // TB)

    out_p, h_out_p = pl.pallas_call(
        kernel,
        out_shape=(jax.ShapeDtypeStruct((Tp, Bp, Hp), jnp.float32),
                   jax.ShapeDtypeStruct((L, Bp, Hp), jnp.float32)),
        grid_spec=pltpu.PrefetchScalarGridSpec(
            num_scalar_prefetch=0,
            grid=grid,
            in_specs=[
                pl.BlockSpec((TB, BT, 3 * Hp), lambda b, t: (t, b, 0)),   # gx0 (hoisted)
                pl.BlockSpec((L, BT, Hp), lambda b, t: (0, b, 0)),        # h0
                pl.BlockSpec((BT, S, Hp), lambda b, t: (b, 0, 0)),        # enc. context
                pl.BlockSpec((Lr, Hp, 3 * Hp), lambda b, t: (0, 0, 0)),   # W_ih layers>0
                pl.BlockSpec((Lr, 1, 3 * Hp), lambda b, t: (0, 0, 0)),    # b_ih layers>0
                pl.BlockSpec((L, Hp, 3 * Hp), lambda b, t: (0, 0, 0)),    # W_hh
                pl.BlockSpec((L, 1, 3 * Hp), lambda b, t: (0, 0, 0)),     # b_hh
                pl.BlockSpec((Hp, Hp), lambda b, t: (0, 0)),              # attention W1
                pl.BlockSpec((Hp, Hp), lambda b, t: (0, 0)),              # attention W2_c
                pl.BlockSpec((Hp, Hp), lambda b, t: (0, 0)),              # attention W2_q
            ],
            out_specs=[
                pl.BlockSpec((TB, BT, Hp), lambda b, t: (t, b, 0)),       # per-step outputs
                pl.BlockSpec((L, BT, Hp), lambda b, t: (0, b, 0)),        # carried hidden
            ],
        ),
        compiler_params=pltpu.CompilerParams(
            dimension_semantics=("parallel", "arbitrary"),
            vmem_limit_bytes=64 * 1024 * 1024),
    )(gx0, h0_p, Hb, w_ihr_p, b_ihr_p, w_hh_p, b_hh_p, wa1_p, wa2c_p, wa2q_p)

    return out_p[:T, :B, :Hd], h_out_p[:, :B, :Hd]


def decoder_reference(tokens, h0, Hctx, params, *, num_layers, hidden_size):
    """Pure-JAX reference matching the PyTorch forward (eval mode, f32)."""
    embed = params["embedding"][tokens]
    Hb = jnp.transpose(Hctx, (1, 0, 2))
    Hd = hidden_size
    h = h0
    outs = []
    for t in range(tokens.shape[0]):
        x = embed[t]
        hn = []
        for i in range(num_layers):
            if i == 0:
                w_ih, b_ih = params["w_ih0"], params["b_ih0"][0]
            else:
                w_ih, b_ih = params["w_ihr"][i - 1], params["b_ihr"][i - 1, 0]
            w_hh, b_hh = params["w_hh"][i], params["b_hh"][i, 0]
            gx = x @ w_ih + b_ih
            gh = h[i] @ w_hh + b_hh
            r = jax.nn.sigmoid(gx[:, :Hd] + gh[:, :Hd])
            z = jax.nn.sigmoid(gx[:, Hd:2 * Hd] + gh[:, Hd:2 * Hd])
            n = jnp.tanh(gx[:, 2 * Hd:] + r * gh[:, 2 * Hd:])
            h_new = (1.0 - z) * n + z * h[i]
            hn.append(h_new)
            x = h_new
        h = jnp.stack(hn)
        q = x
        q1 = q @ params["wa1"]
        scores = jnp.einsum("bsh,bh->bs", Hb, q1)
        attn = jax.nn.softmax(scores, axis=1)
        c = jnp.einsum("bs,bsh->bh", attn, Hb)
        o = jnp.tanh(jnp.concatenate([c, q], axis=1) @ params["wa2"])
        outs.append(o)
    return jnp.stack(outs), h


def init_params(key, vocab_size, input_size, hidden_size, num_layers):
    """Deterministic synthetic parameters (matmul weights stored pre-transposed)."""
    Hd, I, L = hidden_size, input_size, num_layers
    Lr = max(L - 1, 1)
    ks = jax.random.split(key, 9)
    s = 0.1
    p = {
        "embedding": jax.random.normal(ks[0], (vocab_size, I), jnp.float32) * s,
        "w_ih0": jax.random.normal(ks[1], (I, 3 * Hd), jnp.float32) * s,   # weight_ih.T
        "b_ih0": jax.random.normal(ks[2], (1, 3 * Hd), jnp.float32) * s,
        "w_ihr": jax.random.normal(ks[3], (Lr, Hd, 3 * Hd), jnp.float32) * s,
        "b_ihr": jax.random.normal(ks[4], (Lr, 1, 3 * Hd), jnp.float32) * s,
        "w_hh": jax.random.normal(ks[5], (L, Hd, 3 * Hd), jnp.float32) * s,
        "b_hh": jax.random.normal(ks[6], (L, 1, 3 * Hd), jnp.float32) * s,
        "wa1": jax.random.normal(ks[7], (Hd, Hd), jnp.float32) * s,        # L1.weight.T
        "wa2": jax.random.normal(ks[8], (2 * Hd, Hd), jnp.float32) * s,    # L2.weight.T
    }
    return p


if __name__ == "__main__":
    VOCAB, INPUT, HIDDEN, LAYERS = 20, 32, 32, 2
    T, B, S_ENC = 8, 2, 8

    key = jax.random.PRNGKey(0)
    kp, kt, kh, kc = jax.random.split(key, 4)

    params = init_params(kp, VOCAB, INPUT, HIDDEN, LAYERS)
    tokens = jax.random.randint(kt, (T, B), 0, VOCAB, dtype=jnp.int32)
    h0 = jax.random.normal(kh, (LAYERS, B, HIDDEN), jnp.float32) * 0.1
    Hctx = jax.random.normal(kc, (S_ENC, B, HIDDEN), jnp.float32) * 0.1

    out, h_final = decoder_forward(tokens, h0, Hctx, params,
                                   num_layers=LAYERS, hidden_size=HIDDEN,
                                   time_block=4, batch_block=8)
    out = jax.block_until_ready(out)
    h_final = jax.block_until_ready(h_final)

    ref_out, ref_h = decoder_reference(tokens, h0, Hctx, params,
                                       num_layers=LAYERS, hidden_size=HIDDEN)
    assert out.shape == (T, B, HIDDEN) and h_final.shape == (LAYERS, B, HIDDEN)
    assert jnp.allclose(out, ref_out, atol=5e-2, rtol=5e-2)
    assert jnp.allclose(h_final, ref_h, atol=5e-2, rtol=5e-2)

    print("KERNEL_OK")
</pallas_src>

<mosaic_0001>
module attributes {stable_mosaic.version = 11 : i64} {
  func.func @_decoder_kernel(%arg0: i32, %arg1: i32, %arg2: memref<4x8x384xf32, #tpu.memory_space<vmem>>, %arg3: memref<2x8x128xf32, #tpu.memory_space<vmem>>, %arg4: memref<8x8x128xbf16, #tpu.memory_space<vmem>>, %arg5: memref<1x128x384xbf16, #tpu.memory_space<vmem>>, %arg6: memref<1x1x384xf32, #tpu.memory_space<vmem>>, %arg7: memref<2x128x384xbf16, #tpu.memory_space<vmem>>, %arg8: memref<2x1x384xf32, #tpu.memory_space<vmem>>, %arg9: memref<128x128xbf16, #tpu.memory_space<vmem>>, %arg10: memref<128x128xbf16, #tpu.memory_space<vmem>>, %arg11: memref<128x128xbf16, #tpu.memory_space<vmem>>, %arg12: memref<4x8x128xf32, #tpu.memory_space<vmem>>, %arg13: memref<2x8x128xf32, #tpu.memory_space<vmem>>) attributes {dimension_semantics = [#tpu.dimension_semantics<parallel>, #tpu.dimension_semantics<arbitrary>], iteration_bounds = array<i64: 1, 2>, scalar_prefetch = 0 : i64, scratch_operands = 0 : i64, tpu.core_type = #tpu.core_type<tc>, window_params = [{transform_indices = @transform_0, window_bounds = array<i64: 4, 8, 384>}, {transform_indices = @transform_1, window_bounds = array<i64: 2, 8, 128>}, {transform_indices = @transform_2, window_bounds = array<i64: 8, 8, 128>}, {pipeline_mode = #tpu.pipeline_mode<synchronous>, transform_indices = @transform_3, window_bounds = array<i64: 1, 128, 384>}, {pipeline_mode = #tpu.pipeline_mode<synchronous>, transform_indices = @transform_4, window_bounds = array<i64: 1, 1, 384>}, {pipeline_mode = #tpu.pipeline_mode<synchronous>, transform_indices = @transform_5, window_bounds = array<i64: 2, 128, 384>}, {pipeline_mode = #tpu.pipeline_mode<synchronous>, transform_indices = @transform_6, window_bounds = array<i64: 2, 1, 384>}, {pipeline_mode = #tpu.pipeline_mode<synchronous>, transform_indices = @transform_7, window_bounds = array<i64: 128, 128>}, {pipeline_mode = #tpu.pipeline_mode<synchronous>, transform_indices = @transform_8, window_bounds = array<i64: 128, 128>}, {pipeline_mode = #tpu.pipeline_mode<synchronous>, transform_indices = @transform_9, window_bounds = array<i64: 128, 128>}, {transform_indices = @transform_10, window_bounds = array<i64: 4, 8, 128>}, {transform_indices = @transform_11, window_bounds = array<i64: 2, 8, 128>}]} {
    %c0_i32 = arith.constant 0 : i32
    %0 = arith.cmpi eq, %arg1, %c0_i32 : i32
    %1 = arith.extui %0 : i1 to i32
    %c0_i32_0 = arith.constant 0 : i32
    %2 = arith.cmpi ne, %1, %c0_i32_0 : i32
    scf.if %2 {
      %c0_231 = arith.constant 0 : index
      %c0_232 = arith.constant 0 : index
      %c0_233 = arith.constant 0 : index
      %472 = vector.load %arg3[%c0_231, %c0_232, %c0_233] : memref<2x8x128xf32, #tpu.memory_space<vmem>>, vector<2x8x128xf32>
      %c0_234 = arith.constant 0 : index
      %c0_235 = arith.constant 0 : index
      %c0_236 = arith.constant 0 : index
      %473 = vector.load %arg13[%c0_234, %c0_235, %c0_236] : memref<2x8x128xf32, #tpu.memory_space<vmem>>, vector<2x8x128xf32>
      tpu.vector_store %arg13[%c0_234, %c0_235, %c0_236], %472 {strides = array<i32>} : memref<2x8x128xf32, #tpu.memory_space<vmem>>, vector<2x8x128xf32>,
    } else {
    }
    %c0 = arith.constant 0 : index
    %c0_1 = arith.constant 0 : index
    %c0_2 = arith.constant 0 : index
    %3 = vector.load %arg4[%c0, %c0_1, %c0_2] : memref<8x8x128xbf16, #tpu.memory_space<vmem>>, vector<8x8x128xbf16>
    %c0_3 = arith.constant 0 : index
    %c0_4 = arith.constant 0 : index
    %c0_5 = arith.constant 0 : index
    %4 = vector.load %arg13[%c0_3, %c0_4, %c0_5] : memref<2x8x128xf32, #tpu.memory_space<vmem>>, vector<1x8x128xf32>
    %5 = vector.shape_cast %4 : vector<1x8x128xf32> to vector<8x128xf32>
    %c0_6 = arith.constant 0 : index
    %c0_7 = arith.constant 0 : index
    %c0_8 = arith.constant 0 : index
    %6 = vector.load %arg2[%c0_6, %c0_7, %c0_8] : memref<4x8x384xf32, #tpu.memory_space<vmem>>, vector<1x8x384xf32>
    %7 = vector.shape_cast %6 : vector<1x8x384xf32> to vector<8x384xf32>
    %8 = arith.truncf %5 : vector<8x128xf32> to vector<8x128xbf16>
    %c0_9 = arith.constant 0 : index
    %c0_10 = arith.constant 0 : index
    %c0_11 = arith.constant 0 : index
    %9 = vector.load %arg7[%c0_9, %c0_10, %c0_11] : memref<2x128x384xbf16, #tpu.memory_space<vmem>>, vector<1x128x384xbf16>
    %10 = vector.shape_cast %9 : vector<1x128x384xbf16> to vector<128x384xbf16>
    %cst = arith.constant dense<0.000000e+00> : vector<8x384xf32>
    %11 = tpu.matmul %8, %10, %cst {dimension_numbers = #tpu.dot_dimension_numbers<[1], [0], [0], [1], [0, 0, 1, 1], [], []>} : vector<8x128xbf16>, vector<128x384xbf16>, vector<8x384xf32> -> vector<8x384xf32>
    %c0_12 = arith.constant 0 : index
    %c0_13 = arith.constant 0 : index
    %c0_14 = arith.constant 0 : index
    %12 = vector.load %arg8[%c0_12, %c0_13, %c0_14] : memref<2x1x384xf32, #tpu.memory_space<vmem>>, vector<1x1x384xf32>
    %13 = vector.shape_cast %12 : vector<1x1x384xf32> to vector<1x384xf32>
    %14 = vector.broadcast %13 : vector<1x384xf32> to vector<8x384xf32>
    %15 = arith.addf %11, %14 : vector<8x384xf32>
    %16 = vector.extract_strided_slice %7 {offsets = [0, 0], sizes = [8, 128], strides = [1, 1]} : vector<8x384xf32> to vector<8x128xf32>
    %17 = vector.extract_strided_slice %15 {offsets = [0, 0], sizes = [8, 128], strides = [1, 1]} : vector<8x384xf32> to vector<8x128xf32>
    %18 = arith.addf %16, %17 : vector<8x128xf32>
    %19 = arith.negf %18 : vector<8x128xf32>
    %20 = math.exp %19 : vector<8x128xf32>
    %cst_15 = arith.constant 1.000000e+00 : f32
    %21 = vector.broadcast %cst_15 : f32 to vector<8x128xf32>
    %22 = arith.addf %21, %20 : vector<8x128xf32>
    %23 = arith.divf %21, %22 : vector<8x128xf32>
    %24 = vector.extract_strided_slice %7 {offsets = [0, 128], sizes = [8, 128], strides = [1, 1]} : vector<8x384xf32> to vector<8x128xf32>
    %25 = vector.extract_strided_slice %15 {offsets = [0, 128], sizes = [8, 128], strides = [1, 1]} : vector<8x384xf32> to vector<8x128xf32>
    %26 = arith.addf %24, %25 : vector<8x128xf32>
    %27 = arith.negf %26 : vector<8x128xf32>
    %28 = math.exp %27 : vector<8x128xf32>
    %cst_16 = arith.constant 1.000000e+00 : f32
    %29 = vector.broadcast %cst_16 : f32 to vector<8x128xf32>
    %30 = arith.addf %29, %28 : vector<8x128xf32>
    %31 = arith.divf %29, %30 : vector<8x128xf32>
    %32 = vector.extract_strided_slice %7 {offsets = [0, 256], sizes = [8, 128], strides = [1, 1]} : vector<8x384xf32> to vector<8x128xf32>
    %33 = vector.extract_strided_slice %15 {offsets = [0, 256], sizes = [8, 128], strides = [1, 1]} : vector<8x384xf32> to vector<8x128xf32>
    %34 = arith.mulf %23, %33 : vector<8x128xf32>
    %35 = arith.addf %32, %34 : vector<8x128xf32>
    %36 = math.tanh %35 : vector<8x128xf32>
    %cst_17 = arith.constant 1.000000e+00 : f32
    %37 = vector.broadcast %cst_17 : f32 to vector<8x128xf32>
    %38 = arith.subf %37, %31 : vector<8x128xf32>
    %39 = arith.mulf %38, %36 : vector<8x128xf32>
    %40 = arith.mulf %31, %5 : vector<8x128xf32>
    %41 = arith.addf %39, %40 : vector<8x128xf32>
    %c0_18 = arith.constant 0 : index
    %c0_19 = arith.constant 0 : index
    %c0_20 = arith.constant 0 : index
    %42 = vector.load %arg13[%c0_18, %c0_19, %c0_20] : memref<2x8x128xf32, #tpu.memory_space<vmem>>, vector<1x8x128xf32>
    %43 = vector.shape_cast %42 : vector<1x8x128xf32> to vector<8x128xf32>
    %44 = vector.shape_cast %41 : vector<8x128xf32> to vector<1x8x128xf32>
    tpu.vector_store %arg13[%c0_18, %c0_19, %c0_20], %44 {strides = array<i32>} : memref<2x8x128xf32, #tpu.memory_space<vmem>>, vector<1x8x128xf32>,
    %c1 = arith.constant 1 : index
    %c0_21 = arith.constant 0 : index
    %c0_22 = arith.constant 0 : index
    %45 = vector.load %arg13[%c1, %c0_21, %c0_22] : memref<2x8x128xf32, #tpu.memory_space<vmem>>, vector<1x8x128xf32>
    %46 = vector.shape_cast %45 : vector<1x8x128xf32> to vector<8x128xf32>
    %47 = arith.truncf %41 : vector<8x128xf32> to vector<8x128xbf16>
    %c0_23 = arith.constant 0 : index
    %c0_24 = arith.constant 0 : index
    %c0_25 = arith.constant 0 : index
    %48 = vector.load %arg5[%c0_23, %c0_24, %c0_25] : memref<1x128x384xbf16, #tpu.memory_space<vmem>>, vector<1x128x384xbf16>
    %49 = vector.shape_cast %48 : vector<1x128x384xbf16> to vector<128x384xbf16>
    %cst_26 = arith.constant dense<0.000000e+00> : vector<8x384xf32>
    %50 = tpu.matmul %47, %49, %cst_26 {dimension_numbers = #tpu.dot_dimension_numbers<[1], [0], [0], [1], [0, 0, 1, 1], [], []>} : vector<8x128xbf16>, vector<128x384xbf16>, vector<8x384xf32> -> vector<8x384xf32>
    %c0_27 = arith.constant 0 : index
    %c0_28 = arith.constant 0 : index
    %c0_29 = arith.constant 0 : index
    %51 = vector.load %arg6[%c0_27, %c0_28, %c0_29] : memref<1x1x384xf32, #tpu.memory_space<vmem>>, vector<1x1x384xf32>
    %52 = vector.shape_cast %51 : vector<1x1x384xf32> to vector<1x384xf32>
    %53 = vector.broadcast %52 : vector<1x384xf32> to vector<8x384xf32>
    %54 = arith.addf %50, %53 : vector<8x384xf32>
    %55 = arith.truncf %46 : vector<8x128xf32> to vector<8x128xbf16>
    %c1_30 = arith.constant 1 : index
    %c0_31 = arith.constant 0 : index
    %c0_32 = arith.constant 0 : index
    %56 = vector.load %arg7[%c1_30, %c0_31, %c0_32] : memref<2x128x384xbf16, #tpu.memory_space<vmem>>, vector<1x128x384xbf16>
    %57 = vector.shape_cast %56 : vector<1x128x384xbf16> to vector<128x384xbf16>
    %cst_33 = arith.constant dense<0.000000e+00> : vector<8x384xf32>
    %58 = tpu.matmul %55, %57, %cst_33 {dimension_numbers = #tpu.dot_dimension_numbers<[1], [0], [0], [1], [0, 0, 1, 1], [], []>} : vector<8x128xbf16>, vector<128x384xbf16>, vector<8x384xf32> -> vector<8x384xf32>
    %c1_34 = arith.constant 1 : index
    %c0_35 = arith.constant 0 : index
    %c0_36 = arith.constant 0 : index
    %59 = vector.load %arg8[%c1_34, %c0_35, %c0_36] : memref<2x1x384xf32, #tpu.memory_space<vmem>>, vector<1x1x384xf32>
    %60 = vector.shape_cast %59 : vector<1x1x384xf32> to vector<1x384xf32>
    %61 = vector.broadcast %60 : vector<1x384xf32> to vector<8x384xf32>
    %62 = arith.addf %58, %61 : vector<8x384xf32>
    %63 = vector.extract_strided_slice %54 {offsets = [0, 0], sizes = [8, 128], strides = [1, 1]} : vector<8x384xf32> to vector<8x128xf32>
    %64 = vector.extract_strided_slice %62 {offsets = [0, 0], sizes = [8, 128], strides = [1, 1]} : vector<8x384xf32> to vector<8x128xf32>
    %65 = arith.addf %63, %64 : vector<8x128xf32>
    %66 = arith.negf %65 : vector<8x128xf32>
    %67 = math.exp %66 : vector<8x128xf32>
    %cst_37 = arith.constant 1.000000e+00 : f32
    %68 = vector.broadcast %cst_37 : f32 to vector<8x128xf32>
    %69 = arith.addf %68, %67 : vector<8x128xf32>
    %70 = arith.divf %68, %69 : vector<8x128xf32>
    %71 = vector.extract_strided_slice %54 {offsets = [0, 128], sizes = [8, 128], strides = [1, 1]} : vector<8x384xf32> to vector<8x128xf32>
    %72 = vector.extract_strided_slice %62 {offsets = [0, 128], sizes = [8, 128], strides = [1, 1]} : vector<8x384xf32> to vector<8x128xf32>
    %73 = arith.addf %71, %72 : vector<8x128xf32>
    %74 = arith.negf %73 : vector<8x128xf32>
    %75 = math.exp %74 : vector<8x128xf32>
    %cst_38 = arith.constant 1.000000e+00 : f32
    %76 = vector.broadcast %cst_38 : f32 to vector<8x128xf32>
    %77 = arith.addf %76, %75 : vector<8x128xf32>
    %78 = arith.divf %76, %77 : vector<8x128xf32>
    %79 = vector.extract_strided_slice %54 {offsets = [0, 256], sizes = [8, 128], strides = [1, 1]} : vector<8x384xf32> to vector<8x128xf32>
    %80 = vector.extract_strided_slice %62 {offsets = [0, 256], sizes = [8, 128], strides = [1, 1]} : vector<8x384xf32> to vector<8x128xf32>
    %81 = arith.mulf %70, %80 : vector<8x128xf32>
    %82 = arith.addf %79, %81 : vector<8x128xf32>
    %83 = math.tanh %82 : vector<8x128xf32>
    %cst_39 = arith.constant 1.000000e+00 : f32
    %84 = vector.broadcast %cst_39 : f32 to vector<8x128xf32>
    %85 = arith.subf %84, %78 : vector<8x128xf32>
    %86 = arith.mulf %85, %83 : vector<8x128xf32>
    %87 = arith.mulf %78, %46 : vector<8x128xf32>
    %88 = arith.addf %86, %87 : vector<8x128xf32>
    %c1_40 = arith.constant 1 : index
    %c0_41 = arith.constant 0 : index
    %c0_42 = arith.constant 0 : index
    %89 = vector.load %arg13[%c1_40, %c0_41, %c0_42] : memref<2x8x128xf32, #tpu.memory_space<vmem>>, vector<1x8x128xf32>
    %90 = vector.shape_cast %89 : vector<1x8x128xf32> to vector<8x128xf32>
    %91 = vector.shape_cast %88 : vector<8x128xf32> to vector<1x8x128xf32>
    tpu.vector_store %arg13[%c1_40, %c0_41, %c0_42], %91 {strides = array<i32>} : memref<2x8x128xf32, #tpu.memory_space<vmem>>, vector<1x8x128xf32>,
    %92 = arith.truncf %88 : vector<8x128xf32> to vector<8x128xbf16>
    %c0_43 = arith.constant 0 : index
    %c0_44 = arith.constant 0 : index
    %93 = vector.load %arg9[%c0_43, %c0_44] : memref<128x128xbf16, #tpu.memory_space<vmem>>, vector<128x128xbf16>
    %cst_45 = arith.constant dense<0.000000e+00> : vector<8x128xf32>
    %94 = tpu.matmul %92, %93, %cst_45 {dimension_numbers = #tpu.dot_dimension_numbers<[1], [0], [0], [1], [0, 0, 1, 1], [], []>} : vector<8x128xbf16>, vector<128x128xbf16>, vector<8x128xf32> -> vector<8x128xf32>
    %95 = vector.shape_cast %94 : vector<8x128xf32> to vector<8x1x128xf32>
    %96 = arith.truncf %95 : vector<8x1x128xf32> to vector<8x1x128xbf16>
    "tpu.trace_start"() <{level = 10 : i32, message = "bqh,bsh->bqs"}> : () -> ()
    %cst_46 = arith.constant dense<0.000000e+00> : vector<8x1x8xf32>
    %97 = tpu.matmul %96, %3, %cst_46 {dimension_numbers = #tpu.dot_dimension_numbers<[2], [2], [1], [1], [0, 0, 0, 1, 1, 1], [0], [0]>} : vector<8x1x128xbf16>, vector<8x8x128xbf16>, vector<8x1x8xf32> -> vector<8x1x8xf32>
    "tpu.trace_stop"() : () -> ()
    %cst_47 = arith.constant dense<0xFF800000> : vector<8x1xf32>
    %98 = vector.multi_reduction <maximumf>, %97, %cst_47 [2] : vector<8x1x8xf32> to vector<8x1xf32>
    %99 = vector.shape_cast %98 : vector<8x1xf32> to vector<8x1x1xf32>
    %100 = vector.broadcast %99 : vector<8x1x1xf32> to vector<8x1x8xf32>
    %101 = arith.subf %97, %100 : vector<8x1x8xf32>
    %102 = math.exp %101 : vector<8x1x8xf32>
    %cst_48 = arith.constant dense<0.000000e+00> : vector<8x1xf32>
    %103 = vector.multi_reduction <add>, %102, %cst_48 [2] : vector<8x1x8xf32> to vector<8x1xf32>
    %104 = vector.shape_cast %103 : vector<8x1xf32> to vector<8x1x1xf32>
    %105 = tpu.reciprocal %104 {approx = true} : vector<8x1x1xf32> -> vector<8x1x1xf32>
    %106 = vector.broadcast %105 : vector<8x1x1xf32> to vector<8x1x8xf32>
    %107 = arith.mulf %102, %106 : vector<8x1x8xf32>
    %108 = arith.truncf %107 : vector<8x1x8xf32> to vector<8x1x8xbf16>
    "tpu.trace_start"() <{level = 10 : i32, message = "bqs,bsh->bqh"}> : () -> ()
    %cst_49 = arith.constant dense<0.000000e+00> : vector<8x1x128xf32>
    %109 = tpu.matmul %108, %3, %cst_49 {dimension_numbers = #tpu.dot_dimension_numbers<[2], [1], [1], [2], [0, 0, 0, 1, 1, 2], [0], [0]>} : vector<8x1x8xbf16>, vector<8x8x128xbf16>, vector<8x1x128xf32> -> vector<8x1x128xf32>
    "tpu.trace_stop"() : () -> ()
    %110 = vector.shape_cast %109 : vector<8x1x128xf32> to vector<8x128xf32>
    %111 = arith.truncf %110 : vector<8x128xf32> to vector<8x128xbf16>
    %c0_50 = arith.constant 0 : index
    %c0_51 = arith.constant 0 : index
    %112 = vector.load %arg10[%c0_50, %c0_51] : memref<128x128xbf16, #tpu.memory_space<vmem>>, vector<128x128xbf16>
    %cst_52 = arith.constant dense<0.000000e+00> : vector<8x128xf32>
    %113 = tpu.matmul %111, %112, %cst_52 {dimension_numbers = #tpu.dot_dimension_numbers<[1], [0], [0], [1], [0, 0, 1, 1], [], []>} : vector<8x128xbf16>, vector<128x128xbf16>, vector<8x128xf32> -> vector<8x128xf32>
    %c0_53 = arith.constant 0 : index
    %c0_54 = arith.constant 0 : index
    %114 = vector.load %arg11[%c0_53, %c0_54] : memref<128x128xbf16, #tpu.memory_space<vmem>>, vector<128x128xbf16>
    %cst_55 = arith.constant dense<0.000000e+00> : vector<8x128xf32>
    %115 = tpu.matmul %92, %114, %cst_55 {dimension_numbers = #tpu.dot_dimension_numbers<[1], [0], [0], [1], [0, 0, 1, 1], [], []>} : vector<8x128xbf16>, vector<128x128xbf16>, vector<8x128xf32> -> vector<8x128xf32>
    %116 = arith.addf %113, %115 : vector<8x128xf32>
    %117 = math.tanh %116 : vector<8x128xf32>
    %c0_56 = arith.constant 0 : index
    %c0_57 = arith.constant 0 : index
    %c0_58 = arith.constant 0 : index
    %118 = vector.load %arg12[%c0_56, %c0_57, %c0_58] : memref<4x8x128xf32, #tpu.memory_space<vmem>>, vector<1x8x128xf32>
    %119 = vector.shape_cast %118 : vector<1x8x128xf32> to vector<8x128xf32>
    %120 = vector.shape_cast %117 : vector<8x128xf32> to vector<1x8x128xf32>
    tpu.vector_store %arg12[%c0_56, %c0_57, %c0_58], %120 {strides = array<i32>} : memref<4x8x128xf32, #tpu.memory_space<vmem>>, vector<1x8x128xf32>,
    %c0_59 = arith.constant 0 : index
    %c0_60 = arith.constant 0 : index
    %c0_61 = arith.constant 0 : index
    %121 = vector.load %arg13[%c0_59, %c0_60, %c0_61] : memref<2x8x128xf32, #tpu.memory_space<vmem>>, vector<1x8x128xf32>
    %122 = vector.shape_cast %121 : vector<1x8x128xf32> to vector<8x128xf32>
    %c1_62 = arith.constant 1 : index
    %c0_63 = arith.constant 0 : index
    %c0_64 = arith.constant 0 : index
    %123 = vector.load %arg2[%c1_62, %c0_63, %c0_64] : memref<4x8x384xf32, #tpu.memory_space<vmem>>, vector<1x8x384xf32>
    %124 = vector.shape_cast %123 : vector<1x8x384xf32> to vector<8x384xf32>
    %125 = arith.truncf %122 : vector<8x128xf32> to vector<8x128xbf16>
    %c0_65 = arith.constant 0 : index
    %c0_66 = arith.constant 0 : index
    %c0_67 = arith.constant 0 : index
    %126 = vector.load %arg7[%c0_65, %c0_66, %c0_67] : memref<2x128x384xbf16, #tpu.memory_space<vmem>>, vector<1x128x384xbf16>
    %127 = vector.shape_cast %126 : vector<1x128x384xbf16> to vector<128x384xbf16>
    %cst_68 = arith.constant dense<0.000000e+00> : vector<8x384xf32>
    %128 = tpu.matmul %125, %127, %cst_68 {dimension_numbers = #tpu.dot_dimension_numbers<[1], [0], [0], [1], [0, 0, 1, 1], [], []>} : vector<8x128xbf16>, vector<128x384xbf16>, vector<8x384xf32> -> vector<8x384xf32>
    %c0_69 = arith.constant 0 : index
    %c0_70 = arith.constant 0 : index
    %c0_71 = arith.constant 0 : index
    %129 = vector.load %arg8[%c0_69, %c0_70, %c0_71] : memref<2x1x384xf32, #tpu.memory_space<vmem>>, vector<1x1x384xf32>
    %130 = vector.shape_cast %129 : vector<1x1x384xf32> to vector<1x384xf32>
    %131 = vector.broadcast %130 : vector<1x384xf32> to vector<8x384xf32>
    %132 = arith.addf %128, %131 : vector<8x384xf32>
    %133 = vector.extract_strided_slice %124 {offsets = [0, 0], sizes = [8, 128], strides = [1, 1]} : vector<8x384xf32> to vector<8x128xf32>
    %134 = vector.extract_strided_slice %132 {offsets = [0, 0], sizes = [8, 128], strides = [1, 1]} : vector<8x384xf32> to vector<8x128xf32>
    %135 = arith.addf %133, %134 : vector<8x128xf32>
    %136 = arith.negf %135 : vector<8x128xf32>
    %137 = math.exp %136 : vector<8x128xf32>
    %cst_72 = arith.constant 1.000000e+00 : f32
    %138 = vector.broadcast %cst_72 : f32 to vector<8x128xf32>
    %139 = arith.addf %138, %137 : vector<8x128xf32>
    %140 = arith.divf %138, %139 : vector<8x128xf32>
    %141 = vector.extract_strided_slice %124 {offsets = [0, 128], sizes = [8, 128], strides = [1, 1]} : vector<8x384xf32> to vector<8x128xf32>
    %142 = vector.extract_strided_slice %132 {offsets = [0, 128], sizes = [8, 128], strides = [1, 1]} : vector<8x384xf32> to vector<8x128xf32>
    %143 = arith.addf %141, %142 : vector<8x128xf32>
    %144 = arith.negf %143 : vector<8x128xf32>
    %145 = math.exp %144 : vector<8x128xf32>
    %cst_73 = arith.constant 1.000000e+00 : f32
    %146 = vector.broadcast %cst_73 : f32 to vector<8x128xf32>
    %147 = arith.addf %146, %145 : vector<8x128xf32>
    %148 = arith.divf %146, %147 : vector<8x128xf32>
    %149 = vector.extract_strided_slice %124 {offsets = [0, 256], sizes = [8, 128], strides = [1, 1]} : vector<8x384xf32> to vector<8x128xf32>
    %150 = vector.extract_strided_slice %132 {offsets = [0, 256], sizes = [8, 128], strides = [1, 1]} : vector<8x384xf32> to vector<8x128xf32>
    %151 = arith.mulf %140, %150 : vector<8x128xf32>
    %152 = arith.addf %149, %151 : vector<8x128xf32>
    %153 = math.tanh %152 : vector<8x128xf32>
    %cst_74 = arith.constant 1.000000e+00 : f32
    %154 = vector.broadcast %cst_74 : f32 to vector<8x128xf32>
    %155 = arith.subf %154, %148 : vector<8x128xf32>
    %156 = arith.mulf %155, %153 : vector<8x128xf32>
    %157 = arith.mulf %148, %122 : vector<8x128xf32>
    %158 = arith.addf %156, %157 : vector<8x128xf32>
    %c0_75 = arith.constant 0 : index
    %c0_76 = arith.constant 0 : index
    %c0_77 = arith.constant 0 : index
    %159 = vector.load %arg13[%c0_75, %c0_76, %c0_77] : memref<2x8x128xf32, #tpu.memory_space<vmem>>, vector<1x8x128xf32>
    %160 = vector.shape_cast %159 : vector<1x8x128xf32> to vector<8x128xf32>
    %161 = vector.shape_cast %158 : vector<8x128xf32> to vector<1x8x128xf32>
    tpu.vector_store %arg13[%c0_75, %c0_76, %c0_77], %161 {strides = array<i32>} : memref<2x8x128xf32, #tpu.memory_space<vmem>>, vector<1x8x128xf32>,
    %c1_78 = arith.constant 1 : index
    %c0_79 = arith.constant 0 : index
    %c0_80 = arith.constant 0 : index
    %162 = vector.load %arg13[%c1_78, %c0_79, %c0_80] : memref<2x8x128xf32, #tpu.memory_space<vmem>>, vector<1x8x128xf32>
    %163 = vector.shape_cast %162 : vector<1x8x128xf32> to vector<8x128xf32>
    %164 = arith.truncf %158 : vector<8x128xf32> to vector<8x128xbf16>
    %c0_81 = arith.constant 0 : index
    %c0_82 = arith.constant 0 : index
    %c0_83 = arith.constant 0 : index
    %165 = vector.load %arg5[%c0_81, %c0_82, %c0_83] : memref<1x128x384xbf16, #tpu.memory_space<vmem>>, vector<1x128x384xbf16>
    %166 = vector.shape_cast %165 : vector<1x128x384xbf16> to vector<128x384xbf16>
    %cst_84 = arith.constant dense<0.000000e+00> : vector<8x384xf32>
    %167 = tpu.matmul %164, %166, %cst_84 {dimension_numbers = #tpu.dot_dimension_numbers<[1], [0], [0], [1], [0, 0, 1, 1], [], []>} : vector<8x128xbf16>, vector<128x384xbf16>, vector<8x384xf32> -> vector<8x384xf32>
    %c0_85 = arith.constant 0 : index
    %c0_86 = arith.constant 0 : index
    %c0_87 = arith.constant 0 : index
    %168 = vector.load %arg6[%c0_85, %c0_86, %c0_87] : memref<1x1x384xf32, #tpu.memory_space<vmem>>, vector<1x1x384xf32>
    %169 = vector.shape_cast %168 : vector<1x1x384xf32> to vector<1x384xf32>
    %170 = vector.broadcast %169 : vector<1x384xf32> to vector<8x384xf32>
    %171 = arith.addf %167, %170 : vector<8x384xf32>
    %172 = arith.truncf %163 : vector<8x128xf32> to vector<8x128xbf16>
    %c1_88 = arith.constant 1 : index
    %c0_89 = arith.constant 0 : index
    %c0_90 = arith.constant 0 : index
    %173 = vector.load %arg7[%c1_88, %c0_89, %c0_90] : memref<2x128x384xbf16, #tpu.memory_space<vmem>>, vector<1x128x384xbf16>
    %174 = vector.shape_cast %173 : vector<1x128x384xbf16> to vector<128x384xbf16>
    %cst_91 = arith.constant dense<0.000000e+00> : vector<8x384xf32>
    %175 = tpu.matmul %172, %174, %cst_91 {dimension_numbers = #tpu.dot_dimension_numbers<[1], [0], [0], [1], [0, 0, 1, 1], [], []>} : vector<8x128xbf16>, vector<128x384xbf16>, vector<8x384xf32> -> vector<8x384xf32>
    %c1_92 = arith.constant 1 : index
    %c0_93 = arith.constant 0 : index
    %c0_94 = arith.constant 0 : index
    %176 = vector.load %arg8[%c1_92, %c0_93, %c0_94] : memref<2x1x384xf32, #tpu.memory_space<vmem>>, vector<1x1x384xf32>
    %177 = vector.shape_cast %176 : vector<1x1x384xf32> to vector<1x384xf32>
    %178 = vector.broadcast %177 : vector<1x384xf32> to vector<8x384xf32>
    %179 = arith.addf %175, %178 : vector<8x384xf32>
    %180 = vector.extract_strided_slice %171 {offsets = [0, 0], sizes = [8, 128], strides = [1, 1]} : vector<8x384xf32> to vector<8x128xf32>
    %181 = vector.extract_strided_slice %179 {offsets = [0, 0], sizes = [8, 128], strides = [1, 1]} : vector<8x384xf32> to vector<8x128xf32>
    %182 = arith.addf %180, %181 : vector<8x128xf32>
    %183 = arith.negf %182 : vector<8x128xf32>
    %184 = math.exp %183 : vector<8x128xf32>
    %cst_95 = arith.constant 1.000000e+00 : f32
    %185 = vector.broadcast %cst_95 : f32 to vector<8x128xf32>
    %186 = arith.addf %185, %184 : vector<8x128xf32>
    %187 = arith.divf %185, %186 : vector<8x128xf32>
    %188 = vector.extract_strided_slice %171 {offsets = [0, 128], sizes = [8, 128], strides = [1, 1]} : vector<8x384xf32> to vector<8x128xf32>
    %189 = vector.extract_strided_slice %179 {offsets = [0, 128], sizes = [8, 128], strides = [1, 1]} : vector<8x384xf32> to vector<8x128xf32>
    %190 = arith.addf %188, %189 : vector<8x128xf32>
    %191 = arith.negf %190 : vector<8x128xf32>
    %192 = math.exp %191 : vector<8x128xf32>
    %cst_96 = arith.constant 1.000000e+00 : f32
    %193 = vector.broadcast %cst_96 : f32 to vector<8x128xf32>
    %194 = arith.addf %193, %192 : vector<8x128xf32>
    %195 = arith.divf %193, %194 : vector<8x128xf32>
    %196 = vector.extract_strided_slice %171 {offsets = [0, 256], sizes = [8, 128], strides = [1, 1]} : vector<8x384xf32> to vector<8x128xf32>
    %197 = vector.extract_strided_slice %179 {offsets = [0, 256], sizes = [8, 128], strides = [1, 1]} : vector<8x384xf32> to vector<8x128xf32>
    %198 = arith.mulf %187, %197 : vector<8x128xf32>
    %199 = arith.addf %196, %198 : vector<8x128xf32>
    %200 = math.tanh %199 : vector<8x128xf32>
    %cst_97 = arith.constant 1.000000e+00 : f32
    %201 = vector.broadcast %cst_97 : f32 to vector<8x128xf32>
    %202 = arith.subf %201, %195 : vector<8x128xf32>
    %203 = arith.mulf %202, %200 : vector<8x128xf32>
    %204 = arith.mulf %195, %163 : vector<8x128xf32>
    %205 = arith.addf %203, %204 : vector<8x128xf32>
    %c1_98 = arith.constant 1 : index
    %c0_99 = arith.constant 0 : index
    %c0_100 = arith.constant 0 : index
    %206 = vector.load %arg13[%c1_98, %c0_99, %c0_100] : memref<2x8x128xf32, #tpu.memory_space<vmem>>, vector<1x8x128xf32>
    %207 = vector.shape_cast %206 : vector<1x8x128xf32> to vector<8x128xf32>
    %208 = vector.shape_cast %205 : vector<8x128xf32> to vector<1x8x128xf32>
    tpu.vector_store %arg13[%c1_98, %c0_99, %c0_100], %208 {strides = array<i32>} : memref<2x8x128xf32, #tpu.memory_space<vmem>>, vector<1x8x128xf32>,
    %209 = arith.truncf %205 : vector<8x128xf32> to vector<8x128xbf16>
    %c0_101 = arith.constant 0 : index
    %c0_102 = arith.constant 0 : index
    %210 = vector.load %arg9[%c0_101, %c0_102] : memref<128x128xbf16, #tpu.memory_space<vmem>>, vector<128x128xbf16>
    %cst_103 = arith.constant dense<0.000000e+00> : vector<8x128xf32>
    %211 = tpu.matmul %209, %210, %cst_103 {dimension_numbers = #tpu.dot_dimension_numbers<[1], [0], [0], [1], [0, 0, 1, 1], [], []>} : vector<8x128xbf16>, vector<128x128xbf16>, vector<8x128xf32> -> vector<8x128xf32>
    %212 = vector.shape_cast %211 : vector<8x128xf32> to vector<8x1x128xf32>
    %213 = arith.truncf %212 : vector<8x1x128xf32> to vector<8x1x128xbf16>
    "tpu.trace_start"() <{level = 10 : i32, message = "bqh,bsh->bqs"}> : () -> ()
    %cst_104 = arith.constant dense<0.000000e+00> : vector<8x1x8xf32>
    %214 = tpu.matmul %213, %3, %cst_104 {dimension_numbers = #tpu.dot_dimension_numbers<[2], [2], [1], [1], [0, 0, 0, 1, 1, 1], [0], [0]>} : vector<8x1x128xbf16>, vector<8x8x128xbf16>, vector<8x1x8xf32> -> vector<8x1x8xf32>
    "tpu.trace_stop"() : () -> ()
    %cst_105 = arith.constant dense<0xFF800000> : vector<8x1xf32>
    %215 = vector.multi_reduction <maximumf>, %214, %cst_105 [2] : vector<8x1x8xf32> to vector<8x1xf32>
    %216 = vector.shape_cast %215 : vector<8x1xf32> to vector<8x1x1xf32>
    %217 = vector.broadcast %216 : vector<8x1x1xf32> to vector<8x1x8xf32>
    %218 = arith.subf %214, %217 : vector<8x1x8xf32>
    %219 = math.exp %218 : vector<8x1x8xf32>
    %cst_106 = arith.constant dense<0.000000e+00> : vector<8x1xf32>
    %220 = vector.multi_reduction <add>, %219, %cst_106 [2] : vector<8x1x8xf32> to vector<8x1xf32>
    %221 = vector.shape_cast %220 : vector<8x1xf32> to vector<8x1x1xf32>
    %222 = tpu.reciprocal %221 {approx = true} : vector<8x1x1xf32> -> vector<8x1x1xf32>
    %223 = vector.broadcast %222 : vector<8x1x1xf32> to vector<8x1x8xf32>
    %224 = arith.mulf %219, %223 : vector<8x1x8xf32>
    %225 = arith.truncf %224 : vector<8x1x8xf32> to vector<8x1x8xbf16>
    "tpu.trace_start"() <{level = 10 : i32, message = "bqs,bsh->bqh"}> : () -> ()
    %cst_107 = arith.constant dense<0.000000e+00> : vector<8x1x128xf32>
    %226 = tpu.matmul %225, %3, %cst_107 {dimension_numbers = #tpu.dot_dimension_numbers<[2], [1], [1], [2], [0, 0, 0, 1, 1, 2], [0], [0]>} : vector<8x1x8xbf16>, vector<8x8x128xbf16>, vector<8x1x128xf32> -> vector<8x1x128xf32>
    "tpu.trace_stop"() : () -> ()
    %227 = vector.shape_cast %226 : vector<8x1x128xf32> to vector<8x128xf32>
    %228 = arith.truncf %227 : vector<8x128xf32> to vector<8x128xbf16>
    %c0_108 = arith.constant 0 : index
    %c0_109 = arith.constant 0 : index
    %229 = vector.load %arg10[%c0_108, %c0_109] : memref<128x128xbf16, #tpu.memory_space<vmem>>, vector<128x128xbf16>
    %cst_110 = arith.constant dense<0.000000e+00> : vector<8x128xf32>
    %230 = tpu.matmul %228, %229, %cst_110 {dimension_numbers = #tpu.dot_dimension_numbers<[1], [0], [0], [1], [0, 0, 1, 1], [], []>} : vector<8x128xbf16>, vector<128x128xbf16>, vector<8x128xf32> -> vector<8x128xf32>
    %c0_111 = arith.constant 0 : index
    %c0_112 = arith.constant 0 : index
    %231 = vector.load %arg11[%c0_111, %c0_112] : memref<128x128xbf16, #tpu.memory_space<vmem>>, vector<128x128xbf16>
    %cst_113 = arith.constant dense<0.000000e+00> : vector<8x128xf32>
    %232 = tpu.matmul %209, %231, %cst_113 {dimension_numbers = #tpu.dot_dimension_numbers<[1], [0], [0], [1], [0, 0, 1, 1], [], []>} : vector<8x128xbf16>, vector<128x128xbf16>, vector<8x128xf32> -> vector<8x128xf32>
    %233 = arith.addf %230, %232 : vector<8x128xf32>
    %234 = math.tanh %233 : vector<8x128xf32>
    %c1_114 = arith.constant 1 : index
    %c0_115 = arith.constant 0 : index
    %c0_116 = arith.constant 0 : index
    %235 = vector.load %arg12[%c1_114, %c0_115, %c0_116] : memref<4x8x128xf32, #tpu.memory_space<vmem>>, vector<1x8x128xf32>
    %236 = vector.shape_cast %235 : vector<1x8x128xf32> to vector<8x128xf32>
    %237 = vector.shape_cast %234 : vector<8x128xf32> to vector<1x8x128xf32>
    tpu.vector_store %arg12[%c1_114, %c0_115, %c0_116], %237 {strides = array<i32>} : memref<4x8x128xf32, #tpu.memory_space<vmem>>, vector<1x8x128xf32>,
    %c0_117 = arith.constant 0 : index
    %c0_118 = arith.constant 0 : index
    %c0_119 = arith.constant 0 : index
    %238 = vector.load %arg13[%c0_117, %c0_118, %c0_119] : memref<2x8x128xf32, #tpu.memory_space<vmem>>, vector<1x8x128xf32>
    %239 = vector.shape_cast %238 : vector<1x8x128xf32> to vector<8x128xf32>
    %c2 = arith.constant 2 : index
    %c0_120 = arith.constant 0 : index
    %c0_121 = arith.constant 0 : index
    %240 = vector.load %arg2[%c2, %c0_120, %c0_121] : memref<4x8x384xf32, #tpu.memory_space<vmem>>, vector<1x8x384xf32>
    %241 = vector.shape_cast %240 : vector<1x8x384xf32> to vector<8x384xf32>
    %242 = arith.truncf %239 : vector<8x128xf32> to vector<8x128xbf16>
    %c0_122 = arith.constant 0 : index
    %c0_123 = arith.constant 0 : index
    %c0_124 = arith.constant 0 : index
    %243 = vector.load %arg7[%c0_122, %c0_123, %c0_124] : memref<2x128x384xbf16, #tpu.memory_space<vmem>>, vector<1x128x384xbf16>
    %244 = vector.shape_cast %243 : vector<1x128x384xbf16> to vector<128x384xbf16>
    %cst_125 = arith.constant dense<0.000000e+00> : vector<8x384xf32>
    %245 = tpu.matmul %242, %244, %cst_125 {dimension_numbers = #tpu.dot_dimension_numbers<[1], [0], [0], [1], [0, 0, 1, 1], [], []>} : vector<8x128xbf16>, vector<128x384xbf16>, vector<8x384xf32> -> vector<8x384xf32>
    %c0_126 = arith.constant 0 : index
    %c0_127 = arith.constant 0 : index
    %c0_128 = arith.constant 0 : index
    %246 = vector.load %arg8[%c0_126, %c0_127, %c0_128] : memref<2x1x384xf32, #tpu.memory_space<vmem>>, vector<1x1x384xf32>
    %247 = vector.shape_cast %246 : vector<1x1x384xf32> to vector<1x384xf32>
    %248 = vector.broadcast %247 : vector<1x384xf32> to vector<8x384xf32>
    %249 = arith.addf %245, %248 : vector<8x384xf32>
    %250 = vector.extract_strided_slice %241 {offsets = [0, 0], sizes = [8, 128], strides = [1, 1]} : vector<8x384xf32> to vector<8x128xf32>
    %251 = vector.extract_strided_slice %249 {offsets = [0, 0], sizes = [8, 128], strides = [1, 1]} : vector<8x384xf32> to vector<8x128xf32>
    %252 = arith.addf %250, %251 : vector<8x128xf32>
    %253 = arith.negf %252 : vector<8x128xf32>
    %254 = math.exp %253 : vector<8x128xf32>
    %cst_129 = arith.constant 1.000000e+00 : f32
    %255 = vector.broadcast %cst_129 : f32 to vector<8x128xf32>
    %256 = arith.addf %255, %254 : vector<8x128xf32>
    %257 = arith.divf %255, %256 : vector<8x128xf32>
    %258 = vector.extract_strided_slice %241 {offsets = [0, 128], sizes = [8, 128], strides = [1, 1]} : vector<8x384xf32> to vector<8x128xf32>
    %259 = vector.extract_strided_slice %249 {offsets = [0, 128], sizes = [8, 128], strides = [1, 1]} : vector<8x384xf32> to vector<8x128xf32>
    %260 = arith.addf %258, %259 : vector<8x128xf32>
    %261 = arith.negf %260 : vector<8x128xf32>
    %262 = math.exp %261 : vector<8x128xf32>
    %cst_130 = arith.constant 1.000000e+00 : f32
    %263 = vector.broadcast %cst_130 : f32 to vector<8x128xf32>
    %264 = arith.addf %263, %262 : vector<8x128xf32>
    %265 = arith.divf %263, %264 : vector<8x128xf32>
    %266 = vector.extract_strided_slice %241 {offsets = [0, 256], sizes = [8, 128], strides = [1, 1]} : vector<8x384xf32> to vector<8x128xf32>
    %267 = vector.extract_strided_slice %249 {offsets = [0, 256], sizes = [8, 128], strides = [1, 1]} : vector<8x384xf32> to vector<8x128xf32>
    %268 = arith.mulf %257, %267 : vector<8x128xf32>
    %269 = arith.addf %266, %268 : vector<8x128xf32>
    %270 = math.tanh %269 : vector<8x128xf32>
    %cst_131 = arith.constant 1.000000e+00 : f32
    %271 = vector.broadcast %cst_131 : f32 to vector<8x128xf32>
    %272 = arith.subf %271, %265 : vector<8x128xf32>
    %273 = arith.mulf %272, %270 : vector<8x128xf32>
    %274 = arith.mulf %265, %239 : vector<8x128xf32>
    %275 = arith.addf %273, %274 : vector<8x128xf32>
    %c0_132 = arith.constant 0 : index
    %c0_133 = arith.constant 0 : index
    %c0_134 = arith.constant 0 : index
    %276 = vector.load %arg13[%c0_132, %c0_133, %c0_134] : memref<2x8x128xf32, #tpu.memory_space<vmem>>, vector<1x8x128xf32>
    %277 = vector.shape_cast %276 : vector<1x8x128xf32> to vector<8x128xf32>
    %278 = vector.shape_cast %275 : vector<8x128xf32> to vector<1x8x128xf32>
    tpu.vector_store %arg13[%c0_132, %c0_133, %c0_134], %278 {strides = array<i32>} : memref<2x8x128xf32, #tpu.memory_space<vmem>>, vector<1x8x128xf32>,
    %c1_135 = arith.constant 1 : index
    %c0_136 = arith.constant 0 : index
    %c0_137 = arith.constant 0 : index
    %279 = vector.load %arg13[%c1_135, %c0_136, %c0_137] : memref<2x8x128xf32, #tpu.memory_space<vmem>>, vector<1x8x128xf32>
    %280 = vector.shape_cast %279 : vector<1x8x128xf32> to vector<8x128xf32>
    %281 = arith.truncf %275 : vector<8x128xf32> to vector<8x128xbf16>
    %c0_138 = arith.constant 0 : index
    %c0_139 = arith.constant 0 : index
    %c0_140 = arith.constant 0 : index
    %282 = vector.load %arg5[%c0_138, %c0_139, %c0_140] : memref<1x128x384xbf16, #tpu.memory_space<vmem>>, vector<1x128x384xbf16>
    %283 = vector.shape_cast %282 : vector<1x128x384xbf16> to vector<128x384xbf16>
    %cst_141 = arith.constant dense<0.000000e+00> : vector<8x384xf32>
    %284 = tpu.matmul %281, %283, %cst_141 {dimension_numbers = #tpu.dot_dimension_numbers<[1], [0], [0], [1], [0, 0, 1, 1], [], []>} : vector<8x128xbf16>, vector<128x384xbf16>, vector<8x384xf32> -> vector<8x384xf32>
    %c0_142 = arith.constant 0 : index
    %c0_143 = arith.constant 0 : index
    %c0_144 = arith.constant 0 : index
    %285 = vector.load %arg6[%c0_142, %c0_143, %c0_144] : memref<1x1x384xf32, #tpu.memory_space<vmem>>, vector<1x1x384xf32>
    %286 = vector.shape_cast %285 : vector<1x1x384xf32> to vector<1x384xf32>
    %287 = vector.broadcast %286 : vector<1x384xf32> to vector<8x384xf32>
    %288 = arith.addf %284, %287 : vector<8x384xf32>
    %289 = arith.truncf %280 : vector<8x128xf32> to vector<8x128xbf16>
    %c1_145 = arith.constant 1 : index
    %c0_146 = arith.constant 0 : index
    %c0_147 = arith.constant 0 : index
    %290 = vector.load %arg7[%c1_145, %c0_146, %c0_147] : memref<2x128x384xbf16, #tpu.memory_space<vmem>>, vector<1x128x384xbf16>
    %291 = vector.shape_cast %290 : vector<1x128x384xbf16> to vector<128x384xbf16>
    %cst_148 = arith.constant dense<0.000000e+00> : vector<8x384xf32>
    %292 = tpu.matmul %289, %291, %cst_148 {dimension_numbers = #tpu.dot_dimension_numbers<[1], [0], [0], [1], [0, 0, 1, 1], [], []>} : vector<8x128xbf16>, vector<128x384xbf16>, vector<8x384xf32> -> vector<8x384xf32>
    %c1_149 = arith.constant 1 : index
    %c0_150 = arith.constant 0 : index
    %c0_151 = arith.constant 0 : index
    %293 = vector.load %arg8[%c1_149, %c0_150, %c0_151] : memref<2x1x384xf32, #tpu.memory_space<vmem>>, vector<1x1x384xf32>
    %294 = vector.shape_cast %293 : vector<1x1x384xf32> to vector<1x384xf32>
    %295 = vector.broadcast %294 : vector<1x384xf32> to vector<8x384xf32>
    %296 = arith.addf %292, %295 : vector<8x384xf32>
    %297 = vector.extract_strided_slice %288 {offsets = [0, 0], sizes = [8, 128], strides = [1, 1]} : vector<8x384xf32> to vector<8x128xf32>
    %298 = vector.extract_strided_slice %296 {offsets = [0, 0], sizes = [8, 128], strides = [1, 1]} : vector<8x384xf32> to vector<8x128xf32>
    %299 = arith.addf %297, %298 : vector<8x128xf32>
    %300 = arith.negf %299 : vector<8x128xf32>
    %301 = math.exp %300 : vector<8x128xf32>
    %cst_152 = arith.constant 1.000000e+00 : f32
    %302 = vector.broadcast %cst_152 : f32 to vector<8x128xf32>
    %303 = arith.addf %302, %301 : vector<8x128xf32>
    %304 = arith.divf %302, %303 : vector<8x128xf32>
    %305 = vector.extract_strided_slice %288 {offsets = [0, 128], sizes = [8, 128], strides = [1, 1]} : vector<8x384xf32> to vector<8x128xf32>
    %306 = vector.extract_strided_slice %296 {offsets = [0, 128], sizes = [8, 128], strides = [1, 1]} : vector<8x384xf32> to vector<8x128xf32>
    %307 = arith.addf %305, %306 : vector<8x128xf32>
    %308 = arith.negf %307 : vector<8x128xf32>
    %309 = math.exp %308 : vector<8x128xf32>
    %cst_153 = arith.constant 1.000000e+00 : f32
    %310 = vector.broadcast %cst_153 : f32 to vector<8x128xf32>
    %311 = arith.addf %310, %309 : vector<8x128xf32>
    %312 = arith.divf %310, %311 : vector<8x128xf32>
    %313 = vector.extract_strided_slice %288 {offsets = [0, 256], sizes = [8, 128], strides = [1, 1]} : vector<8x384xf32> to vector<8x128xf32>
    %314 = vector.extract_strided_slice %296 {offsets = [0, 256], sizes = [8, 128], strides = [1, 1]} : vector<8x384xf32> to vector<8x128xf32>
    %315 = arith.mulf %304, %314 : vector<8x128xf32>
    %316 = arith.addf %313, %315 : vector<8x128xf32>
    %317 = math.tanh %316 : vector<8x128xf32>
    %cst_154 = arith.constant 1.000000e+00 : f32
    %318 = vector.broadcast %cst_154 : f32 to vector<8x128xf32>
    %319 = arith.subf %318, %312 : vector<8x128xf32>
    %320 = arith.mulf %319, %317 : vector<8x128xf32>
    %321 = arith.mulf %312, %280 : vector<8x128xf32>
    %322 = arith.addf %320, %321 : vector<8x128xf32>
    %c1_155 = arith.constant 1 : index
    %c0_156 = arith.constant 0 : index
    %c0_157 = arith.constant 0 : index
    %323 = vector.load %arg13[%c1_155, %c0_156, %c0_157] : memref<2x8x128xf32, #tpu.memory_space<vmem>>, vector<1x8x128xf32>
    %324 = vector.shape_cast %323 : vector<1x8x128xf32> to vector<8x128xf32>
    %325 = vector.shape_cast %322 : vector<8x128xf32> to vector<1x8x128xf32>
    tpu.vector_store %arg13[%c1_155, %c0_156, %c0_157], %325 {strides = array<i32>} : memref<2x8x128xf32, #tpu.memory_space<vmem>>, vector<1x8x128xf32>,
    %326 = arith.truncf %322 : vector<8x128xf32> to vector<8x128xbf16>
    %c0_158 = arith.constant 0 : index
    %c0_159 = arith.constant 0 : index
    %327 = vector.load %arg9[%c0_158, %c0_159] : memref<128x128xbf16, #tpu.memory_space<vmem>>, vector<128x128xbf16>
    %cst_160 = arith.constant dense<0.000000e+00> : vector<8x128xf32>
    %328 = tpu.matmul %326, %327, %cst_160 {dimension_numbers = #tpu.dot_dimension_numbers<[1], [0], [0], [1], [0, 0, 1, 1], [], []>} : vector<8x128xbf16>, vector<128x128xbf16>, vector<8x128xf32> -> vector<8x128xf32>
    %329 = vector.shape_cast %328 : vector<8x128xf32> to vector<8x1x128xf32>
    %330 = arith.truncf %329 : vector<8x1x128xf32> to vector<8x1x128xbf16>
    "tpu.trace_start"() <{level = 10 : i32, message = "bqh,bsh->bqs"}> : () -> ()
    %cst_161 = arith.constant dense<0.000000e+00> : vector<8x1x8xf32>
    %331 = tpu.matmul %330, %3, %cst_161 {dimension_numbers = #tpu.dot_dimension_numbers<[2], [2], [1], [1], [0, 0, 0, 1, 1, 1], [0], [0]>} : vector<8x1x128xbf16>, vector<8x8x128xbf16>, vector<8x1x8xf32> -> vector<8x1x8xf32>
    "tpu.trace_stop"() : () -> ()
    %cst_162 = arith.constant dense<0xFF800000> : vector<8x1xf32>
    %332 = vector.multi_reduction <maximumf>, %331, %cst_162 [2] : vector<8x1x8xf32> to vector<8x1xf32>
    %333 = vector.shape_cast %332 : vector<8x1xf32> to vector<8x1x1xf32>
    %334 = vector.broadcast %333 : vector<8x1x1xf32> to vector<8x1x8xf32>
    %335 = arith.subf %331, %334 : vector<8x1x8xf32>
    %336 = math.exp %335 : vector<8x1x8xf32>
    %cst_163 = arith.constant dense<0.000000e+00> : vector<8x1xf32>
    %337 = vector.multi_reduction <add>, %336, %cst_163 [2] : vector<8x1x8xf32> to vector<8x1xf32>
    %338 = vector.shape_cast %337 : vector<8x1xf32> to vector<8x1x1xf32>
    %339 = tpu.reciprocal %338 {approx = true} : vector<8x1x1xf32> -> vector<8x1x1xf32>
    %340 = vector.broadcast %339 : vector<8x1x1xf32> to vector<8x1x8xf32>
    %341 = arith.mulf %336, %340 : vector<8x1x8xf32>
    %342 = arith.truncf %341 : vector<8x1x8xf32> to vector<8x1x8xbf16>
    "tpu.trace_start"() <{level = 10 : i32, message = "bqs,bsh->bqh"}> : () -> ()
    %cst_164 = arith.constant dense<0.000000e+00> : vector<8x1x128xf32>
    %343 = tpu.matmul %342, %3, %cst_164 {dimension_numbers = #tpu.dot_dimension_numbers<[2], [1], [1], [2], [0, 0, 0, 1, 1, 2], [0], [0]>} : vector<8x1x8xbf16>, vector<8x8x128xbf16>, vector<8x1x128xf32> -> vector<8x1x128xf32>
    "tpu.trace_stop"() : () -> ()
    %344 = vector.shape_cast %343 : vector<8x1x128xf32> to vector<8x128xf32>
    %345 = arith.truncf %344 : vector<8x128xf32> to vector<8x128xbf16>
    %c0_165 = arith.constant 0 : index
    %c0_166 = arith.constant 0 : index
    %346 = vector.load %arg10[%c0_165, %c0_166] : memref<128x128xbf16, #tpu.memory_space<vmem>>, vector<128x128xbf16>
    %cst_167 = arith.constant dense<0.000000e+00> : vector<8x128xf32>
    %347 = tpu.matmul %345, %346, %cst_167 {dimension_numbers = #tpu.dot_dimension_numbers<[1], [0], [0], [1], [0, 0, 1, 1], [], []>} : vector<8x128xbf16>, vector<128x128xbf16>, vector<8x128xf32> -> vector<8x128xf32>
    %c0_168 = arith.constant 0 : index
    %c0_169 = arith.constant 0 : index
    %348 = vector.load %arg11[%c0_168, %c0_169] : memref<128x128xbf16, #tpu.memory_space<vmem>>, vector<128x128xbf16>
    %cst_170 = arith.constant dense<0.000000e+00> : vector<8x128xf32>
    %349 = tpu.matmul %326, %348, %cst_170 {dimension_numbers = #tpu.dot_dimension_numbers<[1], [0], [0], [1], [0, 0, 1, 1], [], []>} : vector<8x128xbf16>, vector<128x128xbf16>, vector<8x128xf32> -> vector<8x128xf32>
    %350 = arith.addf %347, %349 : vector<8x128xf32>
    %351 = math.tanh %350 : vector<8x128xf32>
    %c2_171 = arith.constant 2 : index
    %c0_172 = arith.constant 0 : index
    %c0_173 = arith.constant 0 : index
    %352 = vector.load %arg12[%c2_171, %c0_172, %c0_173] : memref<4x8x128xf32, #tpu.memory_space<vmem>>, vector<1x8x128xf32>
    %353 = vector.shape_cast %352 : vector<1x8x128xf32> to vector<8x128xf32>
    %354 = vector.shape_cast %351 : vector<8x128xf32> to vector<1x8x128xf32>
    tpu.vector_store %arg12[%c2_171, %c0_172, %c0_173], %354 {strides = array<i32>} : memref<4x8x128xf32, #tpu.memory_space<vmem>>, vector<1x8x128xf32>,
    %c0_174 = arith.constant 0 : index
    %c0_175 = arith.constant 0 : index
    %c0_176 = arith.constant 0 : index
    %355 = vector.load %arg13[%c0_174, %c0_175, %c0_176] : memref<2x8x128xf32, #tpu.memory_space<vmem>>, vector<1x8x128xf32>
    %356 = vector.shape_cast %355 : vector<1x8x128xf32> to vector<8x128xf32>
    %c3 = arith.constant 3 : index
    %c0_177 = arith.constant 0 : index
    %c0_178 = arith.constant 0 : index
    %357 = vector.load %arg2[%c3, %c0_177, %c0_178] : memref<4x8x384xf32, #tpu.memory_space<vmem>>, vector<1x8x384xf32>
    %358 = vector.shape_cast %357 : vector<1x8x384xf32> to vector<8x384xf32>
    %359 = arith.truncf %356 : vector<8x128xf32> to vector<8x128xbf16>
    %c0_179 = arith.constant 0 : index
    %c0_180 = arith.constant 0 : index
    %c0_181 = arith.constant 0 : index
    %360 = vector.load %arg7[%c0_179, %c0_180, %c0_181] : memref<2x128x384xbf16, #tpu.memory_space<vmem>>, vector<1x128x384xbf16>
    %361 = vector.shape_cast %360 : vector<1x128x384xbf16> to vector<128x384xbf16>
    %cst_182 = arith.constant dense<0.000000e+00> : vector<8x384xf32>
    %362 = tpu.matmul %359, %361, %cst_182 {dimension_numbers = #tpu.dot_dimension_numbers<[1], [0], [0], [1], [0, 0, 1, 1], [], []>} : vector<8x128xbf16>, vector<128x384xbf16>, vector<8x384xf32> -> vector<8x384xf32>
    %c0_183 = arith.constant 0 : index
    %c0_184 = arith.constant 0 : index
    %c0_185 = arith.constant 0 : index
    %363 = vector.load %arg8[%c0_183, %c0_184, %c0_185] : memref<2x1x384xf32, #tpu.memory_space<vmem>>, vector<1x1x384xf32>
    %364 = vector.shape_cast %363 : vector<1x1x384xf32> to vector<1x384xf32>
    %365 = vector.broadcast %364 : vector<1x384xf32> to vector<8x384xf32>
    %366 = arith.addf %362, %365 : vector<8x384xf32>
    %367 = vector.extract_strided_slice %358 {offsets = [0, 0], sizes = [8, 128], strides = [1, 1]} : vector<8x384xf32> to vector<8x128xf32>
    %368 = vector.extract_strided_slice %366 {offsets = [0, 0], sizes = [8, 128], strides = [1, 1]} : vector<8x384xf32> to vector<8x128xf32>
    %369 = arith.addf %367, %368 : vector<8x128xf32>
    %370 = arith.negf %369 : vector<8x128xf32>
    %371 = math.exp %370 : vector<8x128xf32>
    %cst_186 = arith.constant 1.000000e+00 : f32
    %372 = vector.broadcast %cst_186 : f32 to vector<8x128xf32>
    %373 = arith.addf %372, %371 : vector<8x128xf32>
    %374 = arith.divf %372, %373 : vector<8x128xf32>
    %375 = vector.extract_strided_slice %358 {offsets = [0, 128], sizes = [8, 128], strides = [1, 1]} : vector<8x384xf32> to vector<8x128xf32>
    %376 = vector.extract_strided_slice %366 {offsets = [0, 128], sizes = [8, 128], strides = [1, 1]} : vector<8x384xf32> to vector<8x128xf32>
    %377 = arith.addf %375, %376 : vector<8x128xf32>
    %378 = arith.negf %377 : vector<8x128xf32>
    %379 = math.exp %378 : vector<8x128xf32>
    %cst_187 = arith.constant 1.000000e+00 : f32
    %380 = vector.broadcast %cst_187 : f32 to vector<8x128xf32>
    %381 = arith.addf %380, %379 : vector<8x128xf32>
    %382 = arith.divf %380, %381 : vector<8x128xf32>
    %383 = vector.extract_strided_slice %358 {offsets = [0, 256], sizes = [8, 128], strides = [1, 1]} : vector<8x384xf32> to vector<8x128xf32>
    %384 = vector.extract_strided_slice %366 {offsets = [0, 256], sizes = [8, 128], strides = [1, 1]} : vector<8x384xf32> to vector<8x128xf32>
    %385 = arith.mulf %374, %384 : vector<8x128xf32>
    %386 = arith.addf %383, %385 : vector<8x128xf32>
    %387 = math.tanh %386 : vector<8x128xf32>
    %cst_188 = arith.constant 1.000000e+00 : f32
    %388 = vector.broadcast %cst_188 : f32 to vector<8x128xf32>
    %389 = arith.subf %388, %382 : vector<8x128xf32>
    %390 = arith.mulf %389, %387 : vector<8x128xf32>
    %391 = arith.mulf %382, %356 : vector<8x128xf32>
    %392 = arith.addf %390, %391 : vector<8x128xf32>
    %c0_189 = arith.constant 0 : index
    %c0_190 = arith.constant 0 : index
    %c0_191 = arith.constant 0 : index
    %393 = vector.load %arg13[%c0_189, %c0_190, %c0_191] : memref<2x8x128xf32, #tpu.memory_space<vmem>>, vector<1x8x128xf32>
    %394 = vector.shape_cast %393 : vector<1x8x128xf32> to vector<8x128xf32>
    %395 = vector.shape_cast %392 : vector<8x128xf32> to vector<1x8x128xf32>
    tpu.vector_store %arg13[%c0_189, %c0_190, %c0_191], %395 {strides = array<i32>} : memref<2x8x128xf32, #tpu.memory_space<vmem>>, vector<1x8x128xf32>,
    %c1_192 = arith.constant 1 : index
    %c0_193 = arith.constant 0 : index
    %c0_194 = arith.constant 0 : index
    %396 = vector.load %arg13[%c1_192, %c0_193, %c0_194] : memref<2x8x128xf32, #tpu.memory_space<vmem>>, vector<1x8x128xf32>
    %397 = vector.shape_cast %396 : vector<1x8x128xf32> to vector<8x128xf32>
    %398 = arith.truncf %392 : vector<8x128xf32> to vector<8x128xbf16>
    %c0_195 = arith.constant 0 : index
    %c0_196 = arith.constant 0 : index
    %c0_197 = arith.constant 0 : index
    %399 = vector.load %arg5[%c0_195, %c0_196, %c0_197] : memref<1x128x384xbf16, #tpu.memory_space<vmem>>, vector<1x128x384xbf16>
    %400 = vector.shape_cast %399 : vector<1x128x384xbf16> to vector<128x384xbf16>
    %cst_198 = arith.constant dense<0.000000e+00> : vector<8x384xf32>
    %401 = tpu.matmul %398, %400, %cst_198 {dimension_numbers = #tpu.dot_dimension_numbers<[1], [0], [0], [1], [0, 0, 1, 1], [], []>} : vector<8x128xbf16>, vector<128x384xbf16>, vector<8x384xf32> -> vector<8x384xf32>
    %c0_199 = arith.constant 0 : index
    %c0_200 = arith.constant 0 : index
    %c0_201 = arith.constant 0 : index
    %402 = vector.load %arg6[%c0_199, %c0_200, %c0_201] : memref<1x1x384xf32, #tpu.memory_space<vmem>>, vector<1x1x384xf32>
    %403 = vector.shape_cast %402 : vector<1x1x384xf32> to vector<1x384xf32>
    %404 = vector.broadcast %403 : vector<1x384xf32> to vector<8x384xf32>
    %405 = arith.addf %401, %404 : vector<8x384xf32>
    %406 = arith.truncf %397 : vector<8x128xf32> to vector<8x128xbf16>
    %c1_202 = arith.constant 1 : index
    %c0_203 = arith.constant 0 : index
    %c0_204 = arith.constant 0 : index
    %407 = vector.load %arg7[%c1_202, %c0_203, %c0_204] : memref<2x128x384xbf16, #tpu.memory_space<vmem>>, vector<1x128x384xbf16>
    %408 = vector.shape_cast %407 : vector<1x128x384xbf16> to vector<128x384xbf16>
    %cst_205 = arith.constant dense<0.000000e+00> : vector<8x384xf32>
    %409 = tpu.matmul %406, %408, %cst_205 {dimension_numbers = #tpu.dot_dimension_numbers<[1], [0], [0], [1], [0, 0, 1, 1], [], []>} : vector<8x128xbf16>, vector<128x384xbf16>, vector<8x384xf32> -> vector<8x384xf32>
    %c1_206 = arith.constant 1 : index
    %c0_207 = arith.constant 0 : index
    %c0_208 = arith.constant 0 : index
    %410 = vector.load %arg8[%c1_206, %c0_207, %c0_208] : memref<2x1x384xf32, #tpu.memory_space<vmem>>, vector<1x1x384xf32>
    %411 = vector.shape_cast %410 : vector<1x1x384xf32> to vector<1x384xf32>
    %412 = vector.broadcast %411 : vector<1x384xf32> to vector<8x384xf32>
    %413 = arith.addf %409, %412 : vector<8x384xf32>
    %414 = vector.extract_strided_slice %405 {offsets = [0, 0], sizes = [8, 128], strides = [1, 1]} : vector<8x384xf32> to vector<8x128xf32>
    %415 = vector.extract_strided_slice %413 {offsets = [0, 0], sizes = [8, 128], strides = [1, 1]} : vector<8x384xf32> to vector<8x128xf32>
    %416 = arith.addf %414, %415 : vector<8x128xf32>
    %417 = arith.negf %416 : vector<8x128xf32>
    %418 = math.exp %417 : vector<8x128xf32>
    %cst_209 = arith.constant 1.000000e+00 : f32
    %419 = vector.broadcast %cst_209 : f32 to vector<8x128xf32>
    %420 = arith.addf %419, %418 : vector<8x128xf32>
    %421 = arith.divf %419, %420 : vector<8x128xf32>
    %422 = vector.extract_strided_slice %405 {offsets = [0, 128], sizes = [8, 128], strides = [1, 1]} : vector<8x384xf32> to vector<8x128xf32>
    %423 = vector.extract_strided_slice %413 {offsets = [0, 128], sizes = [8, 128], strides = [1, 1]} : vector<8x384xf32> to vector<8x128xf32>
    %424 = arith.addf %422, %423 : vector<8x128xf32>
    %425 = arith.negf %424 : vector<8x128xf32>
    %426 = math.exp %425 : vector<8x128xf32>
    %cst_210 = arith.constant 1.000000e+00 : f32
    %427 = vector.broadcast %cst_210 : f32 to vector<8x128xf32>
    %428 = arith.addf %427, %426 : vector<8x128xf32>
    %429 = arith.divf %427, %428 : vector<8x128xf32>
    %430 = vector.extract_strided_slice %405 {offsets = [0, 256], sizes = [8, 128], strides = [1, 1]} : vector<8x384xf32> to vector<8x128xf32>
    %431 = vector.extract_strided_slice %413 {offsets = [0, 256], sizes = [8, 128], strides = [1, 1]} : vector<8x384xf32> to vector<8x128xf32>
    %432 = arith.mulf %421, %431 : vector<8x128xf32>
    %433 = arith.addf %430, %432 : vector<8x128xf32>
    %434 = math.tanh %433 : vector<8x128xf32>
    %cst_211 = arith.constant 1.000000e+00 : f32
    %435 = vector.broadcast %cst_211 : f32 to vector<8x128xf32>
    %436 = arith.subf %435, %429 : vector<8x128xf32>
    %437 = arith.mulf %436, %434 : vector<8x128xf32>
    %438 = arith.mulf %429, %397 : vector<8x128xf32>
    %439 = arith.addf %437, %438 : vector<8x128xf32>
    %c1_212 = arith.constant 1 : index
    %c0_213 = arith.constant 0 : index
    %c0_214 = arith.constant 0 : index
    %440 = vector.load %arg13[%c1_212, %c0_213, %c0_214] : memref<2x8x128xf32, #tpu.memory_space<vmem>>, vector<1x8x128xf32>
    %441 = vector.shape_cast %440 : vector<1x8x128xf32> to vector<8x128xf32>
    %442 = vector.shape_cast %439 : vector<8x128xf32> to vector<1x8x128xf32>
    tpu.vector_store %arg13[%c1_212, %c0_213, %c0_214], %442 {strides = array<i32>} : memref<2x8x128xf32, #tpu.memory_space<vmem>>, vector<1x8x128xf32>,
    %443 = arith.truncf %439 : vector<8x128xf32> to vector<8x128xbf16>
    %c0_215 = arith.constant 0 : index
    %c0_216 = arith.constant 0 : index
    %444 = vector.load %arg9[%c0_215, %c0_216] : memref<128x128xbf16, #tpu.memory_space<vmem>>, vector<128x128xbf16>
    %cst_217 = arith.constant dense<0.000000e+00> : vector<8x128xf32>
    %445 = tpu.matmul %443, %444, %cst_217 {dimension_numbers = #tpu.dot_dimension_numbers<[1], [0], [0], [1], [0, 0, 1, 1], [], []>} : vector<8x128xbf16>, vector<128x128xbf16>, vector<8x128xf32> -> vector<8x128xf32>
    %446 = vector.shape_cast %445 : vector<8x128xf32> to vector<8x1x128xf32>
    %447 = arith.truncf %446 : vector<8x1x128xf32> to vector<8x1x128xbf16>
    "tpu.trace_start"() <{level = 10 : i32, message = "bqh,bsh->bqs"}> : () -> ()
    %cst_218 = arith.constant dense<0.000000e+00> : vector<8x1x8xf32>
    %448 = tpu.matmul %447, %3, %cst_218 {dimension_numbers = #tpu.dot_dimension_numbers<[2], [2], [1], [1], [0, 0, 0, 1, 1, 1], [0], [0]>} : vector<8x1x128xbf16>, vector<8x8x128xbf16>, vector<8x1x8xf32> -> vector<8x1x8xf32>
    "tpu.trace_stop"() : () -> ()
    %cst_219 = arith.constant dense<0xFF800000> : vector<8x1xf32>
    %449 = vector.multi_reduction <maximumf>, %448, %cst_219 [2] : vector<8x1x8xf32> to vector<8x1xf32>
    %450 = vector.shape_cast %449 : vector<8x1xf32> to vector<8x1x1xf32>
    %451 = vector.broadcast %450 : vector<8x1x1xf32> to vector<8x1x8xf32>
    %452 = arith.subf %448, %451 : vector<8x1x8xf32>
    %453 = math.exp %452 : vector<8x1x8xf32>
    %cst_220 = arith.constant dense<0.000000e+00> : vector<8x1xf32>
    %454 = vector.multi_reduction <add>, %453, %cst_220 [2] : vector<8x1x8xf32> to vector<8x1xf32>
    %455 = vector.shape_cast %454 : vector<8x1xf32> to vector<8x1x1xf32>
    %456 = tpu.reciprocal %455 {approx = true} : vector<8x1x1xf32> -> vector<8x1x1xf32>
    %457 = vector.broadcast %456 : vector<8x1x1xf32> to vector<8x1x8xf32>
    %458 = arith.mulf %453, %457 : vector<8x1x8xf32>
    %459 = arith.truncf %458 : vector<8x1x8xf32> to vector<8x1x8xbf16>
    "tpu.trace_start"() <{level = 10 : i32, message = "bqs,bsh->bqh"}> : () -> ()
    %cst_221 = arith.constant dense<0.000000e+00> : vector<8x1x128xf32>
    %460 = tpu.matmul %459, %3, %cst_221 {dimension_numbers = #tpu.dot_dimension_numbers<[2], [1], [1], [2], [0, 0, 0, 1, 1, 2], [0], [0]>} : vector<8x1x8xbf16>, vector<8x8x128xbf16>, vector<8x1x128xf32> -> vector<8x1x128xf32>
    "tpu.trace_stop"() : () -> ()
    %461 = vector.shape_cast %460 : vector<8x1x128xf32> to vector<8x128xf32>
    %462 = arith.truncf %461 : vector<8x128xf32> to vector<8x128xbf16>
    %c0_222 = arith.constant 0 : index
    %c0_223 = arith.constant 0 : index
    %463 = vector.load %arg10[%c0_222, %c0_223] : memref<128x128xbf16, #tpu.memory_space<vmem>>, vector<128x128xbf16>
    %cst_224 = arith.constant dense<0.000000e+00> : vector<8x128xf32>
    %464 = tpu.matmul %462, %463, %cst_224 {dimension_numbers = #tpu.dot_dimension_numbers<[1], [0], [0], [1], [0, 0, 1, 1], [], []>} : vector<8x128xbf16>, vector<128x128xbf16>, vector<8x128xf32> -> vector<8x128xf32>
    %c0_225 = arith.constant 0 : index
    %c0_226 = arith.constant 0 : index
    %465 = vector.load %arg11[%c0_225, %c0_226] : memref<128x128xbf16, #tpu.memory_space<vmem>>, vector<128x128xbf16>
    %cst_227 = arith.constant dense<0.000000e+00> : vector<8x128xf32>
    %466 = tpu.matmul %443, %465, %cst_227 {dimension_numbers = #tpu.dot_dimension_numbers<[1], [0], [0], [1], [0, 0, 1, 1], [], []>} : vector<8x128xbf16>, vector<128x128xbf16>, vector<8x128xf32> -> vector<8x128xf32>
    %467 = arith.addf %464, %466 : vector<8x128xf32>
    %468 = math.tanh %467 : vector<8x128xf32>
    %c3_228 = arith.constant 3 : index
    %c0_229 = arith.constant 0 : index
    %c0_230 = arith.constant 0 : index
    %469 = vector.load %arg12[%c3_228, %c0_229, %c0_230] : memref<4x8x128xf32, #tpu.memory_space<vmem>>, vector<1x8x128xf32>
    %470 = vector.shape_cast %469 : vector<1x8x128xf32> to vector<8x128xf32>
    %471 = vector.shape_cast %468 : vector<8x128xf32> to vector<1x8x128xf32>
    tpu.vector_store %arg12[%c3_228, %c0_229, %c0_230], %471 {strides = array<i32>} : memref<4x8x128xf32, #tpu.memory_space<vmem>>, vector<1x8x128xf32>,
    return
  }
  func.func @transform_0(%arg0: i32, %arg1: i32) -> (i32, i32, i32) {
    %c0_i32 = arith.constant 0 : i32
    %c0_i32_0 = arith.constant 0 : i32
    return %arg1, %arg0, %c0_i32 : i32, i32, i32
  }
  func.func @transform_1(%arg0: i32, %arg1: i32) -> (i32, i32, i32) {
    %c0_i32 = arith.constant 0 : i32
    %c0_i32_0 = arith.constant 0 : i32
    %c0_i32_1 = arith.constant 0 : i32
    return %c0_i32, %arg0, %c0_i32_0 : i32, i32, i32
  }
  func.func @transform_2(%arg0: i32, %arg1: i32) -> (i32, i32, i32) {
    %c0_i32 = arith.constant 0 : i32
    %c0_i32_0 = arith.constant 0 : i32
    %c0_i32_1 = arith.constant 0 : i32
    return %arg0, %c0_i32, %c0_i32_0 : i32, i32, i32
  }
  func.func @transform_3(%arg0: i32, %arg1: i32) -> (i32, i32, i32) {
    %c0_i32 = arith.constant 0 : i32
    %c0_i32_0 = arith.constant 0 : i32
    %c0_i32_1 = arith.constant 0 : i32
    %c0_i32_2 = arith.constant 0 : i32
    return %c0_i32, %c0_i32_0, %c0_i32_1 : i32, i32, i32
  }
  func.func @transform_4(%arg0: i32, %arg1: i32) -> (i32, i32, i32) {
    %c0_i32 = arith.constant 0 : i32
    %c0_i32_0 = arith.constant 0 : i32
    %c0_i32_1 = arith.constant 0 : i32
    %c0_i32_2 = arith.constant 0 : i32
    return %c0_i32, %c0_i32_0, %c0_i32_1 : i32, i32, i32
  }
  func.func @transform_5(%arg0: i32, %arg1: i32) -> (i32, i32, i32) {
    %c0_i32 = arith.constant 0 : i32
    %c0_i32_0 = arith.constant 0 : i32
    %c0_i32_1 = arith.constant 0 : i32
    %c0_i32_2 = arith.constant 0 : i32
    return %c0_i32, %c0_i32_0, %c0_i32_1 : i32, i32, i32
  }
  func.func @transform_6(%arg0: i32, %arg1: i32) -> (i32, i32, i32) {
    %c0_i32 = arith.constant 0 : i32
    %c0_i32_0 = arith.constant 0 : i32
    %c0_i32_1 = arith.constant 0 : i32
    %c0_i32_2 = arith.constant 0 : i32
    return %c0_i32, %c0_i32_0, %c0_i32_1 : i32, i32, i32
  }
  func.func @transform_7(%arg0: i32, %arg1: i32) -> (i32, i32) {
    %c0_i32 = arith.constant 0 : i32
    %c0_i32_0 = arith.constant 0 : i32
    %c0_i32_1 = arith.constant 0 : i32
    return %c0_i32, %c0_i32_0 : i32, i32
  }
  func.func @transform_8(%arg0: i32, %arg1: i32) -> (i32, i32) {
    %c0_i32 = arith.constant 0 : i32
    %c0_i32_0 = arith.constant 0 : i32
    %c0_i32_1 = arith.constant 0 : i32
    return %c0_i32, %c0_i32_0 : i32, i32
  }
  func.func @transform_9(%arg0: i32, %arg1: i32) -> (i32, i32) {
    %c0_i32 = arith.constant 0 : i32
    %c0_i32_0 = arith.constant 0 : i32
    %c0_i32_1 = arith.constant 0 : i32
    return %c0_i32, %c0_i32_0 : i32, i32
  }
  func.func @transform_10(%arg0: i32, %arg1: i32) -> (i32, i32, i32) {
    %c0_i32 = arith.constant 0 : i32
    %c0_i32_0 = arith.constant 0 : i32
    return %arg1, %arg0, %c0_i32 : i32, i32, i32
  }
  func.func @transform_11(%arg0: i32, %arg1: i32) -> (i32, i32, i32) {
    %c0_i32 = arith.constant 0 : i32
    %c0_i32_0 = arith.constant 0 : i32
    %c0_i32_1 = arith.constant 0 : i32
    return %c0_i32, %arg0, %c0_i32_0 : i32, i32, i32
  }
}

</mosaic_0001>

<llo_original>
// kernel: tpu_custom_call.1
$region0: #{tpu_custom_call.1}
  #allocation0 [shape = 'u32[]', space=smem, size = 0x4, offset = 0x4, fixed_abs, tag = 'smem constant byte address 0x4 - core index']
  #allocation1 [shape = 'u32[144,128]{1,0:T(1,128)}', space=vmem, size = 0x12000, scoped, tag = 'internal scratch']
  %s0 = inlined_call_operand.hbm [shape: f32[8,8,384], index: 0, kind: input, shape index: {}]
  %s1 = inlined_call_operand.hbm [shape: f32[2,8,128], index: 1, kind: input, shape index: {}]
  %s2 = inlined_call_operand.hbm [shape: bf16[8,8,128], index: 2, kind: input, shape index: {}]
  %s3 = inlined_call_operand.hbm [shape: bf16[1,128,384], index: 3, kind: input, shape index: {}]
  %s4 = inlined_call_operand.hbm [shape: f32[1,1,384], index: 4, kind: input, shape index: {}]
  %s5 = inlined_call_operand.hbm [shape: bf16[2,128,384], index: 5, kind: input, shape index: {}]
  %s6 = inlined_call_operand.hbm [shape: f32[2,1,384], index: 6, kind: input, shape index: {}]
  %s7 = inlined_call_operand.hbm [shape: bf16[128,128], index: 7, kind: input, shape index: {}]
  %s8 = inlined_call_operand.hbm [shape: bf16[128,128], index: 8, kind: input, shape index: {}]
  %s9 = inlined_call_operand.hbm [shape: bf16[128,128], index: 9, kind: input, shape index: {}]
  %s10 = inlined_call_operand.hbm [shape: f32[8,8,128], index: 10, kind: output, shape index: {0}]
  %s11 = inlined_call_operand.hbm [shape: f32[2,8,128], index: 11, kind: output, shape index: {1}]
  %12 = xla_tuple %s10, %s11
  %s13 = sld [smem:[#allocation0]]
  $region125: #{tpu_custom_call.1} parent=0
    _
  %s15 = ssub.s32 1, %s13
  %s16 = scalar_select 0, %s15, %s13
  $region1: #{tpu_custom_call.1} parent=0
    #allocation2 [shape = 'u8[98304]{0}', space=vmem, size = 0x18000, scoped, tag = 'input window, operand 0']
    #allocation3 [shape = 's32[2]{0}', space=sflag, size = 0x8, scoped, tag = 'scoped memory for tpu_custom_call.1']
    #allocation4 [shape = 's32[2]{0}', space=sflag, size = 0x8, scoped, tag = 'scoped memory for tpu_custom_call.1']
    #allocation5 [shape = 'u8[8192]{0}', space=vmem, size = 0x2000, scoped, tag = 'input window, operand 1, single buffered']
    #allocation6 [shape = 's32[1]{0}', space=sflag, size = 0x4, scoped, tag = 'scoped memory for tpu_custom_call.1']
    #allocation7 [shape = 'u8[16384]{0}', space=vmem, size = 0x4000, scoped, tag = 'input window, operand 2, single buffered']
    #allocation8 [shape = 'u8[98304]{0}', space=vmem, size = 0x18000, scoped, tag = 'input window, operand 3, single buffered']
    #allocation9 [shape = 's32[1]{0}', space=sflag, size = 0x4, scoped, tag = 'scoped memory for tpu_custom_call.1']
    #allocation10 [shape = 'u8[1536]{0}', space=vmem, size = 0x800, scoped, tag = 'input window, operand 4, single buffered']
    #allocation11 [shape = 'u8[196608]{0}', space=vmem, size = 0x30000, scoped, tag = 'input window, operand 5, single buffered']
    #allocation12 [shape = 's32[1]{0}', space=sflag, size = 0x4, scoped, tag = 'scoped memory for tpu_custom_call.1']
    #allocation13 [shape = 'u8[3072]{0}', space=vmem, size = 0xc00, scoped, tag = 'input window, operand 6, single buffered']
    #allocation14 [shape = 'u8[32768]{0}', space=vmem, size = 0x8000, scoped, tag = 'input window, operand 7, single buffered']
    #allocation15 [shape = 's32[1]{0}', space=sflag, size = 0x4, scoped, tag = 'scoped memory for tpu_custom_call.1']
    #allocation16 [shape = 'u8[32768]{0}', space=vmem, size = 0x8000, scoped, tag = 'input window, operand 8, single buffered']
    #allocation17 [shape = 'u8[32768]{0}', space=vmem, size = 0x8000, scoped, tag = 'input window, operand 9, single buffered']
    #allocation18 [shape = 's32[1]{0}', space=sflag, size = 0x4, scoped, tag = 'scoped memory for tpu_custom_call.1']
    #allocation19 [shape = 'u8[32768]{0}', space=vmem, size = 0x8000, scoped, tag = 'output window, operand 0']
    #allocation20 [shape = 'u8[8192]{0}', space=vmem, size = 0x2000, scoped, tag = 'output window, operand 1, single buffered']
    #allocation21 [shape = 's32[1]{0}', space=sflag, size = 0x4, scoped, tag = 'scoped memory for tpu_custom_call.1']
    %17 = vsyncpa [#allocation3], 0
    %s18 = scalar_lea.sflag [#allocation3], 1
    %19 = vsyncpa %s18, 0
    %20 = vsyncpa [#allocation6], 0
    %21 = vsyncpa [#allocation9], 0
    %22 = vsyncpa [#allocation12], 0
    %23 = vsyncpa [#allocation15], 0
    %24 = vsyncpa [#allocation18], 0
    %25 = vsyncpa [#allocation4], 0
    %s26 = scalar_lea.sflag [#allocation4], 1
    %27 = vsyncpa %s26, 0
    %28 = vsyncpa [#allocation21], 0
    loop: start=0, step=1, limit=4
    $region2: #{tpu_custom_call.1} parent=1 // loop_pre_header
      _
    $region3: #{tpu_custom_call.1} parent=1 // loop_header
      %s30 = sphi 0, %s34
      %p31 = scmp.ge.s32.totalorder %s30, 4
      %s37 = sphi 0, %s49
      %s38 = sphi 0, %s45
      %s39 = sphi 0, %s37
      %s40 = sphi 0, %s38
      %s41 = sphi 0, %s39
      %s42 = sphi 0, %s40
      %s54 = sphi 0, %s56
      %s57 = sphi 0, %s54
      %s58 = sphi 0, %s57
      %s74 = sphi 0, %s58
      %s80 = sphi 0, %s82
      %s83 = sphi 0, %s80
      %s84 = sphi 0, %s83
      %s100 = sphi 0, %s84
      %s106 = sphi 0, %s108
      %s109 = sphi 0, %s106
      %s110 = sphi 0, %s109
      %s126 = sphi 0, %s110
      %s130 = sphi 0, %s130
      %s132 = sphi 0, %s130
      %s133 = sphi 0, %s132
      %s147 = sphi 0, %s133
      %s151 = sphi 0, %s151
      %s153 = sphi 0, %s151
      %s154 = sphi 0, %s153
      %s168 = sphi 0, %s154
      %s172 = sphi 0, %s172
      %s174 = sphi 0, %s172
      %s175 = sphi 0, %s174
      %s189 = sphi 0, %s175
      %s193 = sphi 0, %s193
      %s195 = sphi 0, %s193
      %s196 = sphi 0, %s195
      %s210 = sphi 0, %s196
      %s214 = sphi 0, %s214
      %s216 = sphi 0, %s214
      %s217 = sphi 0, %s216
      %s231 = sphi 0, %s217
      %s235 = sphi 0, %s235
      %s237 = sphi 0, %s235
      %s238 = sphi 0, %s237
      %s252 = sphi 0, %s238
      %s256 = sphi 0, %s256
      %s258 = sphi 0, %s256
      %s259 = sphi 0, %s258
      %s273 = sphi 0, %s259
      %s281 = sphi 0, %s283
      %s284 = sphi 0, %s281
      %s285 = sphi 0, %s284
      %s301 = sphi 0, %s285
      %s307 = sphi 0, %s309
      %s310 = sphi 0, %s307
      %s311 = sphi 0, %s310
      %s327 = sphi 0, %s311
    $region4: #{tpu_custom_call.1} parent=1 // loop_header_branch
      %33 = sbr.rel (%p31) target = $region8
    $region5: #{tpu_custom_call.1} parent=1 // loop_body
      %s35 = ssub.s32 %s30, 1
      %s36 = ssub.s32 %s30, 2
      %s43 = sadd.s32 1, %s38
      %p44 = scmp.ge.s32.totalorder %s43, 2
      %s45 = scalar_select %p44, 0, %s43
      %s46 = sadd.s32 1, %s37
      %s47 = scalar_select %p44, %s46, %s37
      %p48 = scmp.ge.s32.totalorder %s47, 1
      %s49 = scalar_select %p48, 0, %s47
      %s50 = ssub.s32 %s38, %s45
      %s51 = ssub.s32 %s37, %s49
      %s52 = sor.u32 %s50, %s51
      %p53 = scmp.eq.s32.totalorder %s52, 0
      %s55 = sadd.s32 %s54, 1
      %s56 = scalar_select %p53, %s54, %s55
      %p59 = pneg %p53
      %p60 = scmp.eq.s32.totalorder %s30, 1
      %p61 = por %p59, %p60
      %p62 = scmp.ne.s32.totalorder %s54, %s57
      %p63 = scmp.eq.s32.totalorder %s30, 0
      %p64 = por %p62, %p63
      %p65 = scmp.ne.s32.totalorder %s54, %s57
      %p66 = scmp.eq.s32.totalorder %s35, 1
      %p67 = por %p65, %p66
      %p68 = scmp.ne.s32.totalorder %s57, %s58
      %p69 = scmp.eq.s32.totalorder %s35, 0
      %p70 = por %p68, %p69
      %p71 = scmp.ne.s32.totalorder %s57, %s58
      %p72 = scmp.eq.s32.totalorder %s36, 1
      %p73 = por %p71, %p72
      %p75 = scmp.ne.s32.totalorder %s58, %s74
      %p76 = scmp.eq.s32.totalorder %s36, 0
      %p77 = por %p75, %p76
      %s78 = ssub.s32 %s37, %s49
      %p79 = scmp.eq.s32.totalorder %s78, 0
      %s81 = sadd.s32 %s80, 1
      %s82 = scalar_select %p79, %s80, %s81
      %p85 = pneg %p79
      %p86 = scmp.eq.s32.totalorder %s30, 1
      %p87 = por %p85, %p86
      %p88 = scmp.ne.s32.totalorder %s80, %s83
      %p89 = scmp.eq.s32.totalorder %s30, 0
      %p90 = por %p88, %p89
      %p91 = scmp.ne.s32.totalorder %s80, %s83
      %p92 = scmp.eq.s32.totalorder %s35, 1
      %p93 = por %p91, %p92
      %p94 = scmp.ne.s32.totalorder %s83, %s84
      %p95 = scmp.eq.s32.totalorder %s35, 0
      %p96 = por %p94, %p95
      %p97 = scmp.ne.s32.totalorder %s83, %s84
      %p98 = scmp.eq.s32.totalorder %s36, 1
      %p99 = por %p97, %p98
      %p101 = scmp.ne.s32.totalorder %s84, %s100
      %p102 = scmp.eq.s32.totalorder %s36, 0
      %p103 = por %p101, %p102
      %s104 = ssub.s32 %s37, %s49
      %p105 = scmp.eq.s32.totalorder %s104, 0
      %s107 = sadd.s32 %s106, 1
      %s108 = scalar_select %p105, %s106, %s107
      %p111 = pneg %p105
      %p112 = scmp.eq.s32.totalorder %s30, 1
      %p113 = por %p111, %p112
      %p114 = scmp.ne.s32.totalorder %s106, %s109
      %p115 = scmp.eq.s32.totalorder %s30, 0
      %p116 = por %p114, %p115
      %p117 = scmp.ne.s32.totalorder %s106, %s109
      %p118 = scmp.eq.s32.totalorder %s35, 1
      %p119 = por %p117, %p118
      %p120 = scmp.ne.s32.totalorder %s109, %s110
      %p121 = scmp.eq.s32.totalorder %s35, 0
      %p122 = por %p120, %p121
      %p123 = scmp.ne.s32.totalorder %s109, %s110
      %p124 = scmp.eq.s32.totalorder %s36, 1
      %p125 = por %p123, %p124
      %p127 = scmp.ne.s32.totalorder %s110, %s126
      %p128 = scmp.eq.s32.totalorder %s36, 0
      %p129 = por %p127, %p128
      %s131 = sadd.s32 %s130, 1
      %p134 = scmp.eq.s32.totalorder %s30, 1
      %p135 = scmp.ne.s32.totalorder %s130, %s132
      %p136 = scmp.eq.s32.totalorder %s30, 0
      %p137 = por %p135, %p136
      %p138 = scmp.ne.s32.totalorder %s130, %s132
      %p139 = scmp.eq.s32.totalorder %s35, 1
      %p140 = por %p138, %p139
      %p141 = scmp.ne.s32.totalorder %s132, %s133
      %p142 = scmp.eq.s32.totalorder %s35, 0
      %p143 = por %p141, %p142
      %p144 = scmp.ne.s32.totalorder %s132, %s133
      %p145 = scmp.eq.s32.totalorder %s36, 1
      %p146 = por %p144, %p145
      %p148 = scmp.ne.s32.totalorder %s133, %s147
      %p149 = scmp.eq.s32.totalorder %s36, 0
      %p150 = por %p148, %p149
      %s152 = sadd.s32 %s151, 1
      %p155 = scmp.eq.s32.totalorder %s30, 1
      %p156 = scmp.ne.s32.totalorder %s151, %s153
      %p157 = scmp.eq.s32.totalorder %s30, 0
      %p158 = por %p156, %p157
      %p159 = scmp.ne.s32.totalorder %s151, %s153
      %p160 = scmp.eq.s32.totalorder %s35, 1
      %p161 = por %p159, %p160
      %p162 = scmp.ne.s32.totalorder %s153, %s154
      %p163 = scmp.eq.s32.totalorder %s35, 0
      %p164 = por %p162, %p163
      %p165 = scmp.ne.s32.totalorder %s153, %s154
      %p166 = scmp.eq.s32.totalorder %s36, 1
      %p167 = por %p165, %p166
      %p169 = scmp.ne.s32.totalorder %s154, %s168
      %p170 = scmp.eq.s32.totalorder %s36, 0
      %p171 = por %p169, %p170
      %s173 = sadd.s32 %s172, 1
      %p176 = scmp.eq.s32.totalorder %s30, 1
      %p177 = scmp.ne.s32.totalorder %s172, %s174
      %p178 = scmp.eq.s32.totalorder %s30, 0
      %p179 = por %p177, %p178
      %p180 = scmp.ne.s32.totalorder %s172, %s174
      %p181 = scmp.eq.s32.totalorder %s35, 1
      %p182 = por %p180, %p181
      %p183 = scmp.ne.s32.totalorder %s174, %s175
      %p184 = scmp.eq.s32.totalorder %s35, 0
      %p185 = por %p183, %p184
      %p186 = scmp.ne.s32.totalorder %s174, %s175
      %p187 = scmp.eq.s32.totalorder %s36, 1
      %p188 = por %p186, %p187
      %p190 = scmp.ne.s32.totalorder %s175, %s189
      %p191 = scmp.eq.s32.totalorder %s36, 0
      %p192 = por %p190, %p191
      %s194 = sadd.s32 %s193, 1
      %p197 = scmp.eq.s32.totalorder %s30, 1
      %p198 = scmp.ne.s32.totalorder %s193, %s195
      %p199 = scmp.eq.s32.totalorder %s30, 0
      %p200 = por %p198, %p199
      %p201 = scmp.ne.s32.totalorder %s193, %s195
      %p202 = scmp.eq.s32.totalorder %s35, 1
      %p203 = por %p201, %p202
      %p204 = scmp.ne.s32.totalorder %s195, %s196
      %p205 = scmp.eq.s32.totalorder %s35, 0
      %p206 = por %p204, %p205
      %p207 = scmp.ne.s32.totalorder %s195, %s196
      %p208 = scmp.eq.s32.totalorder %s36, 1
      %p209 = por %p207, %p208
      %p211 = scmp.ne.s32.totalorder %s196, %s210
      %p212 = scmp.eq.s32.totalorder %s36, 0
      %p213 = por %p211, %p212
      %s215 = sadd.s32 %s214, 1
      %p218 = scmp.eq.s32.totalorder %s30, 1
      %p219 = scmp.ne.s32.totalorder %s214, %s216
      %p220 = scmp.eq.s32.totalorder %s30, 0
      %p221 = por %p219, %p220
      %p222 = scmp.ne.s32.totalorder %s214, %s216
      %p223 = scmp.eq.s32.totalorder %s35, 1
      %p224 = por %p222, %p223
      %p225 = scmp.ne.s32.totalorder %s216, %s217
      %p226 = scmp.eq.s32.totalorder %s35, 0
      %p227 = por %p225, %p226
      %p228 = scmp.ne.s32.totalorder %s216, %s217
      %p229 = scmp.eq.s32.totalorder %s36, 1
      %p230 = por %p228, %p229
      %p232 = scmp.ne.s32.totalorder %s217, %s231
      %p233 = scmp.eq.s32.totalorder %s36, 0
      %p234 = por %p232, %p233
      %s236 = sadd.s32 %s235, 1
      %p239 = scmp.eq.s32.totalorder %s30, 1
      %p240 = scmp.ne.s32.totalorder %s235, %s237
      %p241 = scmp.eq.s32.totalorder %s30, 0
      %p242 = por %p240, %p241
      %p243 = scmp.ne.s32.totalorder %s235, %s237
      %p244 = scmp.eq.s32.totalorder %s35, 1
      %p245 = por %p243, %p244
      %p246 = scmp.ne.s32.totalorder %s237, %s238
      %p247 = scmp.eq.s32.totalorder %s35, 0
      %p248 = por %p246, %p247
      %p249 = scmp.ne.s32.totalorder %s237, %s238
      %p250 = scmp.eq.s32.totalorder %s36, 1
      %p251 = por %p249, %p250
      %p253 = scmp.ne.s32.totalorder %s238, %s252
      %p254 = scmp.eq.s32.totalorder %s36, 0
      %p255 = por %p253, %p254
      %s257 = sadd.s32 %s256, 1
      %p260 = scmp.eq.s32.totalorder %s30, 1
      %p261 = scmp.ne.s32.totalorder %s256, %s258
      %p262 = scmp.eq.s32.totalorder %s30, 0
      %p263 = por %p261, %p262
      %p264 = scmp.ne.s32.totalorder %s256, %s258
      %p265 = scmp.eq.s32.totalorder %s35, 1
      %p266 = por %p264, %p265
      %p267 = scmp.ne.s32.totalorder %s258, %s259
      %p268 = scmp.eq.s32.totalorder %s35, 0
      %p269 = por %p267, %p268
      %p270 = scmp.ne.s32.totalorder %s258, %s259
      %p271 = scmp.eq.s32.totalorder %s36, 1
      %p272 = por %p270, %p271
      %p274 = scmp.ne.s32.totalorder %s259, %s273
      %p275 = scmp.eq.s32.totalorder %s36, 0
      %p276 = por %p274, %p275
      %s277 = ssub.s32 %s38, %s45
      %s278 = ssub.s32 %s37, %s49
      %s279 = sor.u32 %s277, %s278
      %p280 = scmp.eq.s32.totalorder %s279, 0
      %s282 = sadd.s32 %s281, 1
      %s283 = scalar_select %p280, %s281, %s282
      %p286 = pneg %p280
      %p287 = scmp.eq.s32.totalorder %s30, 1
      %p288 = por %p286, %p287
      %p289 = scmp.ne.s32.totalorder %s281, %s284
      %p290 = scmp.eq.s32.totalorder %s30, 0
      %p291 = por %p289, %p290
      %p292 = scmp.ne.s32.totalorder %s281, %s284
      %p293 = scmp.eq.s32.totalorder %s35, 1
      %p294 = por %p292, %p293
      %p295 = scmp.ne.s32.totalorder %s284, %s285
      %p296 = scmp.eq.s32.totalorder %s35, 0
      %p297 = por %p295, %p296
      %p298 = scmp.ne.s32.totalorder %s284, %s285
      %p299 = scmp.eq.s32.totalorder %s36, 1
      %p300 = por %p298, %p299
      %p302 = scmp.ne.s32.totalorder %s285, %s301
      %p303 = scmp.eq.s32.totalorder %s36, 0
      %p304 = por %p302, %p303
      %s305 = ssub.s32 %s37, %s49
      %p306 = scmp.eq.s32.totalorder %s305, 0
      %s308 = sadd.s32 %s307, 1
      %s309 = scalar_select %p306, %s307, %s308
      %p312 = pneg %p306
      %p313 = scmp.eq.s32.totalorder %s30, 1
      %p314 = por %p312, %p313
      %p315 = scmp.ne.s32.totalorder %s307, %s310
      %p316 = scmp.eq.s32.totalorder %s30, 0
      %p317 = por %p315, %p316
      %p318 = scmp.ne.s32.totalorder %s307, %s310
      %p319 = scmp.eq.s32.totalorder %s35, 1
      %p320 = por %p318, %p319
      %p321 = scmp.ne.s32.totalorder %s310, %s311
      %p322 = scmp.eq.s32.totalorder %s35, 0
      %p323 = por %p321, %p322
      %p324 = scmp.ne.s32.totalorder %s310, %s311
      %p325 = scmp.eq.s32.totalorder %s36, 1
      %p326 = por %p324, %p325
      %p328 = scmp.ne.s32.totalorder %s311, %s327
      %p329 = scmp.eq.s32.totalorder %s36, 0
      %p330 = por %p328, %p329
      %p331 = scmp.le.s32.totalorder 1, %s30
      %p332 = scmp.lt.s32.totalorder %s30, 3
      %p333 = pnand %p331, %p332
      %p334 = pneg %p333
      // Predicated region
      $region9: #{tpu_custom_call.1} parent=5 // pred_check
        _
      $region10: #{tpu_custom_call.1} parent=5 // pred_check_branch
        %336 = sbr.rel (%p333) target = $region12
      $region11: #{tpu_custom_call.1} parent=5 // pred_region
        %s337 = ssub.s32 %s30, 1
        // Predicated region
        $region13: #{tpu_custom_call.1} parent=11 // pred_check
          %p338 = pneg %p96
        $region14: #{tpu_custom_call.1} parent=11 // pred_check_branch
          %340 = sbr.rel (%p338) target = $region16
        $region15: #{tpu_custom_call.1} parent=11 // pred_region
          %s342 = ssub.s32 256, 256
          %343 = vsyncadd [#allocation6], %s342
          %s344 = smul.addr %s39, 128
          %s345 = scalar_lea.hbm %s1, %s344
          %s346 = sshll.u32 [#allocation5], 4
          %s347 = int_to_ptr.vmem [resolvable:$true] %s346
          %352 = dma.hbm_to_vmem [thread:$0]  %s345, 256, %s347, [#allocation6], 128, 128, 8
        $region16: #{tpu_custom_call.1} parent=11 // pred_fallthru
          _
        // Predicated region
        $region17: #{tpu_custom_call.1} parent=11 // pred_check
          %p353 = pneg %p122
        $region18: #{tpu_custom_call.1} parent=11 // pred_check_branch
          %355 = sbr.rel (%p353) target = $region20
        $region19: #{tpu_custom_call.1} parent=11 // pred_region
          %s356 = smul.u32 8, %s39
          %s358 = ssub.s32 512, 512
          %359 = vsyncadd [#allocation6], %s358
          %s360 = smul.addr %s356, 64
          %s361 = scalar_lea.hbm %s2, %s360
          %s362 = sshll.u32 [#allocation7], 4
          %s363 = int_to_ptr.vmem [resolvable:$true] %s362
          %368 = dma.hbm_to_vmem [thread:$0]  %s361, 512, %s363, [#allocation6], 64, 64, 4
        $region20: #{tpu_custom_call.1} parent=11 // pred_fallthru
          _
        // Predicated region
        $region21: #{tpu_custom_call.1} parent=11 // pred_check
          %p369 = pneg %p143
        $region22: #{tpu_custom_call.1} parent=11 // pred_check_branch
          %371 = sbr.rel (%p369) target = $region24
        $region23: #{tpu_custom_call.1} parent=11 // pred_region
          %s373 = ssub.s32 3072, 3072
          %374 = vsyncadd [#allocation9], %s373
          %s375 = sshll.u32 [#allocation8], 4
          %s376 = int_to_ptr.vmem [resolvable:$true] %s375
          %381 = dma.hbm_to_vmem [thread:$0]  %s3, 3072, %s376, [#allocation9], 192, 192, 12
        $region24: #{tpu_custom_call.1} parent=11 // pred_fallthru
          _
        // Predicated region
        $region25: #{tpu_custom_call.1} parent=11 // pred_check
          %p382 = pneg %p164
        $region26: #{tpu_custom_call.1} parent=11 // pred_check_branch
          %384 = sbr.rel (%p382) target = $region28
        $region27: #{tpu_custom_call.1} parent=11 // pred_region
          %s386 = ssub.s32 48, 48
          %387 = vsyncadd [#allocation9], %s386
          %s389 = sshll.u32 [#allocation10], 4
          %s390 = int_to_ptr.vmem [resolvable:$true] %s389
          %392 = dma.hbm_to_vmem [thread:$0]  %s4, 48, %s390, [#allocation9]
        $region28: #{tpu_custom_call.1} parent=11 // pred_fallthru
          _
        // Predicated region
        $region29: #{tpu_custom_call.1} parent=11 // pred_check
          %p393 = pneg %p185
        $region30: #{tpu_custom_call.1} parent=11 // pred_check_branch
          %395 = sbr.rel (%p393) target = $region32
        $region31: #{tpu_custom_call.1} parent=11 // pred_region
          %s397 = ssub.s32 6144, 6144
          %398 = vsyncadd [#allocation12], %s397
          %s399 = sshll.u32 [#allocation11], 4
          %s400 = int_to_ptr.vmem [resolvable:$true] %s399
          %405 = dma.hbm_to_vmem [thread:$0]  %s5, 6144, %s400, [#allocation12], 192, 192, 12
        $region32: #{tpu_custom_call.1} parent=11 // pred_fallthru
          _
        // Predicated region
        $region33: #{tpu_custom_call.1} parent=11 // pred_check
          %p406 = pneg %p206
        $region34: #{tpu_custom_call.1} parent=11 // pred_check_branch
          %408 = sbr.rel (%p406) target = $region36
        $region35: #{tpu_custom_call.1} parent=11 // pred_region
          %s410 = ssub.s32 96, 96
          %411 = vsyncadd [#allocation12], %s410
          %s412 = sshll.u32 [#allocation13], 4
          %s413 = int_to_ptr.vmem [resolvable:$true] %s412
          %418 = dma.hbm_to_vmem [thread:$0]  %s6, 96, %s413, [#allocation12], 48, 48, 3
        $region36: #{tpu_custom_call.1} parent=11 // pred_fallthru
          _
        // Predicated region
        $region37: #{tpu_custom_call.1} parent=11 // pred_check
          %p419 = pneg %p227
        $region38: #{tpu_custom_call.1} parent=11 // pred_check_branch
          %421 = sbr.rel (%p419) target = $region40
        $region39: #{tpu_custom_call.1} parent=11 // pred_region
          %s423 = ssub.s32 1024, 1024
          %424 = vsyncadd [#allocation15], %s423
          %s425 = sshll.u32 [#allocation14], 4
          %s426 = int_to_ptr.vmem [resolvable:$true] %s425
          %431 = dma.hbm_to_vmem [thread:$0]  %s7, 1024, %s426, [#allocation15], 64, 64, 4
        $region40: #{tpu_custom_call.1} parent=11 // pred_fallthru
          _
        // Predicated region
        $region41: #{tpu_custom_call.1} parent=11 // pred_check
          %p432 = pneg %p248
        $region42: #{tpu_custom_call.1} parent=11 // pred_check_branch
          %434 = sbr.rel (%p432) target = $region44
        $region43: #{tpu_custom_call.1} parent=11 // pred_region
          %s436 = ssub.s32 1024, 1024
          %437 = vsyncadd [#allocation15], %s436
          %s438 = sshll.u32 [#allocation16], 4
          %s439 = int_to_ptr.vmem [resolvable:$true] %s438
          %444 = dma.hbm_to_vmem [thread:$0]  %s8, 1024, %s439, [#allocation15], 64, 64, 4
        $region44: #{tpu_custom_call.1} parent=11 // pred_fallthru
          _
        // Predicated region
        $region45: #{tpu_custom_call.1} parent=11 // pred_check
          %p445 = pneg %p269
        $region46: #{tpu_custom_call.1} parent=11 // pred_check_branch
          %447 = sbr.rel (%p445) target = $region48
        $region47: #{tpu_custom_call.1} parent=11 // pred_region
          %s449 = ssub.s32 1024, 1024
          %450 = vsyncadd [#allocation18], %s449
          %s451 = sshll.u32 [#allocation17], 4
          %s452 = int_to_ptr.vmem [resolvable:$true] %s451
          %457 = dma.hbm_to_vmem [thread:$0]  %s9, 1024, %s452, [#allocation18], 64, 64, 4
        $region48: #{tpu_custom_call.1} parent=11 // pred_fallthru
          _
      $region12: #{tpu_custom_call.1} parent=5 // pred_fallthru
        _
      %p458 = scmp.lt.s32.totalorder %s30, 2
      // Predicated region
      $region49: #{tpu_custom_call.1} parent=5 // pred_check
        %p459 = pneg %p458
      $region50: #{tpu_custom_call.1} parent=5 // pred_check_branch
        %461 = sbr.rel (%p459) target = $region52
      $region51: #{tpu_custom_call.1} parent=5 // pred_region
        // Predicated region
        $region53: #{tpu_custom_call.1} parent=51 // pred_check
          %p462 = pneg %p64
        $region54: #{tpu_custom_call.1} parent=51 // pred_check_branch
          %464 = sbr.rel (%p462) target = $region56
        $region55: #{tpu_custom_call.1} parent=51 // pred_region
          %s465 = sand.u32 %s54, 1
          %s466 = scalar_lea.sflag [#allocation3], %s465
          %s467 = sand.u32 %s54, 1
          %s468 = smul.addr %s467, 96
          %s469 = scalar_lea.vmem [#allocation2], %s468
          %s470 = smul.u32 4, %s38
          %s472 = ssub.s32 1536, 1536
          %473 = vsyncadd %s466, %s472
          %s474 = smul.addr %s37, 3
          %s475 = smul.addr %s470, 3
          %s476 = sadd.s32 %s474, %s475
          %s477 = smul.addr %s476, 128
          %s478 = scalar_lea.hbm %s0, %s477
          %s479 = sshll.u32 %s469, 4
          %s480 = int_to_ptr.vmem [resolvable:$true] %s479
          %485 = dma.hbm_to_vmem [thread:$0]  %s478, 1536, %s480, %s466, 384, 384, 24
        $region56: #{tpu_custom_call.1} parent=51 // pred_fallthru
          _
      $region52: #{tpu_custom_call.1} parent=5 // pred_fallthru
        _
      %p486 = scmp.le.s32.totalorder 1, %s30
      %p487 = scmp.lt.s32.totalorder %s30, 3
      %p488 = pnand %p486, %p487
      %p489 = pneg %p488
      // Predicated region
      $region57: #{tpu_custom_call.1} parent=5 // pred_check
        _
      $region58: #{tpu_custom_call.1} parent=5 // pred_check_branch
        %491 = sbr.rel (%p488) target = $region60
      $region59: #{tpu_custom_call.1} parent=5 // pred_region
        %s492 = ssub.s32 %s30, 1
        %s493 = sand.u32 %s57, 1
        %s494 = scalar_lea.sflag [#allocation3], %s493
        %s495 = sand.u32 %s57, 1
        %s496 = smul.addr %s495, 96
        %s497 = scalar_lea.vmem [#allocation2], %s496
        // Predicated region
        $region61: #{tpu_custom_call.1} parent=59 // pred_check
          %p498 = pneg %p70
        $region62: #{tpu_custom_call.1} parent=59 // pred_check_branch
          %500 = sbr.rel (%p498) target = $region64
        $region63: #{tpu_custom_call.1} parent=59 // pred_region
          %501 = dma.done %s494, 1536
        $region64: #{tpu_custom_call.1} parent=59 // pred_fallthru
          _
        // Predicated region
        $region65: #{tpu_custom_call.1} parent=59 // pred_check
          %p502 = pneg %p96
        $region66: #{tpu_custom_call.1} parent=59 // pred_check_branch
          %504 = sbr.rel (%p502) target = $region68
        $region67: #{tpu_custom_call.1} parent=59 // pred_region
          %505 = dma.done [#allocation6], 256
        $region68: #{tpu_custom_call.1} parent=59 // pred_fallthru
          _
        // Predicated region
        $region69: #{tpu_custom_call.1} parent=59 // pred_check
          %p506 = pneg %p122
        $region70: #{tpu_custom_call.1} parent=59 // pred_check_branch
          %508 = sbr.rel (%p506) target = $region72
        $region71: #{tpu_custom_call.1} parent=59 // pred_region
          %509 = dma.done [#allocation6], 512
        $region72: #{tpu_custom_call.1} parent=59 // pred_fallthru
          _
        // Predicated region
        $region73: #{tpu_custom_call.1} parent=59 // pred_check
          %p510 = pneg %p143
        $region74: #{tpu_custom_call.1} parent=59 // pred_check_branch
          %512 = sbr.rel (%p510) target = $region76
        $region75: #{tpu_custom_call.1} parent=59 // pred_region
          %513 = dma.done [#allocation9], 3072
        $region76: #{tpu_custom_call.1} parent=59 // pred_fallthru
          _
        // Predicated region
        $region77: #{tpu_custom_call.1} parent=59 // pred_check
          %p514 = pneg %p164
        $region78: #{tpu_custom_call.1} parent=59 // pred_check_branch
          %516 = sbr.rel (%p514) target = $region80
        $region79: #{tpu_custom_call.1} parent=59 // pred_region
          %517 = dma.done [#allocation9], 48
        $region80: #{tpu_custom_call.1} parent=59 // pred_fallthru
          _
        // Predicated region
        $region81: #{tpu_custom_call.1} parent=59 // pred_check
          %p518 = pneg %p185
        $region82: #{tpu_custom_call.1} parent=59 // pred_check_branch
          %520 = sbr.rel (%p518) target = $region84
        $region83: #{tpu_custom_call.1} parent=59 // pred_region
          %521 = dma.done [#allocation12], 6144
        $region84: #{tpu_custom_call.1} parent=59 // pred_fallthru
          _
        // Predicated region
        $region85: #{tpu_custom_call.1} parent=59 // pred_check
          %p522 = pneg %p206
        $region86: #{tpu_custom_call.1} parent=59 // pred_check_branch
          %524 = sbr.rel (%p522) target = $region88
        $region87: #{tpu_custom_call.1} parent=59 // pred_region
          %525 = dma.done [#allocation12], 96
        $region88: #{tpu_custom_call.1} parent=59 // pred_fallthru
          _
        // Predicated region
        $region89: #{tpu_custom_call.1} parent=59 // pred_check
          %p526 = pneg %p227
        $region90: #{tpu_custom_call.1} parent=59 // pred_check_branch
          %528 = sbr.rel (%p526) target = $region92
        $region91: #{tpu_custom_call.1} parent=59 // pred_region
          %529 = dma.done [#allocation15], 1024
        $region92: #{tpu_custom_call.1} parent=59 // pred_fallthru
          _
        // Predicated region
        $region93: #{tpu_custom_call.1} parent=59 // pred_check
          %p530 = pneg %p248
        $region94: #{tpu_custom_call.1} parent=59 // pred_check_branch
          %532 = sbr.rel (%p530) target = $region96
        $region95: #{tpu_custom_call.1} parent=59 // pred_region
          %533 = dma.done [#allocation15], 1024
        $region96: #{tpu_custom_call.1} parent=59 // pred_fallthru
          _
        // Predicated region
        $region97: #{tpu_custom_call.1} parent=59 // pred_check
          %p534 = pneg %p269
        $region98: #{tpu_custom_call.1} parent=59 // pred_check_branch
          %536 = sbr.rel (%p534) target = $region100
        $region99: #{tpu_custom_call.1} parent=59 // pred_region
          %537 = dma.done [#allocation18], 1024
        $region100: #{tpu_custom_call.1} parent=59 // pred_fallthru
          _
        %s538 = sand.u32 %s57, 1
        %s539 = scalar_lea.sflag [#allocation3], %s538
        %s540 = sand.u32 %s57, 1
        %s541 = smul.addr %s540, 96
        %s542 = scalar_lea.vmem [#allocation2], %s541
        %p543 = pneg %p70
        %p544 = pneg %p67
        %p545 = pneg %p96
        %p546 = pneg %p93
        %p547 = pneg %p122
        %p548 = pneg %p119
        %p549 = pneg %p143
        %p550 = pneg %p140
        %p551 = pneg %p164
        %p552 = pneg %p161
        %p553 = pneg %p185
        %p554 = pneg %p182
        %p555 = pneg %p206
        %p556 = pneg %p203
        %p557 = pneg %p227
        %p558 = pneg %p224
        %p559 = pneg %p248
        %p560 = pneg %p245
        %p561 = pneg %p269
        %p562 = pneg %p266
        %p563 = pneg %p297
        %p564 = pneg %p294
        %s565 = sand.u32 %s284, 1
        %s566 = scalar_lea.sflag [#allocation4], %s565
        %s567 = sand.u32 %s284, 1
        %s568 = smul.addr %s567, 32
        %s569 = scalar_lea.vmem [#allocation19], %s568
        %p570 = pneg %p323
        %p571 = pneg %p320
        %s572 = smul.u32 4, %s40
        %s573 = smul.u32 8, %s39
        %s574 = smul.u32 4, %s40
        %p576 = scmp.eq.s32.totalorder %s40, 0
        // Predicated region
        $region101: #{tpu_custom_call.1} parent=59 // pred_check
          %p577 = pneg %p576
        $region102: #{tpu_custom_call.1} parent=59 // pred_check_branch
          %579 = sbr.rel (%p577) target = $region104
        $region103: #{tpu_custom_call.1} parent=59 // pred_region
          %v580 = vld [vmem:[#allocation5] sm:$0xff]
          %v581 = vld [vmem:[#allocation5 + $0x8] sm:$0xff]
          %582 = vst [vmem:[#allocation20] sm:$0xff] %v580
          %583 = vst [vmem:[#allocation20 + $0x8] sm:$0xff] %v581
        $region104: #{tpu_custom_call.1} parent=59 // pred_fallthru
          _
        %v584 = vld [vmem:[#allocation7] sm:$0xf]
        %v585 = vld [vmem:[#allocation7 + $0x4] sm:$0xf]
        %v586 = vld [vmem:[#allocation7 + $0x8] sm:$0xf]
        %v587 = vld [vmem:[#allocation7 + $0xc] sm:$0xf]
        %v588 = vld [vmem:[#allocation7 + $0x10] sm:$0xf]
        %v589 = vld [vmem:[#allocation7 + $0x14] sm:$0xf]
        %v590 = vld [vmem:[#allocation7 + $0x18] sm:$0xf]
        %v591 = vld [vmem:[#allocation7 + $0x1c] sm:$0xf]
        %v592 = vld [vmem:[#allocation20] sm:$0xff]
        %v593 = vld [vmem:[%s497] sm:$0xff]
        %v594 = vld [vmem:[%s497 + $0x8] sm:$0xff]
        %v595 = vld [vmem:[%s497 + $0x10] sm:$0xff]
        %v596 = vpack.c.bf16 %v592, %v592
        %v597 = vld [vmem:[#allocation11] sm:$0xff]
        %v598 = vld [vmem:[#allocation11 + $0x8] sm:$0xf]
        %v599 = vld [vmem:[#allocation11 + $0xc] sm:$0xff]
        %v600 = vld [vmem:[#allocation11 + $0x14] sm:$0xf]
        %v601 = vld [vmem:[#allocation11 + $0x18] sm:$0xff]
        %v602 = vld [vmem:[#allocation11 + $0x20] sm:$0xf]
        %v603 = vld [vmem:[#allocation11 + $0x24] sm:$0xff]
        %v604 = vld [vmem:[#allocation11 + $0x2c] sm:$0xf]
        %v605 = vld [vmem:[#allocation11 + $0x30] sm:$0xff]
        %v606 = vld [vmem:[#allocation11 + $0x38] sm:$0xf]
        %v607 = vld [vmem:[#allocation11 + $0x3c] sm:$0xff]
        %v608 = vld [vmem:[#allocation11 + $0x44] sm:$0xf]
        %v609 = vld [vmem:[#allocation11 + $0x48] sm:$0xff]
        %v610 = vld [vmem:[#allocation11 + $0x50] sm:$0xf]
        %v611 = vld [vmem:[#allocation11 + $0x54] sm:$0xff]
        %v612 = vld [vmem:[#allocation11 + $0x5c] sm:$0xf]
        %v613 = vld [vmem:[#allocation11 + $0x60] sm:$0xff]
        %v614 = vld [vmem:[#allocation11 + $0x68] sm:$0xf]
        %v615 = vld [vmem:[#allocation11 + $0x6c] sm:$0xff]
        %v616 = vld [vmem:[#allocation11 + $0x74] sm:$0xf]
        %v617 = vld [vmem:[#allocation11 + $0x78] sm:$0xff]
        %v618 = vld [vmem:[#allocation11 + $0x80] sm:$0xf]
        %v619 = vld [vmem:[#allocation11 + $0x84] sm:$0xff]
        %v620 = vld [vmem:[#allocation11 + $0x8c] sm:$0xf]
        %v621 = vld [vmem:[#allocation11 + $0x90] sm:$0xff]
        %v622 = vld [vmem:[#allocation11 + $0x98] sm:$0xf]
        %v623 = vld [vmem:[#allocation11 + $0x9c] sm:$0xff]
        %v624 = vld [vmem:[#allocation11 + $0xa4] sm:$0xf]
        %v625 = vld [vmem:[#allocation11 + $0xa8] sm:$0xff]
        %v626 = vld [vmem:[#allocation11 + $0xb0] sm:$0xf]
        %v627 = vld [vmem:[#allocation11 + $0xb4] sm:$0xff]
        %v628 = vld [vmem:[#allocation11 + $0xbc] sm:$0xf]
        %v629 = vld [vmem:[#allocation13] sm:$0x7]
        %v631 = vlaneseq
        %v632 = vshrl.u32 %v631, 7
        %v633 = vsub.s32 0, %v632
        %v634 = vrot.slane %v629, %v633
        %v635 = vlaneseq
        %v636 = vshrl.u32 %v635, 7
        %v637 = vsub.s32 1, %v636
        %v638 = vrot.slane %v629, %v637
        %v639 = vlaneseq
        %v640 = vshrl.u32 %v639, 7
        %v641 = vsub.s32 2, %v640
        %v642 = vrot.slane %v629, %v641
        %v678 = vunpack.c.l.b16 %v597
        %v679 = vunpack.c.h.b16 %v597
        %v680 = vunpack.c.l.b16 %v598
        %v681 = vunpack.c.l.b16 %v599
        %v682 = vunpack.c.h.b16 %v599
        %v683 = vunpack.c.l.b16 %v600
        %v684 = vunpack.c.l.b16 %v601
        %v685 = vunpack.c.h.b16 %v601
        %v686 = vunpack.c.l.b16 %v602
        %v687 = vunpack.c.l.b16 %v603
        %v688 = vunpack.c.h.b16 %v603
        %v689 = vunpack.c.l.b16 %v604
        %v690 = vunpack.c.l.b16 %v605
        %v691 = vunpack.c.h.b16 %v605
        %v692 = vunpack.c.l.b16 %v606
        %v693 = vunpack.c.l.b16 %v607
        %v694 = vunpack.c.h.b16 %v607
        %v695 = vunpack.c.l.b16 %v608
        %v696 = vunpack.c.l.b16 %v609
        %v697 = vunpack.c.h.b16 %v609
        %v698 = vunpack.c.l.b16 %v610
        %v699 = vunpack.c.l.b16 %v611
        %v700 = vunpack.c.h.b16 %v611
        %v701 = vunpack.c.l.b16 %v612
        %v702 = vunpack.c.l.b16 %v613
        %v703 = vunpack.c.h.b16 %v613
        %v704 = vunpack.c.l.b16 %v614
        %v705 = vunpack.c.l.b16 %v615
        %v706 = vunpack.c.h.b16 %v615
        %v707 = vunpack.c.l.b16 %v616
        %v708 = vunpack.c.l.b16 %v617
        %v709 = vunpack.c.h.b16 %v617
        %v710 = vunpack.c.l.b16 %v618
        %v711 = vunpack.c.l.b16 %v619
        %v712 = vunpack.c.h.b16 %v619
        %v713 = vunpack.c.l.b16 %v620
        %v714 = vunpack.c.l.b16 %v621
        %v715 = vunpack.c.h.b16 %v621
        %v716 = vunpack.c.l.b16 %v622
        %v717 = vunpack.c.l.b16 %v623
        %v718 = vunpack.c.h.b16 %v623
        %v719 = vunpack.c.l.b16 %v624
        %v720 = vunpack.c.l.b16 %v625
        %v721 = vunpack.c.h.b16 %v625
        %v722 = vunpack.c.l.b16 %v626
        %v723 = vunpack.c.l.b16 %v627
        %v724 = vunpack.c.h.b16 %v627
        %v725 = vunpack.c.l.b16 %v628
        %v726 = vpack.c.b16 %v681, %v678
        %v727 = vpack.c.b16 %v682, %v679
        %v728 = vpack.c.b16 %v683, %v680
        %v729 = vpack.c.b16 %v687, %v684
        %v730 = vpack.c.b16 %v688, %v685
        %v731 = vpack.c.b16 %v689, %v686
        %v732 = vpack.c.b16 %v693, %v690
        %v733 = vpack.c.b16 %v694, %v691
        %v734 = vpack.c.b16 %v695, %v692
        %v735 = vpack.c.b16 %v699, %v696
        %v736 = vpack.c.b16 %v700, %v697
        %v737 = vpack.c.b16 %v701, %v698
        %v738 = vpack.c.b16 %v705, %v702
        %v739 = vpack.c.b16 %v706, %v703
        %v740 = vpack.c.b16 %v707, %v704
        %v741 = vpack.c.b16 %v711, %v708
        %v742 = vpack.c.b16 %v712, %v709
        %v743 = vpack.c.b16 %v713, %v710
        %v744 = vpack.c.b16 %v717, %v714
        %v745 = vpack.c.b16 %v718, %v715
        %v746 = vpack.c.b16 %v719, %v716
        %v747 = vpack.c.b16 %v723, %v720
        %v748 = vpack.c.b16 %v724, %v721
        %v749 = vpack.c.b16 %v725, %v722
        %774 = vmatprep.subr.bf16.mxu0 %v727
        %775 = vmatpush1.bf16.msra.mxu0 %v726
        %776 = vmatprep.subr.bf16.mxu0 %v730
        %777 = vmatpush1.bf16.msra.mxu0 %v729
        %778 = vmatprep.subr.bf16.mxu0 %v733
        %779 = vmatpush1.bf16.msra.mxu0 %v732
        %780 = vmatprep.subr.bf16.mxu0 %v736
        %781 = vmatpush1.bf16.msra.mxu0 %v735
        %782 = vmatprep.subr.bf16.mxu0 %v739
        %783 = vmatpush1.bf16.msra.mxu0 %v738
        %784 = vmatprep.subr.bf16.mxu0 %v742
        %785 = vmatpush1.bf16.msra.mxu0 %v741
        %786 = vmatprep.subr.bf16.mxu0 %v745
        %787 = vmatpush1.bf16.msra.mxu0 %v744
        %788 = vmatprep.subr.bf16.mxu0 %v748
        %789 = vmatpush1.bf16.msra.mxu0 %v747
        %790 = vmatprep.subr.bf16.mxu0 0
        %791 = vmatpush1.bf16.msra.mxu0 0
        %792 = vmatprep.subr.bf16.mxu0 0
        %793 = vmatpush1.bf16.msra.mxu0 0
        %794 = vmatprep.subr.bf16.mxu0 0
        %795 = vmatpush1.bf16.msra.mxu0 0
        %796 = vmatprep.subr.bf16.mxu0 0
        %797 = vmatpush1.bf16.msra.mxu0 0
        %798 = vmatprep.subr.bf16.mxu0 0
        %799 = vmatpush1.bf16.msra.mxu0 0
        %800 = vmatprep.subr.bf16.mxu0 0
        %801 = vmatpush1.bf16.msra.mxu0 0
        %802 = vmatprep.subr.bf16.mxu0 0
        %803 = vmatpush1.bf16.msra.mxu0 0
        %804 = vmatprep.subr.bf16.mxu0 0
        %805 = vmatpush1.bf16.msra.mxu0 0
        %806 = vmatprep.mubr.bf16.mxu0 0
        %807 = vmatmul.mubr.bf16.gmra.mrb[0].mxu0 %v596
        %v808 = vpop.f32.mrb[0].mxu0
        %v809 = vadd.f32 %v634, %v808
        %v810 = vpop.f32.mrb[0].mxu0
        %v811 = vadd.f32 %v638, %v810
        %v812 = vpop.f32.mrb[0].mxu0
        %v813 = vpop.f32.mrb[0].mxu0
        %814 = vdwg.mxu0
        %815 = vmatprep.subr.bf16.mxu0 0
        %816 = vmatpush1.bf16.msra.mxu0 %v728
        %817 = vmatprep.subr.bf16.mxu0 0
        %818 = vmatpush1.bf16.msra.mxu0 %v731
        %819 = vmatprep.subr.bf16.mxu0 0
        %820 = vmatpush1.bf16.msra.mxu0 %v734
        %821 = vmatprep.subr.bf16.mxu0 0
        %822 = vmatpush1.bf16.msra.mxu0 %v737
        %823 = vmatprep.subr.bf16.mxu0 0
        %824 = vmatpush1.bf16.msra.mxu0 %v740
        %825 = vmatprep.subr.bf16.mxu0 0
        %826 = vmatpush1.bf16.msra.mxu0 %v743
        %827 = vmatprep.subr.bf16.mxu0 0
        %828 = vmatpush1.bf16.msra.mxu0 %v746
        %829 = vmatprep.subr.bf16.mxu0 0
        %830 = vmatpush1.bf16.msra.mxu0 %v749
        %831 = vmatprep.subr.bf16.mxu0 0
        %832 = vmatpush1.bf16.msra.mxu0 0
        %833 = vmatprep.subr.bf16.mxu0 0
        %834 = vmatpush1.bf16.msra.mxu0 0
        %835 = vmatprep.subr.bf16.mxu0 0
        %836 = vmatpush1.bf16.msra.mxu0 0
        %837 = vmatprep.subr.bf16.mxu0 0
        %838 = vmatpush1.bf16.msra.mxu0 0
        %839 = vmatprep.subr.bf16.mxu0 0
        %840 = vmatpush1.bf16.msra.mxu0 0
        %841 = vmatprep.subr.bf16.mxu0 0
        %842 = vmatpush1.bf16.msra.mxu0 0
        %843 = vmatprep.subr.bf16.mxu0 0
        %844 = vmatpush1.bf16.msra.mxu0 0
        %845 = vmatprep.subr.bf16.mxu0 0
        %846 = vmatpush1.bf16.msra.mxu0 0
        %847 = vmatprep.mubr.bf16.mxu0 0
        %848 = vmatmul.mubr.bf16.gmra.mrb[0].mxu0 %v596
        %v849 = vpop.f32.mrb[0].mxu0
        %v850 = vadd.f32 %v642, %v849
        %v851 = vpop.f32.mrb[0].mxu0
        %v852 = vpop.f32.mrb[0].mxu0
        %v853 = vpop.f32.mrb[0].mxu0
        %854 = vdwg.mxu0
        %v855 = vadd.f32 %v593, %v809
        %v856 = vxor.u32 %v855, 2147483648
        %v857 = vmul.f32 %v856, 1.442695
        %v858 = vpow.pop %v857
        %v859 = vadd.f32 %v858, 1.0
        %v860 = vrcp.pop %v859
        %v861 = vmul.f32 1.0, %v860
        %v862 = vadd.f32 %v594, %v811
        %v863 = vxor.u32 %v862, 2147483648
        %v864 = vmul.f32 %v863, 1.442695
        %v865 = vpow.pop %v864
        %v866 = vadd.f32 %v865, 1.0
        %v867 = vrcp.pop %v866
        %v868 = vmul.f32 1.0, %v867
        %v869 = vmul.f32 %v861, %v850
        %v870 = vadd.f32 %v595, %v869
        %v871 = vtanh.pop %v870
        %v872 = vsub.f32 1.0, %v868
        %v873 = vmul.f32 %v872, %v871
        %v874 = vmul.f32 %v868, %v592
        %v875 = vadd.f32 %v873, %v874
        %876 = vst [vmem:[#allocation20] sm:$0xff] %v875
        %s877 = scalar_lea.vmem [#allocation20], 8
        %v878 = vld [vmem:[%s877] sm:$0xff]
        %v879 = vpack.c.bf16 %v875, %v875
        %v880 = vld [vmem:[#allocation8] sm:$0xff]
        %v881 = vld [vmem:[#allocation8 + $0x8] sm:$0xf]
        %v882 = vld [vmem:[#allocation8 + $0xc] sm:$0xff]
        %v883 = vld [vmem:[#allocation8 + $0x14] sm:$0xf]
        %v884 = vld [vmem:[#allocation8 + $0x18] sm:$0xff]
        %v885 = vld [vmem:[#allocation8 + $0x20] sm:$0xf]
        %v886 = vld [vmem:[#allocation8 + $0x24] sm:$0xff]
        %v887 = vld [vmem:[#allocation8 + $0x2c] sm:$0xf]
        %v888 = vld [vmem:[#allocation8 + $0x30] sm:$0xff]
        %v889 = vld [vmem:[#allocation8 + $0x38] sm:$0xf]
        %v890 = vld [vmem:[#allocation8 + $0x3c] sm:$0xff]
        %v891 = vld [vmem:[#allocation8 + $0x44] sm:$0xf]
        %v892 = vld [vmem:[#allocation8 + $0x48] sm:$0xff]
        %v893 = vld [vmem:[#allocation8 + $0x50] sm:$0xf]
        %v894 = vld [vmem:[#allocation8 + $0x54] sm:$0xff]
        %v895 = vld [vmem:[#allocation8 + $0x5c] sm:$0xf]
        %v896 = vld [vmem:[#allocation8 + $0x60] sm:$0xff]
        %v897 = vld [vmem:[#allocation8 + $0x68] sm:$0xf]
        %v898 = vld [vmem:[#allocation8 + $0x6c] sm:$0xff]
        %v899 = vld [vmem:[#allocation8 + $0x74] sm:$0xf]
        %v900 = vld [vmem:[#allocation8 + $0x78] sm:$0xff]
        %v901 = vld [vmem:[#allocation8 + $0x80] sm:$0xf]
        %v902 = vld [vmem:[#allocation8 + $0x84] sm:$0xff]
        %v903 = vld [vmem:[#allocation8 + $0x8c] sm:$0xf]
        %v904 = vld [vmem:[#allocation8 + $0x90] sm:$0xff]
        %v905 = vld [vmem:[#allocation8 + $0x98] sm:$0xf]
        %v906 = vld [vmem:[#allocation8 + $0x9c] sm:$0xff]
        %v907 = vld [vmem:[#allocation8 + $0xa4] sm:$0xf]
        %v908 = vld [vmem:[#allocation8 + $0xa8] sm:$0xff]
        %v909 = vld [vmem:[#allocation8 + $0xb0] sm:$0xf]
        %v910 = vld [vmem:[#allocation8 + $0xb4] sm:$0xff]
        %v911 = vld [vmem:[#allocation8 + $0xbc] sm:$0xf]
        %v912 = vld [vmem:[#allocation10] sm:$0x7]
        %v914 = vlaneseq
        %v915 = vshrl.u32 %v914, 7
        %v916 = vsub.s32 0, %v915
        %v917 = vrot.slane %v912, %v916
        %v918 = vlaneseq
        %v919 = vshrl.u32 %v918, 7
        %v920 = vsub.s32 1, %v919
        %v921 = vrot.slane %v912, %v920
        %v922 = vlaneseq
        %v923 = vshrl.u32 %v922, 7
        %v924 = vsub.s32 2, %v923
        %v925 = vrot.slane %v912, %v924
        %v961 = vunpack.c.l.b16 %v880
        %v962 = vunpack.c.h.b16 %v880
        %v963 = vunpack.c.l.b16 %v881
        %v964 = vunpack.c.l.b16 %v882
        %v965 = vunpack.c.h.b16 %v882
        %v966 = vunpack.c.l.b16 %v883
        %v967 = vunpack.c.l.b16 %v884
        %v968 = vunpack.c.h.b16 %v884
        %v969 = vunpack.c.l.b16 %v885
        %v970 = vunpack.c.l.b16 %v886
        %v971 = vunpack.c.h.b16 %v886
        %v972 = vunpack.c.l.b16 %v887
        %v973 = vunpack.c.l.b16 %v888
        %v974 = vunpack.c.h.b16 %v888
        %v975 = vunpack.c.l.b16 %v889
        %v976 = vunpack.c.l.b16 %v890
        %v977 = vunpack.c.h.b16 %v890
        %v978 = vunpack.c.l.b16 %v891
        %v979 = vunpack.c.l.b16 %v892
        %v980 = vunpack.c.h.b16 %v892
        %v981 = vunpack.c.l.b16 %v893
        %v982 = vunpack.c.l.b16 %v894
        %v983 = vunpack.c.h.b16 %v894
        %v984 = vunpack.c.l.b16 %v895
        %v985 = vunpack.c.l.b16 %v896
        %v986 = vunpack.c.h.b16 %v896
        %v987 = vunpack.c.l.b16 %v897
        %v988 = vunpack.c.l.b16 %v898
        %v989 = vunpack.c.h.b16 %v898
        %v990 = vunpack.c.l.b16 %v899
        %v991 = vunpack.c.l.b16 %v900
        %v992 = vunpack.c.h.b16 %v900
        %v993 = vunpack.c.l.b16 %v901
        %v994 = vunpack.c.l.b16 %v902
        %v995 = vunpack.c.h.b16 %v902
        %v996 = vunpack.c.l.b16 %v903
        %v997 = vunpack.c.l.b16 %v904
        %v998 = vunpack.c.h.b16 %v904
        %v999 = vunpack.c.l.b16 %v905
        %v1000 = vunpack.c.l.b16 %v906
        %v1001 = vunpack.c.h.b16 %v906
        %v1002 = vunpack.c.l.b16 %v907
        %v1003 = vunpack.c.l.b16 %v908
        %v1004 = vunpack.c.h.b16 %v908
        %v1005 = vunpack.c.l.b16 %v909
        %v1006 = vunpack.c.l.b16 %v910
        %v1007 = vunpack.c.h.b16 %v910
        %v1008 = vunpack.c.l.b16 %v911
        %v1009 = vpack.c.b16 %v964, %v961
        %v1010 = vpack.c.b16 %v965, %v962
        %v1011 = vpack.c.b16 %v966, %v963
        %v1012 = vpack.c.b16 %v970, %v967
        %v1013 = vpack.c.b16 %v971, %v968
        %v1014 = vpack.c.b16 %v972, %v969
        %v1015 = vpack.c.b16 %v976, %v973
        %v1016 = vpack.c.b16 %v977, %v974
        %v1017 = vpack.c.b16 %v978, %v975
        %v1018 = vpack.c.b16 %v982, %v979
        %v1019 = vpack.c.b16 %v983, %v980
        %v1020 = vpack.c.b16 %v984, %v981
        %v1021 = vpack.c.b16 %v988, %v985
        %v1022 = vpack.c.b16 %v989, %v986
        %v1023 = vpack.c.b16 %v990, %v987
        %v1024 = vpack.c.b16 %v994, %v991
        %v1025 = vpack.c.b16 %v995, %v992
        %v1026 = vpack.c.b16 %v996, %v993
        %v1027 = vpack.c.b16 %v1000, %v997
        %v1028 = vpack.c.b16 %v1001, %v998
        %v1029 = vpack.c.b16 %v1002, %v999
        %v1030 = vpack.c.b16 %v1006, %v1003
        %v1031 = vpack.c.b16 %v1007, %v1004
        %v1032 = vpack.c.b16 %v1008, %v1005
        %1057 = vmatprep.subr.bf16.mxu0 %v1010
        %1058 = vmatpush1.bf16.msra.mxu0 %v1009
        %1059 = vmatprep.subr.bf16.mxu0 %v1013
        %1060 = vmatpush1.bf16.msra.mxu0 %v1012
        %1061 = vmatprep.subr.bf16.mxu0 %v1016
        %1062 = vmatpush1.bf16.msra.mxu0 %v1015
        %1063 = vmatprep.subr.bf16.mxu0 %v1019
        %1064 = vmatpush1.bf16.msra.mxu0 %v1018
        %1065 = vmatprep.subr.bf16.mxu0 %v1022
        %1066 = vmatpush1.bf16.msra.mxu0 %v1021
        %1067 = vmatprep.subr.bf16.mxu0 %v1025
        %1068 = vmatpush1.bf16.msra.mxu0 %v1024
        %1069 = vmatprep.subr.bf16.mxu0 %v1028
        %1070 = vmatpush1.bf16.msra.mxu0 %v1027
        %1071 = vmatprep.subr.bf16.mxu0 %v1031
        %1072 = vmatpush1.bf16.msra.mxu0 %v1030
        %1073 = vmatprep.subr.bf16.mxu0 0
        %1074 = vmatpush1.bf16.msra.mxu0 0
        %1075 = vmatprep.subr.bf16.mxu0 0
        %1076 = vmatpush1.bf16.msra.mxu0 0
        %1077 = vmatprep.subr.bf16.mxu0 0
        %1078 = vmatpush1.bf16.msra.mxu0 0
        %1079 = vmatprep.subr.bf16.mxu0 0
        %1080 = vmatpush1.bf16.msra.mxu0 0
        %1081 = vmatprep.subr.bf16.mxu0 0
        %1082 = vmatpush1.bf16.msra.mxu0 0
        %1083 = vmatprep.subr.bf16.mxu0 0
        %1084 = vmatpush1.bf16.msra.mxu0 0
        %1085 = vmatprep.subr.bf16.mxu0 0
        %1086 = vmatpush1.bf16.msra.mxu0 0
        %1087 = vmatprep.subr.bf16.mxu0 0
        %1088 = vmatpush1.bf16.msra.mxu0 0
        %1089 = vmatprep.mubr.bf16.mxu0 0
        %1090 = vmatmul.mubr.bf16.gmra.mrb[0].mxu0 %v879
        %v1091 = vpop.f32.mrb[0].mxu0
        %v1092 = vadd.f32 %v917, %v1091
        %v1093 = vpop.f32.mrb[0].mxu0
        %v1094 = vadd.f32 %v921, %v1093
        %v1095 = vpop.f32.mrb[0].mxu0
        %v1096 = vpop.f32.mrb[0].mxu0
        %1097 = vdwg.mxu0
        %1098 = vmatprep.subr.bf16.mxu0 0
        %1099 = vmatpush1.bf16.msra.mxu0 %v1011
        %1100 = vmatprep.subr.bf16.mxu0 0
        %1101 = vmatpush1.bf16.msra.mxu0 %v1014
        %1102 = vmatprep.subr.bf16.mxu0 0
        %1103 = vmatpush1.bf16.msra.mxu0 %v1017
        %1104 = vmatprep.subr.bf16.mxu0 0
        %1105 = vmatpush1.bf16.msra.mxu0 %v1020
        %1106 = vmatprep.subr.bf16.mxu0 0
        %1107 = vmatpush1.bf16.msra.mxu0 %v1023
        %1108 = vmatprep.subr.bf16.mxu0 0
        %1109 = vmatpush1.bf16.msra.mxu0 %v1026
        %1110 = vmatprep.subr.bf16.mxu0 0
        %1111 = vmatpush1.bf16.msra.mxu0 %v1029
        %1112 = vmatprep.subr.bf16.mxu0 0
        %1113 = vmatpush1.bf16.msra.mxu0 %v1032
        %1114 = vmatprep.subr.bf16.mxu0 0
        %1115 = vmatpush1.bf16.msra.mxu0 0
        %1116 = vmatprep.subr.bf16.mxu0 0
        %1117 = vmatpush1.bf16.msra.mxu0 0
        %1118 = vmatprep.subr.bf16.mxu0 0
        %1119 = vmatpush1.bf16.msra.mxu0 0
        %1120 = vmatprep.subr.bf16.mxu0 0
        %1121 = vmatpush1.bf16.msra.mxu0 0
        %1122 = vmatprep.subr.bf16.mxu0 0
        %1123 = vmatpush1.bf16.msra.mxu0 0
        %1124 = vmatprep.subr.bf16.mxu0 0
        %1125 = vmatpush1.bf16.msra.mxu0 0
        %1126 = vmatprep.subr.bf16.mxu0 0
        %1127 = vmatpush1.bf16.msra.mxu0 0
        %1128 = vmatprep.subr.bf16.mxu0 0
        %1129 = vmatpush1.bf16.msra.mxu0 0
        %1130 = vmatprep.mubr.bf16.mxu0 0
        %1131 = vmatmul.mubr.bf16.gmra.mrb[0].mxu0 %v879
        %v1132 = vpop.f32.mrb[0].mxu0
        %v1133 = vadd.f32 %v925, %v1132
        %v1134 = vpop.f32.mrb[0].mxu0
        %v1135 = vpop.f32.mrb[0].mxu0
        %v1136 = vpop.f32.mrb[0].mxu0
        %1137 = vdwg.mxu0
        %v1138 = vpack.c.bf16 %v878, %v878
        %s1139 = scalar_lea.vmem [#allocation11], 192
        %v1140 = vld [vmem:[%s1139] sm:$0xff]
        %v1141 = vld [vmem:[%s1139 + $0x8] sm:$0xf]
        %v1142 = vld [vmem:[%s1139 + $0xc] sm:$0xff]
        %v1143 = vld [vmem:[%s1139 + $0x14] sm:$0xf]
        %v1144 = vld [vmem:[%s1139 + $0x18] sm:$0xff]
        %v1145 = vld [vmem:[%s1139 + $0x20] sm:$0xf]
        %v1146 = vld [vmem:[%s1139 + $0x24] sm:$0xff]
        %v1147 = vld [vmem:[%s1139 + $0x2c] sm:$0xf]
        %v1148 = vld [vmem:[%s1139 + $0x30] sm:$0xff]
        %v1149 = vld [vmem:[%s1139 + $0x38] sm:$0xf]
        %v1150 = vld [vmem:[%s1139 + $0x3c] sm:$0xff]
        %v1151 = vld [vmem:[%s1139 + $0x44] sm:$0xf]
        %v1152 = vld [vmem:[%s1139 + $0x48] sm:$0xff]
        %v1153 = vld [vmem:[%s1139 + $0x50] sm:$0xf]
        %v1154 = vld [vmem:[%s1139 + $0x54] sm:$0xff]
        %v1155 = vld [vmem:[%s1139 + $0x5c] sm:$0xf]
        %v1156 = vld [vmem:[%s1139 + $0x60] sm:$0xff]
        %v1157 = vld [vmem:[%s1139 + $0x68] sm:$0xf]
        %v1158 = vld [vmem:[%s1139 + $0x6c] sm:$0xff]
        %v1159 = vld [vmem:[%s1139 + $0x74] sm:$0xf]
        %v1160 = vld [vmem:[%s1139 + $0x78] sm:$0xff]
        %v1161 = vld [vmem:[%s1139 + $0x80] sm:$0xf]
        %v1162 = vld [vmem:[%s1139 + $0x84] sm:$0xff]
        %v1163 = vld [vmem:[%s1139 + $0x8c] sm:$0xf]
        %v1164 = vld [vmem:[%s1139 + $0x90] sm:$0xff]
        %v1165 = vld [vmem:[%s1139 + $0x98] sm:$0xf]
        %v1166 = vld [vmem:[%s1139 + $0x9c] sm:$0xff]
        %v1167 = vld [vmem:[%s1139 + $0xa4] sm:$0xf]
        %v1168 = vld [vmem:[%s1139 + $0xa8] sm:$0xff]
        %v1169 = vld [vmem:[%s1139 + $0xb0] sm:$0xf]
        %v1170 = vld [vmem:[%s1139 + $0xb4] sm:$0xff]
        %v1171 = vld [vmem:[%s1139 + $0xbc] sm:$0xf]
        %s1172 = scalar_lea.vmem [#allocation13], 3
        %v1173 = vld [vmem:[%s1172] sm:$0x7]
        %v1175 = vlaneseq
        %v1176 = vshrl.u32 %v1175, 7
        %v1177 = vsub.s32 0, %v1176
        %v1178 = vrot.slane %v1173, %v1177
        %v1179 = vlaneseq
        %v1180 = vshrl.u32 %v1179, 7
        %v1181 = vsub.s32 1, %v1180
        %v1182 = vrot.slane %v1173, %v1181
        %v1183 = vlaneseq
        %v1184 = vshrl.u32 %v1183, 7
        %v1185 = vsub.s32 2, %v1184
        %v1186 = vrot.slane %v1173, %v1185
        %v1222 = vunpack.c.l.b16 %v1140
        %v1223 = vunpack.c.h.b16 %v1140
        %v1224 = vunpack.c.l.b16 %v1141
        %v1225 = vunpack.c.l.b16 %v1142
        %v1226 = vunpack.c.h.b16 %v1142
        %v1227 = vunpack.c.l.b16 %v1143
        %v1228 = vunpack.c.l.b16 %v1144
        %v1229 = vunpack.c.h.b16 %v1144
        %v1230 = vunpack.c.l.b16 %v1145
        %v1231 = vunpack.c.l.b16 %v1146
        %v1232 = vunpack.c.h.b16 %v1146
        %v1233 = vunpack.c.l.b16 %v1147
        %v1234 = vunpack.c.l.b16 %v1148
        %v1235 = vunpack.c.h.b16 %v1148
        %v1236 = vunpack.c.l.b16 %v1149
        %v1237 = vunpack.c.l.b16 %v1150
        %v1238 = vunpack.c.h.b16 %v1150
        %v1239 = vunpack.c.l.b16 %v1151
        %v1240 = vunpack.c.l.b16 %v1152
        %v1241 = vunpack.c.h.b16 %v1152
        %v1242 = vunpack.c.l.b16 %v1153
        %v1243 = vunpack.c.l.b16 %v1154
        %v1244 = vunpack.c.h.b16 %v1154
        %v1245 = vunpack.c.l.b16 %v1155
        %v1246 = vunpack.c.l.b16 %v1156
        %v1247 = vunpack.c.h.b16 %v1156
        %v1248 = vunpack.c.l.b16 %v1157
        %v1249 = vunpack.c.l.b16 %v1158
        %v1250 = vunpack.c.h.b16 %v1158
        %v1251 = vunpack.c.l.b16 %v1159
        %v1252 = vunpack.c.l.b16 %v1160
        %v1253 = vunpack.c.h.b16 %v1160
        %v1254 = vunpack.c.l.b16 %v1161
        %v1255 = vunpack.c.l.b16 %v1162
        %v1256 = vunpack.c.h.b16 %v1162
        %v1257 = vunpack.c.l.b16 %v1163
        %v1258 = vunpack.c.l.b16 %v1164
        %v1259 = vunpack.c.h.b16 %v1164
        %v1260 = vunpack.c.l.b16 %v1165
        %v1261 = vunpack.c.l.b16 %v1166
        %v1262 = vunpack.c.h.b16 %v1166
        %v1263 = vunpack.c.l.b16 %v1167
        %v1264 = vunpack.c.l.b16 %v1168
        %v1265 = vunpack.c.h.b16 %v1168
        %v1266 = vunpack.c.l.b16 %v1169
        %v1267 = vunpack.c.l.b16 %v1170
        %v1268 = vunpack.c.h.b16 %v1170
        %v1269 = vunpack.c.l.b16 %v1171
        %v1270 = vpack.c.b16 %v1225, %v1222
        %v1271 = vpack.c.b16 %v1226, %v1223
        %v1272 = vpack.c.b16 %v1227, %v1224
        %v1273 = vpack.c.b16 %v1231, %v1228
        %v1274 = vpack.c.b16 %v1232, %v1229
        %v1275 = vpack.c.b16 %v1233, %v1230
        %v1276 = vpack.c.b16 %v1237, %v1234
        %v1277 = vpack.c.b16 %v1238, %v1235
        %v1278 = vpack.c.b16 %v1239, %v1236
        %v1279 = vpack.c.b16 %v1243, %v1240
        %v1280 = vpack.c.b16 %v1244, %v1241
        %v1281 = vpack.c.b16 %v1245, %v1242
        %v1282 = vpack.c.b16 %v1249, %v1246
        %v1283 = vpack.c.b16 %v1250, %v1247
        %v1284 = vpack.c.b16 %v1251, %v1248
        %v1285 = vpack.c.b16 %v1255, %v1252
        %v1286 = vpack.c.b16 %v1256, %v1253
        %v1287 = vpack.c.b16 %v1257, %v1254
        %v1288 = vpack.c.b16 %v1261, %v1258
        %v1289 = vpack.c.b16 %v1262, %v1259
        %v1290 = vpack.c.b16 %v1263, %v1260
        %v1291 = vpack.c.b16 %v1267, %v1264
        %v1292 = vpack.c.b16 %v1268, %v1265
        %v1293 = vpack.c.b16 %v1269, %v1266
        %1318 = vmatprep.subr.bf16.mxu0 %v1271
        %1319 = vmatpush1.bf16.msra.mxu0 %v1270
        %1320 = vmatprep.subr.bf16.mxu0 %v1274
        %1321 = vmatpush1.bf16.msra.mxu0 %v1273
        %1322 = vmatprep.subr.bf16.mxu0 %v1277
        %1323 = vmatpush1.bf16.msra.mxu0 %v1276
        %1324 = vmatprep.subr.bf16.mxu0 %v1280
        %1325 = vmatpush1.bf16.msra.mxu0 %v1279
        %1326 = vmatprep.subr.bf16.mxu0 %v1283
        %1327 = vmatpush1.bf16.msra.mxu0 %v1282
        %1328 = vmatprep.subr.bf16.mxu0 %v1286
        %1329 = vmatpush1.bf16.msra.mxu0 %v1285
        %1330 = vmatprep.subr.bf16.mxu0 %v1289
        %1331 = vmatpush1.bf16.msra.mxu0 %v1288
        %1332 = vmatprep.subr.bf16.mxu0 %v1292
        %1333 = vmatpush1.bf16.msra.mxu0 %v1291
        %1334 = vmatprep.subr.bf16.mxu0 0
        %1335 = vmatpush1.bf16.msra.mxu0 0
        %1336 = vmatprep.subr.bf16.mxu0 0
        %1337 = vmatpush1.bf16.msra.mxu0 0
        %1338 = vmatprep.subr.bf16.mxu0 0
        %1339 = vmatpush1.bf16.msra.mxu0 0
        %1340 = vmatprep.subr.bf16.mxu0 0
        %1341 = vmatpush1.bf16.msra.mxu0 0
        %1342 = vmatprep.subr.bf16.mxu0 0
        %1343 = vmatpush1.bf16.msra.mxu0 0
        %1344 = vmatprep.subr.bf16.mxu0 0
        %1345 = vmatpush1.bf16.msra.mxu0 0
        %1346 = vmatprep.subr.bf16.mxu0 0
        %1347 = vmatpush1.bf16.msra.mxu0 0
        %1348 = vmatprep.subr.bf16.mxu0 0
        %1349 = vmatpush1.bf16.msra.mxu0 0
        %1350 = vmatprep.mubr.bf16.mxu0 0
        %1351 = vmatmul.mubr.bf16.gmra.mrb[0].mxu0 %v1138
        %v1352 = vpop.f32.mrb[0].mxu0
        %v1353 = vadd.f32 %v1178, %v1352
        %v1354 = vpop.f32.mrb[0].mxu0
        %v1355 = vadd.f32 %v1182, %v1354
        %v1356 = vpop.f32.mrb[0].mxu0
        %v1357 = vpop.f32.mrb[0].mxu0
        %1358 = vdwg.mxu0
        %1359 = vmatprep.subr.bf16.mxu0 0
        %1360 = vmatpush1.bf16.msra.mxu0 %v1272
        %1361 = vmatprep.subr.bf16.mxu0 0
        %1362 = vmatpush1.bf16.msra.mxu0 %v1275
        %1363 = vmatprep.subr.bf16.mxu0 0
        %1364 = vmatpush1.bf16.msra.mxu0 %v1278
        %1365 = vmatprep.subr.bf16.mxu0 0
        %1366 = vmatpush1.bf16.msra.mxu0 %v1281
        %1367 = vmatprep.subr.bf16.mxu0 0
        %1368 = vmatpush1.bf16.msra.mxu0 %v1284
        %1369 = vmatprep.subr.bf16.mxu0 0
        %1370 = vmatpush1.bf16.msra.mxu0 %v1287
        %1371 = vmatprep.subr.bf16.mxu0 0
        %1372 = vmatpush1.bf16.msra.mxu0 %v1290
        %1373 = vmatprep.subr.bf16.mxu0 0
        %1374 = vmatpush1.bf16.msra.mxu0 %v1293
        %1375 = vmatprep.subr.bf16.mxu0 0
        %1376 = vmatpush1.bf16.msra.mxu0 0
        %1377 = vmatprep.subr.bf16.mxu0 0
        %1378 = vmatpush1.bf16.msra.mxu0 0
        %1379 = vmatprep.subr.bf16.mxu0 0
        %1380 = vmatpush1.bf16.msra.mxu0 0
        %1381 = vmatprep.subr.bf16.mxu0 0
        %1382 = vmatpush1.bf16.msra.mxu0 0
        %1383 = vmatprep.subr.bf16.mxu0 0
        %1384 = vmatpush1.bf16.msra.mxu0 0
        %1385 = vmatprep.subr.bf16.mxu0 0
        %1386 = vmatpush1.bf16.msra.mxu0 0
        %1387 = vmatprep.subr.bf16.mxu0 0
        %1388 = vmatpush1.bf16.msra.mxu0 0
        %1389 = vmatprep.subr.bf16.mxu0 0
        %1390 = vmatpush1.bf16.msra.mxu0 0
        %1391 = vmatprep.mubr.bf16.mxu0 0
        %1392 = vmatmul.mubr.bf16.gmra.mrb[0].mxu0 %v1138
        %v1393 = vpop.f32.mrb[0].mxu0
        %v1394 = vadd.f32 %v1186, %v1393
        %v1395 = vpop.f32.mrb[0].mxu0
        %v1396 = vpop.f32.mrb[0].mxu0
        %v1397 = vpop.f32.mrb[0].mxu0
        %1398 = vdwg.mxu0
        %v1399 = vadd.f32 %v1092, %v1353
        %v1400 = vxor.u32 %v1399, 2147483648
        %v1401 = vmul.f32 %v1400, 1.442695
        %v1402 = vpow.pop %v1401
        %v1403 = vadd.f32 %v1402, 1.0
        %v1404 = vrcp.pop %v1403
        %v1405 = vmul.f32 1.0, %v1404
        %v1406 = vadd.f32 %v1094, %v1355
        %v1407 = vxor.u32 %v1406, 2147483648
        %v1408 = vmul.f32 %v1407, 1.442695
        %v1409 = vpow.pop %v1408
        %v1410 = vadd.f32 %v1409, 1.0
        %v1411 = vrcp.pop %v1410
        %v1412 = vmul.f32 1.0, %v1411
        %v1413 = vmul.f32 %v1405, %v1394
        %v1414 = vadd.f32 %v1133, %v1413
        %v1415 = vtanh.pop %v1414
        %v1416 = vsub.f32 1.0, %v1412
        %v1417 = vmul.f32 %v1416, %v1415
        %v1418 = vmul.f32 %v1412, %v878
        %v1419 = vadd.f32 %v1417, %v1418
        %1420 = vst [vmem:[%s877] sm:$0xff] %v1419
        %v1421 = vpack.c.bf16 %v1419, %v1419
        %v1422 = vld [vmem:[#allocation14] sm:$0xf]
        %v1423 = vld [vmem:[#allocation14 + $0x4] sm:$0xf]
        %v1424 = vld [vmem:[#allocation14 + $0x8] sm:$0xf]
        %v1425 = vld [vmem:[#allocation14 + $0xc] sm:$0xf]
        %v1426 = vld [vmem:[#allocation14 + $0x10] sm:$0xf]
        %v1427 = vld [vmem:[#allocation14 + $0x14] sm:$0xf]
        %v1428 = vld [vmem:[#allocation14 + $0x18] sm:$0xf]
        %v1429 = vld [vmem:[#allocation14 + $0x1c] sm:$0xf]
        %v1430 = vld [vmem:[#allocation14 + $0x20] sm:$0xf]
        %v1431 = vld [vmem:[#allocation14 + $0x24] sm:$0xf]
        %v1432 = vld [vmem:[#allocation14 + $0x28] sm:$0xf]
        %v1433 = vld [vmem:[#allocation14 + $0x2c] sm:$0xf]
        %v1434 = vld [vmem:[#allocation14 + $0x30] sm:$0xf]
        %v1435 = vld [vmem:[#allocation14 + $0x34] sm:$0xf]
        %v1436 = vld [vmem:[#allocation14 + $0x38] sm:$0xf]
        %v1437 = vld [vmem:[#allocation14 + $0x3c] sm:$0xf]
        %v1454 = vunpack.c.l.b16 %v1422
        %v1455 = vunpack.c.l.b16 %v1423
        %v1456 = vunpack.c.l.b16 %v1424
        %v1457 = vunpack.c.l.b16 %v1425
        %v1458 = vunpack.c.l.b16 %v1426
        %v1459 = vunpack.c.l.b16 %v1427
        %v1460 = vunpack.c.l.b16 %v1428
        %v1461 = vunpack.c.l.b16 %v1429
        %v1462 = vunpack.c.l.b16 %v1430
        %v1463 = vunpack.c.l.b16 %v1431
        %v1464 = vunpack.c.l.b16 %v1432
        %v1465 = vunpack.c.l.b16 %v1433
        %v1466 = vunpack.c.l.b16 %v1434
        %v1467 = vunpack.c.l.b16 %v1435
        %v1468 = vunpack.c.l.b16 %v1436
        %v1469 = vunpack.c.l.b16 %v1437
        %v1470 = vpack.c.b16 %v1455, %v1454
        %v1471 = vpack.c.b16 %v1457, %v1456
        %v1472 = vpack.c.b16 %v1459, %v1458
        %v1473 = vpack.c.b16 %v1461, %v1460
        %v1474 = vpack.c.b16 %v1463, %v1462
        %v1475 = vpack.c.b16 %v1465, %v1464
        %v1476 = vpack.c.b16 %v1467, %v1466
        %v1477 = vpack.c.b16 %v1469, %v1468
        %1486 = vmatprep.subr.bf16.mxu0 0
        %1487 = vmatpush1.bf16.msra.mxu0 %v1470
        %1488 = vmatprep.subr.bf16.mxu0 0
        %1489 = vmatpush1.bf16.msra.mxu0 %v1471
        %1490 = vmatprep.subr.bf16.mxu0 0
        %1491 = vmatpush1.bf16.msra.mxu0 %v1472
        %1492 = vmatprep.subr.bf16.mxu0 0
        %1493 = vmatpush1.bf16.msra.mxu0 %v1473
        %1494 = vmatprep.subr.bf16.mxu0 0
        %1495 = vmatpush1.bf16.msra.mxu0 %v1474
        %1496 = vmatprep.subr.bf16.mxu0 0
        %1497 = vmatpush1.bf16.msra.mxu0 %v1475
        %1498 = vmatprep.subr.bf16.mxu0 0
        %1499 = vmatpush1.bf16.msra.mxu0 %v1476
        %1500 = vmatprep.subr.bf16.mxu0 0
        %1501 = vmatpush1.bf16.msra.mxu0 %v1477
        %1502 = vmatprep.subr.bf16.mxu0 0
        %1503 = vmatpush1.bf16.msra.mxu0 0
        %1504 = vmatprep.subr.bf16.mxu0 0
        %1505 = vmatpush1.bf16.msra.mxu0 0
        %1506 = vmatprep.subr.bf16.mxu0 0
        %1507 = vmatpush1.bf16.msra.mxu0 0
        %1508 = vmatprep.subr.bf16.mxu0 0
        %1509 = vmatpush1.bf16.msra.mxu0 0
        %1510 = vmatprep.subr.bf16.mxu0 0
        %1511 = vmatpush1.bf16.msra.mxu0 0
        %1512 = vmatprep.subr.bf16.mxu0 0
        %1513 = vmatpush1.bf16.msra.mxu0 0
        %1514 = vmatprep.subr.bf16.mxu0 0
        %1515 = vmatpush1.bf16.msra.mxu0 0
        %1516 = vmatprep.subr.bf16.mxu0 0
        %1517 = vmatpush1.bf16.msra.mxu0 0
        %1518 = vmatprep.mubr.bf16.mxu0 0
        %1519 = vmatmul.mubr.bf16.gmra.mrb[0].mxu0 %v1421
        %v1520 = vpop.f32.mrb[0].mxu0
        %v1521 = vadd.f32 0.0, %v1520
        %v1522 = vpop.f32.mrb[0].mxu0
        %v1523 = vpop.f32.mrb[0].mxu0
        %v1524 = vpop.f32.mrb[0].mxu0
        %1525 = vdwg.mxu0
        %v1527 = vcombine.high %v1521, %v1521
        %v1529 = vunpack.c.l.s4 1966171168
        %v1530 = vunpack.c.0.s8 %v1529
        %v1531 = vlaneseq
        %v1532 = vshrl.u32 %v1531, 7
        %v1533 = vsub.s32 %v1530, %v1532
        %v1534 = vrot.slane %v1521, %v1533
        %v1536 = vunpack.c.l.s4 1966171168
        %v1537 = vunpack.c.0.s8 %v1536
        %v1538 = vlaneseq
        %v1539 = vshrl.u32 %v1538, 7
        %v1540 = vsub.s32 %v1537, %v1539
        %v1541 = vrot.slane %v1527, %v1540
        %v1542 = vcombine.high %v1534, %v1534
        %v1543 = vcombine.high %v1541, %v1541
        %v1545 = vunpack.c.l.s4 1966171168
        %v1546 = vunpack.c.0.s8 %v1545
        %v1547 = vlaneseq
        %v1548 = vshrl.u32 %v1547, 7
        %v1549 = vsub.s32 %v1546, %v1548
        %v1550 = vrot.slane %v1534, %v1549
        %v1552 = vunpack.c.l.s4 1966171168
        %v1553 = vunpack.c.0.s8 %v1552
        %v1554 = vlaneseq
        %v1555 = vshrl.u32 %v1554, 7
        %v1556 = vsub.s32 %v1553, %v1555
        %v1557 = vrot.slane %v1541, %v1556
        %v1559 = vunpack.c.l.s4 1966171168
        %v1560 = vunpack.c.0.s8 %v1559
        %v1561 = vlaneseq
        %v1562 = vshrl.u32 %v1561, 7
        %v1563 = vsub.s32 %v1560, %v1562
        %v1564 = vrot.slane %v1542, %v1563
        %v1566 = vunpack.c.l.s4 1966171168
        %v1567 = vunpack.c.0.s8 %v1566
        %v1568 = vlaneseq
        %v1569 = vshrl.u32 %v1568, 7
        %v1570 = vsub.s32 %v1567, %v1569
        %v1571 = vrot.slane %v1543, %v1570
        %v1572 = vcombine.high %v1550, %v1550
        %v1573 = vcombine.high %v1557, %v1557
        %v1574 = vcombine.high %v1564, %v1564
        %v1575 = vcombine.high %v1571, %v1571
        %v1584 = vpack.c.bf16 %v1550, %v1550
        %v1585 = vpack.c.bf16 %v1564, %v1564
        %v1586 = vpack.c.bf16 %v1572, %v1572
        %v1587 = vpack.c.bf16 %v1574, %v1574
        %v1588 = vpack.c.bf16 %v1557, %v1557
        %v1589 = vpack.c.bf16 %v1571, %v1571
        %v1590 = vpack.c.bf16 %v1573, %v1573
        %v1591 = vpack.c.bf16 %v1575, %v1575
        %1592 = vmatprep.subr.bf16.mxu0 0
        %1593 = vmatpush1.bf16.xpose.msra.mxu0 %v584
        %1594 = vmatprep.subr.bf16.mxu0 0
        %1595 = vmatpush1.bf16.xpose.msra.mxu0 0
        %1596 = vmatprep.subr.bf16.mxu0 0
        %1597 = vmatpush1.bf16.xpose.msra.mxu0 0
        %1598 = vmatprep.subr.bf16.mxu0 0
        %1599 = vmatpush1.bf16.xpose.msra.mxu0 0
        %1600 = vmatprep.subr.bf16.mxu0 0
        %1601 = vmatpush1.bf16.xpose.msra.mxu0 0
        %1602 = vmatprep.subr.bf16.mxu0 0
        %1603 = vmatpush1.bf16.xpose.msra.mxu0 0
        %1604 = vmatprep.subr.bf16.mxu0 0
        %1605 = vmatpush1.bf16.xpose.msra.mxu0 0
        %1606 = vmatprep.subr.bf16.mxu0 0
        %1607 = vmatpush1.bf16.xpose.msra.mxu0 0
        %1608 = vmatprep.subr.bf16.mxu0 0
        %1609 = vmatpush1.bf16.xpose.msra.mxu0 0
        %1610 = vmatprep.subr.bf16.mxu0 0
        %1611 = vmatpush1.bf16.xpose.msra.mxu0 0
        %1612 = vmatprep.subr.bf16.mxu0 0
        %1613 = vmatpush1.bf16.xpose.msra.mxu0 0
        %1614 = vmatprep.subr.bf16.mxu0 0
        %1615 = vmatpush1.bf16.xpose.msra.mxu0 0
        %1616 = vmatprep.subr.bf16.mxu0 0
        %1617 = vmatpush1.bf16.xpose.msra.mxu0 0
        %1618 = vmatprep.subr.bf16.mxu0 0
        %1619 = vmatpush1.bf16.xpose.msra.mxu0 0
        %1620 = vmatprep.subr.bf16.mxu0 0
        %1621 = vmatpush1.bf16.xpose.msra.mxu0 0
        %1622 = vmatprep.subr.bf16.mxu0 0
        %1623 = vmatpush1.bf16.xpose.msra.mxu0 0
        %1624 = vmatprep.mubr.bf16.mxu0 0
        %1625 = vmatmul.mubr.bf16.gmra.mrb[0].mxu0 %v1584
        %v1626 = vpop.f32.mrb[0].mxu0
        %v1627 = vadd.f32 0.0, %v1626
        %v1628 = vpop.f32.mrb[0].mxu0
        %v1629 = vpop.f32.mrb[0].mxu0
        %v1630 = vpop.f32.mrb[0].mxu0
        %1631 = vdwg.mxu0
        %1632 = vmatprep.subr.bf16.mxu0 0
        %1633 = vmatpush1.bf16.xpose.msra.mxu0 %v585
        %1634 = vmatprep.subr.bf16.mxu0 0
        %1635 = vmatpush1.bf16.xpose.msra.mxu0 0
        %1636 = vmatprep.subr.bf16.mxu0 0
        %1637 = vmatpush1.bf16.xpose.msra.mxu0 0
        %1638 = vmatprep.subr.bf16.mxu0 0
        %1639 = vmatpush1.bf16.xpose.msra.mxu0 0
        %1640 = vmatprep.subr.bf16.mxu0 0
        %1641 = vmatpush1.bf16.xpose.msra.mxu0 0
        %1642 = vmatprep.subr.bf16.mxu0 0
        %1643 = vmatpush1.bf16.xpose.msra.mxu0 0
        %1644 = vmatprep.subr.bf16.mxu0 0
        %1645 = vmatpush1.bf16.xpose.msra.mxu0 0
        %1646 = vmatprep.subr.bf16.mxu0 0
        %1647 = vmatpush1.bf16.xpose.msra.mxu0 0
        %1648 = vmatprep.subr.bf16.mxu0 0
        %1649 = vmatpush1.bf16.xpose.msra.mxu0 0
        %1650 = vmatprep.subr.bf16.mxu0 0
        %1651 = vmatpush1.bf16.xpose.msra.mxu0 0
        %1652 = vmatprep.subr.bf16.mxu0 0
        %1653 = vmatpush1.bf16.xpose.msra.mxu0 0
        %1654 = vmatprep.subr.bf16.mxu0 0
        %1655 = vmatpush1.bf16.xpose.msra.mxu0 0
        %1656 = vmatprep.subr.bf16.mxu0 0
        %1657 = vmatpush1.bf16.xpose.msra.mxu0 0
        %1658 = vmatprep.subr.bf16.mxu0 0
        %1659 = vmatpush1.bf16.xpose.msra.mxu0 0
        %1660 = vmatprep.subr.bf16.mxu0 0
        %1661 = vmatpush1.bf16.xpose.msra.mxu0 0
        %1662 = vmatprep.subr.bf16.mxu0 0
        %1663 = vmatpush1.bf16.xpose.msra.mxu0 0
        %1664 = vmatprep.mubr.bf16.mxu0 0
        %1665 = vmatmul.mubr.bf16.gmra.mrb[0].mxu0 %v1585
        %v1666 = vpop.f32.mrb[0].mxu0
        %v1667 = vadd.f32 0.0, %v1666
        %v1668 = vpop.f32.mrb[0].mxu0
        %v1669 = vpop.f32.mrb[0].mxu0
        %v1670 = vpop.f32.mrb[0].mxu0
        %1671 = vdwg.mxu0
        %1672 = vmatprep.subr.bf16.mxu0 0
        %1673 = vmatpush1.bf16.xpose.msra.mxu0 %v586
        %1674 = vmatprep.subr.bf16.mxu0 0
        %1675 = vmatpush1.bf16.xpose.msra.mxu0 0
        %1676 = vmatprep.subr.bf16.mxu0 0
        %1677 = vmatpush1.bf16.xpose.msra.mxu0 0
        %1678 = vmatprep.subr.bf16.mxu0 0
        %1679 = vmatpush1.bf16.xpose.msra.mxu0 0
        %1680 = vmatprep.subr.bf16.mxu0 0
        %1681 = vmatpush1.bf16.xpose.msra.mxu0 0
        %1682 = vmatprep.subr.bf16.mxu0 0
        %1683 = vmatpush1.bf16.xpose.msra.mxu0 0
        %1684 = vmatprep.subr.bf16.mxu0 0
        %1685 = vmatpush1.bf16.xpose.msra.mxu0 0
        %1686 = vmatprep.subr.bf16.mxu0 0
        %1687 = vmatpush1.bf16.xpose.msra.mxu0 0
        %1688 = vmatprep.subr.bf16.mxu0 0
        %1689 = vmatpush1.bf16.xpose.msra.mxu0 0
        %1690 = vmatprep.subr.bf16.mxu0 0
        %1691 = vmatpush1.bf16.xpose.msra.mxu0 0
        %1692 = vmatprep.subr.bf16.mxu0 0
        %1693 = vmatpush1.bf16.xpose.msra.mxu0 0
        %1694 = vmatprep.subr.bf16.mxu0 0
        %1695 = vmatpush1.bf16.xpose.msra.mxu0 0
        %1696 = vmatprep.subr.bf16.mxu0 0
        %1697 = vmatpush1.bf16.xpose.msra.mxu0 0
        %1698 = vmatprep.subr.bf16.mxu0 0
        %1699 = vmatpush1.bf16.xpose.msra.mxu0 0
        %1700 = vmatprep.subr.bf16.mxu0 0
        %1701 = vmatpush1.bf16.xpose.msra.mxu0 0
        %1702 = vmatprep.subr.bf16.mxu0 0
        %1703 = vmatpush1.bf16.xpose.msra.mxu0 0
        %1704 = vmatprep.mubr.bf16.mxu0 0
        %1705 = vmatmul.mubr.bf16.gmra.mrb[0].mxu0 %v1586
        %v1706 = vpop.f32.mrb[0].mxu0
        %v1707 = vadd.f32 0.0, %v1706
        %v1708 = vpop.f32.mrb[0].mxu0
        %v1709 = vpop.f32.mrb[0].mxu0
        %v1710 = vpop.f32.mrb[0].mxu0
        %1711 = vdwg.mxu0
        %1712 = vmatprep.subr.bf16.mxu0 0
        %1713 = vmatpush1.bf16.xpose.msra.mxu0 %v587
        %1714 = vmatprep.subr.bf16.mxu0 0
        %1715 = vmatpush1.bf16.xpose.msra.mxu0 0
        %1716 = vmatprep.subr.bf16.mxu0 0
        %1717 = vmatpush1.bf16.xpose.msra.mxu0 0
        %1718 = vmatprep.subr.bf16.mxu0 0
        %1719 = vmatpush1.bf16.xpose.msra.mxu0 0
        %1720 = vmatprep.subr.bf16.mxu0 0
        %1721 = vmatpush1.bf16.xpose.msra.mxu0 0
        %1722 = vmatprep.subr.bf16.mxu0 0
        %1723 = vmatpush1.bf16.xpose.msra.mxu0 0
        %1724 = vmatprep.subr.bf16.mxu0 0
        %1725 = vmatpush1.bf16.xpose.msra.mxu0 0
        %1726 = vmatprep.subr.bf16.mxu0 0
        %1727 = vmatpush1.bf16.xpose.msra.mxu0 0
        %1728 = vmatprep.subr.bf16.mxu0 0
        %1729 = vmatpush1.bf16.xpose.msra.mxu0 0
        %1730 = vmatprep.subr.bf16.mxu0 0
        %1731 = vmatpush1.bf16.xpose.msra.mxu0 0
        %1732 = vmatprep.subr.bf16.mxu0 0
        %1733 = vmatpush1.bf16.xpose.msra.mxu0 0
        %1734 = vmatprep.subr.bf16.mxu0 0
        %1735 = vmatpush1.bf16.xpose.msra.mxu0 0
        %1736 = vmatprep.subr.bf16.mxu0 0
        %1737 = vmatpush1.bf16.xpose.msra.mxu0 0
        %1738 = vmatprep.subr.bf16.mxu0 0
        %1739 = vmatpush1.bf16.xpose.msra.mxu0 0
        %1740 = vmatprep.subr.bf16.mxu0 0
        %1741 = vmatpush1.bf16.xpose.msra.mxu0 0
        %1742 = vmatprep.subr.bf16.mxu0 0
        %1743 = vmatpush1.bf16.xpose.msra.mxu0 0
        %1744 = vmatprep.mubr.bf16.mxu0 0
        %1745 = vmatmul.mubr.bf16.gmra.mrb[0].mxu0 %v1587
        %v1746 = vpop.f32.mrb[0].mxu0
        %v1747 = vadd.f32 0.0, %v1746
        %v1748 = vpop.f32.mrb[0].mxu0
        %v1749 = vpop.f32.mrb[0].mxu0
        %v1750 = vpop.f32.mrb[0].mxu0
        %1751 = vdwg.mxu0
        %1752 = vmatprep.subr.bf16.mxu0 0
        %1753 = vmatpush1.bf16.xpose.msra.mxu0 %v588
        %1754 = vmatprep.subr.bf16.mxu0 0
        %1755 = vmatpush1.bf16.xpose.msra.mxu0 0
        %1756 = vmatprep.subr.bf16.mxu0 0
        %1757 = vmatpush1.bf16.xpose.msra.mxu0 0
        %1758 = vmatprep.subr.bf16.mxu0 0
        %1759 = vmatpush1.bf16.xpose.msra.mxu0 0
        %1760 = vmatprep.subr.bf16.mxu0 0
        %1761 = vmatpush1.bf16.xpose.msra.mxu0 0
        %1762 = vmatprep.subr.bf16.mxu0 0
        %1763 = vmatpush1.bf16.xpose.msra.mxu0 0
        %1764 = vmatprep.subr.bf16.mxu0 0
        %1765 = vmatpush1.bf16.xpose.msra.mxu0 0
        %1766 = vmatprep.subr.bf16.mxu0 0
        %1767 = vmatpush1.bf16.xpose.msra.mxu0 0
        %1768 = vmatprep.subr.bf16.mxu0 0
        %1769 = vmatpush1.bf16.xpose.msra.mxu0 0
        %1770 = vmatprep.subr.bf16.mxu0 0
        %1771 = vmatpush1.bf16.xpose.msra.mxu0 0
        %1772 = vmatprep.subr.bf16.mxu0 0
        %1773 = vmatpush1.bf16.xpose.msra.mxu0 0
        %1774 = vmatprep.subr.bf16.mxu0 0
        %1775 = vmatpush1.bf16.xpose.msra.mxu0 0
        %1776 = vmatprep.subr.bf16.mxu0 0
        %1777 = vmatpush1.bf16.xpose.msra.mxu0 0
        %1778 = vmatprep.subr.bf16.mxu0 0
        %1779 = vmatpush1.bf16.xpose.msra.mxu0 0
        %1780 = vmatprep.subr.bf16.mxu0 0
        %1781 = vmatpush1.bf16.xpose.msra.mxu0 0
        %1782 = vmatprep.subr.bf16.mxu0 0
        %1783 = vmatpush1.bf16.xpose.msra.mxu0 0
        %1784 = vmatprep.mubr.bf16.mxu0 0
        %1785 = vmatmul.mubr.bf16.gmra.mrb[0].mxu0 %v1588
        %v1786 = vpop.f32.mrb[0].mxu0
        %v1787 = vadd.f32 0.0, %v1786
        %v1788 = vpop.f32.mrb[0].mxu0
        %v1789 = vpop.f32.mrb[0].mxu0
        %v1790 = vpop.f32.mrb[0].mxu0
        %1791 = vdwg.mxu0
        %1792 = vmatprep.subr.bf16.mxu0 0
        %1793 = vmatpush1.bf16.xpose.msra.mxu0 %v589
        %1794 = vmatprep.subr.bf16.mxu0 0
        %1795 = vmatpush1.bf16.xpose.msra.mxu0 0
        %1796 = vmatprep.subr.bf16.mxu0 0
        %1797 = vmatpush1.bf16.xpose.msra.mxu0 0
        %1798 = vmatprep.subr.bf16.mxu0 0
        %1799 = vmatpush1.bf16.xpose.msra.mxu0 0
        %1800 = vmatprep.subr.bf16.mxu0 0
        %1801 = vmatpush1.bf16.xpose.msra.mxu0 0
        %1802 = vmatprep.subr.bf16.mxu0 0
        %1803 = vmatpush1.bf16.xpose.msra.mxu0 0
        %1804 = vmatprep.subr.bf16.mxu0 0
        %1805 = vmatpush1.bf16.xpose.msra.mxu0 0
        %1806 = vmatprep.subr.bf16.mxu0 0
        %1807 = vmatpush1.bf16.xpose.msra.mxu0 0
        %1808 = vmatprep.subr.bf16.mxu0 0
        %1809 = vmatpush1.bf16.xpose.msra.mxu0 0
        %1810 = vmatprep.subr.bf16.mxu0 0
        %1811 = vmatpush1.bf16.xpose.msra.mxu0 0
        %1812 = vmatprep.subr.bf16.mxu0 0
        %1813 = vmatpush1.bf16.xpose.msra.mxu0 0
        %1814 = vmatprep.subr.bf16.mxu0 0
        %1815 = vmatpush1.bf16.xpose.msra.mxu0 0
        %1816 = vmatprep.subr.bf16.mxu0 0
        %1817 = vmatpush1.bf16.xpose.msra.mxu0 0
        %1818 = vmatprep.subr.bf16.mxu0 0
        %1819 = vmatpush1.bf16.xpose.msra.mxu0 0
        %1820 = vmatprep.subr.bf16.mxu0 0
        %1821 = vmatpush1.bf16.xpose.msra.mxu0 0
        %1822 = vmatprep.subr.bf16.mxu0 0
        %1823 = vmatpush1.bf16.xpose.msra.mxu0 0
        %1824 = vmatprep.mubr.bf16.mxu0 0
        %1825 = vmatmul.mubr.bf16.gmra.mrb[0].mxu0 %v1589
        %v1826 = vpop.f32.mrb[0].mxu0
        %v1827 = vadd.f32 0.0, %v1826
        %v1828 = vpop.f32.mrb[0].mxu0
        %v1829 = vpop.f32.mrb[0].mxu0
        %v1830 = vpop.f32.mrb[0].mxu0
        %1831 = vdwg.mxu0
        %1832 = vmatprep.subr.bf16.mxu0 0
        %1833 = vmatpush1.bf16.xpose.msra.mxu0 %v590
        %1834 = vmatprep.subr.bf16.mxu0 0
        %1835 = vmatpush1.bf16.xpose.msra.mxu0 0
        %1836 = vmatprep.subr.bf16.mxu0 0
        %1837 = vmatpush1.bf16.xpose.msra.mxu0 0
        %1838 = vmatprep.subr.bf16.mxu0 0
        %1839 = vmatpush1.bf16.xpose.msra.mxu0 0
        %1840 = vmatprep.subr.bf16.mxu0 0
        %1841 = vmatpush1.bf16.xpose.msra.mxu0 0
        %1842 = vmatprep.subr.bf16.mxu0 0
        %1843 = vmatpush1.bf16.xpose.msra.mxu0 0
        %1844 = vmatprep.subr.bf16.mxu0 0
        %1845 = vmatpush1.bf16.xpose.msra.mxu0 0
        %1846 = vmatprep.subr.bf16.mxu0 0
        %1847 = vmatpush1.bf16.xpose.msra.mxu0 0
        %1848 = vmatprep.subr.bf16.mxu0 0
        %1849 = vmatpush1.bf16.xpose.msra.mxu0 0
        %1850 = vmatprep.subr.bf16.mxu0 0
        %1851 = vmatpush1.bf16.xpose.msra.mxu0 0
        %1852 = vmatprep.subr.bf16.mxu0 0
        %1853 = vmatpush1.bf16.xpose.msra.mxu0 0
        %1854 = vmatprep.subr.bf16.mxu0 0
        %1855 = vmatpush1.bf16.xpose.msra.mxu0 0
        %1856 = vmatprep.subr.bf16.mxu0 0
        %1857 = vmatpush1.bf16.xpose.msra.mxu0 0
        %1858 = vmatprep.subr.bf16.mxu0 0
        %1859 = vmatpush1.bf16.xpose.msra.mxu0 0
        %1860 = vmatprep.subr.bf16.mxu0 0
        %1861 = vmatpush1.bf16.xpose.msra.mxu0 0
        %1862 = vmatprep.subr.bf16.mxu0 0
        %1863 = vmatpush1.bf16.xpose.msra.mxu0 0
        %1864 = vmatprep.mubr.bf16.mxu0 0
        %1865 = vmatmul.mubr.bf16.gmra.mrb[0].mxu0 %v1590
        %v1866 = vpop.f32.mrb[0].mxu0
        %v1867 = vadd.f32 0.0, %v1866
        %v1868 = vpop.f32.mrb[0].mxu0
        %v1869 = vpop.f32.mrb[0].mxu0
        %v1870 = vpop.f32.mrb[0].mxu0
        %1871 = vdwg.mxu0
        %1872 = vmatprep.subr.bf16.mxu0 0
        %1873 = vmatpush1.bf16.xpose.msra.mxu0 %v591
        %1874 = vmatprep.subr.bf16.mxu0 0
        %1875 = vmatpush1.bf16.xpose.msra.mxu0 0
        %1876 = vmatprep.subr.bf16.mxu0 0
        %1877 = vmatpush1.bf16.xpose.msra.mxu0 0
        %1878 = vmatprep.subr.bf16.mxu0 0
        %1879 = vmatpush1.bf16.xpose.msra.mxu0 0
        %1880 = vmatprep.subr.bf16.mxu0 0
        %1881 = vmatpush1.bf16.xpose.msra.mxu0 0
        %1882 = vmatprep.subr.bf16.mxu0 0
        %1883 = vmatpush1.bf16.xpose.msra.mxu0 0
        %1884 = vmatprep.subr.bf16.mxu0 0
        %1885 = vmatpush1.bf16.xpose.msra.mxu0 0
        %1886 = vmatprep.subr.bf16.mxu0 0
        %1887 = vmatpush1.bf16.xpose.msra.mxu0 0
        %1888 = vmatprep.subr.bf16.mxu0 0
        %1889 = vmatpush1.bf16.xpose.msra.mxu0 0
        %1890 = vmatprep.subr.bf16.mxu0 0
        %1891 = vmatpush1.bf16.xpose.msra.mxu0 0
        %1892 = vmatprep.subr.bf16.mxu0 0
        %1893 = vmatpush1.bf16.xpose.msra.mxu0 0
        %1894 = vmatprep.subr.bf16.mxu0 0
        %1895 = vmatpush1.bf16.xpose.msra.mxu0 0
        %1896 = vmatprep.subr.bf16.mxu0 0
        %1897 = vmatpush1.bf16.xpose.msra.mxu0 0
        %1898 = vmatprep.subr.bf16.mxu0 0
        %1899 = vmatpush1.bf16.xpose.msra.mxu0 0
        %1900 = vmatprep.subr.bf16.mxu0 0
        %1901 = vmatpush1.bf16.xpose.msra.mxu0 0
        %1902 = vmatprep.subr.bf16.mxu0 0
        %1903 = vmatpush1.bf16.xpose.msra.mxu0 0
        %1904 = vmatprep.mubr.bf16.mxu0 0
        %1905 = vmatmul.mubr.bf16.gmra.mrb[0].mxu0 %v1591
        %v1906 = vpop.f32.mrb[0].mxu0
        %v1907 = vadd.f32 0.0, %v1906
        %v1908 = vpop.f32.mrb[0].mxu0
        %v1909 = vpop.f32.mrb[0].mxu0
        %v1910 = vpop.f32.mrb[0].mxu0
        %1911 = vdwg.mxu0
        %vm1912 = vcmask 57344
        %v1913 = vsel %vm1912, %v1627, -inf
        %1914 = vmax.xlane.f32.xlu0 %v1913
        %v1915 = vpop.xlane.xlu0 %1914
        %v1916 = vsel %vm1912, %v1667, -inf
        %1917 = vmax.xlane.f32.xlu0 %v1916
        %v1918 = vpop.xlane.xlu0 %1917
        %v1919 = vsel %vm1912, %v1707, -inf
        %1920 = vmax.xlane.f32.xlu0 %v1919
        %v1921 = vpop.xlane.xlu0 %1920
        %v1922 = vsel %vm1912, %v1747, -inf
        %1923 = vmax.xlane.f32.xlu0 %v1922
        %v1924 = vpop.xlane.xlu0 %1923
        %v1925 = vsel %vm1912, %v1787, -inf
        %1926 = vmax.xlane.f32.xlu0 %v1925
        %v1927 = vpop.xlane.xlu0 %1926
        %v1928 = vsel %vm1912, %v1827, -inf
        %1929 = vmax.xlane.f32.xlu0 %v1928
        %v1930 = vpop.xlane.xlu0 %1929
        %v1931 = vsel %vm1912, %v1867, -inf
        %1932 = vmax.xlane.f32.xlu0 %v1931
        %v1933 = vpop.xlane.xlu0 %1932
        %v1934 = vsel %vm1912, %v1907, -inf
        %1935 = vmax.xlane.f32.xlu0 %v1934
        %v1936 = vpop.xlane.xlu0 %1935
        %v1937 = vsub.f32 %v1627, %v1915
        %v1938 = vsub.f32 %v1667, %v1918
        %v1939 = vsub.f32 %v1707, %v1921
        %v1940 = vsub.f32 %v1747, %v1924
        %v1941 = vsub.f32 %v1787, %v1927
        %v1942 = vsub.f32 %v1827, %v1930
        %v1943 = vsub.f32 %v1867, %v1933
        %v1944 = vsub.f32 %v1907, %v1936
        %v1945 = vmul.f32 %v1937, 1.442695
        %v1946 = vpow.pop %v1945
        %v1947 = vmul.f32 %v1938, 1.442695
        %v1948 = vpow.pop %v1947
        %v1949 = vmul.f32 %v1939, 1.442695
        %v1950 = vpow.pop %v1949
        %v1951 = vmul.f32 %v1940, 1.442695
        %v1952 = vpow.pop %v1951
        %v1953 = vmul.f32 %v1941, 1.442695
        %v1954 = vpow.pop %v1953
        %v1955 = vmul.f32 %v1942, 1.442695
        %v1956 = vpow.pop %v1955
        %v1957 = vmul.f32 %v1943, 1.442695
        %v1958 = vpow.pop %v1957
        %v1959 = vmul.f32 %v1944, 1.442695
        %v1960 = vpow.pop %v1959
        %v1961 = vsel %vm1912, %v1946, 0.0
        %1962 = vadd.xlane.f32.xlu0 %v1961
        %v1963 = vpop.xlane.xlu0 %1962
        %v1964 = vsel %vm1912, %v1948, 0.0
        %1965 = vadd.xlane.f32.xlu0 %v1964
        %v1966 = vpop.xlane.xlu0 %1965
        %v1967 = vsel %vm1912, %v1950, 0.0
        %1968 = vadd.xlane.f32.xlu0 %v1967
        %v1969 = vpop.xlane.xlu0 %1968
        %v1970 = vsel %vm1912, %v1952, 0.0
        %1971 = vadd.xlane.f32.xlu0 %v1970
        %v1972 = vpop.xlane.xlu0 %1971
        %v1973 = vsel %vm1912, %v1954, 0.0
        %1974 = vadd.xlane.f32.xlu0 %v1973
        %v1975 = vpop.xlane.xlu0 %1974
        %v1976 = vsel %vm1912, %v1956, 0.0
        %1977 = vadd.xlane.f32.xlu0 %v1976
        %v1978 = vpop.xlane.xlu0 %1977
        %v1979 = vsel %vm1912, %v1958, 0.0
        %1980 = vadd.xlane.f32.xlu0 %v1979
        %v1981 = vpop.xlane.xlu0 %1980
        %v1982 = vsel %vm1912, %v1960, 0.0
        %1983 = vadd.xlane.f32.xlu0 %v1982
        %v1984 = vpop.xlane.xlu0 %1983
        %v1985 = vrcp.pop %v1963
        %v1986 = vrcp.pop %v1966
        %v1987 = vrcp.pop %v1969
        %v1988 = vrcp.pop %v1972
        %v1989 = vrcp.pop %v1975
        %v1990 = vrcp.pop %v1978
        %v1991 = vrcp.pop %v1981
        %v1992 = vrcp.pop %v1984
        %v1993 = vmul.f32 %v1946, %v1985
        %v1994 = vmul.f32 %v1948, %v1986
        %v1995 = vmul.f32 %v1950, %v1987
        %v1996 = vmul.f32 %v1952, %v1988
        %v1997 = vmul.f32 %v1954, %v1989
        %v1998 = vmul.f32 %v1956, %v1990
        %v1999 = vmul.f32 %v1958, %v1991
        %v2000 = vmul.f32 %v1960, %v1992
        %v2001 = vpack.c.bf16 %v1993, %v1993
        %v2002 = vpack.c.bf16 %v1994, %v1994
        %v2003 = vpack.c.bf16 %v1995, %v1995
        %v2004 = vpack.c.bf16 %v1996, %v1996
        %v2005 = vpack.c.bf16 %v1997, %v1997
        %v2006 = vpack.c.bf16 %v1998, %v1998
        %v2007 = vpack.c.bf16 %v1999, %v1999
        %v2008 = vpack.c.bf16 %v2000, %v2000
        %vm2009 = vcmask 64512
        %v2011 = vsel %vm2009, %v2001, 0
        %vm2013 = vcmask 1043456
        %v2015 = vsel %vm2013, %v584, 0
        %2017 = vmatprep.subr.bf16.mxu0 0
        %2018 = vmatpush1.bf16.msra.mxu0 %v2015
        %2019 = vmatprep.subr.bf16.mxu0 0
        %2020 = vmatpush1.bf16.msra.mxu0 0
        %2021 = vmatprep.subr.bf16.mxu0 0
        %2022 = vmatpush1.bf16.msra.mxu0 0
        %2023 = vmatprep.subr.bf16.mxu0 0
        %2024 = vmatpush1.bf16.msra.mxu0 0
        %2025 = vmatprep.subr.bf16.mxu0 0
        %2026 = vmatpush1.bf16.msra.mxu0 0
        %2027 = vmatprep.subr.bf16.mxu0 0
        %2028 = vmatpush1.bf16.msra.mxu0 0
        %2029 = vmatprep.subr.bf16.mxu0 0
        %2030 = vmatpush1.bf16.msra.mxu0 0
        %2031 = vmatprep.subr.bf16.mxu0 0
        %2032 = vmatpush1.bf16.msra.mxu0 0
        %2033 = vmatprep.subr.bf16.mxu0 0
        %2034 = vmatpush1.bf16.msra.mxu0 0
        %2035 = vmatprep.subr.bf16.mxu0 0
        %2036 = vmatpush1.bf16.msra.mxu0 0
        %2037 = vmatprep.subr.bf16.mxu0 0
        %2038 = vmatpush1.bf16.msra.mxu0 0
        %2039 = vmatprep.subr.bf16.mxu0 0
        %2040 = vmatpush1.bf16.msra.mxu0 0
        %2041 = vmatprep.subr.bf16.mxu0 0
        %2042 = vmatpush1.bf16.msra.mxu0 0
        %2043 = vmatprep.subr.bf16.mxu0 0
        %2044 = vmatpush1.bf16.msra.mxu0 0
        %2045 = vmatprep.subr.bf16.mxu0 0
        %2046 = vmatpush1.bf16.msra.mxu0 0
        %2047 = vmatprep.subr.bf16.mxu0 0
        %2048 = vmatpush1.bf16.msra.mxu0 0
        %2049 = vmatprep.mubr.bf16.mxu0 0
        %2050 = vmatmul.mubr.bf16.gmra.mrb[0].mxu0 %v2011
        %v2051 = vpop.f32.mrb[0].mxu0
        %v2052 = vadd.f32 0.0, %v2051
        %v2053 = vpop.f32.mrb[0].mxu0
        %v2054 = vpop.f32.mrb[0].mxu0
        %v2055 = vpop.f32.mrb[0].mxu0
        %2056 = vdwg.mxu0
        %v2058 = vsel %vm2009, %v2002, 0
        %v2061 = vsel %vm2013, %v585, 0
        %2063 = vmatprep.subr.bf16.mxu0 0
        %2064 = vmatpush1.bf16.msra.mxu0 %v2061
        %2065 = vmatprep.subr.bf16.mxu0 0
        %2066 = vmatpush1.bf16.msra.mxu0 0
        %2067 = vmatprep.subr.bf16.mxu0 0
        %2068 = vmatpush1.bf16.msra.mxu0 0
        %2069 = vmatprep.subr.bf16.mxu0 0
        %2070 = vmatpush1.bf16.msra.mxu0 0
        %2071 = vmatprep.subr.bf16.mxu0 0
        %2072 = vmatpush1.bf16.msra.mxu0 0
        %2073 = vmatprep.subr.bf16.mxu0 0
        %2074 = vmatpush1.bf16.msra.mxu0 0
        %2075 = vmatprep.subr.bf16.mxu0 0
        %2076 = vmatpush1.bf16.msra.mxu0 0
        %2077 = vmatprep.subr.bf16.mxu0 0
        %2078 = vmatpush1.bf16.msra.mxu0 0
        %2079 = vmatprep.subr.bf16.mxu0 0
        %2080 = vmatpush1.bf16.msra.mxu0 0
        %2081 = vmatprep.subr.bf16.mxu0 0
        %2082 = vmatpush1.bf16.msra.mxu0 0
        %2083 = vmatprep.subr.bf16.mxu0 0
        %2084 = vmatpush1.bf16.msra.mxu0 0
        %2085 = vmatprep.subr.bf16.mxu0 0
        %2086 = vmatpush1.bf16.msra.mxu0 0
        %2087 = vmatprep.subr.bf16.mxu0 0
        %2088 = vmatpush1.bf16.msra.mxu0 0
        %2089 = vmatprep.subr.bf16.mxu0 0
        %2090 = vmatpush1.bf16.msra.mxu0 0
        %2091 = vmatprep.subr.bf16.mxu0 0
        %2092 = vmatpush1.bf16.msra.mxu0 0
        %2093 = vmatprep.subr.bf16.mxu0 0
        %2094 = vmatpush1.bf16.msra.mxu0 0
        %2095 = vmatprep.mubr.bf16.mxu0 0
        %2096 = vmatmul.mubr.bf16.gmra.mrb[0].mxu0 %v2058
        %v2097 = vpop.f32.mrb[0].mxu0
        %v2098 = vadd.f32 0.0, %v2097
        %v2099 = vpop.f32.mrb[0].mxu0
        %v2100 = vpop.f32.mrb[0].mxu0
        %v2101 = vpop.f32.mrb[0].mxu0
        %2102 = vdwg.mxu0
        %v2104 = vsel %vm2009, %v2003, 0
        %v2107 = vsel %vm2013, %v586, 0
        %2109 = vmatprep.subr.bf16.mxu0 0
        %2110 = vmatpush1.bf16.msra.mxu0 %v2107
        %2111 = vmatprep.subr.bf16.mxu0 0
        %2112 = vmatpush1.bf16.msra.mxu0 0
        %2113 = vmatprep.subr.bf16.mxu0 0
        %2114 = vmatpush1.bf16.msra.mxu0 0
        %2115 = vmatprep.subr.bf16.mxu0 0
        %2116 = vmatpush1.bf16.msra.mxu0 0
        %2117 = vmatprep.subr.bf16.mxu0 0
        %2118 = vmatpush1.bf16.msra.mxu0 0
        %2119 = vmatprep.subr.bf16.mxu0 0
        %2120 = vmatpush1.bf16.msra.mxu0 0
        %2121 = vmatprep.subr.bf16.mxu0 0
        %2122 = vmatpush1.bf16.msra.mxu0 0
        %2123 = vmatprep.subr.bf16.mxu0 0
        %2124 = vmatpush1.bf16.msra.mxu0 0
        %2125 = vmatprep.subr.bf16.mxu0 0
        %2126 = vmatpush1.bf16.msra.mxu0 0
        %2127 = vmatprep.subr.bf16.mxu0 0
        %2128 = vmatpush1.bf16.msra.mxu0 0
        %2129 = vmatprep.subr.bf16.mxu0 0
        %2130 = vmatpush1.bf16.msra.mxu0 0
        %2131 = vmatprep.subr.bf16.mxu0 0
        %2132 = vmatpush1.bf16.msra.mxu0 0
        %2133 = vmatprep.subr.bf16.mxu0 0
        %2134 = vmatpush1.bf16.msra.mxu0 0
        %2135 = vmatprep.subr.bf16.mxu0 0
        %2136 = vmatpush1.bf16.msra.mxu0 0
        %2137 = vmatprep.subr.bf16.mxu0 0
        %2138 = vmatpush1.bf16.msra.mxu0 0
        %2139 = vmatprep.subr.bf16.mxu0 0
        %2140 = vmatpush1.bf16.msra.mxu0 0
        %2141 = vmatprep.mubr.bf16.mxu0 0
        %2142 = vmatmul.mubr.bf16.gmra.mrb[0].mxu0 %v2104
        %v2143 = vpop.f32.mrb[0].mxu0
        %v2144 = vadd.f32 0.0, %v2143
        %v2145 = vpop.f32.mrb[0].mxu0
        %v2146 = vpop.f32.mrb[0].mxu0
        %v2147 = vpop.f32.mrb[0].mxu0
        %2148 = vdwg.mxu0
        %v2150 = vsel %vm2009, %v2004, 0
        %v2153 = vsel %vm2013, %v587, 0
        %2155 = vmatprep.subr.bf16.mxu0 0
        %2156 = vmatpush1.bf16.msra.mxu0 %v2153
        %2157 = vmatprep.subr.bf16.mxu0 0
        %2158 = vmatpush1.bf16.msra.mxu0 0
        %2159 = vmatprep.subr.bf16.mxu0 0
        %2160 = vmatpush1.bf16.msra.mxu0 0
        %2161 = vmatprep.subr.bf16.mxu0 0
        %2162 = vmatpush1.bf16.msra.mxu0 0
        %2163 = vmatprep.subr.bf16.mxu0 0
        %2164 = vmatpush1.bf16.msra.mxu0 0
        %2165 = vmatprep.subr.bf16.mxu0 0
        %2166 = vmatpush1.bf16.msra.mxu0 0
        %2167 = vmatprep.subr.bf16.mxu0 0
        %2168 = vmatpush1.bf16.msra.mxu0 0
        %2169 = vmatprep.subr.bf16.mxu0 0
        %2170 = vmatpush1.bf16.msra.mxu0 0
        %2171 = vmatprep.subr.bf16.mxu0 0
        %2172 = vmatpush1.bf16.msra.mxu0 0
        %2173 = vmatprep.subr.bf16.mxu0 0
        %2174 = vmatpush1.bf16.msra.mxu0 0
        %2175 = vmatprep.subr.bf16.mxu0 0
        %2176 = vmatpush1.bf16.msra.mxu0 0
        %2177 = vmatprep.subr.bf16.mxu0 0
        %2178 = vmatpush1.bf16.msra.mxu0 0
        %2179 = vmatprep.subr.bf16.mxu0 0
        %2180 = vmatpush1.bf16.msra.mxu0 0
        %2181 = vmatprep.subr.bf16.mxu0 0
        %2182 = vmatpush1.bf16.msra.mxu0 0
        %2183 = vmatprep.subr.bf16.mxu0 0
        %2184 = vmatpush1.bf16.msra.mxu0 0
        %2185 = vmatprep.subr.bf16.mxu0 0
        %2186 = vmatpush1.bf16.msra.mxu0 0
        %2187 = vmatprep.mubr.bf16.mxu0 0
        %2188 = vmatmul.mubr.bf16.gmra.mrb[0].mxu0 %v2150
        %v2189 = vpop.f32.mrb[0].mxu0
        %v2190 = vadd.f32 0.0, %v2189
        %v2191 = vpop.f32.mrb[0].mxu0
        %v2192 = vpop.f32.mrb[0].mxu0
        %v2193 = vpop.f32.mrb[0].mxu0
        %2194 = vdwg.mxu0
        %v2196 = vsel %vm2009, %v2005, 0
        %v2199 = vsel %vm2013, %v588, 0
        %2201 = vmatprep.subr.bf16.mxu0 0
        %2202 = vmatpush1.bf16.msra.mxu0 %v2199
        %2203 = vmatprep.subr.bf16.mxu0 0
        %2204 = vmatpush1.bf16.msra.mxu0 0
        %2205 = vmatprep.subr.bf16.mxu0 0
        %2206 = vmatpush1.bf16.msra.mxu0 0
        %2207 = vmatprep.subr.bf16.mxu0 0
        %2208 = vmatpush1.bf16.msra.mxu0 0
        %2209 = vmatprep.subr.bf16.mxu0 0
        %2210 = vmatpush1.bf16.msra.mxu0 0
        %2211 = vmatprep.subr.bf16.mxu0 0
        %2212 = vmatpush1.bf16.msra.mxu0 0
        %2213 = vmatprep.subr.bf16.mxu0 0
        %2214 = vmatpush1.bf16.msra.mxu0 0
        %2215 = vmatprep.subr.bf16.mxu0 0
        %2216 = vmatpush1.bf16.msra.mxu0 0
        %2217 = vmatprep.subr.bf16.mxu0 0
        %2218 = vmatpush1.bf16.msra.mxu0 0
        %2219 = vmatprep.subr.bf16.mxu0 0
        %2220 = vmatpush1.bf16.msra.mxu0 0
        %2221 = vmatprep.subr.bf16.mxu0 0
        %2222 = vmatpush1.bf16.msra.mxu0 0
        %2223 = vmatprep.subr.bf16.mxu0 0
        %2224 = vmatpush1.bf16.msra.mxu0 0
        %2225 = vmatprep.subr.bf16.mxu0 0
        %2226 = vmatpush1.bf16.msra.mxu0 0
        %2227 = vmatprep.subr.bf16.mxu0 0
        %2228 = vmatpush1.bf16.msra.mxu0 0
        %2229 = vmatprep.subr.bf16.mxu0 0
        %2230 = vmatpush1.bf16.msra.mxu0 0
        %2231 = vmatprep.subr.bf16.mxu0 0
        %2232 = vmatpush1.bf16.msra.mxu0 0
        %2233 = vmatprep.mubr.bf16.mxu0 0
        %2234 = vmatmul.mubr.bf16.gmra.mrb[0].mxu0 %v2196
        %v2235 = vpop.f32.mrb[0].mxu0
        %v2236 = vadd.f32 0.0, %v2235
        %v2237 = vpop.f32.mrb[0].mxu0
        %v2238 = vpop.f32.mrb[0].mxu0
        %v2239 = vpop.f32.mrb[0].mxu0
        %2240 = vdwg.mxu0
        %v2242 = vsel %vm2009, %v2006, 0
        %v2245 = vsel %vm2013, %v589, 0
        %2247 = vmatprep.subr.bf16.mxu0 0
        %2248 = vmatpush1.bf16.msra.mxu0 %v2245
        %2249 = vmatprep.subr.bf16.mxu0 0
        %2250 = vmatpush1.bf16.msra.mxu0 0
        %2251 = vmatprep.subr.bf16.mxu0 0
        %2252 = vmatpush1.bf16.msra.mxu0 0
        %2253 = vmatprep.subr.bf16.mxu0 0
        %2254 = vmatpush1.bf16.msra.mxu0 0
        %2255 = vmatprep.subr.bf16.mxu0 0
        %2256 = vmatpush1.bf16.msra.mxu0 0
        %2257 = vmatprep.subr.bf16.mxu0 0
        %2258 = vmatpush1.bf16.msra.mxu0 0
        %2259 = vmatprep.subr.bf16.mxu0 0
        %2260 = vmatpush1.bf16.msra.mxu0 0
        %2261 = vmatprep.subr.bf16.mxu0 0
        %2262 = vmatpush1.bf16.msra.mxu0 0
        %2263 = vmatprep.subr.bf16.mxu0 0
        %2264 = vmatpush1.bf16.msra.mxu0 0
        %2265 = vmatprep.subr.bf16.mxu0 0
        %2266 = vmatpush1.bf16.msra.mxu0 0
        %2267 = vmatprep.subr.bf16.mxu0 0
        %2268 = vmatpush1.bf16.msra.mxu0 0
        %2269 = vmatprep.subr.bf16.mxu0 0
        %2270 = vmatpush1.bf16.msra.mxu0 0
        %2271 = vmatprep.subr.bf16.mxu0 0
        %2272 = vmatpush1.bf16.msra.mxu0 0
        %2273 = vmatprep.subr.bf16.mxu0 0
        %2274 = vmatpush1.bf16.msra.mxu0 0
        %2275 = vmatprep.subr.bf16.mxu0 0
        %2276 = vmatpush1.bf16.msra.mxu0 0
        %2277 = vmatprep.subr.bf16.mxu0 0
        %2278 = vmatpush1.bf16.msra.mxu0 0
        %2279 = vmatprep.mubr.bf16.mxu0 0
        %2280 = vmatmul.mubr.bf16.gmra.mrb[0].mxu0 %v2242
        %v2281 = vpop.f32.mrb[0].mxu0
        %v2282 = vadd.f32 0.0, %v2281
        %v2283 = vpop.f32.mrb[0].mxu0
        %v2284 = vpop.f32.mrb[0].mxu0
        %v2285 = vpop.f32.mrb[0].mxu0
        %2286 = vdwg.mxu0
        %v2288 = vsel %vm2009, %v2007, 0
        %v2291 = vsel %vm2013, %v590, 0
        %2293 = vmatprep.subr.bf16.mxu0 0
        %2294 = vmatpush1.bf16.msra.mxu0 %v2291
        %2295 = vmatprep.subr.bf16.mxu0 0
        %2296 = vmatpush1.bf16.msra.mxu0 0
        %2297 = vmatprep.subr.bf16.mxu0 0
        %2298 = vmatpush1.bf16.msra.mxu0 0
        %2299 = vmatprep.subr.bf16.mxu0 0
        %2300 = vmatpush1.bf16.msra.mxu0 0
        %2301 = vmatprep.subr.bf16.mxu0 0
        %2302 = vmatpush1.bf16.msra.mxu0 0
        %2303 = vmatprep.subr.bf16.mxu0 0
        %2304 = vmatpush1.bf16.msra.mxu0 0
        %2305 = vmatprep.subr.bf16.mxu0 0
        %2306 = vmatpush1.bf16.msra.mxu0 0
        %2307 = vmatprep.subr.bf16.mxu0 0
        %2308 = vmatpush1.bf16.msra.mxu0 0
        %2309 = vmatprep.subr.bf16.mxu0 0
        %2310 = vmatpush1.bf16.msra.mxu0 0
        %2311 = vmatprep.subr.bf16.mxu0 0
        %2312 = vmatpush1.bf16.msra.mxu0 0
        %2313 = vmatprep.subr.bf16.mxu0 0
        %2314 = vmatpush1.bf16.msra.mxu0 0
        %2315 = vmatprep.subr.bf16.mxu0 0
        %2316 = vmatpush1.bf16.msra.mxu0 0
        %2317 = vmatprep.subr.bf16.mxu0 0
        %2318 = vmatpush1.bf16.msra.mxu0 0
        %2319 = vmatprep.subr.bf16.mxu0 0
        %2320 = vmatpush1.bf16.msra.mxu0 0
        %2321 = vmatprep.subr.bf16.mxu0 0
        %2322 = vmatpush1.bf16.msra.mxu0 0
        %2323 = vmatprep.subr.bf16.mxu0 0
        %2324 = vmatpush1.bf16.msra.mxu0 0
        %2325 = vmatprep.mubr.bf16.mxu0 0
        %2326 = vmatmul.mubr.bf16.gmra.mrb[0].mxu0 %v2288
        %v2327 = vpop.f32.mrb[0].mxu0
        %v2328 = vadd.f32 0.0, %v2327
        %v2329 = vpop.f32.mrb[0].mxu0
        %v2330 = vpop.f32.mrb[0].mxu0
        %v2331 = vpop.f32.mrb[0].mxu0
        %2332 = vdwg.mxu0
        %v2334 = vsel %vm2009, %v2008, 0
        %v2337 = vsel %vm2013, %v591, 0
        %2339 = vmatprep.subr.bf16.mxu0 0
        %2340 = vmatpush1.bf16.msra.mxu0 %v2337
        %2341 = vmatprep.subr.bf16.mxu0 0
        %2342 = vmatpush1.bf16.msra.mxu0 0
        %2343 = vmatprep.subr.bf16.mxu0 0
        %2344 = vmatpush1.bf16.msra.mxu0 0
        %2345 = vmatprep.subr.bf16.mxu0 0
        %2346 = vmatpush1.bf16.msra.mxu0 0
        %2347 = vmatprep.subr.bf16.mxu0 0
        %2348 = vmatpush1.bf16.msra.mxu0 0
        %2349 = vmatprep.subr.bf16.mxu0 0
        %2350 = vmatpush1.bf16.msra.mxu0 0
        %2351 = vmatprep.subr.bf16.mxu0 0
        %2352 = vmatpush1.bf16.msra.mxu0 0
        %2353 = vmatprep.subr.bf16.mxu0 0
        %2354 = vmatpush1.bf16.msra.mxu0 0
        %2355 = vmatprep.subr.bf16.mxu0 0
        %2356 = vmatpush1.bf16.msra.mxu0 0
        %2357 = vmatprep.subr.bf16.mxu0 0
        %2358 = vmatpush1.bf16.msra.mxu0 0
        %2359 = vmatprep.subr.bf16.mxu0 0
        %2360 = vmatpush1.bf16.msra.mxu0 0
        %2361 = vmatprep.subr.bf16.mxu0 0
        %2362 = vmatpush1.bf16.msra.mxu0 0
        %2363 = vmatprep.subr.bf16.mxu0 0
        %2364 = vmatpush1.bf16.msra.mxu0 0
        %2365 = vmatprep.subr.bf16.mxu0 0
        %2366 = vmatpush1.bf16.msra.mxu0 0
        %2367 = vmatprep.subr.bf16.mxu0 0
        %2368 = vmatpush1.bf16.msra.mxu0 0
        %2369 = vmatprep.subr.bf16.mxu0 0
        %2370 = vmatpush1.bf16.msra.mxu0 0
        %2371 = vmatprep.mubr.bf16.mxu0 0
        %2372 = vmatmul.mubr.bf16.gmra.mrb[0].mxu0 %v2334
        %v2373 = vpop.f32.mrb[0].mxu0
        %v2374 = vadd.f32 0.0, %v2373
        %v2375 = vpop.f32.mrb[0].mxu0
        %v2376 = vpop.f32.mrb[0].mxu0
        %v2377 = vpop.f32.mrb[0].mxu0
        %2378 = vdwg.mxu0
        %v2379 = vpack.c.bf16 %v2052, %v2052
        %v2380 = vpack.c.bf16 %v2098, %v2098
        %v2381 = vpack.c.bf16 %v2144, %v2144
        %v2382 = vpack.c.bf16 %v2190, %v2190
        %v2383 = vpack.c.bf16 %v2236, %v2236
        %v2384 = vpack.c.bf16 %v2282, %v2282
        %v2385 = vpack.c.bf16 %v2328, %v2328
        %v2386 = vpack.c.bf16 %v2374, %v2374
        %v2387 = vld [vmem:[#allocation16] sm:$0xf]
        %v2388 = vld [vmem:[#allocation16 + $0x4] sm:$0xf]
        %v2389 = vld [vmem:[#allocation16 + $0x8] sm:$0xf]
        %v2390 = vld [vmem:[#allocation16 + $0xc] sm:$0xf]
        %v2391 = vld [vmem:[#allocation16 + $0x10] sm:$0xf]
        %v2392 = vld [vmem:[#allocation16 + $0x14] sm:$0xf]
        %v2393 = vld [vmem:[#allocation16 + $0x18] sm:$0xf]
        %v2394 = vld [vmem:[#allocation16 + $0x1c] sm:$0xf]
        %v2395 = vld [vmem:[#allocation16 + $0x20] sm:$0xf]
        %v2396 = vld [vmem:[#allocation16 + $0x24] sm:$0xf]
        %v2397 = vld [vmem:[#allocation16 + $0x28] sm:$0xf]
        %v2398 = vld [vmem:[#allocation16 + $0x2c] sm:$0xf]
        %v2399 = vld [vmem:[#allocation16 + $0x30] sm:$0xf]
        %v2400 = vld [vmem:[#allocation16 + $0x34] sm:$0xf]
        %v2401 = vld [vmem:[#allocation16 + $0x38] sm:$0xf]
        %v2402 = vld [vmem:[#allocation16 + $0x3c] sm:$0xf]
        %v2403 = vld [vmem:[#allocation17] sm:$0xf]
        %v2404 = vld [vmem:[#allocation17 + $0x4] sm:$0xf]
        %v2405 = vld [vmem:[#allocation17 + $0x8] sm:$0xf]
        %v2406 = vld [vmem:[#allocation17 + $0xc] sm:$0xf]
        %v2407 = vld [vmem:[#allocation17 + $0x10] sm:$0xf]
        %v2408 = vld [vmem:[#allocation17 + $0x14] sm:$0xf]
        %v2409 = vld [vmem:[#allocation17 + $0x18] sm:$0xf]
        %v2410 = vld [vmem:[#allocation17 + $0x1c] sm:$0xf]
        %v2411 = vld [vmem:[#allocation17 + $0x20] sm:$0xf]
        %v2412 = vld [vmem:[#allocation17 + $0x24] sm:$0xf]
        %v2413 = vld [vmem:[#allocation17 + $0x28] sm:$0xf]
        %v2414 = vld [vmem:[#allocation17 + $0x2c] sm:$0xf]
        %v2415 = vld [vmem:[#allocation17 + $0x30] sm:$0xf]
        %v2416 = vld [vmem:[#allocation17 + $0x34] sm:$0xf]
        %v2417 = vld [vmem:[#allocation17 + $0x38] sm:$0xf]
        %v2418 = vld [vmem:[#allocation17 + $0x3c] sm:$0xf]
        %v2435 = vunpack.c.l.b16 %v2403
        %v2436 = vunpack.c.l.b16 %v2404
        %v2437 = vunpack.c.l.b16 %v2405
        %v2438 = vunpack.c.l.b16 %v2406
        %v2439 = vunpack.c.l.b16 %v2407
        %v2440 = vunpack.c.l.b16 %v2408
        %v2441 = vunpack.c.l.b16 %v2409
        %v2442 = vunpack.c.l.b16 %v2410
        %v2443 = vunpack.c.l.b16 %v2411
        %v2444 = vunpack.c.l.b16 %v2412
        %v2445 = vunpack.c.l.b16 %v2413
        %v2446 = vunpack.c.l.b16 %v2414
        %v2447 = vunpack.c.l.b16 %v2415
        %v2448 = vunpack.c.l.b16 %v2416
        %v2449 = vunpack.c.l.b16 %v2417
        %v2450 = vunpack.c.l.b16 %v2418
        %v2451 = vpack.c.b16 %v2436, %v2435
        %v2452 = vpack.c.b16 %v2438, %v2437
        %v2453 = vpack.c.b16 %v2440, %v2439
        %v2454 = vpack.c.b16 %v2442, %v2441
        %v2455 = vpack.c.b16 %v2444, %v2443
        %v2456 = vpack.c.b16 %v2446, %v2445
        %v2457 = vpack.c.b16 %v2448, %v2447
        %v2458 = vpack.c.b16 %v2450, %v2449
        %2467 = vmatprep.subr.bf16.mxu0 0
        %2468 = vmatpush1.bf16.msra.mxu0 %v2451
        %2469 = vmatprep.subr.bf16.mxu0 0
        %2470 = vmatpush1.bf16.msra.mxu0 %v2452
        %2471 = vmatprep.subr.bf16.mxu0 0
        %2472 = vmatpush1.bf16.msra.mxu0 %v2453
        %2473 = vmatprep.subr.bf16.mxu0 0
        %2474 = vmatpush1.bf16.msra.mxu0 %v2454
        %2475 = vmatprep.subr.bf16.mxu0 0
        %2476 = vmatpush1.bf16.msra.mxu0 %v2455
        %2477 = vmatprep.subr.bf16.mxu0 0
        %2478 = vmatpush1.bf16.msra.mxu0 %v2456
        %2479 = vmatprep.subr.bf16.mxu0 0
        %2480 = vmatpush1.bf16.msra.mxu0 %v2457
        %2481 = vmatprep.subr.bf16.mxu0 0
        %2482 = vmatpush1.bf16.msra.mxu0 %v2458
        %2483 = vmatprep.subr.bf16.mxu0 0
        %2484 = vmatpush1.bf16.msra.mxu0 0
        %2485 = vmatprep.subr.bf16.mxu0 0
        %2486 = vmatpush1.bf16.msra.mxu0 0
        %2487 = vmatprep.subr.bf16.mxu0 0
        %2488 = vmatpush1.bf16.msra.mxu0 0
        %2489 = vmatprep.subr.bf16.mxu0 0
        %2490 = vmatpush1.bf16.msra.mxu0 0
        %2491 = vmatprep.subr.bf16.mxu0 0
        %2492 = vmatpush1.bf16.msra.mxu0 0
        %2493 = vmatprep.subr.bf16.mxu0 0
        %2494 = vmatpush1.bf16.msra.mxu0 0
        %2495 = vmatprep.subr.bf16.mxu0 0
        %2496 = vmatpush1.bf16.msra.mxu0 0
        %2497 = vmatprep.subr.bf16.mxu0 0
        %2498 = vmatpush1.bf16.msra.mxu0 0
        %2499 = vmatprep.mubr.bf16.mxu0 0
        %2500 = vmatmul.mubr.bf16.gmra.mrb[0].mxu0 %v1421
        %v2501 = vpop.f32.mrb[0].mxu0
        %v2502 = vadd.f32 0.0, %v2501
        %v2503 = vpop.f32.mrb[0].mxu0
        %v2504 = vpop.f32.mrb[0].mxu0
        %v2505 = vpop.f32.mrb[0].mxu0
        %2506 = vdwg.mxu0
        %v2515 = vunpack.c.l.b16 %v2379
        %v2516 = vunpack.c.l.b16 %v2380
        %v2517 = vunpack.c.l.b16 %v2381
        %v2518 = vunpack.c.l.b16 %v2382
        %v2519 = vunpack.c.l.b16 %v2383
        %v2520 = vunpack.c.l.b16 %v2384
        %v2521 = vunpack.c.l.b16 %v2385
        %v2522 = vunpack.c.l.b16 %v2386
        %v2523 = vrot.slane %v2516, 7
        %vm2524 = vcmask 1041409
        %v2525 = vsel %vm2524, %v2523, %v2515
        %v2526 = vrot.slane %v2517, 6
        %vm2527 = vcmask 1042434
        %v2528 = vsel %vm2527, %v2526, %v2525
        %v2529 = vrot.slane %v2518, 5
        %vm2530 = vcmask 1043459
        %v2531 = vsel %vm2530, %v2529, %v2528
        %v2532 = vrot.slane %v2519, 4
        %vm2533 = vcmask 1044484
        %v2534 = vsel %vm2533, %v2532, %v2531
        %v2535 = vrot.slane %v2520, 3
        %vm2536 = vcmask 1045509
        %v2537 = vsel %vm2536, %v2535, %v2534
        %v2538 = vrot.slane %v2521, 2
        %vm2539 = vcmask 1046534
        %v2540 = vsel %vm2539, %v2538, %v2537
        %v2541 = vrot.slane %v2522, 1
        %vm2542 = vcmask 1047559
        %v2543 = vsel %vm2542, %v2541, %v2540
        %v2544 = vpack.c.b16 %v2543, %v2543
        %v2562 = vunpack.c.l.b16 %v2387
        %v2563 = vunpack.c.l.b16 %v2388
        %v2564 = vunpack.c.l.b16 %v2389
        %v2565 = vunpack.c.l.b16 %v2390
        %v2566 = vunpack.c.l.b16 %v2391
        %v2567 = vunpack.c.l.b16 %v2392
        %v2568 = vunpack.c.l.b16 %v2393
        %v2569 = vunpack.c.l.b16 %v2394
        %v2570 = vunpack.c.l.b16 %v2395
        %v2571 = vunpack.c.l.b16 %v2396
        %v2572 = vunpack.c.l.b16 %v2397
        %v2573 = vunpack.c.l.b16 %v2398
        %v2574 = vunpack.c.l.b16 %v2399
        %v2575 = vunpack.c.l.b16 %v2400
        %v2576 = vunpack.c.l.b16 %v2401
        %v2577 = vunpack.c.l.b16 %v2402
        %v2578 = vpack.c.b16 %v2563, %v2562
        %v2579 = vpack.c.b16 %v2565, %v2564
        %v2580 = vpack.c.b16 %v2567, %v2566
        %v2581 = vpack.c.b16 %v2569, %v2568
        %v2582 = vpack.c.b16 %v2571, %v2570
        %v2583 = vpack.c.b16 %v2573, %v2572
        %v2584 = vpack.c.b16 %v2575, %v2574
        %v2585 = vpack.c.b16 %v2577, %v2576
        %2594 = vmatprep.subr.bf16.mxu0 0
        %2595 = vmatpush1.bf16.msra.mxu0 %v2578
        %2596 = vmatprep.subr.bf16.mxu0 0
        %2597 = vmatpush1.bf16.msra.mxu0 %v2579
        %2598 = vmatprep.subr.bf16.mxu0 0
        %2599 = vmatpush1.bf16.msra.mxu0 %v2580
        %2600 = vmatprep.subr.bf16.mxu0 0
        %2601 = vmatpush1.bf16.msra.mxu0 %v2581
        %2602 = vmatprep.subr.bf16.mxu0 0
        %2603 = vmatpush1.bf16.msra.mxu0 %v2582
        %2604 = vmatprep.subr.bf16.mxu0 0
        %2605 = vmatpush1.bf16.msra.mxu0 %v2583
        %2606 = vmatprep.subr.bf16.mxu0 0
        %2607 = vmatpush1.bf16.msra.mxu0 %v2584
        %2608 = vmatprep.subr.bf16.mxu0 0
        %2609 = vmatpush1.bf16.msra.mxu0 %v2585
        %2610 = vmatprep.subr.bf16.mxu0 0
        %2611 = vmatpush1.bf16.msra.mxu0 0
        %2612 = vmatprep.subr.bf16.mxu0 0
        %2613 = vmatpush1.bf16.msra.mxu0 0
        %2614 = vmatprep.subr.bf16.mxu0 0
        %2615 = vmatpush1.bf16.msra.mxu0 0
        %2616 = vmatprep.subr.bf16.mxu0 0
        %2617 = vmatpush1.bf16.msra.mxu0 0
        %2618 = vmatprep.subr.bf16.mxu0 0
        %2619 = vmatpush1.bf16.msra.mxu0 0
        %2620 = vmatprep.subr.bf16.mxu0 0
        %2621 = vmatpush1.bf16.msra.mxu0 0
        %2622 = vmatprep.subr.bf16.mxu0 0
        %2623 = vmatpush1.bf16.msra.mxu0 0
        %2624 = vmatprep.subr.bf16.mxu0 0
        %2625 = vmatpush1.bf16.msra.mxu0 0
        %2626 = vmatprep.mubr.bf16.mxu0 0
        %2627 = vmatmul.mubr.bf16.gmra.mrb[0].mxu0 %v2544
        %v2628 = vpop.f32.mrb[0].mxu0
        %v2629 = vadd.f32 %v2502, %v2628
        %v2630 = vpop.f32.mrb[0].mxu0
        %v2631 = vpop.f32.mrb[0].mxu0
        %v2632 = vpop.f32.mrb[0].mxu0
        %2633 = vdwg.mxu0
        %v2634 = vtanh.pop %v2629
        %2635 = vst [vmem:[%s569] sm:$0xff] %v2634
        %v2636 = vld [vmem:[#allocation20] sm:$0xff]
        %s2637 = scalar_lea.vmem %s497, 24 [#allocation2]
        %v2638 = vld [vmem:[%s2637] sm:$0xff]
        %v2639 = vld [vmem:[%s2637 + $0x8] sm:$0xff]
        %v2640 = vld [vmem:[%s2637 + $0x10] sm:$0xff]
        %v2641 = vpack.c.bf16 %v2636, %v2636
        %v2642 = vld [vmem:[#allocation11] sm:$0xff]
        %v2643 = vld [vmem:[#allocation11 + $0x8] sm:$0xf]
        %v2644 = vld [vmem:[#allocation11 + $0xc] sm:$0xff]
        %v2645 = vld [vmem:[#allocation11 + $0x14] sm:$0xf]
        %v2646 = vld [vmem:[#allocation11 + $0x18] sm:$0xff]
        %v2647 = vld [vmem:[#allocation11 + $0x20] sm:$0xf]
        %v2648 = vld [vmem:[#allocation11 + $0x24] sm:$0xff]
        %v2649 = vld [vmem:[#allocation11 + $0x2c] sm:$0xf]
        %v2650 = vld [vmem:[#allocation11 + $0x30] sm:$0xff]
        %v2651 = vld [vmem:[#allocation11 + $0x38] sm:$0xf]
        %v2652 = vld [vmem:[#allocation11 + $0x3c] sm:$0xff]
        %v2653 = vld [vmem:[#allocation11 + $0x44] sm:$0xf]
        %v2654 = vld [vmem:[#allocation11 + $0x48] sm:$0xff]
        %v2655 = vld [vmem:[#allocation11 + $0x50] sm:$0xf]
        %v2656 = vld [vmem:[#allocation11 + $0x54] sm:$0xff]
        %v2657 = vld [vmem:[#allocation11 + $0x5c] sm:$0xf]
        %v2658 = vld [vmem:[#allocation11 + $0x60] sm:$0xff]
        %v2659 = vld [vmem:[#allocation11 + $0x68] sm:$0xf]
        %v2660 = vld [vmem:[#allocation11 + $0x6c] sm:$0xff]
        %v2661 = vld [vmem:[#allocation11 + $0x74] sm:$0xf]
        %v2662 = vld [vmem:[#allocation11 + $0x78] sm:$0xff]
        %v2663 = vld [vmem:[#allocation11 + $0x80] sm:$0xf]
        %v2664 = vld [vmem:[#allocation11 + $0x84] sm:$0xff]
        %v2665 = vld [vmem:[#allocation11 + $0x8c] sm:$0xf]
        %v2666 = vld [vmem:[#allocation11 + $0x90] sm:$0xff]
        %v2667 = vld [vmem:[#allocation11 + $0x98] sm:$0xf]
        %v2668 = vld [vmem:[#allocation11 + $0x9c] sm:$0xff]
        %v2669 = vld [vmem:[#allocation11 + $0xa4] sm:$0xf]
        %v2670 = vld [vmem:[#allocation11 + $0xa8] sm:$0xff]
        %v2671 = vld [vmem:[#allocation11 + $0xb0] sm:$0xf]
        %v2672 = vld [vmem:[#allocation11 + $0xb4] sm:$0xff]
        %v2673 = vld [vmem:[#allocation11 + $0xbc] sm:$0xf]
        %v2674 = vld [vmem:[#allocation13] sm:$0x7]
        %v2676 = vlaneseq
        %v2677 = vshrl.u32 %v2676, 7
        %v2678 = vsub.s32 0, %v2677
        %v2679 = vrot.slane %v2674, %v2678
        %v2680 = vlaneseq
        %v2681 = vshrl.u32 %v2680, 7
        %v2682 = vsub.s32 1, %v2681
        %v2683 = vrot.slane %v2674, %v2682
        %v2684 = vlaneseq
        %v2685 = vshrl.u32 %v2684, 7
        %v2686 = vsub.s32 2, %v2685
        %v2687 = vrot.slane %v2674, %v2686
        %v2723 = vunpack.c.l.b16 %v2642
        %v2724 = vunpack.c.h.b16 %v2642
        %v2725 = vunpack.c.l.b16 %v2643
        %v2726 = vunpack.c.l.b16 %v2644
        %v2727 = vunpack.c.h.b16 %v2644
        %v2728 = vunpack.c.l.b16 %v2645
        %v2729 = vunpack.c.l.b16 %v2646
        %v2730 = vunpack.c.h.b16 %v2646
        %v2731 = vunpack.c.l.b16 %v2647
        %v2732 = vunpack.c.l.b16 %v2648
        %v2733 = vunpack.c.h.b16 %v2648
        %v2734 = vunpack.c.l.b16 %v2649
        %v2735 = vunpack.c.l.b16 %v2650
        %v2736 = vunpack.c.h.b16 %v2650
        %v2737 = vunpack.c.l.b16 %v2651
        %v2738 = vunpack.c.l.b16 %v2652
        %v2739 = vunpack.c.h.b16 %v2652
        %v2740 = vunpack.c.l.b16 %v2653
        %v2741 = vunpack.c.l.b16 %v2654
        %v2742 = vunpack.c.h.b16 %v2654
        %v2743 = vunpack.c.l.b16 %v2655
        %v2744 = vunpack.c.l.b16 %v2656
        %v2745 = vunpack.c.h.b16 %v2656
        %v2746 = vunpack.c.l.b16 %v2657
        %v2747 = vunpack.c.l.b16 %v2658
        %v2748 = vunpack.c.h.b16 %v2658
        %v2749 = vunpack.c.l.b16 %v2659
        %v2750 = vunpack.c.l.b16 %v2660
        %v2751 = vunpack.c.h.b16 %v2660
        %v2752 = vunpack.c.l.b16 %v2661
        %v2753 = vunpack.c.l.b16 %v2662
        %v2754 = vunpack.c.h.b16 %v2662
        %v2755 = vunpack.c.l.b16 %v2663
        %v2756 = vunpack.c.l.b16 %v2664
        %v2757 = vunpack.c.h.b16 %v2664
        %v2758 = vunpack.c.l.b16 %v2665
        %v2759 = vunpack.c.l.b16 %v2666
        %v2760 = vunpack.c.h.b16 %v2666
        %v2761 = vunpack.c.l.b16 %v2667
        %v2762 = vunpack.c.l.b16 %v2668
        %v2763 = vunpack.c.h.b16 %v2668
        %v2764 = vunpack.c.l.b16 %v2669
        %v2765 = vunpack.c.l.b16 %v2670
        %v2766 = vunpack.c.h.b16 %v2670
        %v2767 = vunpack.c.l.b16 %v2671
        %v2768 = vunpack.c.l.b16 %v2672
        %v2769 = vunpack.c.h.b16 %v2672
        %v2770 = vunpack.c.l.b16 %v2673
        %v2771 = vpack.c.b16 %v2726, %v2723
        %v2772 = vpack.c.b16 %v2727, %v2724
        %v2773 = vpack.c.b16 %v2728, %v2725
        %v2774 = vpack.c.b16 %v2732, %v2729
        %v2775 = vpack.c.b16 %v2733, %v2730
        %v2776 = vpack.c.b16 %v2734, %v2731
        %v2777 = vpack.c.b16 %v2738, %v2735
        %v2778 = vpack.c.b16 %v2739, %v2736
        %v2779 = vpack.c.b16 %v2740, %v2737
        %v2780 = vpack.c.b16 %v2744, %v2741
        %v2781 = vpack.c.b16 %v2745, %v2742
        %v2782 = vpack.c.b16 %v2746, %v2743
        %v2783 = vpack.c.b16 %v2750, %v2747
        %v2784 = vpack.c.b16 %v2751, %v2748
        %v2785 = vpack.c.b16 %v2752, %v2749
        %v2786 = vpack.c.b16 %v2756, %v2753
        %v2787 = vpack.c.b16 %v2757, %v2754
        %v2788 = vpack.c.b16 %v2758, %v2755
        %v2789 = vpack.c.b16 %v2762, %v2759
        %v2790 = vpack.c.b16 %v2763, %v2760
        %v2791 = vpack.c.b16 %v2764, %v2761
        %v2792 = vpack.c.b16 %v2768, %v2765
        %v2793 = vpack.c.b16 %v2769, %v2766
        %v2794 = vpack.c.b16 %v2770, %v2767
        %2819 = vmatprep.subr.bf16.mxu0 %v2772
        %2820 = vmatpush1.bf16.msra.mxu0 %v2771
        %2821 = vmatprep.subr.bf16.mxu0 %v2775
        %2822 = vmatpush1.bf16.msra.mxu0 %v2774
        %2823 = vmatprep.subr.bf16.mxu0 %v2778
        %2824 = vmatpush1.bf16.msra.mxu0 %v2777
        %2825 = vmatprep.subr.bf16.mxu0 %v2781
        %2826 = vmatpush1.bf16.msra.mxu0 %v2780
        %2827 = vmatprep.subr.bf16.mxu0 %v2784
        %2828 = vmatpush1.bf16.msra.mxu0 %v2783
        %2829 = vmatprep.subr.bf16.mxu0 %v2787
        %2830 = vmatpush1.bf16.msra.mxu0 %v2786
        %2831 = vmatprep.subr.bf16.mxu0 %v2790
        %2832 = vmatpush1.bf16.msra.mxu0 %v2789
        %2833 = vmatprep.subr.bf16.mxu0 %v2793
        %2834 = vmatpush1.bf16.msra.mxu0 %v2792
        %2835 = vmatprep.subr.bf16.mxu0 0
        %2836 = vmatpush1.bf16.msra.mxu0 0
        %2837 = vmatprep.subr.bf16.mxu0 0
        %2838 = vmatpush1.bf16.msra.mxu0 0
        %2839 = vmatprep.subr.bf16.mxu0 0
        %2840 = vmatpush1.bf16.msra.mxu0 0
        %2841 = vmatprep.subr.bf16.mxu0 0
        %2842 = vmatpush1.bf16.msra.mxu0 0
        %2843 = vmatprep.subr.bf16.mxu0 0
        %2844 = vmatpush1.bf16.msra.mxu0 0
        %2845 = vmatprep.subr.bf16.mxu0 0
        %2846 = vmatpush1.bf16.msra.mxu0 0
        %2847 = vmatprep.subr.bf16.mxu0 0
        %2848 = vmatpush1.bf16.msra.mxu0 0
        %2849 = vmatprep.subr.bf16.mxu0 0
        %2850 = vmatpush1.bf16.msra.mxu0 0
        %2851 = vmatprep.mubr.bf16.mxu0 0
        %2852 = vmatmul.mubr.bf16.gmra.mrb[0].mxu0 %v2641
        %v2853 = vpop.f32.mrb[0].mxu0
        %v2854 = vadd.f32 %v2679, %v2853
        %v2855 = vpop.f32.mrb[0].mxu0
        %v2856 = vadd.f32 %v2683, %v2855
        %v2857 = vpop.f32.mrb[0].mxu0
        %v2858 = vpop.f32.mrb[0].mxu0
        %2859 = vdwg.mxu0
        %2860 = vmatprep.subr.bf16.mxu0 0
        %2861 = vmatpush1.bf16.msra.mxu0 %v2773
        %2862 = vmatprep.subr.bf16.mxu0 0
        %2863 = vmatpush1.bf16.msra.mxu0 %v2776
        %2864 = vmatprep.subr.bf16.mxu0 0
        %2865 = vmatpush1.bf16.msra.mxu0 %v2779
        %2866 = vmatprep.subr.bf16.mxu0 0
        %2867 = vmatpush1.bf16.msra.mxu0 %v2782
        %2868 = vmatprep.subr.bf16.mxu0 0
        %2869 = vmatpush1.bf16.msra.mxu0 %v2785
        %2870 = vmatprep.subr.bf16.mxu0 0
        %2871 = vmatpush1.bf16.msra.mxu0 %v2788
        %2872 = vmatprep.subr.bf16.mxu0 0
        %2873 = vmatpush1.bf16.msra.mxu0 %v2791
        %2874 = vmatprep.subr.bf16.mxu0 0
        %2875 = vmatpush1.bf16.msra.mxu0 %v2794
        %2876 = vmatprep.subr.bf16.mxu0 0
        %2877 = vmatpush1.bf16.msra.mxu0 0
        %2878 = vmatprep.subr.bf16.mxu0 0
        %2879 = vmatpush1.bf16.msra.mxu0 0
        %2880 = vmatprep.subr.bf16.mxu0 0
        %2881 = vmatpush1.bf16.msra.mxu0 0
        %2882 = vmatprep.subr.bf16.mxu0 0
        %2883 = vmatpush1.bf16.msra.mxu0 0
        %2884 = vmatprep.subr.bf16.mxu0 0
        %2885 = vmatpush1.bf16.msra.mxu0 0
        %2886 = vmatprep.subr.bf16.mxu0 0
        %2887 = vmatpush1.bf16.msra.mxu0 0
        %2888 = vmatprep.subr.bf16.mxu0 0
        %2889 = vmatpush1.bf16.msra.mxu0 0
        %2890 = vmatprep.subr.bf16.mxu0 0
        %2891 = vmatpush1.bf16.msra.mxu0 0
        %2892 = vmatprep.mubr.bf16.mxu0 0
        %2893 = vmatmul.mubr.bf16.gmra.mrb[0].mxu0 %v2641
        %v2894 = vpop.f32.mrb[0].mxu0
        %v2895 = vadd.f32 %v2687, %v2894
        %v2896 = vpop.f32.mrb[0].mxu0
        %v2897 = vpop.f32.mrb[0].mxu0
        %v2898 = vpop.f32.mrb[0].mxu0
        %2899 = vdwg.mxu0
        %v2900 = vadd.f32 %v2638, %v2854
        %v2901 = vxor.u32 %v2900, 2147483648
        %v2902 = vmul.f32 %v2901, 1.442695
        %v2903 = vpow.pop %v2902
        %v2904 = vadd.f32 %v2903, 1.0
        %v2905 = vrcp.pop %v2904
        %v2906 = vmul.f32 1.0, %v2905
        %v2907 = vadd.f32 %v2639, %v2856
        %v2908 = vxor.u32 %v2907, 2147483648
        %v2909 = vmul.f32 %v2908, 1.442695
        %v2910 = vpow.pop %v2909
        %v2911 = vadd.f32 %v2910, 1.0
        %v2912 = vrcp.pop %v2911
        %v2913 = vmul.f32 1.0, %v2912
        %v2914 = vmul.f32 %v2906, %v2895
        %v2915 = vadd.f32 %v2640, %v2914
        %v2916 = vtanh.pop %v2915
        %v2917 = vsub.f32 1.0, %v2913
        %v2918 = vmul.f32 %v2917, %v2916
        %v2919 = vmul.f32 %v2913, %v2636
        %v2920 = vadd.f32 %v2918, %v2919
        %2921 = vst [vmem:[#allocation20] sm:$0xff] %v2920
        %v2922 = vld [vmem:[%s877] sm:$0xff]
        %v2923 = vpack.c.bf16 %v2920, %v2920
        %v2924 = vld [vmem:[#allocation8] sm:$0xff]
        %v2925 = vld [vmem:[#allocation8 + $0x8] sm:$0xf]
        %v2926 = vld [vmem:[#allocation8 + $0xc] sm:$0xff]
        %v2927 = vld [vmem:[#allocation8 + $0x14] sm:$0xf]
        %v2928 = vld [vmem:[#allocation8 + $0x18] sm:$0xff]
        %v2929 = vld [vmem:[#allocation8 + $0x20] sm:$0xf]
        %v2930 = vld [vmem:[#allocation8 + $0x24] sm:$0xff]
        %v2931 = vld [vmem:[#allocation8 + $0x2c] sm:$0xf]
        %v2932 = vld [vmem:[#allocation8 + $0x30] sm:$0xff]
        %v2933 = vld [vmem:[#allocation8 + $0x38] sm:$0xf]
        %v2934 = vld [vmem:[#allocation8 + $0x3c] sm:$0xff]
        %v2935 = vld [vmem:[#allocation8 + $0x44] sm:$0xf]
        %v2936 = vld [vmem:[#allocation8 + $0x48] sm:$0xff]
        %v2937 = vld [vmem:[#allocation8 + $0x50] sm:$0xf]
        %v2938 = vld [vmem:[#allocation8 + $0x54] sm:$0xff]
        %v2939 = vld [vmem:[#allocation8 + $0x5c] sm:$0xf]
        %v2940 = vld [vmem:[#allocation8 + $0x60] sm:$0xff]
        %v2941 = vld [vmem:[#allocation8 + $0x68] sm:$0xf]
        %v2942 = vld [vmem:[#allocation8 + $0x6c] sm:$0xff]
        %v2943 = vld [vmem:[#allocation8 + $0x74] sm:$0xf]
        %v2944 = vld [vmem:[#allocation8 + $0x78] sm:$0xff]
        %v2945 = vld [vmem:[#allocation8 + $0x80] sm:$0xf]
        %v2946 = vld [vmem:[#allocation8 + $0x84] sm:$0xff]
        %v2947 = vld [vmem:[#allocation8 + $0x8c] sm:$0xf]
        %v2948 = vld [vmem:[#allocation8 + $0x90] sm:$0xff]
        %v2949 = vld [vmem:[#allocation8 + $0x98] sm:$0xf]
        %v2950 = vld [vmem:[#allocation8 + $0x9c] sm:$0xff]
        %v2951 = vld [vmem:[#allocation8 + $0xa4] sm:$0xf]
        %v2952 = vld [vmem:[#allocation8 + $0xa8] sm:$0xff]
        %v2953 = vld [vmem:[#allocation8 + $0xb0] sm:$0xf]
        %v2954 = vld [vmem:[#allocation8 + $0xb4] sm:$0xff]
        %v2955 = vld [vmem:[#allocation8 + $0xbc] sm:$0xf]
        %v2956 = vld [vmem:[#allocation10] sm:$0x7]
        %v2958 = vlaneseq
        %v2959 = vshrl.u32 %v2958, 7
        %v2960 = vsub.s32 0, %v2959
        %v2961 = vrot.slane %v2956, %v2960
        %v2962 = vlaneseq
        %v2963 = vshrl.u32 %v2962, 7
        %v2964 = vsub.s32 1, %v2963
        %v2965 = vrot.slane %v2956, %v2964
        %v2966 = vlaneseq
        %v2967 = vshrl.u32 %v2966, 7
        %v2968 = vsub.s32 2, %v2967
        %v2969 = vrot.slane %v2956, %v2968
        %v3005 = vunpack.c.l.b16 %v2924
        %v3006 = vunpack.c.h.b16 %v2924
        %v3007 = vunpack.c.l.b16 %v2925
        %v3008 = vunpack.c.l.b16 %v2926
        %v3009 = vunpack.c.h.b16 %v2926
        %v3010 = vunpack.c.l.b16 %v2927
        %v3011 = vunpack.c.l.b16 %v2928
        %v3012 = vunpack.c.h.b16 %v2928
        %v3013 = vunpack.c.l.b16 %v2929
        %v3014 = vunpack.c.l.b16 %v2930
        %v3015 = vunpack.c.h.b16 %v2930
        %v3016 = vunpack.c.l.b16 %v2931
        %v3017 = vunpack.c.l.b16 %v2932
        %v3018 = vunpack.c.h.b16 %v2932
        %v3019 = vunpack.c.l.b16 %v2933
        %v3020 = vunpack.c.l.b16 %v2934
        %v3021 = vunpack.c.h.b16 %v2934
        %v3022 = vunpack.c.l.b16 %v2935
        %v3023 = vunpack.c.l.b16 %v2936
        %v3024 = vunpack.c.h.b16 %v2936
        %v3025 = vunpack.c.l.b16 %v2937
        %v3026 = vunpack.c.l.b16 %v2938
        %v3027 = vunpack.c.h.b16 %v2938
        %v3028 = vunpack.c.l.b16 %v2939
        %v3029 = vunpack.c.l.b16 %v2940
        %v3030 = vunpack.c.h.b16 %v2940
        %v3031 = vunpack.c.l.b16 %v2941
        %v3032 = vunpack.c.l.b16 %v2942
        %v3033 = vunpack.c.h.b16 %v2942
        %v3034 = vunpack.c.l.b16 %v2943
        %v3035 = vunpack.c.l.b16 %v2944
        %v3036 = vunpack.c.h.b16 %v2944
        %v3037 = vunpack.c.l.b16 %v2945
        %v3038 = vunpack.c.l.b16 %v2946
        %v3039 = vunpack.c.h.b16 %v2946
        %v3040 = vunpack.c.l.b16 %v2947
        %v3041 = vunpack.c.l.b16 %v2948
        %v3042 = vunpack.c.h.b16 %v2948
        %v3043 = vunpack.c.l.b16 %v2949
        %v3044 = vunpack.c.l.b16 %v2950
        %v3045 = vunpack.c.h.b16 %v2950
        %v3046 = vunpack.c.l.b16 %v2951
        %v3047 = vunpack.c.l.b16 %v2952
        %v3048 = vunpack.c.h.b16 %v2952
        %v3049 = vunpack.c.l.b16 %v2953
        %v3050 = vunpack.c.l.b16 %v2954
        %v3051 = vunpack.c.h.b16 %v2954
        %v3052 = vunpack.c.l.b16 %v2955
        %v3053 = vpack.c.b16 %v3008, %v3005
        %v3054 = vpack.c.b16 %v3009, %v3006
        %v3055 = vpack.c.b16 %v3010, %v3007
        %v3056 = vpack.c.b16 %v3014, %v3011
        %v3057 = vpack.c.b16 %v3015, %v3012
        %v3058 = vpack.c.b16 %v3016, %v3013
        %v3059 = vpack.c.b16 %v3020, %v3017
        %v3060 = vpack.c.b16 %v3021, %v3018
        %v3061 = vpack.c.b16 %v3022, %v3019
        %v3062 = vpack.c.b16 %v3026, %v3023
        %v3063 = vpack.c.b16 %v3027, %v3024
        %v3064 = vpack.c.b16 %v3028, %v3025
        %v3065 = vpack.c.b16 %v3032, %v3029
        %v3066 = vpack.c.b16 %v3033, %v3030
        %v3067 = vpack.c.b16 %v3034, %v3031
        %v3068 = vpack.c.b16 %v3038, %v3035
        %v3069 = vpack.c.b16 %v3039, %v3036
        %v3070 = vpack.c.b16 %v3040, %v3037
        %v3071 = vpack.c.b16 %v3044, %v3041
        %v3072 = vpack.c.b16 %v3045, %v3042
        %v3073 = vpack.c.b16 %v3046, %v3043
        %v3074 = vpack.c.b16 %v3050, %v3047
        %v3075 = vpack.c.b16 %v3051, %v3048
        %v3076 = vpack.c.b16 %v3052, %v3049
        %3101 = vmatprep.subr.bf16.mxu0 %v3054
        %3102 = vmatpush1.bf16.msra.mxu0 %v3053
        %3103 = vmatprep.subr.bf16.mxu0 %v3057
        %3104 = vmatpush1.bf16.msra.mxu0 %v3056
        %3105 = vmatprep.subr.bf16.mxu0 %v3060
        %3106 = vmatpush1.bf16.msra.mxu0 %v3059
        %3107 = vmatprep.subr.bf16.mxu0 %v3063
        %3108 = vmatpush1.bf16.msra.mxu0 %v3062
        %3109 = vmatprep.subr.bf16.mxu0 %v3066
        %3110 = vmatpush1.bf16.msra.mxu0 %v3065
        %3111 = vmatprep.subr.bf16.mxu0 %v3069
        %3112 = vmatpush1.bf16.msra.mxu0 %v3068
        %3113 = vmatprep.subr.bf16.mxu0 %v3072
        %3114 = vmatpush1.bf16.msra.mxu0 %v3071
        %3115 = vmatprep.subr.bf16.mxu0 %v3075
        %3116 = vmatpush1.bf16.msra.mxu0 %v3074
        %3117 = vmatprep.subr.bf16.mxu0 0
        %3118 = vmatpush1.bf16.msra.mxu0 0
        %3119 = vmatprep.subr.bf16.mxu0 0
        %3120 = vmatpush1.bf16.msra.mxu0 0
        %3121 = vmatprep.subr.bf16.mxu0 0
        %3122 = vmatpush1.bf16.msra.mxu0 0
        %3123 = vmatprep.subr.bf16.mxu0 0
        %3124 = vmatpush1.bf16.msra.mxu0 0
        %3125 = vmatprep.subr.bf16.mxu0 0
        %3126 = vmatpush1.bf16.msra.mxu0 0
        %3127 = vmatprep.subr.bf16.mxu0 0
        %3128 = vmatpush1.bf16.msra.mxu0 0
        %3129 = vmatprep.subr.bf16.mxu0 0
        %3130 = vmatpush1.bf16.msra.mxu0 0
        %3131 = vmatprep.subr.bf16.mxu0 0
        %3132 = vmatpush1.bf16.msra.mxu0 0
        %3133 = vmatprep.mubr.bf16.mxu0 0
        %3134 = vmatmul.mubr.bf16.gmra.mrb[0].mxu0 %v2923
        %v3135 = vpop.f32.mrb[0].mxu0
        %v3136 = vadd.f32 %v2961, %v3135
        %v3137 = vpop.f32.mrb[0].mxu0
        %v3138 = vadd.f32 %v2965, %v3137
        %v3139 = vpop.f32.mrb[0].mxu0
        %v3140 = vpop.f32.mrb[0].mxu0
        %3141 = vdwg.mxu0
        %3142 = vmatprep.subr.bf16.mxu0 0
        %3143 = vmatpush1.bf16.msra.mxu0 %v3055
        %3144 = vmatprep.subr.bf16.mxu0 0
        %3145 = vmatpush1.bf16.msra.mxu0 %v3058
        %3146 = vmatprep.subr.bf16.mxu0 0
        %3147 = vmatpush1.bf16.msra.mxu0 %v3061
        %3148 = vmatprep.subr.bf16.mxu0 0
        %3149 = vmatpush1.bf16.msra.mxu0 %v3064
        %3150 = vmatprep.subr.bf16.mxu0 0
        %3151 = vmatpush1.bf16.msra.mxu0 %v3067
        %3152 = vmatprep.subr.bf16.mxu0 0
        %3153 = vmatpush1.bf16.msra.mxu0 %v3070
        %3154 = vmatprep.subr.bf16.mxu0 0
        %3155 = vmatpush1.bf16.msra.mxu0 %v3073
        %3156 = vmatprep.subr.bf16.mxu0 0
        %3157 = vmatpush1.bf16.msra.mxu0 %v3076
        %3158 = vmatprep.subr.bf16.mxu0 0
        %3159 = vmatpush1.bf16.msra.mxu0 0
        %3160 = vmatprep.subr.bf16.mxu0 0
        %3161 = vmatpush1.bf16.msra.mxu0 0
        %3162 = vmatprep.subr.bf16.mxu0 0
        %3163 = vmatpush1.bf16.msra.mxu0 0
        %3164 = vmatprep.subr.bf16.mxu0 0
        %3165 = vmatpush1.bf16.msra.mxu0 0
        %3166 = vmatprep.subr.bf16.mxu0 0
        %3167 = vmatpush1.bf16.msra.mxu0 0
        %3168 = vmatprep.subr.bf16.mxu0 0
        %3169 = vmatpush1.bf16.msra.mxu0 0
        %3170 = vmatprep.subr.bf16.mxu0 0
        %3171 = vmatpush1.bf16.msra.mxu0 0
        %3172 = vmatprep.subr.bf16.mxu0 0
        %3173 = vmatpush1.bf16.msra.mxu0 0
        %3174 = vmatprep.mubr.bf16.mxu0 0
        %3175 = vmatmul.mubr.bf16.gmra.mrb[0].mxu0 %v2923
        %v3176 = vpop.f32.mrb[0].mxu0
        %v3177 = vadd.f32 %v2969, %v3176
        %v3178 = vpop.f32.mrb[0].mxu0
        %v3179 = vpop.f32.mrb[0].mxu0
        %v3180 = vpop.f32.mrb[0].mxu0
        %3181 = vdwg.mxu0
        %v3182 = vpack.c.bf16 %v2922, %v2922
        %v3183 = vld [vmem:[%s1139] sm:$0xff]
        %v3184 = vld [vmem:[%s1139 + $0x8] sm:$0xf]
        %v3185 = vld [vmem:[%s1139 + $0xc] sm:$0xff]
        %v3186 = vld [vmem:[%s1139 + $0x14] sm:$0xf]
        %v3187 = vld [vmem:[%s1139 + $0x18] sm:$0xff]
        %v3188 = vld [vmem:[%s1139 + $0x20] sm:$0xf]
        %v3189 = vld [vmem:[%s1139 + $0x24] sm:$0xff]
        %v3190 = vld [vmem:[%s1139 + $0x2c] sm:$0xf]
        %v3191 = vld [vmem:[%s1139 + $0x30] sm:$0xff]
        %v3192 = vld [vmem:[%s1139 + $0x38] sm:$0xf]
        %v3193 = vld [vmem:[%s1139 + $0x3c] sm:$0xff]
        %v3194 = vld [vmem:[%s1139 + $0x44] sm:$0xf]
        %v3195 = vld [vmem:[%s1139 + $0x48] sm:$0xff]
        %v3196 = vld [vmem:[%s1139 + $0x50] sm:$0xf]
        %v3197 = vld [vmem:[%s1139 + $0x54] sm:$0xff]
        %v3198 = vld [vmem:[%s1139 + $0x5c] sm:$0xf]
        %v3199 = vld [vmem:[%s1139 + $0x60] sm:$0xff]
        %v3200 = vld [vmem:[%s1139 + $0x68] sm:$0xf]
        %v3201 = vld [vmem:[%s1139 + $0x6c] sm:$0xff]
        %v3202 = vld [vmem:[%s1139 + $0x74] sm:$0xf]
        %v3203 = vld [vmem:[%s1139 + $0x78] sm:$0xff]
        %v3204 = vld [vmem:[%s1139 + $0x80] sm:$0xf]
        %v3205 = vld [vmem:[%s1139 + $0x84] sm:$0xff]
        %v3206 = vld [vmem:[%s1139 + $0x8c] sm:$0xf]
        %v3207 = vld [vmem:[%s1139 + $0x90] sm:$0xff]
        %v3208 = vld [vmem:[%s1139 + $0x98] sm:$0xf]
        %v3209 = vld [vmem:[%s1139 + $0x9c] sm:$0xff]
        %v3210 = vld [vmem:[%s1139 + $0xa4] sm:$0xf]
        %v3211 = vld [vmem:[%s1139 + $0xa8] sm:$0xff]
        %v3212 = vld [vmem:[%s1139 + $0xb0] sm:$0xf]
        %v3213 = vld [vmem:[%s1139 + $0xb4] sm:$0xff]
        %v3214 = vld [vmem:[%s1139 + $0xbc] sm:$0xf]
        %v3215 = vld [vmem:[%s1172] sm:$0x7]
        %v3217 = vlaneseq
        %v3218 = vshrl.u32 %v3217, 7
        %v3219 = vsub.s32 0, %v3218
        %v3220 = vrot.slane %v3215, %v3219
        %v3221 = vlaneseq
        %v3222 = vshrl.u32 %v3221, 7
        %v3223 = vsub.s32 1, %v3222
        %v3224 = vrot.slane %v3215, %v3223
        %v3225 = vlaneseq
        %v3226 = vshrl.u32 %v3225, 7
        %v3227 = vsub.s32 2, %v3226
        %v3228 = vrot.slane %v3215, %v3227
        %v3264 = vunpack.c.l.b16 %v3183
        %v3265 = vunpack.c.h.b16 %v3183
        %v3266 = vunpack.c.l.b16 %v3184
        %v3267 = vunpack.c.l.b16 %v3185
        %v3268 = vunpack.c.h.b16 %v3185
        %v3269 = vunpack.c.l.b16 %v3186
        %v3270 = vunpack.c.l.b16 %v3187
        %v3271 = vunpack.c.h.b16 %v3187
        %v3272 = vunpack.c.l.b16 %v3188
        %v3273 = vunpack.c.l.b16 %v3189
        %v3274 = vunpack.c.h.b16 %v3189
        %v3275 = vunpack.c.l.b16 %v3190
        %v3276 = vunpack.c.l.b16 %v3191
        %v3277 = vunpack.c.h.b16 %v3191
        %v3278 = vunpack.c.l.b16 %v3192
        %v3279 = vunpack.c.l.b16 %v3193
        %v3280 = vunpack.c.h.b16 %v3193
        %v3281 = vunpack.c.l.b16 %v3194
        %v3282 = vunpack.c.l.b16 %v3195
        %v3283 = vunpack.c.h.b16 %v3195
        %v3284 = vunpack.c.l.b16 %v3196
        %v3285 = vunpack.c.l.b16 %v3197
        %v3286 = vunpack.c.h.b16 %v3197
        %v3287 = vunpack.c.l.b16 %v3198
        %v3288 = vunpack.c.l.b16 %v3199
        %v3289 = vunpack.c.h.b16 %v3199
        %v3290 = vunpack.c.l.b16 %v3200
        %v3291 = vunpack.c.l.b16 %v3201
        %v3292 = vunpack.c.h.b16 %v3201
        %v3293 = vunpack.c.l.b16 %v3202
        %v3294 = vunpack.c.l.b16 %v3203
        %v3295 = vunpack.c.h.b16 %v3203
        %v3296 = vunpack.c.l.b16 %v3204
        %v3297 = vunpack.c.l.b16 %v3205
        %v3298 = vunpack.c.h.b16 %v3205
        %v3299 = vunpack.c.l.b16 %v3206
        %v3300 = vunpack.c.l.b16 %v3207
        %v3301 = vunpack.c.h.b16 %v3207
        %v3302 = vunpack.c.l.b16 %v3208
        %v3303 = vunpack.c.l.b16 %v3209
        %v3304 = vunpack.c.h.b16 %v3209
        %v3305 = vunpack.c.l.b16 %v3210
        %v3306 = vunpack.c.l.b16 %v3211
        %v3307 = vunpack.c.h.b16 %v3211
        %v3308 = vunpack.c.l.b16 %v3212
        %v3309 = vunpack.c.l.b16 %v3213
        %v3310 = vunpack.c.h.b16 %v3213
        %v3311 = vunpack.c.l.b16 %v3214
        %v3312 = vpack.c.b16 %v3267, %v3264
        %v3313 = vpack.c.b16 %v3268, %v3265
        %v3314 = vpack.c.b16 %v3269, %v3266
        %v3315 = vpack.c.b16 %v3273, %v3270
        %v3316 = vpack.c.b16 %v3274, %v3271
        %v3317 = vpack.c.b16 %v3275, %v3272
        %v3318 = vpack.c.b16 %v3279, %v3276
        %v3319 = vpack.c.b16 %v3280, %v3277
        %v3320 = vpack.c.b16 %v3281, %v3278
        %v3321 = vpack.c.b16 %v3285, %v3282
        %v3322 = vpack.c.b16 %v3286, %v3283
        %v3323 = vpack.c.b16 %v3287, %v3284
        %v3324 = vpack.c.b16 %v3291, %v3288
        %v3325 = vpack.c.b16 %v3292, %v3289
        %v3326 = vpack.c.b16 %v3293, %v3290
        %v3327 = vpack.c.b16 %v3297, %v3294
        %v3328 = vpack.c.b16 %v3298, %v3295
        %v3329 = vpack.c.b16 %v3299, %v3296
        %v3330 = vpack.c.b16 %v3303, %v3300
        %v3331 = vpack.c.b16 %v3304, %v3301
        %v3332 = vpack.c.b16 %v3305, %v3302
        %v3333 = vpack.c.b16 %v3309, %v3306
        %v3334 = vpack.c.b16 %v3310, %v3307
        %v3335 = vpack.c.b16 %v3311, %v3308
        %3360 = vmatprep.subr.bf16.mxu0 %v3313
        %3361 = vmatpush1.bf16.msra.mxu0 %v3312
        %3362 = vmatprep.subr.bf16.mxu0 %v3316
        %3363 = vmatpush1.bf16.msra.mxu0 %v3315
        %3364 = vmatprep.subr.bf16.mxu0 %v3319
        %3365 = vmatpush1.bf16.msra.mxu0 %v3318
        %3366 = vmatprep.subr.bf16.mxu0 %v3322
        %3367 = vmatpush1.bf16.msra.mxu0 %v3321
        %3368 = vmatprep.subr.bf16.mxu0 %v3325
        %3369 = vmatpush1.bf16.msra.mxu0 %v3324
        %3370 = vmatprep.subr.bf16.mxu0 %v3328
        %3371 = vmatpush1.bf16.msra.mxu0 %v3327
        %3372 = vmatprep.subr.bf16.mxu0 %v3331
        %3373 = vmatpush1.bf16.msra.mxu0 %v3330
        %3374 = vmatprep.subr.bf16.mxu0 %v3334
        %3375 = vmatpush1.bf16.msra.mxu0 %v3333
        %3376 = vmatprep.subr.bf16.mxu0 0
        %3377 = vmatpush1.bf16.msra.mxu0 0
        %3378 = vmatprep.subr.bf16.mxu0 0
        %3379 = vmatpush1.bf16.msra.mxu0 0
        %3380 = vmatprep.subr.bf16.mxu0 0
        %3381 = vmatpush1.bf16.msra.mxu0 0
        %3382 = vmatprep.subr.bf16.mxu0 0
        %3383 = vmatpush1.bf16.msra.mxu0 0
        %3384 = vmatprep.subr.bf16.mxu0 0
        %3385 = vmatpush1.bf16.msra.mxu0 0
        %3386 = vmatprep.subr.bf16.mxu0 0
        %3387 = vmatpush1.bf16.msra.mxu0 0
        %3388 = vmatprep.subr.bf16.mxu0 0
        %3389 = vmatpush1.bf16.msra.mxu0 0
        %3390 = vmatprep.subr.bf16.mxu0 0
        %3391 = vmatpush1.bf16.msra.mxu0 0
        %3392 = vmatprep.mubr.bf16.mxu0 0
        %3393 = vmatmul.mubr.bf16.gmra.mrb[0].mxu0 %v3182
        %v3394 = vpop.f32.mrb[0].mxu0
        %v3395 = vadd.f32 %v3220, %v3394
        %v3396 = vpop.f32.mrb[0].mxu0
        %v3397 = vadd.f32 %v3224, %v3396
        %v3398 = vpop.f32.mrb[0].mxu0
        %v3399 = vpop.f32.mrb[0].mxu0
        %3400 = vdwg.mxu0
        %3401 = vmatprep.subr.bf16.mxu0 0
        %3402 = vmatpush1.bf16.msra.mxu0 %v3314
        %3403 = vmatprep.subr.bf16.mxu0 0
        %3404 = vmatpush1.bf16.msra.mxu0 %v3317
        %3405 = vmatprep.subr.bf16.mxu0 0
        %3406 = vmatpush1.bf16.msra.mxu0 %v3320
        %3407 = vmatprep.subr.bf16.mxu0 0
        %3408 = vmatpush1.bf16.msra.mxu0 %v3323
        %3409 = vmatprep.subr.bf16.mxu0 0
        %3410 = vmatpush1.bf16.msra.mxu0 %v3326
        %3411 = vmatprep.subr.bf16.mxu0 0
        %3412 = vmatpush1.bf16.msra.mxu0 %v3329
        %3413 = vmatprep.subr.bf16.mxu0 0
        %3414 = vmatpush1.bf16.msra.mxu0 %v3332
        %3415 = vmatprep.subr.bf16.mxu0 0
        %3416 = vmatpush1.bf16.msra.mxu0 %v3335
        %3417 = vmatprep.subr.bf16.mxu0 0
        %3418 = vmatpush1.bf16.msra.mxu0 0
        %3419 = vmatprep.subr.bf16.mxu0 0
        %3420 = vmatpush1.bf16.msra.mxu0 0
        %3421 = vmatprep.subr.bf16.mxu0 0
        %3422 = vmatpush1.bf16.msra.mxu0 0
        %3423 = vmatprep.subr.bf16.mxu0 0
        %3424 = vmatpush1.bf16.msra.mxu0 0
        %3425 = vmatprep.subr.bf16.mxu0 0
        %3426 = vmatpush1.bf16.msra.mxu0 0
        %3427 = vmatprep.subr.bf16.mxu0 0
        %3428 = vmatpush1.bf16.msra.mxu0 0
        %3429 = vmatprep.subr.bf16.mxu0 0
        %3430 = vmatpush1.bf16.msra.mxu0 0
        %3431 = vmatprep.subr.bf16.mxu0 0
        %3432 = vmatpush1.bf16.msra.mxu0 0
        %3433 = vmatprep.mubr.bf16.mxu0 0
        %3434 = vmatmul.mubr.bf16.gmra.mrb[0].mxu0 %v3182
        %v3435 = vpop.f32.mrb[0].mxu0
        %v3436 = vadd.f32 %v3228, %v3435
        %v3437 = vpop.f32.mrb[0].mxu0
        %v3438 = vpop.f32.mrb[0].mxu0
        %v3439 = vpop.f32.mrb[0].mxu0
        %3440 = vdwg.mxu0
        %v3441 = vadd.f32 %v3136, %v3395
        %v3442 = vxor.u32 %v3441, 2147483648
        %v3443 = vmul.f32 %v3442, 1.442695
        %v3444 = vpow.pop %v3443
        %v3445 = vadd.f32 %v3444, 1.0
        %v3446 = vrcp.pop %v3445
        %v3447 = vmul.f32 1.0, %v3446
        %v3448 = vadd.f32 %v3138, %v3397
        %v3449 = vxor.u32 %v3448, 2147483648
        %v3450 = vmul.f32 %v3449, 1.442695
        %v3451 = vpow.pop %v3450
        %v3452 = vadd.f32 %v3451, 1.0
        %v3453 = vrcp.pop %v3452
        %v3454 = vmul.f32 1.0, %v3453
        %v3455 = vmul.f32 %v3447, %v3436
        %v3456 = vadd.f32 %v3177, %v3455
        %v3457 = vtanh.pop %v3456
        %v3458 = vsub.f32 1.0, %v3454
        %v3459 = vmul.f32 %v3458, %v3457
        %v3460 = vmul.f32 %v3454, %v2922
        %v3461 = vadd.f32 %v3459, %v3460
        %3462 = vst [vmem:[%s877] sm:$0xff] %v3461
        %v3463 = vpack.c.bf16 %v3461, %v3461
        %v3464 = vld [vmem:[#allocation14] sm:$0xf]
        %v3465 = vld [vmem:[#allocation14 + $0x4] sm:$0xf]
        %v3466 = vld [vmem:[#allocation14 + $0x8] sm:$0xf]
        %v3467 = vld [vmem:[#allocation14 + $0xc] sm:$0xf]
        %v3468 = vld [vmem:[#allocation14 + $0x10] sm:$0xf]
        %v3469 = vld [vmem:[#allocation14 + $0x14] sm:$0xf]
        %v3470 = vld [vmem:[#allocation14 + $0x18] sm:$0xf]
        %v3471 = vld [vmem:[#allocation14 + $0x1c] sm:$0xf]
        %v3472 = vld [vmem:[#allocation14 + $0x20] sm:$0xf]
        %v3473 = vld [vmem:[#allocation14 + $0x24] sm:$0xf]
        %v3474 = vld [vmem:[#allocation14 + $0x28] sm:$0xf]
        %v3475 = vld [vmem:[#allocation14 + $0x2c] sm:$0xf]
        %v3476 = vld [vmem:[#allocation14 + $0x30] sm:$0xf]
        %v3477 = vld [vmem:[#allocation14 + $0x34] sm:$0xf]
        %v3478 = vld [vmem:[#allocation14 + $0x38] sm:$0xf]
        %v3479 = vld [vmem:[#allocation14 + $0x3c] sm:$0xf]
        %v3496 = vunpack.c.l.b16 %v3464
        %v3497 = vunpack.c.l.b16 %v3465
        %v3498 = vunpack.c.l.b16 %v3466
        %v3499 = vunpack.c.l.b16 %v3467
        %v3500 = vunpack.c.l.b16 %v3468
        %v3501 = vunpack.c.l.b16 %v3469
        %v3502 = vunpack.c.l.b16 %v3470
        %v3503 = vunpack.c.l.b16 %v3471
        %v3504 = vunpack.c.l.b16 %v3472
        %v3505 = vunpack.c.l.b16 %v3473
        %v3506 = vunpack.c.l.b16 %v3474
        %v3507 = vunpack.c.l.b16 %v3475
        %v3508 = vunpack.c.l.b16 %v3476
        %v3509 = vunpack.c.l.b16 %v3477
        %v3510 = vunpack.c.l.b16 %v3478
        %v3511 = vunpack.c.l.b16 %v3479
        %v3512 = vpack.c.b16 %v3497, %v3496
        %v3513 = vpack.c.b16 %v3499, %v3498
        %v3514 = vpack.c.b16 %v3501, %v3500
        %v3515 = vpack.c.b16 %v3503, %v3502
        %v3516 = vpack.c.b16 %v3505, %v3504
        %v3517 = vpack.c.b16 %v3507, %v3506
        %v3518 = vpack.c.b16 %v3509, %v3508
        %v3519 = vpack.c.b16 %v3511, %v3510
        %3528 = vmatprep.subr.bf16.mxu0 0
        %3529 = vmatpush1.bf16.msra.mxu0 %v3512
        %3530 = vmatprep.subr.bf16.mxu0 0
        %3531 = vmatpush1.bf16.msra.mxu0 %v3513
        %3532 = vmatprep.subr.bf16.mxu0 0
        %3533 = vmatpush1.bf16.msra.mxu0 %v3514
        %3534 = vmatprep.subr.bf16.mxu0 0
        %3535 = vmatpush1.bf16.msra.mxu0 %v3515
        %3536 = vmatprep.subr.bf16.mxu0 0
        %3537 = vmatpush1.bf16.msra.mxu0 %v3516
        %3538 = vmatprep.subr.bf16.mxu0 0
        %3539 = vmatpush1.bf16.msra.mxu0 %v3517
        %3540 = vmatprep.subr.bf16.mxu0 0
        %3541 = vmatpush1.bf16.msra.mxu0 %v3518
        %3542 = vmatprep.subr.bf16.mxu0 0
        %3543 = vmatpush1.bf16.msra.mxu0 %v3519
        %3544 = vmatprep.subr.bf16.mxu0 0
        %3545 = vmatpush1.bf16.msra.mxu0 0
        %3546 = vmatprep.subr.bf16.mxu0 0
        %3547 = vmatpush1.bf16.msra.mxu0 0
        %3548 = vmatprep.subr.bf16.mxu0 0
        %3549 = vmatpush1.bf16.msra.mxu0 0
        %3550 = vmatprep.subr.bf16.mxu0 0
        %3551 = vmatpush1.bf16.msra.mxu0 0
        %3552 = vmatprep.subr.bf16.mxu0 0
        %3553 = vmatpush1.bf16.msra.mxu0 0
        %3554 = vmatprep.subr.bf16.mxu0 0
        %3555 = vmatpush1.bf16.msra.mxu0 0
        %3556 = vmatprep.subr.bf16.mxu0 0
        %3557 = vmatpush1.bf16.msra.mxu0 0
        %3558 = vmatprep.subr.bf16.mxu0 0
        %3559 = vmatpush1.bf16.msra.mxu0 0
        %3560 = vmatprep.mubr.bf16.mxu0 0
        %3561 = vmatmul.mubr.bf16.gmra.mrb[0].mxu0 %v3463
        %v3562 = vpop.f32.mrb[0].mxu0
        %v3563 = vadd.f32 0.0, %v3562
        %v3564 = vpop.f32.mrb[0].mxu0
        %v3565 = vpop.f32.mrb[0].mxu0
        %v3566 = vpop.f32.mrb[0].mxu0
        %3567 = vdwg.mxu0
        %v3569 = vcombine.high %v3563, %v3563
        %v3571 = vunpack.c.l.s4 1966171168
        %v3572 = vunpack.c.0.s8 %v3571
        %v3573 = vlaneseq
        %v3574 = vshrl.u32 %v3573, 7
        %v3575 = vsub.s32 %v3572, %v3574
        %v3576 = vrot.slane %v3563, %v3575
        %v3578 = vunpack.c.l.s4 1966171168
        %v3579 = vunpack.c.0.s8 %v3578
        %v3580 = vlaneseq
        %v3581 = vshrl.u32 %v3580, 7
        %v3582 = vsub.s32 %v3579, %v3581
        %v3583 = vrot.slane %v3569, %v3582
        %v3584 = vcombine.high %v3576, %v3576
        %v3585 = vcombine.high %v3583, %v3583
        %v3587 = vunpack.c.l.s4 1966171168
        %v3588 = vunpack.c.0.s8 %v3587
        %v3589 = vlaneseq
        %v3590 = vshrl.u32 %v3589, 7
        %v3591 = vsub.s32 %v3588, %v3590
        %v3592 = vrot.slane %v3576, %v3591
        %v3594 = vunpack.c.l.s4 1966171168
        %v3595 = vunpack.c.0.s8 %v3594
        %v3596 = vlaneseq
        %v3597 = vshrl.u32 %v3596, 7
        %v3598 = vsub.s32 %v3595, %v3597
        %v3599 = vrot.slane %v3583, %v3598
        %v3601 = vunpack.c.l.s4 1966171168
        %v3602 = vunpack.c.0.s8 %v3601
        %v3603 = vlaneseq
        %v3604 = vshrl.u32 %v3603, 7
        %v3605 = vsub.s32 %v3602, %v3604
        %v3606 = vrot.slane %v3584, %v3605
        %v3608 = vunpack.c.l.s4 1966171168
        %v3609 = vunpack.c.0.s8 %v3608
        %v3610 = vlaneseq
        %v3611 = vshrl.u32 %v3610, 7
        %v3612 = vsub.s32 %v3609, %v3611
        %v3613 = vrot.slane %v3585, %v3612
        %v3614 = vcombine.high %v3592, %v3592
        %v3615 = vcombine.high %v3599, %v3599
        %v3616 = vcombine.high %v3606, %v3606
        %v3617 = vcombine.high %v3613, %v3613
        %v3626 = vpack.c.bf16 %v3592, %v3592
        %v3627 = vpack.c.bf16 %v3606, %v3606
        %v3628 = vpack.c.bf16 %v3614, %v3614
        %v3629 = vpack.c.bf16 %v3616, %v3616
        %v3630 = vpack.c.bf16 %v3599, %v3599
        %v3631 = vpack.c.bf16 %v3613, %v3613
        %v3632 = vpack.c.bf16 %v3615, %v3615
        %v3633 = vpack.c.bf16 %v3617, %v3617
        %3634 = vmatprep.subr.bf16.mxu0 0
        %3635 = vmatpush1.bf16.xpose.msra.mxu0 %v584
        %3636 = vmatprep.subr.bf16.mxu0 0
        %3637 = vmatpush1.bf16.xpose.msra.mxu0 0
        %3638 = vmatprep.subr.bf16.mxu0 0
        %3639 = vmatpush1.bf16.xpose.msra.mxu0 0
        %3640 = vmatprep.subr.bf16.mxu0 0
        %3641 = vmatpush1.bf16.xpose.msra.mxu0 0
        %3642 = vmatprep.subr.bf16.mxu0 0
        %3643 = vmatpush1.bf16.xpose.msra.mxu0 0
        %3644 = vmatprep.subr.bf16.mxu0 0
        %3645 = vmatpush1.bf16.xpose.msra.mxu0 0
        %3646 = vmatprep.subr.bf16.mxu0 0
        %3647 = vmatpush1.bf16.xpose.msra.mxu0 0
        %3648 = vmatprep.subr.bf16.mxu0 0
        %3649 = vmatpush1.bf16.xpose.msra.mxu0 0
        %3650 = vmatprep.subr.bf16.mxu0 0
        %3651 = vmatpush1.bf16.xpose.msra.mxu0 0
        %3652 = vmatprep.subr.bf16.mxu0 0
        %3653 = vmatpush1.bf16.xpose.msra.mxu0 0
        %3654 = vmatprep.subr.bf16.mxu0 0
        %3655 = vmatpush1.bf16.xpose.msra.mxu0 0
        %3656 = vmatprep.subr.bf16.mxu0 0
        %3657 = vmatpush1.bf16.xpose.msra.mxu0 0
        %3658 = vmatprep.subr.bf16.mxu0 0
        %3659 = vmatpush1.bf16.xpose.msra.mxu0 0
        %3660 = vmatprep.subr.bf16.mxu0 0
        %3661 = vmatpush1.bf16.xpose.msra.mxu0 0
        %3662 = vmatprep.subr.bf16.mxu0 0
        %3663 = vmatpush1.bf16.xpose.msra.mxu0 0
        %3664 = vmatprep.subr.bf16.mxu0 0
        %3665 = vmatpush1.bf16.xpose.msra.mxu0 0
        %3666 = vmatprep.mubr.bf16.mxu0 0
        %3667 = vmatmul.mubr.bf16.gmra.mrb[0].mxu0 %v3626
        %v3668 = vpop.f32.mrb[0].mxu0
        %v3669 = vadd.f32 0.0, %v3668
        %v3670 = vpop.f32.mrb[0].mxu0
        %v3671 = vpop.f32.mrb[0].mxu0
        %v3672 = vpop.f32.mrb[0].mxu0
        %3673 = vdwg.mxu0
        %3674 = vmatprep.subr.bf16.mxu0 0
        %3675 = vmatpush1.bf16.xpose.msra.mxu0 %v585
        %3676 = vmatprep.subr.bf16.mxu0 0
        %3677 = vmatpush1.bf16.xpose.msra.mxu0 0
        %3678 = vmatprep.subr.bf16.mxu0 0
        %3679 = vmatpush1.bf16.xpose.msra.mxu0 0
        %3680 = vmatprep.subr.bf16.mxu0 0
        %3681 = vmatpush1.bf16.xpose.msra.mxu0 0
        %3682 = vmatprep.subr.bf16.mxu0 0
        %3683 = vmatpush1.bf16.xpose.msra.mxu0 0
        %3684 = vmatprep.subr.bf16.mxu0 0
        %3685 = vmatpush1.bf16.xpose.msra.mxu0 0
        %3686 = vmatprep.subr.bf16.mxu0 0
        %3687 = vmatpush1.bf16.xpose.msra.mxu0 0
        %3688 = vmatprep.subr.bf16.mxu0 0
        %3689 = vmatpush1.bf16.xpose.msra.mxu0 0
        %3690 = vmatprep.subr.bf16.mxu0 0
        %3691 = vmatpush1.bf16.xpose.msra.mxu0 0
        %3692 = vmatprep.subr.bf16.mxu0 0
        %3693 = vmatpush1.bf16.xpose.msra.mxu0 0
        %3694 = vmatprep.subr.bf16.mxu0 0
        %3695 = vmatpush1.bf16.xpose.msra.mxu0 0
        %3696 = vmatprep.subr.bf16.mxu0 0
        %3697 = vmatpush1.bf16.xpose.msra.mxu0 0
        %3698 = vmatprep.subr.bf16.mxu0 0
        %3699 = vmatpush1.bf16.xpose.msra.mxu0 0
        %3700 = vmatprep.subr.bf16.mxu0 0
        %3701 = vmatpush1.bf16.xpose.msra.mxu0 0
        %3702 = vmatprep.subr.bf16.mxu0 0
        %3703 = vmatpush1.bf16.xpose.msra.mxu0 0
        %3704 = vmatprep.subr.bf16.mxu0 0
        %3705 = vmatpush1.bf16.xpose.msra.mxu0 0
        %3706 = vmatprep.mubr.bf16.mxu0 0
        %3707 = vmatmul.mubr.bf16.gmra.mrb[0].mxu0 %v3627
        %v3708 = vpop.f32.mrb[0].mxu0
        %v3709 = vadd.f32 0.0, %v3708
        %v3710 = vpop.f32.mrb[0].mxu0
        %v3711 = vpop.f32.mrb[0].mxu0
        %v3712 = vpop.f32.mrb[0].mxu0
        %3713 = vdwg.mxu0
        %3714 = vmatprep.subr.bf16.mxu0 0
        %3715 = vmatpush1.bf16.xpose.msra.mxu0 %v586
        %3716 = vmatprep.subr.bf16.mxu0 0
        %3717 = vmatpush1.bf16.xpose.msra.mxu0 0
        %3718 = vmatprep.subr.bf16.mxu0 0
        %3719 = vmatpush1.bf16.xpose.msra.mxu0 0
        %3720 = vmatprep.subr.bf16.mxu0 0
        %3721 = vmatpush1.bf16.xpose.msra.mxu0 0
        %3722 = vmatprep.subr.bf16.mxu0 0
        %3723 = vmatpush1.bf16.xpose.msra.mxu0 0
        %3724 = vmatprep.subr.bf16.mxu0 0
        %3725 = vmatpush1.bf16.xpose.msra.mxu0 0
        %3726 = vmatprep.subr.bf16.mxu0 0
        %3727 = vmatpush1.bf16.xpose.msra.mxu0 0
        %3728 = vmatprep.subr.bf16.mxu0 0
        %3729 = vmatpush1.bf16.xpose.msra.mxu0 0
        %3730 = vmatprep.subr.bf16.mxu0 0
        %3731 = vmatpush1.bf16.xpose.msra.mxu0 0
        %3732 = vmatprep.subr.bf16.mxu0 0
        %3733 = vmatpush1.bf16.xpose.msra.mxu0 0
        %3734 = vmatprep.subr.bf16.mxu0 0
        %3735 = vmatpush1.bf16.xpose.msra.mxu0 0
        %3736 = vmatprep.subr.bf16.mxu0 0
        %3737 = vmatpush1.bf16.xpose.msra.mxu0 0
        %3738 = vmatprep.subr.bf16.mxu0 0
        %3739 = vmatpush1.bf16.xpose.msra.mxu0 0
        %3740 = vmatprep.subr.bf16.mxu0 0
        %3741 = vmatpush1.bf16.xpose.msra.mxu0 0
        %3742 = vmatprep.subr.bf16.mxu0 0
        %3743 = vmatpush1.bf16.xpose.msra.mxu0 0
        %3744 = vmatprep.subr.bf16.mxu0 0
        %3745 = vmatpush1.bf16.xpose.msra.mxu0 0
        %3746 = vmatprep.mubr.bf16.mxu0 0
        %3747 = vmatmul.mubr.bf16.gmra.mrb[0].mxu0 %v3628
        %v3748 = vpop.f32.mrb[0].mxu0
        %v3749 = vadd.f32 0.0, %v3748
        %v3750 = vpop.f32.mrb[0].mxu0
        %v3751 = vpop.f32.mrb[0].mxu0
        %v3752 = vpop.f32.mrb[0].mxu0
        %3753 = vdwg.mxu0
        %3754 = vmatprep.subr.bf16.mxu0 0
        %3755 = vmatpush1.bf16.xpose.msra.mxu0 %v587
        %3756 = vmatprep.subr.bf16.mxu0 0
        %3757 = vmatpush1.bf16.xpose.msra.mxu0 0
        %3758 = vmatprep.subr.bf16.mxu0 0
        %3759 = vmatpush1.bf16.xpose.msra.mxu0 0
        %3760 = vmatprep.subr.bf16.mxu0 0
        %3761 = vmatpush1.bf16.xpose.msra.mxu0 0
        %3762 = vmatprep.subr.bf16.mxu0 0
        %3763 = vmatpush1.bf16.xpose.msra.mxu0 0
        %3764 = vmatprep.subr.bf16.mxu0 0
        %3765 = vmatpush1.bf16.xpose.msra.mxu0 0
        %3766 = vmatprep.subr.bf16.mxu0 0
        %3767 = vmatpush1.bf16.xpose.msra.mxu0 0
        %3768 = vmatprep.subr.bf16.mxu0 0
        %3769 = vmatpush1.bf16.xpose.msra.mxu0 0
        %3770 = vmatprep.subr.bf16.mxu0 0
        %3771 = vmatpush1.bf16.xpose.msra.mxu0 0
        %3772 = vmatprep.subr.bf16.mxu0 0
        %3773 = vmatpush1.bf16.xpose.msra.mxu0 0
        %3774 = vmatprep.subr.bf16.mxu0 0
        %3775 = vmatpush1.bf16.xpose.msra.mxu0 0
        %3776 = vmatprep.subr.bf16.mxu0 0
        %3777 = vmatpush1.bf16.xpose.msra.mxu0 0
        %3778 = vmatprep.subr.bf16.mxu0 0
        %3779 = vmatpush1.bf16.xpose.msra.mxu0 0
        %3780 = vmatprep.subr.bf16.mxu0 0
        %3781 = vmatpush1.bf16.xpose.msra.mxu0 0
        %3782 = vmatprep.subr.bf16.mxu0 0
        %3783 = vmatpush1.bf16.xpose.msra.mxu0 0
        %3784 = vmatprep.subr.bf16.mxu0 0
        %3785 = vmatpush1.bf16.xpose.msra.mxu0 0
        %3786 = vmatprep.mubr.bf16.mxu0 0
        %3787 = vmatmul.mubr.bf16.gmra.mrb[0].mxu0 %v3629
        %v3788 = vpop.f32.mrb[0].mxu0
        %v3789 = vadd.f32 0.0, %v3788
        %v3790 = vpop.f32.mrb[0].mxu0
        %v3791 = vpop.f32.mrb[0].mxu0
        %v3792 = vpop.f32.mrb[0].mxu0
        %3793 = vdwg.mxu0
        %3794 = vmatprep.subr.bf16.mxu0 0
        %3795 = vmatpush1.bf16.xpose.msra.mxu0 %v588
        %3796 = vmatprep.subr.bf16.mxu0 0
        %3797 = vmatpush1.bf16.xpose.msra.mxu0 0
        %3798 = vmatprep.subr.bf16.mxu0 0
        %3799 = vmatpush1.bf16.xpose.msra.mxu0 0
        %3800 = vmatprep.subr.bf16.mxu0 0
        %3801 = vmatpush1.bf16.xpose.msra.mxu0 0
        %3802 = vmatprep.subr.bf16.mxu0 0
        %3803 = vmatpush1.bf16.xpose.msra.mxu0 0
        %3804 = vmatprep.subr.bf16.mxu0 0
        %3805 = vmatpush1.bf16.xpose.msra.mxu0 0
        %3806 = vmatprep.subr.bf16.mxu0 0
        %3807 = vmatpush1.bf16.xpose.msra.mxu0 0
        %3808 = vmatprep.subr.bf16.mxu0 0
        %3809 = vmatpush1.bf16.xpose.msra.mxu0 0
        %3810 = vmatprep.subr.bf16.mxu0 0
        %3811 = vmatpush1.bf16.xpose.msra.mxu0 0
        %3812 = vmatprep.subr.bf16.mxu0 0
        %3813 = vmatpush1.bf16.xpose.msra.mxu0 0
        %3814 = vmatprep.subr.bf16.mxu0 0
        %3815 = vmatpush1.bf16.xpose.msra.mxu0 0
        %3816 = vmatprep.subr.bf16.mxu0 0
        %3817 = vmatpush1.bf16.xpose.msra.mxu0 0
        %3818 = vmatprep.subr.bf16.mxu0 0
        %3819 = vmatpush1.bf16.xpose.msra.mxu0 0
        %3820 = vmatprep.subr.bf16.mxu0 0
        %3821 = vmatpush1.bf16.xpose.msra.mxu0 0
        %3822 = vmatprep.subr.bf16.mxu0 0
        %3823 = vmatpush1.bf16.xpose.msra.mxu0 0
        %3824 = vmatprep.subr.bf16.mxu0 0
        %3825 = vmatpush1.bf16.xpose.msra.mxu0 0
        %3826 = vmatprep.mubr.bf16.mxu0 0
        %3827 = vmatmul.mubr.bf16.gmra.mrb[0].mxu0 %v3630
        %v3828 = vpop.f32.mrb[0].mxu0
        %v3829 = vadd.f32 0.0, %v3828
        %v3830 = vpop.f32.mrb[0].mxu0
        %v3831 = vpop.f32.mrb[0].mxu0
        %v3832 = vpop.f32.mrb[0].mxu0
        %3833 = vdwg.mxu0
        %3834 = vmatprep.subr.bf16.mxu0 0
        %3835 = vmatpush1.bf16.xpose.msra.mxu0 %v589
        %3836 = vmatprep.subr.bf16.mxu0 0
        %3837 = vmatpush1.bf16.xpose.msra.mxu0 0
        %3838 = vmatprep.subr.bf16.mxu0 0
        %3839 = vmatpush1.bf16.xpose.msra.mxu0 0
        %3840 = vmatprep.subr.bf16.mxu0 0
        %3841 = vmatpush1.bf16.xpose.msra.mxu0 0
        %3842 = vmatprep.subr.bf16.mxu0 0
        %3843 = vmatpush1.bf16.xpose.msra.mxu0 0
        %3844 = vmatprep.subr.bf16.mxu0 0
        %3845 = vmatpush1.bf16.xpose.msra.mxu0 0
        %3846 = vmatprep.subr.bf16.mxu0 0
        %3847 = vmatpush1.bf16.xpose.msra.mxu0 0
        %3848 = vmatprep.subr.bf16.mxu0 0
        %3849 = vmatpush1.bf16.xpose.msra.mxu0 0
        %3850 = vmatprep.subr.bf16.mxu0 0
        %3851 = vmatpush1.bf16.xpose.msra.mxu0 0
        %3852 = vmatprep.subr.bf16.mxu0 0
        %3853 = vmatpush1.bf16.xpose.msra.mxu0 0
        %3854 = vmatprep.subr.bf16.mxu0 0
        %3855 = vmatpush1.bf16.xpose.msra.mxu0 0
        %3856 = vmatprep.subr.bf16.mxu0 0
        %3857 = vmatpush1.bf16.xpose.msra.mxu0 0
        %3858 = vmatprep.subr.bf16.mxu0 0
        %3859 = vmatpush1.bf16.xpose.msra.mxu0 0
        %3860 = vmatprep.subr.bf16.mxu0 0
        %3861 = vmatpush1.bf16.xpose.msra.mxu0 0
        %3862 = vmatprep.subr.bf16.mxu0 0
        %3863 = vmatpush1.bf16.xpose.msra.mxu0 0
        %3864 = vmatprep.subr.bf16.mxu0 0
        %3865 = vmatpush1.bf16.xpose.msra.mxu0 0
        %3866 = vmatprep.mubr.bf16.mxu0 0
        %3867 = vmatmul.mubr.bf16.gmra.mrb[0].mxu0 %v3631
        %v3868 = vpop.f32.mrb[0].mxu0
        %v3869 = vadd.f32 0.0, %v3868
        %v3870 = vpop.f32.mrb[0].mxu0
        %v3871 = vpop.f32.mrb[0].mxu0
        %v3872 = vpop.f32.mrb[0].mxu0
        %3873 = vdwg.mxu0
        %3874 = vmatprep.subr.bf16.mxu0 0
        %3875 = vmatpush1.bf16.xpose.msra.mxu0 %v590
        %3876 = vmatprep.subr.bf16.mxu0 0
        %3877 = vmatpush1.bf16.xpose.msra.mxu0 0
        %3878 = vmatprep.subr.bf16.mxu0 0
        %3879 = vmatpush1.bf16.xpose.msra.mxu0 0
        %3880 = vmatprep.subr.bf16.mxu0 0
        %3881 = vmatpush1.bf16.xpose.msra.mxu0 0
        %3882 = vmatprep.subr.bf16.mxu0 0
        %3883 = vmatpush1.bf16.xpose.msra.mxu0 0
        %3884 = vmatprep.subr.bf16.mxu0 0
        %3885 = vmatpush1.bf16.xpose.msra.mxu0 0
        %3886 = vmatprep.subr.bf16.mxu0 0
        %3887 = vmatpush1.bf16.xpose.msra.mxu0 0
        %3888 = vmatprep.subr.bf16.mxu0 0
        %3889 = vmatpush1.bf16.xpose.msra.mxu0 0
        %3890 = vmatprep.subr.bf16.mxu0 0
        %3891 = vmatpush1.bf16.xpose.msra.mxu0 0
        %3892 = vmatprep.subr.bf16.mxu0 0
        %3893 = vmatpush1.bf16.xpose.msra.mxu0 0
        %3894 = vmatprep.subr.bf16.mxu0 0
        %3895 = vmatpush1.bf16.xpose.msra.mxu0 0
        %3896 = vmatprep.subr.bf16.mxu0 0
        %3897 = vmatpush1.bf16.xpose.msra.mxu0 0
        %3898 = vmatprep.subr.bf16.mxu0 0
        %3899 = vmatpush1.bf16.xpose.msra.mxu0 0
        %3900 = vmatprep.subr.bf16.mxu0 0
        %3901 = vmatpush1.bf16.xpose.msra.mxu0 0
        %3902 = vmatprep.subr.bf16.mxu0 0
        %3903 = vmatpush1.bf16.xpose.msra.mxu0 0
        %3904 = vmatprep.subr.bf16.mxu0 0
        %3905 = vmatpush1.bf16.xpose.msra.mxu0 0
        %3906 = vmatprep.mubr.bf16.mxu0 0
        %3907 = vmatmul.mubr.bf16.gmra.mrb[0].mxu0 %v3632
        %v3908 = vpop.f32.mrb[0].mxu0
        %v3909 = vadd.f32 0.0, %v3908
        %v3910 = vpop.f32.mrb[0].mxu0
        %v3911 = vpop.f32.mrb[0].mxu0
        %v3912 = vpop.f32.mrb[0].mxu0
        %3913 = vdwg.mxu0
        %3914 = vmatprep.subr.bf16.mxu0 0
        %3915 = vmatpush1.bf16.xpose.msra.mxu0 %v591
        %3916 = vmatprep.subr.bf16.mxu0 0
        %3917 = vmatpush1.bf16.xpose.msra.mxu0 0
        %3918 = vmatprep.subr.bf16.mxu0 0
        %3919 = vmatpush1.bf16.xpose.msra.mxu0 0
        %3920 = vmatprep.subr.bf16.mxu0 0
        %3921 = vmatpush1.bf16.xpose.msra.mxu0 0
        %3922 = vmatprep.subr.bf16.mxu0 0
        %3923 = vmatpush1.bf16.xpose.msra.mxu0 0
        %3924 = vmatprep.subr.bf16.mxu0 0
        %3925 = vmatpush1.bf16.xpose.msra.mxu0 0
        %3926 = vmatprep.subr.bf16.mxu0 0
        %3927 = vmatpush1.bf16.xpose.msra.mxu0 0
        %3928 = vmatprep.subr.bf16.mxu0 0
        %3929 = vmatpush1.bf16.xpose.msra.mxu0 0
        %3930 = vmatprep.subr.bf16.mxu0 0
        %3931 = vmatpush1.bf16.xpose.msra.mxu0 0
        %3932 = vmatprep.subr.bf16.mxu0 0
        %3933 = vmatpush1.bf16.xpose.msra.mxu0 0
        %3934 = vmatprep.subr.bf16.mxu0 0
        %3935 = vmatpush1.bf16.xpose.msra.mxu0 0
        %3936 = vmatprep.subr.bf16.mxu0 0
        %3937 = vmatpush1.bf16.xpose.msra.mxu0 0
        %3938 = vmatprep.subr.bf16.mxu0 0
        %3939 = vmatpush1.bf16.xpose.msra.mxu0 0
        %3940 = vmatprep.subr.bf16.mxu0 0
        %3941 = vmatpush1.bf16.xpose.msra.mxu0 0
        %3942 = vmatprep.subr.bf16.mxu0 0
        %3943 = vmatpush1.bf16.xpose.msra.mxu0 0
        %3944 = vmatprep.subr.bf16.mxu0 0
        %3945 = vmatpush1.bf16.xpose.msra.mxu0 0
        %3946 = vmatprep.mubr.bf16.mxu0 0
        %3947 = vmatmul.mubr.bf16.gmra.mrb[0].mxu0 %v3633
        %v3948 = vpop.f32.mrb[0].mxu0
        %v3949 = vadd.f32 0.0, %v3948
        %v3950 = vpop.f32.mrb[0].mxu0
        %v3951 = vpop.f32.mrb[0].mxu0
        %v3952 = vpop.f32.mrb[0].mxu0
        %3953 = vdwg.mxu0
        %v3954 = vsel %vm1912, %v3669, -inf
        %3955 = vmax.xlane.f32.xlu0 %v3954
        %v3956 = vpop.xlane.xlu0 %3955
        %v3957 = vsel %vm1912, %v3709, -inf
        %3958 = vmax.xlane.f32.xlu0 %v3957
        %v3959 = vpop.xlane.xlu0 %3958
        %v3960 = vsel %vm1912, %v3749, -inf
        %3961 = vmax.xlane.f32.xlu0 %v3960
        %v3962 = vpop.xlane.xlu0 %3961
        %v3963 = vsel %vm1912, %v3789, -inf
        %3964 = vmax.xlane.f32.xlu0 %v3963
        %v3965 = vpop.xlane.xlu0 %3964
        %v3966 = vsel %vm1912, %v3829, -inf
        %3967 = vmax.xlane.f32.xlu0 %v3966
        %v3968 = vpop.xlane.xlu0 %3967
        %v3969 = vsel %vm1912, %v3869, -inf
        %3970 = vmax.xlane.f32.xlu0 %v3969
        %v3971 = vpop.xlane.xlu0 %3970
        %v3972 = vsel %vm1912, %v3909, -inf
        %3973 = vmax.xlane.f32.xlu0 %v3972
        %v3974 = vpop.xlane.xlu0 %3973
        %v3975 = vsel %vm1912, %v3949, -inf
        %3976 = vmax.xlane.f32.xlu0 %v3975
        %v3977 = vpop.xlane.xlu0 %3976
        %v3978 = vsub.f32 %v3669, %v3956
        %v3979 = vsub.f32 %v3709, %v3959
        %v3980 = vsub.f32 %v3749, %v3962
        %v3981 = vsub.f32 %v3789, %v3965
        %v3982 = vsub.f32 %v3829, %v3968
        %v3983 = vsub.f32 %v3869, %v3971
        %v3984 = vsub.f32 %v3909, %v3974
        %v3985 = vsub.f32 %v3949, %v3977
        %v3986 = vmul.f32 %v3978, 1.442695
        %v3987 = vpow.pop %v3986
        %v3988 = vmul.f32 %v3979, 1.442695
        %v3989 = vpow.pop %v3988
        %v3990 = vmul.f32 %v3980, 1.442695
        %v3991 = vpow.pop %v3990
        %v3992 = vmul.f32 %v3981, 1.442695
        %v3993 = vpow.pop %v3992
        %v3994 = vmul.f32 %v3982, 1.442695
        %v3995 = vpow.pop %v3994
        %v3996 = vmul.f32 %v3983, 1.442695
        %v3997 = vpow.pop %v3996
        %v3998 = vmul.f32 %v3984, 1.442695
        %v3999 = vpow.pop %v3998
        %v4000 = vmul.f32 %v3985, 1.442695
        %v4001 = vpow.pop %v4000
        %v4002 = vsel %vm1912, %v3987, 0.0
        %4003 = vadd.xlane.f32.xlu0 %v4002
        %v4004 = vpop.xlane.xlu0 %4003
        %v4005 = vsel %vm1912, %v3989, 0.0
        %4006 = vadd.xlane.f32.xlu0 %v4005
        %v4007 = vpop.xlane.xlu0 %4006
        %v4008 = vsel %vm1912, %v3991, 0.0
        %4009 = vadd.xlane.f32.xlu0 %v4008
        %v4010 = vpop.xlane.xlu0 %4009
        %v4011 = vsel %vm1912, %v3993, 0.0
        %4012 = vadd.xlane.f32.xlu0 %v4011
        %v4013 = vpop.xlane.xlu0 %4012
        %v4014 = vsel %vm1912, %v3995, 0.0
        %4015 = vadd.xlane.f32.xlu0 %v4014
        %v4016 = vpop.xlane.xlu0 %4015
        %v4017 = vsel %vm1912, %v3997, 0.0
        %4018 = vadd.xlane.f32.xlu0 %v4017
        %v4019 = vpop.xlane.xlu0 %4018
        %v4020 = vsel %vm1912, %v3999, 0.0
        %4021 = vadd.xlane.f32.xlu0 %v4020
        %v4022 = vpop.xlane.xlu0 %4021
        %v4023 = vsel %vm1912, %v4001, 0.0
        %4024 = vadd.xlane.f32.xlu0 %v4023
        %v4025 = vpop.xlane.xlu0 %4024
        %v4026 = vrcp.pop %v4004
        %v4027 = vrcp.pop %v4007
        %v4028 = vrcp.pop %v4010
        %v4029 = vrcp.pop %v4013
        %v4030 = vrcp.pop %v4016
        %v4031 = vrcp.pop %v4019
        %v4032 = vrcp.pop %v4022
        %v4033 = vrcp.pop %v4025
        %v4034 = vmul.f32 %v3987, %v4026
        %v4035 = vmul.f32 %v3989, %v4027
        %v4036 = vmul.f32 %v3991, %v4028
        %v4037 = vmul.f32 %v3993, %v4029
        %v4038 = vmul.f32 %v3995, %v4030
        %v4039 = vmul.f32 %v3997, %v4031
        %v4040 = vmul.f32 %v3999, %v4032
        %v4041 = vmul.f32 %v4001, %v4033
        %v4042 = vpack.c.bf16 %v4034, %v4034
        %v4043 = vpack.c.bf16 %v4035, %v4035
        %v4044 = vpack.c.bf16 %v4036, %v4036
        %v4045 = vpack.c.bf16 %v4037, %v4037
        %v4046 = vpack.c.bf16 %v4038, %v4038
        %v4047 = vpack.c.bf16 %v4039, %v4039
        %v4048 = vpack.c.bf16 %v4040, %v4040
        %v4049 = vpack.c.bf16 %v4041, %v4041
        %v4051 = vsel %vm2009, %v4042, 0
        %4053 = vmatprep.subr.bf16.mxu0 0
        %4054 = vmatpush1.bf16.msra.mxu0 %v2015
        %4055 = vmatprep.subr.bf16.mxu0 0
        %4056 = vmatpush1.bf16.msra.mxu0 0
        %4057 = vmatprep.subr.bf16.mxu0 0
        %4058 = vmatpush1.bf16.msra.mxu0 0
        %4059 = vmatprep.subr.bf16.mxu0 0
        %4060 = vmatpush1.bf16.msra.mxu0 0
        %4061 = vmatprep.subr.bf16.mxu0 0
        %4062 = vmatpush1.bf16.msra.mxu0 0
        %4063 = vmatprep.subr.bf16.mxu0 0
        %4064 = vmatpush1.bf16.msra.mxu0 0
        %4065 = vmatprep.subr.bf16.mxu0 0
        %4066 = vmatpush1.bf16.msra.mxu0 0
        %4067 = vmatprep.subr.bf16.mxu0 0
        %4068 = vmatpush1.bf16.msra.mxu0 0
        %4069 = vmatprep.subr.bf16.mxu0 0
        %4070 = vmatpush1.bf16.msra.mxu0 0
        %4071 = vmatprep.subr.bf16.mxu0 0
        %4072 = vmatpush1.bf16.msra.mxu0 0
        %4073 = vmatprep.subr.bf16.mxu0 0
        %4074 = vmatpush1.bf16.msra.mxu0 0
        %4075 = vmatprep.subr.bf16.mxu0 0
        %4076 = vmatpush1.bf16.msra.mxu0 0
        %4077 = vmatprep.subr.bf16.mxu0 0
        %4078 = vmatpush1.bf16.msra.mxu0 0
        %4079 = vmatprep.subr.bf16.mxu0 0
        %4080 = vmatpush1.bf16.msra.mxu0 0
        %4081 = vmatprep.subr.bf16.mxu0 0
        %4082 = vmatpush1.bf16.msra.mxu0 0
        %4083 = vmatprep.subr.bf16.mxu0 0
        %4084 = vmatpush1.bf16.msra.mxu0 0
        %4085 = vmatprep.mubr.bf16.mxu0 0
        %4086 = vmatmul.mubr.bf16.gmra.mrb[0].mxu0 %v4051
        %v4087 = vpop.f32.mrb[0].mxu0
        %v4088 = vadd.f32 0.0, %v4087
        %v4089 = vpop.f32.mrb[0].mxu0
        %v4090 = vpop.f32.mrb[0].mxu0
        %v4091 = vpop.f32.mrb[0].mxu0
        %4092 = vdwg.mxu0
        %v4094 = vsel %vm2009, %v4043, 0
        %4096 = vmatprep.subr.bf16.mxu0 0
        %4097 = vmatpush1.bf16.msra.mxu0 %v2061
        %4098 = vmatprep.subr.bf16.mxu0 0
        %4099 = vmatpush1.bf16.msra.mxu0 0
        %4100 = vmatprep.subr.bf16.mxu0 0
        %4101 = vmatpush1.bf16.msra.mxu0 0
        %4102 = vmatprep.subr.bf16.mxu0 0
        %4103 = vmatpush1.bf16.msra.mxu0 0
        %4104 = vmatprep.subr.bf16.mxu0 0
        %4105 = vmatpush1.bf16.msra.mxu0 0
        %4106 = vmatprep.subr.bf16.mxu0 0
        %4107 = vmatpush1.bf16.msra.mxu0 0
        %4108 = vmatprep.subr.bf16.mxu0 0
        %4109 = vmatpush1.bf16.msra.mxu0 0
        %4110 = vmatprep.subr.bf16.mxu0 0
        %4111 = vmatpush1.bf16.msra.mxu0 0
        %4112 = vmatprep.subr.bf16.mxu0 0
        %4113 = vmatpush1.bf16.msra.mxu0 0
        %4114 = vmatprep.subr.bf16.mxu0 0
        %4115 = vmatpush1.bf16.msra.mxu0 0
        %4116 = vmatprep.subr.bf16.mxu0 0
        %4117 = vmatpush1.bf16.msra.mxu0 0
        %4118 = vmatprep.subr.bf16.mxu0 0
        %4119 = vmatpush1.bf16.msra.mxu0 0
        %4120 = vmatprep.subr.bf16.mxu0 0
        %4121 = vmatpush1.bf16.msra.mxu0 0
        %4122 = vmatprep.subr.bf16.mxu0 0
        %4123 = vmatpush1.bf16.msra.mxu0 0
        %4124 = vmatprep.subr.bf16.mxu0 0
        %4125 = vmatpush1.bf16.msra.mxu0 0
        %4126 = vmatprep.subr.bf16.mxu0 0
        %4127 = vmatpush1.bf16.msra.mxu0 0
        %4128 = vmatprep.mubr.bf16.mxu0 0
        %4129 = vmatmul.mubr.bf16.gmra.mrb[0].mxu0 %v4094
        %v4130 = vpop.f32.mrb[0].mxu0
        %v4131 = vadd.f32 0.0, %v4130
        %v4132 = vpop.f32.mrb[0].mxu0
        %v4133 = vpop.f32.mrb[0].mxu0
        %v4134 = vpop.f32.mrb[0].mxu0
        %4135 = vdwg.mxu0
        %v4137 = vsel %vm2009, %v4044, 0
        %4139 = vmatprep.subr.bf16.mxu0 0
        %4140 = vmatpush1.bf16.msra.mxu0 %v2107
        %4141 = vmatprep.subr.bf16.mxu0 0
        %4142 = vmatpush1.bf16.msra.mxu0 0
        %4143 = vmatprep.subr.bf16.mxu0 0
        %4144 = vmatpush1.bf16.msra.mxu0 0
        %4145 = vmatprep.subr.bf16.mxu0 0
        %4146 = vmatpush1.bf16.msra.mxu0 0
        %4147 = vmatprep.subr.bf16.mxu0 0
        %4148 = vmatpush1.bf16.msra.mxu0 0
        %4149 = vmatprep.subr.bf16.mxu0 0
        %4150 = vmatpush1.bf16.msra.mxu0 0
        %4151 = vmatprep.subr.bf16.mxu0 0
        %4152 = vmatpush1.bf16.msra.mxu0 0
        %4153 = vmatprep.subr.bf16.mxu0 0
        %4154 = vmatpush1.bf16.msra.mxu0 0
        %4155 = vmatprep.subr.bf16.mxu0 0
        %4156 = vmatpush1.bf16.msra.mxu0 0
        %4157 = vmatprep.subr.bf16.mxu0 0
        %4158 = vmatpush1.bf16.msra.mxu0 0
        %4159 = vmatprep.subr.bf16.mxu0 0
        %4160 = vmatpush1.bf16.msra.mxu0 0
        %4161 = vmatprep.subr.bf16.mxu0 0
        %4162 = vmatpush1.bf16.msra.mxu0 0
        %4163 = vmatprep.subr.bf16.mxu0 0
        %4164 = vmatpush1.bf16.msra.mxu0 0
        %4165 = vmatprep.subr.bf16.mxu0 0
        %4166 = vmatpush1.bf16.msra.mxu0 0
        %4167 = vmatprep.subr.bf16.mxu0 0
        %4168 = vmatpush1.bf16.msra.mxu0 0
        %4169 = vmatprep.subr.bf16.mxu0 0
        %4170 = vmatpush1.bf16.msra.mxu0 0
        %4171 = vmatprep.mubr.bf16.mxu0 0
        %4172 = vmatmul.mubr.bf16.gmra.mrb[0].mxu0 %v4137
        %v4173 = vpop.f32.mrb[0].mxu0
        %v4174 = vadd.f32 0.0, %v4173
        %v4175 = vpop.f32.mrb[0].mxu0
        %v4176 = vpop.f32.mrb[0].mxu0
        %v4177 = vpop.f32.mrb[0].mxu0
        %4178 = vdwg.mxu0
        %v4180 = vsel %vm2009, %v4045, 0
        %4182 = vmatprep.subr.bf16.mxu0 0
        %4183 = vmatpush1.bf16.msra.mxu0 %v2153
        %4184 = vmatprep.subr.bf16.mxu0 0
        %4185 = vmatpush1.bf16.msra.mxu0 0
        %4186 = vmatprep.subr.bf16.mxu0 0
        %4187 = vmatpush1.bf16.msra.mxu0 0
        %4188 = vmatprep.subr.bf16.mxu0 0
        %4189 = vmatpush1.bf16.msra.mxu0 0
        %4190 = vmatprep.subr.bf16.mxu0 0
        %4191 = vmatpush1.bf16.msra.mxu0 0
        %4192 = vmatprep.subr.bf16.mxu0 0
        %4193 = vmatpush1.bf16.msra.mxu0 0
        %4194 = vmatprep.subr.bf16.mxu0 0
        %4195 = vmatpush1.bf16.msra.mxu0 0
        %4196 = vmatprep.subr.bf16.mxu0 0
        %4197 = vmatpush1.bf16.msra.mxu0 0
        %4198 = vmatprep.subr.bf16.mxu0 0
        %4199 = vmatpush1.bf16.msra.mxu0 0
        %4200 = vmatprep.subr.bf16.mxu0 0
        %4201 = vmatpush1.bf16.msra.mxu0 0
        %4202 = vmatprep.subr.bf16.mxu0 0
        %4203 = vmatpush1.bf16.msra.mxu0 0
        %4204 = vmatprep.subr.bf16.mxu0 0
        %4205 = vmatpush1.bf16.msra.mxu0 0
        %4206 = vmatprep.subr.bf16.mxu0 0
        %4207 = vmatpush1.bf16.msra.mxu0 0
        %4208 = vmatprep.subr.bf16.mxu0 0
        %4209 = vmatpush1.bf16.msra.mxu0 0
        %4210 = vmatprep.subr.bf16.mxu0 0
        %4211 = vmatpush1.bf16.msra.mxu0 0
        %4212 = vmatprep.subr.bf16.mxu0 0
        %4213 = vmatpush1.bf16.msra.mxu0 0
        %4214 = vmatprep.mubr.bf16.mxu0 0
        %4215 = vmatmul.mubr.bf16.gmra.mrb[0].mxu0 %v4180
        %v4216 = vpop.f32.mrb[0].mxu0
        %v4217 = vadd.f32 0.0, %v4216
        %v4218 = vpop.f32.mrb[0].mxu0
        %v4219 = vpop.f32.mrb[0].mxu0
        %v4220 = vpop.f32.mrb[0].mxu0
        %4221 = vdwg.mxu0
        %v4223 = vsel %vm2009, %v4046, 0
        %4225 = vmatprep.subr.bf16.mxu0 0
        %4226 = vmatpush1.bf16.msra.mxu0 %v2199
        %4227 = vmatprep.subr.bf16.mxu0 0
        %4228 = vmatpush1.bf16.msra.mxu0 0
        %4229 = vmatprep.subr.bf16.mxu0 0
        %4230 = vmatpush1.bf16.msra.mxu0 0
        %4231 = vmatprep.subr.bf16.mxu0 0
        %4232 = vmatpush1.bf16.msra.mxu0 0
        %4233 = vmatprep.subr.bf16.mxu0 0
        %4234 = vmatpush1.bf16.msra.mxu0 0
        %4235 = vmatprep.subr.bf16.mxu0 0
        %4236 = vmatpush1.bf16.msra.mxu0 0
        %4237 = vmatprep.subr.bf16.mxu0 0
        %4238 = vmatpush1.bf16.msra.mxu0 0
        %4239 = vmatprep.subr.bf16.mxu0 0
        %4240 = vmatpush1.bf16.msra.mxu0 0
        %4241 = vmatprep.subr.bf16.mxu0 0
        %4242 = vmatpush1.bf16.msra.mxu0 0
        %4243 = vmatprep.subr.bf16.mxu0 0
        %4244 = vmatpush1.bf16.msra.mxu0 0
        %4245 = vmatprep.subr.bf16.mxu0 0
        %4246 = vmatpush1.bf16.msra.mxu0 0
        %4247 = vmatprep.subr.bf16.mxu0 0
        %4248 = vmatpush1.bf16.msra.mxu0 0
        %4249 = vmatprep.subr.bf16.mxu0 0
        %4250 = vmatpush1.bf16.msra.mxu0 0
        %4251 = vmatprep.subr.bf16.mxu0 0
        %4252 = vmatpush1.bf16.msra.mxu0 0
        %4253 = vmatprep.subr.bf16.mxu0 0
        %4254 = vmatpush1.bf16.msra.mxu0 0
        %4255 = vmatprep.subr.bf16.mxu0 0
        %4256 = vmatpush1.bf16.msra.mxu0 0
        %4257 = vmatprep.mubr.bf16.mxu0 0
        %4258 = vmatmul.mubr.bf16.gmra.mrb[0].mxu0 %v4223
        %v4259 = vpop.f32.mrb[0].mxu0
        %v4260 = vadd.f32 0.0, %v4259
        %v4261 = vpop.f32.mrb[0].mxu0
        %v4262 = vpop.f32.mrb[0].mxu0
        %v4263 = vpop.f32.mrb[0].mxu0
        %4264 = vdwg.mxu0
        %v4266 = vsel %vm2009, %v4047, 0
        %4268 = vmatprep.subr.bf16.mxu0 0
        %4269 = vmatpush1.bf16.msra.mxu0 %v2245
        %4270 = vmatprep.subr.bf16.mxu0 0
        %4271 = vmatpush1.bf16.msra.mxu0 0
        %4272 = vmatprep.subr.bf16.mxu0 0
        %4273 = vmatpush1.bf16.msra.mxu0 0
        %4274 = vmatprep.subr.bf16.mxu0 0
        %4275 = vmatpush1.bf16.msra.mxu0 0
        %4276 = vmatprep.subr.bf16.mxu0 0
        %4277 = vmatpush1.bf16.msra.mxu0 0
        %4278 = vmatprep.subr.bf16.mxu0 0
        %4279 = vmatpush1.bf16.msra.mxu0 0
        %4280 = vmatprep.subr.bf16.mxu0 0
        %4281 = vmatpush1.bf16.msra.mxu0 0
        %4282 = vmatprep.subr.bf16.mxu0 0
        %4283 = vmatpush1.bf16.msra.mxu0 0
        %4284 = vmatprep.subr.bf16.mxu0 0
        %4285 = vmatpush1.bf16.msra.mxu0 0
        %4286 = vmatprep.subr.bf16.mxu0 0
        %4287 = vmatpush1.bf16.msra.mxu0 0
        %4288 = vmatprep.subr.bf16.mxu0 0
        %4289 = vmatpush1.bf16.msra.mxu0 0
        %4290 = vmatprep.subr.bf16.mxu0 0
        %4291 = vmatpush1.bf16.msra.mxu0 0
        %4292 = vmatprep.subr.bf16.mxu0 0
        %4293 = vmatpush1.bf16.msra.mxu0 0
        %4294 = vmatprep.subr.bf16.mxu0 0
        %4295 = vmatpush1.bf16.msra.mxu0 0
        %4296 = vmatprep.subr.bf16.mxu0 0
        %4297 = vmatpush1.bf16.msra.mxu0 0
        %4298 = vmatprep.subr.bf16.mxu0 0
        %4299 = vmatpush1.bf16.msra.mxu0 0
        %4300 = vmatprep.mubr.bf16.mxu0 0
        %4301 = vmatmul.mubr.bf16.gmra.mrb[0].mxu0 %v4266
        %v4302 = vpop.f32.mrb[0].mxu0
        %v4303 = vadd.f32 0.0, %v4302
        %v4304 = vpop.f32.mrb[0].mxu0
        %v4305 = vpop.f32.mrb[0].mxu0
        %v4306 = vpop.f32.mrb[0].mxu0
        %4307 = vdwg.mxu0
        %v4309 = vsel %vm2009, %v4048, 0
        %4311 = vmatprep.subr.bf16.mxu0 0
        %4312 = vmatpush1.bf16.msra.mxu0 %v2291
        %4313 = vmatprep.subr.bf16.mxu0 0
        %4314 = vmatpush1.bf16.msra.mxu0 0
        %4315 = vmatprep.subr.bf16.mxu0 0
        %4316 = vmatpush1.bf16.msra.mxu0 0
        %4317 = vmatprep.subr.bf16.mxu0 0
        %4318 = vmatpush1.bf16.msra.mxu0 0
        %4319 = vmatprep.subr.bf16.mxu0 0
        %4320 = vmatpush1.bf16.msra.mxu0 0
        %4321 = vmatprep.subr.bf16.mxu0 0
        %4322 = vmatpush1.bf16.msra.mxu0 0
        %4323 = vmatprep.subr.bf16.mxu0 0
        %4324 = vmatpush1.bf16.msra.mxu0 0
        %4325 = vmatprep.subr.bf16.mxu0 0
        %4326 = vmatpush1.bf16.msra.mxu0 0
        %4327 = vmatprep.subr.bf16.mxu0 0
        %4328 = vmatpush1.bf16.msra.mxu0 0
        %4329 = vmatprep.subr.bf16.mxu0 0
        %4330 = vmatpush1.bf16.msra.mxu0 0
        %4331 = vmatprep.subr.bf16.mxu0 0
        %4332 = vmatpush1.bf16.msra.mxu0 0
        %4333 = vmatprep.subr.bf16.mxu0 0
        %4334 = vmatpush1.bf16.msra.mxu0 0
        %4335 = vmatprep.subr.bf16.mxu0 0
        %4336 = vmatpush1.bf16.msra.mxu0 0
        %4337 = vmatprep.subr.bf16.mxu0 0
        %4338 = vmatpush1.bf16.msra.mxu0 0
        %4339 = vmatprep.subr.bf16.mxu0 0
        %4340 = vmatpush1.bf16.msra.mxu0 0
        %4341 = vmatprep.subr.bf16.mxu0 0
        %4342 = vmatpush1.bf16.msra.mxu0 0
        %4343 = vmatprep.mubr.bf16.mxu0 0
        %4344 = vmatmul.mubr.bf16.gmra.mrb[0].mxu0 %v4309
        %v4345 = vpop.f32.mrb[0].mxu0
        %v4346 = vadd.f32 0.0, %v4345
        %v4347 = vpop.f32.mrb[0].mxu0
        %v4348 = vpop.f32.mrb[0].mxu0
        %v4349 = vpop.f32.mrb[0].mxu0
        %4350 = vdwg.mxu0
        %v4352 = vsel %vm2009, %v4049, 0
        %4354 = vmatprep.subr.bf16.mxu0 0
        %4355 = vmatpush1.bf16.msra.mxu0 %v2337
        %4356 = vmatprep.subr.bf16.mxu0 0
        %4357 = vmatpush1.bf16.msra.mxu0 0
        %4358 = vmatprep.subr.bf16.mxu0 0
        %4359 = vmatpush1.bf16.msra.mxu0 0
        %4360 = vmatprep.subr.bf16.mxu0 0
        %4361 = vmatpush1.bf16.msra.mxu0 0
        %4362 = vmatprep.subr.bf16.mxu0 0
        %4363 = vmatpush1.bf16.msra.mxu0 0
        %4364 = vmatprep.subr.bf16.mxu0 0
        %4365 = vmatpush1.bf16.msra.mxu0 0
        %4366 = vmatprep.subr.bf16.mxu0 0
        %4367 = vmatpush1.bf16.msra.mxu0 0
        %4368 = vmatprep.subr.bf16.mxu0 0
        %4369 = vmatpush1.bf16.msra.mxu0 0
        %4370 = vmatprep.subr.bf16.mxu0 0
        %4371 = vmatpush1.bf16.msra.mxu0 0
        %4372 = vmatprep.subr.bf16.mxu0 0
        %4373 = vmatpush1.bf16.msra.mxu0 0
        %4374 = vmatprep.subr.bf16.mxu0 0
        %4375 = vmatpush1.bf16.msra.mxu0 0
        %4376 = vmatprep.subr.bf16.mxu0 0
        %4377 = vmatpush1.bf16.msra.mxu0 0
        %4378 = vmatprep.subr.bf16.mxu0 0
        %4379 = vmatpush1.bf16.msra.mxu0 0
        %4380 = vmatprep.subr.bf16.mxu0 0
        %4381 = vmatpush1.bf16.msra.mxu0 0
        %4382 = vmatprep.subr.bf16.mxu0 0
        %4383 = vmatpush1.bf16.msra.mxu0 0
        %4384 = vmatprep.subr.bf16.mxu0 0
        %4385 = vmatpush1.bf16.msra.mxu0 0
        %4386 = vmatprep.mubr.bf16.mxu0 0
        %4387 = vmatmul.mubr.bf16.gmra.mrb[0].mxu0 %v4352
        %v4388 = vpop.f32.mrb[0].mxu0
        %v4389 = vadd.f32 0.0, %v4388
        %v4390 = vpop.f32.mrb[0].mxu0
        %v4391 = vpop.f32.mrb[0].mxu0
        %v4392 = vpop.f32.mrb[0].mxu0
        %4393 = vdwg.mxu0
        %v4394 = vpack.c.bf16 %v4088, %v4088
        %v4395 = vpack.c.bf16 %v4131, %v4131
        %v4396 = vpack.c.bf16 %v4174, %v4174
        %v4397 = vpack.c.bf16 %v4217, %v4217
        %v4398 = vpack.c.bf16 %v4260, %v4260
        %v4399 = vpack.c.bf16 %v4303, %v4303
        %v4400 = vpack.c.bf16 %v4346, %v4346
        %v4401 = vpack.c.bf16 %v4389, %v4389
        %v4402 = vld [vmem:[#allocation16] sm:$0xf]
        %v4403 = vld [vmem:[#allocation16 + $0x4] sm:$0xf]
        %v4404 = vld [vmem:[#allocation16 + $0x8] sm:$0xf]
        %v4405 = vld [vmem:[#allocation16 + $0xc] sm:$0xf]
        %v4406 = vld [vmem:[#allocation16 + $0x10] sm:$0xf]
        %v4407 = vld [vmem:[#allocation16 + $0x14] sm:$0xf]
        %v4408 = vld [vmem:[#allocation16 + $0x18] sm:$0xf]
        %v4409 = vld [vmem:[#allocation16 + $0x1c] sm:$0xf]
        %v4410 = vld [vmem:[#allocation16 + $0x20] sm:$0xf]
        %v4411 = vld [vmem:[#allocation16 + $0x24] sm:$0xf]
        %v4412 = vld [vmem:[#allocation16 + $0x28] sm:$0xf]
        %v4413 = vld [vmem:[#allocation16 + $0x2c] sm:$0xf]
        %v4414 = vld [vmem:[#allocation16 + $0x30] sm:$0xf]
        %v4415 = vld [vmem:[#allocation16 + $0x34] sm:$0xf]
        %v4416 = vld [vmem:[#allocation16 + $0x38] sm:$0xf]
        %v4417 = vld [vmem:[#allocation16 + $0x3c] sm:$0xf]
        %v4418 = vld [vmem:[#allocation17] sm:$0xf]
        %v4419 = vld [vmem:[#allocation17 + $0x4] sm:$0xf]
        %v4420 = vld [vmem:[#allocation17 + $0x8] sm:$0xf]
        %v4421 = vld [vmem:[#allocation17 + $0xc] sm:$0xf]
        %v4422 = vld [vmem:[#allocation17 + $0x10] sm:$0xf]
        %v4423 = vld [vmem:[#allocation17 + $0x14] sm:$0xf]
        %v4424 = vld [vmem:[#allocation17 + $0x18] sm:$0xf]
        %v4425 = vld [vmem:[#allocation17 + $0x1c] sm:$0xf]
        %v4426 = vld [vmem:[#allocation17 + $0x20] sm:$0xf]
        %v4427 = vld [vmem:[#allocation17 + $0x24] sm:$0xf]
        %v4428 = vld [vmem:[#allocation17 + $0x28] sm:$0xf]
        %v4429 = vld [vmem:[#allocation17 + $0x2c] sm:$0xf]
        %v4430 = vld [vmem:[#allocation17 + $0x30] sm:$0xf]
        %v4431 = vld [vmem:[#allocation17 + $0x34] sm:$0xf]
        %v4432 = vld [vmem:[#allocation17 + $0x38] sm:$0xf]
        %v4433 = vld [vmem:[#allocation17 + $0x3c] sm:$0xf]
        %v4450 = vunpack.c.l.b16 %v4418
        %v4451 = vunpack.c.l.b16 %v4419
        %v4452 = vunpack.c.l.b16 %v4420
        %v4453 = vunpack.c.l.b16 %v4421
        %v4454 = vunpack.c.l.b16 %v4422
        %v4455 = vunpack.c.l.b16 %v4423
        %v4456 = vunpack.c.l.b16 %v4424
        %v4457 = vunpack.c.l.b16 %v4425
        %v4458 = vunpack.c.l.b16 %v4426
        %v4459 = vunpack.c.l.b16 %v4427
        %v4460 = vunpack.c.l.b16 %v4428
        %v4461 = vunpack.c.l.b16 %v4429
        %v4462 = vunpack.c.l.b16 %v4430
        %v4463 = vunpack.c.l.b16 %v4431
        %v4464 = vunpack.c.l.b16 %v4432
        %v4465 = vunpack.c.l.b16 %v4433
        %v4466 = vpack.c.b16 %v4451, %v4450
        %v4467 = vpack.c.b16 %v4453, %v4452
        %v4468 = vpack.c.b16 %v4455, %v4454
        %v4469 = vpack.c.b16 %v4457, %v4456
        %v4470 = vpack.c.b16 %v4459, %v4458
        %v4471 = vpack.c.b16 %v4461, %v4460
        %v4472 = vpack.c.b16 %v4463, %v4462
        %v4473 = vpack.c.b16 %v4465, %v4464
        %4482 = vmatprep.subr.bf16.mxu0 0
        %4483 = vmatpush1.bf16.msra.mxu0 %v4466
        %4484 = vmatprep.subr.bf16.mxu0 0
        %4485 = vmatpush1.bf16.msra.mxu0 %v4467
        %4486 = vmatprep.subr.bf16.mxu0 0
        %4487 = vmatpush1.bf16.msra.mxu0 %v4468
        %4488 = vmatprep.subr.bf16.mxu0 0
        %4489 = vmatpush1.bf16.msra.mxu0 %v4469
        %4490 = vmatprep.subr.bf16.mxu0 0
        %4491 = vmatpush1.bf16.msra.mxu0 %v4470
        %4492 = vmatprep.subr.bf16.mxu0 0
        %4493 = vmatpush1.bf16.msra.mxu0 %v4471
        %4494 = vmatprep.subr.bf16.mxu0 0
        %4495 = vmatpush1.bf16.msra.mxu0 %v4472
        %4496 = vmatprep.subr.bf16.mxu0 0
        %4497 = vmatpush1.bf16.msra.mxu0 %v4473
        %4498 = vmatprep.subr.bf16.mxu0 0
        %4499 = vmatpush1.bf16.msra.mxu0 0
        %4500 = vmatprep.subr.bf16.mxu0 0
        %4501 = vmatpush1.bf16.msra.mxu0 0
        %4502 = vmatprep.subr.bf16.mxu0 0
        %4503 = vmatpush1.bf16.msra.mxu0 0
        %4504 = vmatprep.subr.bf16.mxu0 0
        %4505 = vmatpush1.bf16.msra.mxu0 0
        %4506 = vmatprep.subr.bf16.mxu0 0
        %4507 = vmatpush1.bf16.msra.mxu0 0
        %4508 = vmatprep.subr.bf16.mxu0 0
        %4509 = vmatpush1.bf16.msra.mxu0 0
        %4510 = vmatprep.subr.bf16.mxu0 0
        %4511 = vmatpush1.bf16.msra.mxu0 0
        %4512 = vmatprep.subr.bf16.mxu0 0
        %4513 = vmatpush1.bf16.msra.mxu0 0
        %4514 = vmatprep.mubr.bf16.mxu0 0
        %4515 = vmatmul.mubr.bf16.gmra.mrb[0].mxu0 %v3463
        %v4516 = vpop.f32.mrb[0].mxu0
        %v4517 = vadd.f32 0.0, %v4516
        %v4518 = vpop.f32.mrb[0].mxu0
        %v4519 = vpop.f32.mrb[0].mxu0
        %v4520 = vpop.f32.mrb[0].mxu0
        %4521 = vdwg.mxu0
        %v4530 = vunpack.c.l.b16 %v4394
        %v4531 = vunpack.c.l.b16 %v4395
        %v4532 = vunpack.c.l.b16 %v4396
        %v4533 = vunpack.c.l.b16 %v4397
        %v4534 = vunpack.c.l.b16 %v4398
        %v4535 = vunpack.c.l.b16 %v4399
        %v4536 = vunpack.c.l.b16 %v4400
        %v4537 = vunpack.c.l.b16 %v4401
        %v4538 = vrot.slane %v4531, 7
        %v4539 = vsel %vm2524, %v4538, %v4530
        %v4540 = vrot.slane %v4532, 6
        %v4541 = vsel %vm2527, %v4540, %v4539
        %v4542 = vrot.slane %v4533, 5
        %v4543 = vsel %vm2530, %v4542, %v4541
        %v4544 = vrot.slane %v4534, 4
        %v4545 = vsel %vm2533, %v4544, %v4543
        %v4546 = vrot.slane %v4535, 3
        %v4547 = vsel %vm2536, %v4546, %v4545
        %v4548 = vrot.slane %v4536, 2
        %v4549 = vsel %vm2539, %v4548, %v4547
        %v4550 = vrot.slane %v4537, 1
        %v4551 = vsel %vm2542, %v4550, %v4549
        %v4552 = vpack.c.b16 %v4551, %v4551
        %v4570 = vunpack.c.l.b16 %v4402
        %v4571 = vunpack.c.l.b16 %v4403
        %v4572 = vunpack.c.l.b16 %v4404
        %v4573 = vunpack.c.l.b16 %v4405
        %v4574 = vunpack.c.l.b16 %v4406
        %v4575 = vunpack.c.l.b16 %v4407
        %v4576 = vunpack.c.l.b16 %v4408
        %v4577 = vunpack.c.l.b16 %v4409
        %v4578 = vunpack.c.l.b16 %v4410
        %v4579 = vunpack.c.l.b16 %v4411
        %v4580 = vunpack.c.l.b16 %v4412
        %v4581 = vunpack.c.l.b16 %v4413
        %v4582 = vunpack.c.l.b16 %v4414
        %v4583 = vunpack.c.l.b16 %v4415
        %v4584 = vunpack.c.l.b16 %v4416
        %v4585 = vunpack.c.l.b16 %v4417
        %v4586 = vpack.c.b16 %v4571, %v4570
        %v4587 = vpack.c.b16 %v4573, %v4572
        %v4588 = vpack.c.b16 %v4575, %v4574
        %v4589 = vpack.c.b16 %v4577, %v4576
        %v4590 = vpack.c.b16 %v4579, %v4578
        %v4591 = vpack.c.b16 %v4581, %v4580
        %v4592 = vpack.c.b16 %v4583, %v4582
        %v4593 = vpack.c.b16 %v4585, %v4584
        %4602 = vmatprep.subr.bf16.mxu0 0
        %4603 = vmatpush1.bf16.msra.mxu0 %v4586
        %4604 = vmatprep.subr.bf16.mxu0 0
        %4605 = vmatpush1.bf16.msra.mxu0 %v4587
        %4606 = vmatprep.subr.bf16.mxu0 0
        %4607 = vmatpush1.bf16.msra.mxu0 %v4588
        %4608 = vmatprep.subr.bf16.mxu0 0
        %4609 = vmatpush1.bf16.msra.mxu0 %v4589
        %4610 = vmatprep.subr.bf16.mxu0 0
        %4611 = vmatpush1.bf16.msra.mxu0 %v4590
        %4612 = vmatprep.subr.bf16.mxu0 0
        %4613 = vmatpush1.bf16.msra.mxu0 %v4591
        %4614 = vmatprep.subr.bf16.mxu0 0
        %4615 = vmatpush1.bf16.msra.mxu0 %v4592
        %4616 = vmatprep.subr.bf16.mxu0 0
        %4617 = vmatpush1.bf16.msra.mxu0 %v4593
        %4618 = vmatprep.subr.bf16.mxu0 0
        %4619 = vmatpush1.bf16.msra.mxu0 0
        %4620 = vmatprep.subr.bf16.mxu0 0
        %4621 = vmatpush1.bf16.msra.mxu0 0
        %4622 = vmatprep.subr.bf16.mxu0 0
        %4623 = vmatpush1.bf16.msra.mxu0 0
        %4624 = vmatprep.subr.bf16.mxu0 0
        %4625 = vmatpush1.bf16.msra.mxu0 0
        %4626 = vmatprep.subr.bf16.mxu0 0
        %4627 = vmatpush1.bf16.msra.mxu0 0
        %4628 = vmatprep.subr.bf16.mxu0 0
        %4629 = vmatpush1.bf16.msra.mxu0 0
        %4630 = vmatprep.subr.bf16.mxu0 0
        %4631 = vmatpush1.bf16.msra.mxu0 0
        %4632 = vmatprep.subr.bf16.mxu0 0
        %4633 = vmatpush1.bf16.msra.mxu0 0
        %4634 = vmatprep.mubr.bf16.mxu0 0
        %4635 = vmatmul.mubr.bf16.gmra.mrb[0].mxu0 %v4552
        %v4636 = vpop.f32.mrb[0].mxu0
        %v4637 = vadd.f32 %v4517, %v4636
        %v4638 = vpop.f32.mrb[0].mxu0
        %v4639 = vpop.f32.mrb[0].mxu0
        %v4640 = vpop.f32.mrb[0].mxu0
        %4641 = vdwg.mxu0
        %v4642 = vtanh.pop %v4637
        %s4643 = scalar_lea.vmem %s569, 8 [#allocation19]
        %4644 = vst [vmem:[%s4643] sm:$0xff] %v4642
        %v4645 = vld [vmem:[#allocation20] sm:$0xff]
        %s4646 = scalar_lea.vmem %s497, 48 [#allocation2]
        %v4647 = vld [vmem:[%s4646] sm:$0xff]
        %v4648 = vld [vmem:[%s4646 + $0x8] sm:$0xff]
        %v4649 = vld [vmem:[%s4646 + $0x10] sm:$0xff]
        %v4650 = vpack.c.bf16 %v4645, %v4645
        %v4651 = vld [vmem:[#allocation11] sm:$0xff]
        %v4652 = vld [vmem:[#allocation11 + $0x8] sm:$0xf]
        %v4653 = vld [vmem:[#allocation11 + $0xc] sm:$0xff]
        %v4654 = vld [vmem:[#allocation11 + $0x14] sm:$0xf]
        %v4655 = vld [vmem:[#allocation11 + $0x18] sm:$0xff]
        %v4656 = vld [vmem:[#allocation11 + $0x20] sm:$0xf]
        %v4657 = vld [vmem:[#allocation11 + $0x24] sm:$0xff]
        %v4658 = vld [vmem:[#allocation11 + $0x2c] sm:$0xf]
        %v4659 = vld [vmem:[#allocation11 + $0x30] sm:$0xff]
        %v4660 = vld [vmem:[#allocation11 + $0x38] sm:$0xf]
        %v4661 = vld [vmem:[#allocation11 + $0x3c] sm:$0xff]
        %v4662 = vld [vmem:[#allocation11 + $0x44] sm:$0xf]
        %v4663 = vld [vmem:[#allocation11 + $0x48] sm:$0xff]
        %v4664 = vld [vmem:[#allocation11 + $0x50] sm:$0xf]
        %v4665 = vld [vmem:[#allocation11 + $0x54] sm:$0xff]
        %v4666 = vld [vmem:[#allocation11 + $0x5c] sm:$0xf]
        %v4667 = vld [vmem:[#allocation11 + $0x60] sm:$0xff]
        %v4668 = vld [vmem:[#allocation11 + $0x68] sm:$0xf]
        %v4669 = vld [vmem:[#allocation11 + $0x6c] sm:$0xff]
        %v4670 = vld [vmem:[#allocation11 + $0x74] sm:$0xf]
        %v4671 = vld [vmem:[#allocation11 + $0x78] sm:$0xff]
        %v4672 = vld [vmem:[#allocation11 + $0x80] sm:$0xf]
        %v4673 = vld [vmem:[#allocation11 + $0x84] sm:$0xff]
        %v4674 = vld [vmem:[#allocation11 + $0x8c] sm:$0xf]
        %v4675 = vld [vmem:[#allocation11 + $0x90] sm:$0xff]
        %v4676 = vld [vmem:[#allocation11 + $0x98] sm:$0xf]
        %v4677 = vld [vmem:[#allocation11 + $0x9c] sm:$0xff]
        %v4678 = vld [vmem:[#allocation11 + $0xa4] sm:$0xf]
        %v4679 = vld [vmem:[#allocation11 + $0xa8] sm:$0xff]
        %v4680 = vld [vmem:[#allocation11 + $0xb0] sm:$0xf]
        %v4681 = vld [vmem:[#allocation11 + $0xb4] sm:$0xff]
        %v4682 = vld [vmem:[#allocation11 + $0xbc] sm:$0xf]
        %v4683 = vld [vmem:[#allocation13] sm:$0x7]
        %v4685 = vlaneseq
        %v4686 = vshrl.u32 %v4685, 7
        %v4687 = vsub.s32 0, %v4686
        %v4688 = vrot.slane %v4683, %v4687
        %v4689 = vlaneseq
        %v4690 = vshrl.u32 %v4689, 7
        %v4691 = vsub.s32 1, %v4690
        %v4692 = vrot.slane %v4683, %v4691
        %v4693 = vlaneseq
        %v4694 = vshrl.u32 %v4693, 7
        %v4695 = vsub.s32 2, %v4694
        %v4696 = vrot.slane %v4683, %v4695
        %v4732 = vunpack.c.l.b16 %v4651
        %v4733 = vunpack.c.h.b16 %v4651
        %v4734 = vunpack.c.l.b16 %v4652
        %v4735 = vunpack.c.l.b16 %v4653
        %v4736 = vunpack.c.h.b16 %v4653
        %v4737 = vunpack.c.l.b16 %v4654
        %v4738 = vunpack.c.l.b16 %v4655
        %v4739 = vunpack.c.h.b16 %v4655
        %v4740 = vunpack.c.l.b16 %v4656
        %v4741 = vunpack.c.l.b16 %v4657
        %v4742 = vunpack.c.h.b16 %v4657
        %v4743 = vunpack.c.l.b16 %v4658
        %v4744 = vunpack.c.l.b16 %v4659
        %v4745 = vunpack.c.h.b16 %v4659
        %v4746 = vunpack.c.l.b16 %v4660
        %v4747 = vunpack.c.l.b16 %v4661
        %v4748 = vunpack.c.h.b16 %v4661
        %v4749 = vunpack.c.l.b16 %v4662
        %v4750 = vunpack.c.l.b16 %v4663
        %v4751 = vunpack.c.h.b16 %v4663
        %v4752 = vunpack.c.l.b16 %v4664
        %v4753 = vunpack.c.l.b16 %v4665
        %v4754 = vunpack.c.h.b16 %v4665
        %v4755 = vunpack.c.l.b16 %v4666
        %v4756 = vunpack.c.l.b16 %v4667
        %v4757 = vunpack.c.h.b16 %v4667
        %v4758 = vunpack.c.l.b16 %v4668
        %v4759 = vunpack.c.l.b16 %v4669
        %v4760 = vunpack.c.h.b16 %v4669
        %v4761 = vunpack.c.l.b16 %v4670
        %v4762 = vunpack.c.l.b16 %v4671
        %v4763 = vunpack.c.h.b16 %v4671
        %v4764 = vunpack.c.l.b16 %v4672
        %v4765 = vunpack.c.l.b16 %v4673
        %v4766 = vunpack.c.h.b16 %v4673
        %v4767 = vunpack.c.l.b16 %v4674
        %v4768 = vunpack.c.l.b16 %v4675
        %v4769 = vunpack.c.h.b16 %v4675
        %v4770 = vunpack.c.l.b16 %v4676
        %v4771 = vunpack.c.l.b16 %v4677
        %v4772 = vunpack.c.h.b16 %v4677
        %v4773 = vunpack.c.l.b16 %v4678
        %v4774 = vunpack.c.l.b16 %v4679
        %v4775 = vunpack.c.h.b16 %v4679
        %v4776 = vunpack.c.l.b16 %v4680
        %v4777 = vunpack.c.l.b16 %v4681
        %v4778 = vunpack.c.h.b16 %v4681
        %v4779 = vunpack.c.l.b16 %v4682
        %v4780 = vpack.c.b16 %v4735, %v4732
        %v4781 = vpack.c.b16 %v4736, %v4733
        %v4782 = vpack.c.b16 %v4737, %v4734
        %v4783 = vpack.c.b16 %v4741, %v4738
        %v4784 = vpack.c.b16 %v4742, %v4739
        %v4785 = vpack.c.b16 %v4743, %v4740
        %v4786 = vpack.c.b16 %v4747, %v4744
        %v4787 = vpack.c.b16 %v4748, %v4745
        %v4788 = vpack.c.b16 %v4749, %v4746
        %v4789 = vpack.c.b16 %v4753, %v4750
        %v4790 = vpack.c.b16 %v4754, %v4751
        %v4791 = vpack.c.b16 %v4755, %v4752
        %v4792 = vpack.c.b16 %v4759, %v4756
        %v4793 = vpack.c.b16 %v4760, %v4757
        %v4794 = vpack.c.b16 %v4761, %v4758
        %v4795 = vpack.c.b16 %v4765, %v4762
        %v4796 = vpack.c.b16 %v4766, %v4763
        %v4797 = vpack.c.b16 %v4767, %v4764
        %v4798 = vpack.c.b16 %v4771, %v4768
        %v4799 = vpack.c.b16 %v4772, %v4769
        %v4800 = vpack.c.b16 %v4773, %v4770
        %v4801 = vpack.c.b16 %v4777, %v4774
        %v4802 = vpack.c.b16 %v4778, %v4775
        %v4803 = vpack.c.b16 %v4779, %v4776
        %4828 = vmatprep.subr.bf16.mxu0 %v4781
        %4829 = vmatpush1.bf16.msra.mxu0 %v4780
        %4830 = vmatprep.subr.bf16.mxu0 %v4784
        %4831 = vmatpush1.bf16.msra.mxu0 %v4783
        %4832 = vmatprep.subr.bf16.mxu0 %v4787
        %4833 = vmatpush1.bf16.msra.mxu0 %v4786
        %4834 = vmatprep.subr.bf16.mxu0 %v4790
        %4835 = vmatpush1.bf16.msra.mxu0 %v4789
        %4836 = vmatprep.subr.bf16.mxu0 %v4793
        %4837 = vmatpush1.bf16.msra.mxu0 %v4792
        %4838 = vmatprep.subr.bf16.mxu0 %v4796
        %4839 = vmatpush1.bf16.msra.mxu0 %v4795
        %4840 = vmatprep.subr.bf16.mxu0 %v4799
        %4841 = vmatpush1.bf16.msra.mxu0 %v4798
        %4842 = vmatprep.subr.bf16.mxu0 %v4802
        %4843 = vmatpush1.bf16.msra.mxu0 %v4801
        %4844 = vmatprep.subr.bf16.mxu0 0
        %4845 = vmatpush1.bf16.msra.mxu0 0
        %4846 = vmatprep.subr.bf16.mxu0 0
        %4847 = vmatpush1.bf16.msra.mxu0 0
        %4848 = vmatprep.subr.bf16.mxu0 0
        %4849 = vmatpush1.bf16.msra.mxu0 0
        %4850 = vmatprep.subr.bf16.mxu0 0
        %4851 = vmatpush1.bf16.msra.mxu0 0
        %4852 = vmatprep.subr.bf16.mxu0 0
        %4853 = vmatpush1.bf16.msra.mxu0 0
        %4854 = vmatprep.subr.bf16.mxu0 0
        %4855 = vmatpush1.bf16.msra.mxu0 0
        %4856 = vmatprep.subr.bf16.mxu0 0
        %4857 = vmatpush1.bf16.msra.mxu0 0
        %4858 = vmatprep.subr.bf16.mxu0 0
        %4859 = vmatpush1.bf16.msra.mxu0 0
        %4860 = vmatprep.mubr.bf16.mxu0 0
        %4861 = vmatmul.mubr.bf16.gmra.mrb[0].mxu0 %v4650
        %v4862 = vpop.f32.mrb[0].mxu0
        %v4863 = vadd.f32 %v4688, %v4862
        %v4864 = vpop.f32.mrb[0].mxu0
        %v4865 = vadd.f32 %v4692, %v4864
        %v4866 = vpop.f32.mrb[0].mxu0
        %v4867 = vpop.f32.mrb[0].mxu0
        %4868 = vdwg.mxu0
        %4869 = vmatprep.subr.bf16.mxu0 0
        %4870 = vmatpush1.bf16.msra.mxu0 %v4782
        %4871 = vmatprep.subr.bf16.mxu0 0
        %4872 = vmatpush1.bf16.msra.mxu0 %v4785
        %4873 = vmatprep.subr.bf16.mxu0 0
        %4874 = vmatpush1.bf16.msra.mxu0 %v4788
        %4875 = vmatprep.subr.bf16.mxu0 0
        %4876 = vmatpush1.bf16.msra.mxu0 %v4791
        %4877 = vmatprep.subr.bf16.mxu0 0
        %4878 = vmatpush1.bf16.msra.mxu0 %v4794
        %4879 = vmatprep.subr.bf16.mxu0 0
        %4880 = vmatpush1.bf16.msra.mxu0 %v4797
        %4881 = vmatprep.subr.bf16.mxu0 0
        %4882 = vmatpush1.bf16.msra.mxu0 %v4800
        %4883 = vmatprep.subr.bf16.mxu0 0
        %4884 = vmatpush1.bf16.msra.mxu0 %v4803
        %4885 = vmatprep.subr.bf16.mxu0 0
        %4886 = vmatpush1.bf16.msra.mxu0 0
        %4887 = vmatprep.subr.bf16.mxu0 0
        %4888 = vmatpush1.bf16.msra.mxu0 0
        %4889 = vmatprep.subr.bf16.mxu0 0
        %4890 = vmatpush1.bf16.msra.mxu0 0
        %4891 = vmatprep.subr.bf16.mxu0 0
        %4892 = vmatpush1.bf16.msra.mxu0 0
        %4893 = vmatprep.subr.bf16.mxu0 0
        %4894 = vmatpush1.bf16.msra.mxu0 0
        %4895 = vmatprep.subr.bf16.mxu0 0
        %4896 = vmatpush1.bf16.msra.mxu0 0
        %4897 = vmatprep.subr.bf16.mxu0 0
        %4898 = vmatpush1.bf16.msra.mxu0 0
        %4899 = vmatprep.subr.bf16.mxu0 0
        %4900 = vmatpush1.bf16.msra.mxu0 0
        %4901 = vmatprep.mubr.bf16.mxu0 0
        %4902 = vmatmul.mubr.bf16.gmra.mrb[0].mxu0 %v4650
        %v4903 = vpop.f32.mrb[0].mxu0
        %v4904 = vadd.f32 %v4696, %v4903
        %v4905 = vpop.f32.mrb[0].mxu0
        %v4906 = vpop.f32.mrb[0].mxu0
        %v4907 = vpop.f32.mrb[0].mxu0
        %4908 = vdwg.mxu0
        %v4909 = vadd.f32 %v4647, %v4863
        %v4910 = vxor.u32 %v4909, 2147483648
        %v4911 = vmul.f32 %v4910, 1.442695
        %v4912 = vpow.pop %v4911
        %v4913 = vadd.f32 %v4912, 1.0
        %v4914 = vrcp.pop %v4913
        %v4915 = vmul.f32 1.0, %v4914
        %v4916 = vadd.f32 %v4648, %v4865
        %v4917 = vxor.u32 %v4916, 2147483648
        %v4918 = vmul.f32 %v4917, 1.442695
        %v4919 = vpow.pop %v4918
        %v4920 = vadd.f32 %v4919, 1.0
        %v4921 = vrcp.pop %v4920
        %v4922 = vmul.f32 1.0, %v4921
        %v4923 = vmul.f32 %v4915, %v4904
        %v4924 = vadd.f32 %v4649, %v4923
        %v4925 = vtanh.pop %v4924
        %v4926 = vsub.f32 1.0, %v4922
        %v4927 = vmul.f32 %v4926, %v4925
        %v4928 = vmul.f32 %v4922, %v4645
        %v4929 = vadd.f32 %v4927, %v4928
        %4930 = vst [vmem:[#allocation20] sm:$0xff] %v4929
        %v4931 = vld [vmem:[%s877] sm:$0xff]
        %v4932 = vpack.c.bf16 %v4929, %v4929
        %v4933 = vld [vmem:[#allocation8] sm:$0xff]
        %v4934 = vld [vmem:[#allocation8 + $0x8] sm:$0xf]
        %v4935 = vld [vmem:[#allocation8 + $0xc] sm:$0xff]
        %v4936 = vld [vmem:[#allocation8 + $0x14] sm:$0xf]
        %v4937 = vld [vmem:[#allocation8 + $0x18] sm:$0xff]
        %v4938 = vld [vmem:[#allocation8 + $0x20] sm:$0xf]
        %v4939 = vld [vmem:[#allocation8 + $0x24] sm:$0xff]
        %v4940 = vld [vmem:[#allocation8 + $0x2c] sm:$0xf]
        %v4941 = vld [vmem:[#allocation8 + $0x30] sm:$0xff]
        %v4942 = vld [vmem:[#allocation8 + $0x38] sm:$0xf]
        %v4943 = vld [vmem:[#allocation8 + $0x3c] sm:$0xff]
        %v4944 = vld [vmem:[#allocation8 + $0x44] sm:$0xf]
        %v4945 = vld [vmem:[#allocation8 + $0x48] sm:$0xff]
        %v4946 = vld [vmem:[#allocation8 + $0x50] sm:$0xf]
        %v4947 = vld [vmem:[#allocation8 + $0x54] sm:$0xff]
        %v4948 = vld [vmem:[#allocation8 + $0x5c] sm:$0xf]
        %v4949 = vld [vmem:[#allocation8 + $0x60] sm:$0xff]
        %v4950 = vld [vmem:[#allocation8 + $0x68] sm:$0xf]
        %v4951 = vld [vmem:[#allocation8 + $0x6c] sm:$0xff]
        %v4952 = vld [vmem:[#allocation8 + $0x74] sm:$0xf]
        %v4953 = vld [vmem:[#allocation8 + $0x78] sm:$0xff]
        %v4954 = vld [vmem:[#allocation8 + $0x80] sm:$0xf]
        %v4955 = vld [vmem:[#allocation8 + $0x84] sm:$0xff]
        %v4956 = vld [vmem:[#allocation8 + $0x8c] sm:$0xf]
        %v4957 = vld [vmem:[#allocation8 + $0x90] sm:$0xff]
        %v4958 = vld [vmem:[#allocation8 + $0x98] sm:$0xf]
        %v4959 = vld [vmem:[#allocation8 + $0x9c] sm:$0xff]
        %v4960 = vld [vmem:[#allocation8 + $0xa4] sm:$0xf]
        %v4961 = vld [vmem:[#allocation8 + $0xa8] sm:$0xff]
        %v4962 = vld [vmem:[#allocation8 + $0xb0] sm:$0xf]
        %v4963 = vld [vmem:[#allocation8 + $0xb4] sm:$0xff]
        %v4964 = vld [vmem:[#allocation8 + $0xbc] sm:$0xf]
        %v4965 = vld [vmem:[#allocation10] sm:$0x7]
        %v4967 = vlaneseq
        %v4968 = vshrl.u32 %v4967, 7
        %v4969 = vsub.s32 0, %v4968
        %v4970 = vrot.slane %v4965, %v4969
        %v4971 = vlaneseq
        %v4972 = vshrl.u32 %v4971, 7
        %v4973 = vsub.s32 1, %v4972
        %v4974 = vrot.slane %v4965, %v4973
        %v4975 = vlaneseq
        %v4976 = vshrl.u32 %v4975, 7
        %v4977 = vsub.s32 2, %v4976
        %v4978 = vrot.slane %v4965, %v4977
        %v5014 = vunpack.c.l.b16 %v4933
        %v5015 = vunpack.c.h.b16 %v4933
        %v5016 = vunpack.c.l.b16 %v4934
        %v5017 = vunpack.c.l.b16 %v4935
        %v5018 = vunpack.c.h.b16 %v4935
        %v5019 = vunpack.c.l.b16 %v4936
        %v5020 = vunpack.c.l.b16 %v4937
        %v5021 = vunpack.c.h.b16 %v4937
        %v5022 = vunpack.c.l.b16 %v4938
        %v5023 = vunpack.c.l.b16 %v4939
        %v5024 = vunpack.c.h.b16 %v4939
        %v5025 = vunpack.c.l.b16 %v4940
        %v5026 = vunpack.c.l.b16 %v4941
        %v5027 = vunpack.c.h.b16 %v4941
        %v5028 = vunpack.c.l.b16 %v4942
        %v5029 = vunpack.c.l.b16 %v4943
        %v5030 = vunpack.c.h.b16 %v4943
        %v5031 = vunpack.c.l.b16 %v4944
        %v5032 = vunpack.c.l.b16 %v4945
        %v5033 = vunpack.c.h.b16 %v4945
        %v5034 = vunpack.c.l.b16 %v4946
        %v5035 = vunpack.c.l.b16 %v4947
        %v5036 = vunpack.c.h.b16 %v4947
        %v5037 = vunpack.c.l.b16 %v4948
        %v5038 = vunpack.c.l.b16 %v4949
        %v5039 = vunpack.c.h.b16 %v4949
        %v5040 = vunpack.c.l.b16 %v4950
        %v5041 = vunpack.c.l.b16 %v4951
        %v5042 = vunpack.c.h.b16 %v4951
        %v5043 = vunpack.c.l.b16 %v4952
        %v5044 = vunpack.c.l.b16 %v4953
        %v5045 = vunpack.c.h.b16 %v4953
        %v5046 = vunpack.c.l.b16 %v4954
        %v5047 = vunpack.c.l.b16 %v4955
        %v5048 = vunpack.c.h.b16 %v4955
        %v5049 = vunpack.c.l.b16 %v4956
        %v5050 = vunpack.c.l.b16 %v4957
        %v5051 = vunpack.c.h.b16 %v4957
        %v5052 = vunpack.c.l.b16 %v4958
        %v5053 = vunpack.c.l.b16 %v4959
        %v5054 = vunpack.c.h.b16 %v4959
        %v5055 = vunpack.c.l.b16 %v4960
        %v5056 = vunpack.c.l.b16 %v4961
        %v5057 = vunpack.c.h.b16 %v4961
        %v5058 = vunpack.c.l.b16 %v4962
        %v5059 = vunpack.c.l.b16 %v4963
        %v5060 = vunpack.c.h.b16 %v4963
        %v5061 = vunpack.c.l.b16 %v4964
        %v5062 = vpack.c.b16 %v5017, %v5014
        %v5063 = vpack.c.b16 %v5018, %v5015
        %v5064 = vpack.c.b16 %v5019, %v5016
        %v5065 = vpack.c.b16 %v5023, %v5020
        %v5066 = vpack.c.b16 %v5024, %v5021
        %v5067 = vpack.c.b16 %v5025, %v5022
        %v5068 = vpack.c.b16 %v5029, %v5026
        %v5069 = vpack.c.b16 %v5030, %v5027
        %v5070 = vpack.c.b16 %v5031, %v5028
        %v5071 = vpack.c.b16 %v5035, %v5032
        %v5072 = vpack.c.b16 %v5036, %v5033
        %v5073 = vpack.c.b16 %v5037, %v5034
        %v5074 = vpack.c.b16 %v5041, %v5038
        %v5075 = vpack.c.b16 %v5042, %v5039
        %v5076 = vpack.c.b16 %v5043, %v5040
        %v5077 = vpack.c.b16 %v5047, %v5044
        %v5078 = vpack.c.b16 %v5048, %v5045
        %v5079 = vpack.c.b16 %v5049, %v5046
        %v5080 = vpack.c.b16 %v5053, %v5050
        %v5081 = vpack.c.b16 %v5054, %v5051
        %v5082 = vpack.c.b16 %v5055, %v5052
        %v5083 = vpack.c.b16 %v5059, %v5056
        %v5084 = vpack.c.b16 %v5060, %v5057
        %v5085 = vpack.c.b16 %v5061, %v5058
        %5110 = vmatprep.subr.bf16.mxu0 %v5063
        %5111 = vmatpush1.bf16.msra.mxu0 %v5062
        %5112 = vmatprep.subr.bf16.mxu0 %v5066
        %5113 = vmatpush1.bf16.msra.mxu0 %v5065
        %5114 = vmatprep.subr.bf16.mxu0 %v5069
        %5115 = vmatpush1.bf16.msra.mxu0 %v5068
        %5116 = vmatprep.subr.bf16.mxu0 %v5072
        %5117 = vmatpush1.bf16.msra.mxu0 %v5071
        %5118 = vmatprep.subr.bf16.mxu0 %v5075
        %5119 = vmatpush1.bf16.msra.mxu0 %v5074
        %5120 = vmatprep.subr.bf16.mxu0 %v5078
        %5121 = vmatpush1.bf16.msra.mxu0 %v5077
        %5122 = vmatprep.subr.bf16.mxu0 %v5081
        %5123 = vmatpush1.bf16.msra.mxu0 %v5080
        %5124 = vmatprep.subr.bf16.mxu0 %v5084
        %5125 = vmatpush1.bf16.msra.mxu0 %v5083
        %5126 = vmatprep.subr.bf16.mxu0 0
        %5127 = vmatpush1.bf16.msra.mxu0 0
        %5128 = vmatprep.subr.bf16.mxu0 0
        %5129 = vmatpush1.bf16.msra.mxu0 0
        %5130 = vmatprep.subr.bf16.mxu0 0
        %5131 = vmatpush1.bf16.msra.mxu0 0
        %5132 = vmatprep.subr.bf16.mxu0 0
        %5133 = vmatpush1.bf16.msra.mxu0 0
        %5134 = vmatprep.subr.bf16.mxu0 0
        %5135 = vmatpush1.bf16.msra.mxu0 0
        %5136 = vmatprep.subr.bf16.mxu0 0
        %5137 = vmatpush1.bf16.msra.mxu0 0
        %5138 = vmatprep.subr.bf16.mxu0 0
        %5139 = vmatpush1.bf16.msra.mxu0 0
        %5140 = vmatprep.subr.bf16.mxu0 0
        %5141 = vmatpush1.bf16.msra.mxu0 0
        %5142 = vmatprep.mubr.bf16.mxu0 0
        %5143 = vmatmul.mubr.bf16.gmra.mrb[0].mxu0 %v4932
        %v5144 = vpop.f32.mrb[0].mxu0
        %v5145 = vadd.f32 %v4970, %v5144
        %v5146 = vpop.f32.mrb[0].mxu0
        %v5147 = vadd.f32 %v4974, %v5146
        %v5148 = vpop.f32.mrb[0].mxu0
        %v5149 = vpop.f32.mrb[0].mxu0
        %5150 = vdwg.mxu0
        %5151 = vmatprep.subr.bf16.mxu0 0
        %5152 = vmatpush1.bf16.msra.mxu0 %v5064
        %5153 = vmatprep.subr.bf16.mxu0 0
        %5154 = vmatpush1.bf16.msra.mxu0 %v5067
        %5155 = vmatprep.subr.bf16.mxu0 0
        %5156 = vmatpush1.bf16.msra.mxu0 %v5070
        %5157 = vmatprep.subr.bf16.mxu0 0
        %5158 = vmatpush1.bf16.msra.mxu0 %v5073
        %5159 = vmatprep.subr.bf16.mxu0 0
        %5160 = vmatpush1.bf16.msra.mxu0 %v5076
        %5161 = vmatprep.subr.bf16.mxu0 0
        %5162 = vmatpush1.bf16.msra.mxu0 %v5079
        %5163 = vmatprep.subr.bf16.mxu0 0
        %5164 = vmatpush1.bf16.msra.mxu0 %v5082
        %5165 = vmatprep.subr.bf16.mxu0 0
        %5166 = vmatpush1.bf16.msra.mxu0 %v5085
        %5167 = vmatprep.subr.bf16.mxu0 0
        %5168 = vmatpush1.bf16.msra.mxu0 0
        %5169 = vmatprep.subr.bf16.mxu0 0
        %5170 = vmatpush1.bf16.msra.mxu0 0
        %5171 = vmatprep.subr.bf16.mxu0 0
        %5172 = vmatpush1.bf16.msra.mxu0 0
        %5173 = vmatprep.subr.bf16.mxu0 0
        %5174 = vmatpush1.bf16.msra.mxu0 0
        %5175 = vmatprep.subr.bf16.mxu0 0
        %5176 = vmatpush1.bf16.msra.mxu0 0
        %5177 = vmatprep.subr.bf16.mxu0 0
        %5178 = vmatpush1.bf16.msra.mxu0 0
        %5179 = vmatprep.subr.bf16.mxu0 0
        %5180 = vmatpush1.bf16.msra.mxu0 0
        %5181 = vmatprep.subr.bf16.mxu0 0
        %5182 = vmatpush1.bf16.msra.mxu0 0
        %5183 = vmatprep.mubr.bf16.mxu0 0
        %5184 = vmatmul.mubr.bf16.gmra.mrb[0].mxu0 %v4932
        %v5185 = vpop.f32.mrb[0].mxu0
        %v5186 = vadd.f32 %v4978, %v5185
        %v5187 = vpop.f32.mrb[0].mxu0
        %v5188 = vpop.f32.mrb[0].mxu0
        %v5189 = vpop.f32.mrb[0].mxu0
        %5190 = vdwg.mxu0
        %v5191 = vpack.c.bf16 %v4931, %v4931
        %v5192 = vld [vmem:[%s1139] sm:$0xff]
        %v5193 = vld [vmem:[%s1139 + $0x8] sm:$0xf]
        %v5194 = vld [vmem:[%s1139 + $0xc] sm:$0xff]
        %v5195 = vld [vmem:[%s1139 + $0x14] sm:$0xf]
        %v5196 = vld [vmem:[%s1139 + $0x18] sm:$0xff]
        %v5197 = vld [vmem:[%s1139 + $0x20] sm:$0xf]
        %v5198 = vld [vmem:[%s1139 + $0x24] sm:$0xff]
        %v5199 = vld [vmem:[%s1139 + $0x2c] sm:$0xf]
        %v5200 = vld [vmem:[%s1139 + $0x30] sm:$0xff]
        %v5201 = vld [vmem:[%s1139 + $0x38] sm:$0xf]
        %v5202 = vld [vmem:[%s1139 + $0x3c] sm:$0xff]
        %v5203 = vld [vmem:[%s1139 + $0x44] sm:$0xf]
        %v5204 = vld [vmem:[%s1139 + $0x48] sm:$0xff]
        %v5205 = vld [vmem:[%s1139 + $0x50] sm:$0xf]
        %v5206 = vld [vmem:[%s1139 + $0x54] sm:$0xff]
        %v5207 = vld [vmem:[%s1139 + $0x5c] sm:$0xf]
        %v5208 = vld [vmem:[%s1139 + $0x60] sm:$0xff]
        %v5209 = vld [vmem:[%s1139 + $0x68] sm:$0xf]
        %v5210 = vld [vmem:[%s1139 + $0x6c] sm:$0xff]
        %v5211 = vld [vmem:[%s1139 + $0x74] sm:$0xf]
        %v5212 = vld [vmem:[%s1139 + $0x78] sm:$0xff]
        %v5213 = vld [vmem:[%s1139 + $0x80] sm:$0xf]
        %v5214 = vld [vmem:[%s1139 + $0x84] sm:$0xff]
        %v5215 = vld [vmem:[%s1139 + $0x8c] sm:$0xf]
        %v5216 = vld [vmem:[%s1139 + $0x90] sm:$0xff]
        %v5217 = vld [vmem:[%s1139 + $0x98] sm:$0xf]
        %v5218 = vld [vmem:[%s1139 + $0x9c] sm:$0xff]
        %v5219 = vld [vmem:[%s1139 + $0xa4] sm:$0xf]
        %v5220 = vld [vmem:[%s1139 + $0xa8] sm:$0xff]
        %v5221 = vld [vmem:[%s1139 + $0xb0] sm:$0xf]
        %v5222 = vld [vmem:[%s1139 + $0xb4] sm:$0xff]
        %v5223 = vld [vmem:[%s1139 + $0xbc] sm:$0xf]
        %v5224 = vld [vmem:[%s1172] sm:$0x7]
        %v5226 = vlaneseq
        %v5227 = vshrl.u32 %v5226, 7
        %v5228 = vsub.s32 0, %v5227
        %v5229 = vrot.slane %v5224, %v5228
        %v5230 = vlaneseq
        %v5231 = vshrl.u32 %v5230, 7
        %v5232 = vsub.s32 1, %v5231
        %v5233 = vrot.slane %v5224, %v5232
        %v5234 = vlaneseq
        %v5235 = vshrl.u32 %v5234, 7
        %v5236 = vsub.s32 2, %v5235
        %v5237 = vrot.slane %v5224, %v5236
        %v5273 = vunpack.c.l.b16 %v5192
        %v5274 = vunpack.c.h.b16 %v5192
        %v5275 = vunpack.c.l.b16 %v5193
        %v5276 = vunpack.c.l.b16 %v5194
        %v5277 = vunpack.c.h.b16 %v5194
        %v5278 = vunpack.c.l.b16 %v5195
        %v5279 = vunpack.c.l.b16 %v5196
        %v5280 = vunpack.c.h.b16 %v5196
        %v5281 = vunpack.c.l.b16 %v5197
        %v5282 = vunpack.c.l.b16 %v5198
        %v5283 = vunpack.c.h.b16 %v5198
        %v5284 = vunpack.c.l.b16 %v5199
        %v5285 = vunpack.c.l.b16 %v5200
        %v5286 = vunpack.c.h.b16 %v5200
        %v5287 = vunpack.c.l.b16 %v5201
        %v5288 = vunpack.c.l.b16 %v5202
        %v5289 = vunpack.c.h.b16 %v5202
        %v5290 = vunpack.c.l.b16 %v5203
        %v5291 = vunpack.c.l.b16 %v5204
        %v5292 = vunpack.c.h.b16 %v5204
        %v5293 = vunpack.c.l.b16 %v5205
        %v5294 = vunpack.c.l.b16 %v5206
        %v5295 = vunpack.c.h.b16 %v5206
        %v5296 = vunpack.c.l.b16 %v5207
        %v5297 = vunpack.c.l.b16 %v5208
        %v5298 = vunpack.c.h.b16 %v5208
        %v5299 = vunpack.c.l.b16 %v5209
        %v5300 = vunpack.c.l.b16 %v5210
        %v5301 = vunpack.c.h.b16 %v5210
        %v5302 = vunpack.c.l.b16 %v5211
        %v5303 = vunpack.c.l.b16 %v5212
        %v5304 = vunpack.c.h.b16 %v5212
        %v5305 = vunpack.c.l.b16 %v5213
        %v5306 = vunpack.c.l.b16 %v5214
        %v5307 = vunpack.c.h.b16 %v5214
        %v5308 = vunpack.c.l.b16 %v5215
        %v5309 = vunpack.c.l.b16 %v5216
        %v5310 = vunpack.c.h.b16 %v5216
        %v5311 = vunpack.c.l.b16 %v5217
        %v5312 = vunpack.c.l.b16 %v5218
        %v5313 = vunpack.c.h.b16 %v5218
        %v5314 = vunpack.c.l.b16 %v5219
        %v5315 = vunpack.c.l.b16 %v5220
        %v5316 = vunpack.c.h.b16 %v5220
        %v5317 = vunpack.c.l.b16 %v5221
        %v5318 = vunpack.c.l.b16 %v5222
        %v5319 = vunpack.c.h.b16 %v5222
        %v5320 = vunpack.c.l.b16 %v5223
        %v5321 = vpack.c.b16 %v5276, %v5273
        %v5322 = vpack.c.b16 %v5277, %v5274
        %v5323 = vpack.c.b16 %v5278, %v5275
        %v5324 = vpack.c.b16 %v5282, %v5279
        %v5325 = vpack.c.b16 %v5283, %v5280
        %v5326 = vpack.c.b16 %v5284, %v5281
        %v5327 = vpack.c.b16 %v5288, %v5285
        %v5328 = vpack.c.b16 %v5289, %v5286
        %v5329 = vpack.c.b16 %v5290, %v5287
        %v5330 = vpack.c.b16 %v5294, %v5291
        %v5331 = vpack.c.b16 %v5295, %v5292
        %v5332 = vpack.c.b16 %v5296, %v5293
        %v5333 = vpack.c.b16 %v5300, %v5297
        %v5334 = vpack.c.b16 %v5301, %v5298
        %v5335 = vpack.c.b16 %v5302, %v5299
        %v5336 = vpack.c.b16 %v5306, %v5303
        %v5337 = vpack.c.b16 %v5307, %v5304
        %v5338 = vpack.c.b16 %v5308, %v5305
        %v5339 = vpack.c.b16 %v5312, %v5309
        %v5340 = vpack.c.b16 %v5313, %v5310
        %v5341 = vpack.c.b16 %v5314, %v5311
        %v5342 = vpack.c.b16 %v5318, %v5315
        %v5343 = vpack.c.b16 %v5319, %v5316
        %v5344 = vpack.c.b16 %v5320, %v5317
        %5369 = vmatprep.subr.bf16.mxu0 %v5322
        %5370 = vmatpush1.bf16.msra.mxu0 %v5321
        %5371 = vmatprep.subr.bf16.mxu0 %v5325
        %5372 = vmatpush1.bf16.msra.mxu0 %v5324
        %5373 = vmatprep.subr.bf16.mxu0 %v5328
        %5374 = vmatpush1.bf16.msra.mxu0 %v5327
        %5375 = vmatprep.subr.bf16.mxu0 %v5331
        %5376 = vmatpush1.bf16.msra.mxu0 %v5330
        %5377 = vmatprep.subr.bf16.mxu0 %v5334
        %5378 = vmatpush1.bf16.msra.mxu0 %v5333
        %5379 = vmatprep.subr.bf16.mxu0 %v5337
        %5380 = vmatpush1.bf16.msra.mxu0 %v5336
        %5381 = vmatprep.subr.bf16.mxu0 %v5340
        %5382 = vmatpush1.bf16.msra.mxu0 %v5339
        %5383 = vmatprep.subr.bf16.mxu0 %v5343
        %5384 = vmatpush1.bf16.msra.mxu0 %v5342
        %5385 = vmatprep.subr.bf16.mxu0 0
        %5386 = vmatpush1.bf16.msra.mxu0 0
        %5387 = vmatprep.subr.bf16.mxu0 0
        %5388 = vmatpush1.bf16.msra.mxu0 0
        %5389 = vmatprep.subr.bf16.mxu0 0
        %5390 = vmatpush1.bf16.msra.mxu0 0
        %5391 = vmatprep.subr.bf16.mxu0 0
        %5392 = vmatpush1.bf16.msra.mxu0 0
        %5393 = vmatprep.subr.bf16.mxu0 0
        %5394 = vmatpush1.bf16.msra.mxu0 0
        %5395 = vmatprep.subr.bf16.mxu0 0
        %5396 = vmatpush1.bf16.msra.mxu0 0
        %5397 = vmatprep.subr.bf16.mxu0 0
        %5398 = vmatpush1.bf16.msra.mxu0 0
        %5399 = vmatprep.subr.bf16.mxu0 0
        %5400 = vmatpush1.bf16.msra.mxu0 0
        %5401 = vmatprep.mubr.bf16.mxu0 0
        %5402 = vmatmul.mubr.bf16.gmra.mrb[0].mxu0 %v5191
        %v5403 = vpop.f32.mrb[0].mxu0
        %v5404 = vadd.f32 %v5229, %v5403
        %v5405 = vpop.f32.mrb[0].mxu0
        %v5406 = vadd.f32 %v5233, %v5405
        %v5407 = vpop.f32.mrb[0].mxu0
        %v5408 = vpop.f32.mrb[0].mxu0
        %5409 = vdwg.mxu0
        %5410 = vmatprep.subr.bf16.mxu0 0
        %5411 = vmatpush1.bf16.msra.mxu0 %v5323
        %5412 = vmatprep.subr.bf16.mxu0 0
        %5413 = vmatpush1.bf16.msra.mxu0 %v5326
        %5414 = vmatprep.subr.bf16.mxu0 0
        %5415 = vmatpush1.bf16.msra.mxu0 %v5329
        %5416 = vmatprep.subr.bf16.mxu0 0
        %5417 = vmatpush1.bf16.msra.mxu0 %v5332
        %5418 = vmatprep.subr.bf16.mxu0 0
        %5419 = vmatpush1.bf16.msra.mxu0 %v5335
        %5420 = vmatprep.subr.bf16.mxu0 0
        %5421 = vmatpush1.bf16.msra.mxu0 %v5338
        %5422 = vmatprep.subr.bf16.mxu0 0
        %5423 = vmatpush1.bf16.msra.mxu0 %v5341
        %5424 = vmatprep.subr.bf16.mxu0 0
        %5425 = vmatpush1.bf16.msra.mxu0 %v5344
        %5426 = vmatprep.subr.bf16.mxu0 0
        %5427 = vmatpush1.bf16.msra.mxu0 0
        %5428 = vmatprep.subr.bf16.mxu0 0
        %5429 = vmatpush1.bf16.msra.mxu0 0
        %5430 = vmatprep.subr.bf16.mxu0 0
        %5431 = vmatpush1.bf16.msra.mxu0 0
        %5432 = vmatprep.subr.bf16.mxu0 0
        %5433 = vmatpush1.bf16.msra.mxu0 0
        %5434 = vmatprep.subr.bf16.mxu0 0
        %5435 = vmatpush1.bf16.msra.mxu0 0
        %5436 = vmatprep.subr.bf16.mxu0 0
        %5437 = vmatpush1.bf16.msra.mxu0 0
        %5438 = vmatprep.subr.bf16.mxu0 0
        %5439 = vmatpush1.bf16.msra.mxu0 0
        %5440 = vmatprep.subr.bf16.mxu0 0
        %5441 = vmatpush1.bf16.msra.mxu0 0
        %5442 = vmatprep.mubr.bf16.mxu0 0
        %5443 = vmatmul.mubr.bf16.gmra.mrb[0].mxu0 %v5191
        %v5444 = vpop.f32.mrb[0].mxu0
        %v5445 = vadd.f32 %v5237, %v5444
        %v5446 = vpop.f32.mrb[0].mxu0
        %v5447 = vpop.f32.mrb[0].mxu0
        %v5448 = vpop.f32.mrb[0].mxu0
        %5449 = vdwg.mxu0
        %v5450 = vadd.f32 %v5145, %v5404
        %v5451 = vxor.u32 %v5450, 2147483648
        %v5452 = vmul.f32 %v5451, 1.442695
        %v5453 = vpow.pop %v5452
        %v5454 = vadd.f32 %v5453, 1.0
        %v5455 = vrcp.pop %v5454
        %v5456 = vmul.f32 1.0, %v5455
        %v5457 = vadd.f32 %v5147, %v5406
        %v5458 = vxor.u32 %v5457, 2147483648
        %v5459 = vmul.f32 %v5458, 1.442695
        %v5460 = vpow.pop %v5459
        %v5461 = vadd.f32 %v5460, 1.0
        %v5462 = vrcp.pop %v5461
        %v5463 = vmul.f32 1.0, %v5462
        %v5464 = vmul.f32 %v5456, %v5445
        %v5465 = vadd.f32 %v5186, %v5464
        %v5466 = vtanh.pop %v5465
        %v5467 = vsub.f32 1.0, %v5463
        %v5468 = vmul.f32 %v5467, %v5466
        %v5469 = vmul.f32 %v5463, %v4931
        %v5470 = vadd.f32 %v5468, %v5469
        %5471 = vst [vmem:[%s877] sm:$0xff] %v5470
        %v5472 = vpack.c.bf16 %v5470, %v5470
        %v5473 = vld [vmem:[#allocation14] sm:$0xf]
        %v5474 = vld [vmem:[#allocation14 + $0x4] sm:$0xf]
        %v5475 = vld [vmem:[#allocation14 + $0x8] sm:$0xf]
        %v5476 = vld [vmem:[#allocation14 + $0xc] sm:$0xf]
        %v5477 = vld [vmem:[#allocation14 + $0x10] sm:$0xf]
        %v5478 = vld [vmem:[#allocation14 + $0x14] sm:$0xf]
        %v5479 = vld [vmem:[#allocation14 + $0x18] sm:$0xf]
        %v5480 = vld [vmem:[#allocation14 + $0x1c] sm:$0xf]
        %v5481 = vld [vmem:[#allocation14 + $0x20] sm:$0xf]
        %v5482 = vld [vmem:[#allocation14 + $0x24] sm:$0xf]
        %v5483 = vld [vmem:[#allocation14 + $0x28] sm:$0xf]
        %v5484 = vld [vmem:[#allocation14 + $0x2c] sm:$0xf]
        %v5485 = vld [vmem:[#allocation14 + $0x30] sm:$0xf]
        %v5486 = vld [vmem:[#allocation14 + $0x34] sm:$0xf]
        %v5487 = vld [vmem:[#allocation14 + $0x38] sm:$0xf]
        %v5488 = vld [vmem:[#allocation14 + $0x3c] sm:$0xf]
        %v5505 = vunpack.c.l.b16 %v5473
        %v5506 = vunpack.c.l.b16 %v5474
        %v5507 = vunpack.c.l.b16 %v5475
        %v5508 = vunpack.c.l.b16 %v5476
        %v5509 = vunpack.c.l.b16 %v5477
        %v5510 = vunpack.c.l.b16 %v5478
        %v5511 = vunpack.c.l.b16 %v5479
        %v5512 = vunpack.c.l.b16 %v5480
        %v5513 = vunpack.c.l.b16 %v5481
        %v5514 = vunpack.c.l.b16 %v5482
        %v5515 = vunpack.c.l.b16 %v5483
        %v5516 = vunpack.c.l.b16 %v5484
        %v5517 = vunpack.c.l.b16 %v5485
        %v5518 = vunpack.c.l.b16 %v5486
        %v5519 = vunpack.c.l.b16 %v5487
        %v5520 = vunpack.c.l.b16 %v5488
        %v5521 = vpack.c.b16 %v5506, %v5505
        %v5522 = vpack.c.b16 %v5508, %v5507
        %v5523 = vpack.c.b16 %v5510, %v5509
        %v5524 = vpack.c.b16 %v5512, %v5511
        %v5525 = vpack.c.b16 %v5514, %v5513
        %v5526 = vpack.c.b16 %v5516, %v5515
        %v5527 = vpack.c.b16 %v5518, %v5517
        %v5528 = vpack.c.b16 %v5520, %v5519
        %5537 = vmatprep.subr.bf16.mxu0 0
        %5538 = vmatpush1.bf16.msra.mxu0 %v5521
        %5539 = vmatprep.subr.bf16.mxu0 0
        %5540 = vmatpush1.bf16.msra.mxu0 %v5522
        %5541 = vmatprep.subr.bf16.mxu0 0
        %5542 = vmatpush1.bf16.msra.mxu0 %v5523
        %5543 = vmatprep.subr.bf16.mxu0 0
        %5544 = vmatpush1.bf16.msra.mxu0 %v5524
        %5545 = vmatprep.subr.bf16.mxu0 0
        %5546 = vmatpush1.bf16.msra.mxu0 %v5525
        %5547 = vmatprep.subr.bf16.mxu0 0
        %5548 = vmatpush1.bf16.msra.mxu0 %v5526
        %5549 = vmatprep.subr.bf16.mxu0 0
        %5550 = vmatpush1.bf16.msra.mxu0 %v5527
        %5551 = vmatprep.subr.bf16.mxu0 0
        %5552 = vmatpush1.bf16.msra.mxu0 %v5528
        %5553 = vmatprep.subr.bf16.mxu0 0
        %5554 = vmatpush1.bf16.msra.mxu0 0
        %5555 = vmatprep.subr.bf16.mxu0 0
        %5556 = vmatpush1.bf16.msra.mxu0 0
        %5557 = vmatprep.subr.bf16.mxu0 0
        %5558 = vmatpush1.bf16.msra.mxu0 0
        %5559 = vmatprep.subr.bf16.mxu0 0
        %5560 = vmatpush1.bf16.msra.mxu0 0
        %5561 = vmatprep.subr.bf16.mxu0 0
        %5562 = vmatpush1.bf16.msra.mxu0 0
        %5563 = vmatprep.subr.bf16.mxu0 0
        %5564 = vmatpush1.bf16.msra.mxu0 0
        %5565 = vmatprep.subr.bf16.mxu0 0
        %5566 = vmatpush1.bf16.msra.mxu0 0
        %5567 = vmatprep.subr.bf16.mxu0 0
        %5568 = vmatpush1.bf16.msra.mxu0 0
        %5569 = vmatprep.mubr.bf16.mxu0 0
        %5570 = vmatmul.mubr.bf16.gmra.mrb[0].mxu0 %v5472
        %v5571 = vpop.f32.mrb[0].mxu0
        %v5572 = vadd.f32 0.0, %v5571
        %v5573 = vpop.f32.mrb[0].mxu0
        %v5574 = vpop.f32.mrb[0].mxu0
        %v5575 = vpop.f32.mrb[0].mxu0
        %5576 = vdwg.mxu0
        %v5578 = vcombine.high %v5572, %v5572
        %v5580 = vunpack.c.l.s4 1966171168
        %v5581 = vunpack.c.0.s8 %v5580
        %v5582 = vlaneseq
        %v5583 = vshrl.u32 %v5582, 7
        %v5584 = vsub.s32 %v5581, %v5583
        %v5585 = vrot.slane %v5572, %v5584
        %v5587 = vunpack.c.l.s4 1966171168
        %v5588 = vunpack.c.0.s8 %v5587
        %v5589 = vlaneseq
        %v5590 = vshrl.u32 %v5589, 7
        %v5591 = vsub.s32 %v5588, %v5590
        %v5592 = vrot.slane %v5578, %v5591
        %v5593 = vcombine.high %v5585, %v5585
        %v5594 = vcombine.high %v5592, %v5592
        %v5596 = vunpack.c.l.s4 1966171168
        %v5597 = vunpack.c.0.s8 %v5596
        %v5598 = vlaneseq
        %v5599 = vshrl.u32 %v5598, 7
        %v5600 = vsub.s32 %v5597, %v5599
        %v5601 = vrot.slane %v5585, %v5600
        %v5603 = vunpack.c.l.s4 1966171168
        %v5604 = vunpack.c.0.s8 %v5603
        %v5605 = vlaneseq
        %v5606 = vshrl.u32 %v5605, 7
        %v5607 = vsub.s32 %v5604, %v5606
        %v5608 = vrot.slane %v5592, %v5607
        %v5610 = vunpack.c.l.s4 1966171168
        %v5611 = vunpack.c.0.s8 %v5610
        %v5612 = vlaneseq
        %v5613 = vshrl.u32 %v5612, 7
        %v5614 = vsub.s32 %v5611, %v5613
        %v5615 = vrot.slane %v5593, %v5614
        %v5617 = vunpack.c.l.s4 1966171168
        %v5618 = vunpack.c.0.s8 %v5617
        %v5619 = vlaneseq
        %v5620 = vshrl.u32 %v5619, 7
        %v5621 = vsub.s32 %v5618, %v5620
        %v5622 = vrot.slane %v5594, %v5621
        %v5623 = vcombine.high %v5601, %v5601
        %v5624 = vcombine.high %v5608, %v5608
        %v5625 = vcombine.high %v5615, %v5615
        %v5626 = vcombine.high %v5622, %v5622
        %v5635 = vpack.c.bf16 %v5601, %v5601
        %v5636 = vpack.c.bf16 %v5615, %v5615
        %v5637 = vpack.c.bf16 %v5623, %v5623
        %v5638 = vpack.c.bf16 %v5625, %v5625
        %v5639 = vpack.c.bf16 %v5608, %v5608
        %v5640 = vpack.c.bf16 %v5622, %v5622
        %v5641 = vpack.c.bf16 %v5624, %v5624
        %v5642 = vpack.c.bf16 %v5626, %v5626
        %5643 = vmatprep.subr.bf16.mxu0 0
        %5644 = vmatpush1.bf16.xpose.msra.mxu0 %v584
        %5645 = vmatprep.subr.bf16.mxu0 0
        %5646 = vmatpush1.bf16.xpose.msra.mxu0 0
        %5647 = vmatprep.subr.bf16.mxu0 0
        %5648 = vmatpush1.bf16.xpose.msra.mxu0 0
        %5649 = vmatprep.subr.bf16.mxu0 0
        %5650 = vmatpush1.bf16.xpose.msra.mxu0 0
        %5651 = vmatprep.subr.bf16.mxu0 0
        %5652 = vmatpush1.bf16.xpose.msra.mxu0 0
        %5653 = vmatprep.subr.bf16.mxu0 0
        %5654 = vmatpush1.bf16.xpose.msra.mxu0 0
        %5655 = vmatprep.subr.bf16.mxu0 0
        %5656 = vmatpush1.bf16.xpose.msra.mxu0 0
        %5657 = vmatprep.subr.bf16.mxu0 0
        %5658 = vmatpush1.bf16.xpose.msra.mxu0 0
        %5659 = vmatprep.subr.bf16.mxu0 0
        %5660 = vmatpush1.bf16.xpose.msra.mxu0 0
        %5661 = vmatprep.subr.bf16.mxu0 0
        %5662 = vmatpush1.bf16.xpose.msra.mxu0 0
        %5663 = vmatprep.subr.bf16.mxu0 0
        %5664 = vmatpush1.bf16.xpose.msra.mxu0 0
        %5665 = vmatprep.subr.bf16.mxu0 0
        %5666 = vmatpush1.bf16.xpose.msra.mxu0 0
        %5667 = vmatprep.subr.bf16.mxu0 0
        %5668 = vmatpush1.bf16.xpose.msra.mxu0 0
        %5669 = vmatprep.subr.bf16.mxu0 0
        %5670 = vmatpush1.bf16.xpose.msra.mxu0 0
        %5671 = vmatprep.subr.bf16.mxu0 0
        %5672 = vmatpush1.bf16.xpose.msra.mxu0 0
        %5673 = vmatprep.subr.bf16.mxu0 0
        %5674 = vmatpush1.bf16.xpose.msra.mxu0 0
        %5675 = vmatprep.mubr.bf16.mxu0 0
        %5676 = vmatmul.mubr.bf16.gmra.mrb[0].mxu0 %v5635
        %v5677 = vpop.f32.mrb[0].mxu0
        %v5678 = vadd.f32 0.0, %v5677
        %v5679 = vpop.f32.mrb[0].mxu0
        %v5680 = vpop.f32.mrb[0].mxu0
        %v5681 = vpop.f32.mrb[0].mxu0
        %5682 = vdwg.mxu0
        %5683 = vmatprep.subr.bf16.mxu0 0
        %5684 = vmatpush1.bf16.xpose.msra.mxu0 %v585
        %5685 = vmatprep.subr.bf16.mxu0 0
        %5686 = vmatpush1.bf16.xpose.msra.mxu0 0
        %5687 = vmatprep.subr.bf16.mxu0 0
        %5688 = vmatpush1.bf16.xpose.msra.mxu0 0
        %5689 = vmatprep.subr.bf16.mxu0 0
        %5690 = vmatpush1.bf16.xpose.msra.mxu0 0
        %5691 = vmatprep.subr.bf16.mxu0 0
        %5692 = vmatpush1.bf16.xpose.msra.mxu0 0
        %5693 = vmatprep.subr.bf16.mxu0 0
        %5694 = vmatpush1.bf16.xpose.msra.mxu0 0
        %5695 = vmatprep.subr.bf16.mxu0 0
        %5696 = vmatpush1.bf16.xpose.msra.mxu0 0
        %5697 = vmatprep.subr.bf16.mxu0 0
        %5698 = vmatpush1.bf16.xpose.msra.mxu0 0
        %5699 = vmatprep.subr.bf16.mxu0 0
        %5700 = vmatpush1.bf16.xpose.msra.mxu0 0
        %5701 = vmatprep.subr.bf16.mxu0 0
        %5702 = vmatpush1.bf16.xpose.msra.mxu0 0
        %5703 = vmatprep.subr.bf16.mxu0 0
        %5704 = vmatpush1.bf16.xpose.msra.mxu0 0
        %5705 = vmatprep.subr.bf16.mxu0 0
        %5706 = vmatpush1.bf16.xpose.msra.mxu0 0
        %5707 = vmatprep.subr.bf16.mxu0 0
        %5708 = vmatpush1.bf16.xpose.msra.mxu0 0
        %5709 = vmatprep.subr.bf16.mxu0 0
        %5710 = vmatpush1.bf16.xpose.msra.mxu0 0
        %5711 = vmatprep.subr.bf16.mxu0 0
        %5712 = vmatpush1.bf16.xpose.msra.mxu0 0
        %5713 = vmatprep.subr.bf16.mxu0 0
        %5714 = vmatpush1.bf16.xpose.msra.mxu0 0
        %5715 = vmatprep.mubr.bf16.mxu0 0
        %5716 = vmatmul.mubr.bf16.gmra.mrb[0].mxu0 %v5636
        %v5717 = vpop.f32.mrb[0].mxu0
        %v5718 = vadd.f32 0.0, %v5717
        %v5719 = vpop.f32.mrb[0].mxu0
        %v5720 = vpop.f32.mrb[0].mxu0
        %v5721 = vpop.f32.mrb[0].mxu0
        %5722 = vdwg.mxu0
        %5723 = vmatprep.subr.bf16.mxu0 0
        %5724 = vmatpush1.bf16.xpose.msra.mxu0 %v586
        %5725 = vmatprep.subr.bf16.mxu0 0
        %5726 = vmatpush1.bf16.xpose.msra.mxu0 0
        %5727 = vmatprep.subr.bf16.mxu0 0
        %5728 = vmatpush1.bf16.xpose.msra.mxu0 0
        %5729 = vmatprep.subr.bf16.mxu0 0
        %5730 = vmatpush1.bf16.xpose.msra.mxu0 0
        %5731 = vmatprep.subr.bf16.mxu0 0
        %5732 = vmatpush1.bf16.xpose.msra.mxu0 0
        %5733 = vmatprep.subr.bf16.mxu0 0
        %5734 = vmatpush1.bf16.xpose.msra.mxu0 0
        %5735 = vmatprep.subr.bf16.mxu0 0
        %5736 = vmatpush1.bf16.xpose.msra.mxu0 0
        %5737 = vmatprep.subr.bf16.mxu0 0
        %5738 = vmatpush1.bf16.xpose.msra.mxu0 0
        %5739 = vmatprep.subr.bf16.mxu0 0
        %5740 = vmatpush1.bf16.xpose.msra.mxu0 0
        %5741 = vmatprep.subr.bf16.mxu0 0
        %5742 = vmatpush1.bf16.xpose.msra.mxu0 0
        %5743 = vmatprep.subr.bf16.mxu0 0
        %5744 = vmatpush1.bf16.xpose.msra.mxu0 0
        %5745 = vmatprep.subr.bf16.mxu0 0
        %5746 = vmatpush1.bf16.xpose.msra.mxu0 0
        %5747 = vmatprep.subr.bf16.mxu0 0
        %5748 = vmatpush1.bf16.xpose.msra.mxu0 0
        %5749 = vmatprep.subr.bf16.mxu0 0
        %5750 = vmatpush1.bf16.xpose.msra.mxu0 0
        %5751 = vmatprep.subr.bf16.mxu0 0
        %5752 = vmatpush1.bf16.xpose.msra.mxu0 0
        %5753 = vmatprep.subr.bf16.mxu0 0
        %5754 = vmatpush1.bf16.xpose.msra.mxu0 0
        %5755 = vmatprep.mubr.bf16.mxu0 0
        %5756 = vmatmul.mubr.bf16.gmra.mrb[0].mxu0 %v5637
        %v5757 = vpop.f32.mrb[0].mxu0
        %v5758 = vadd.f32 0.0, %v5757
        %v5759 = vpop.f32.mrb[0].mxu0
        %v5760 = vpop.f32.mrb[0].mxu0
        %v5761 = vpop.f32.mrb[0].mxu0
        %5762 = vdwg.mxu0
        %5763 = vmatprep.subr.bf16.mxu0 0
        %5764 = vmatpush1.bf16.xpose.msra.mxu0 %v587
        %5765 = vmatprep.subr.bf16.mxu0 0
        %5766 = vmatpush1.bf16.xpose.msra.mxu0 0
        %5767 = vmatprep.subr.bf16.mxu0 0
        %5768 = vmatpush1.bf16.xpose.msra.mxu0 0
        %5769 = vmatprep.subr.bf16.mxu0 0
        %5770 = vmatpush1.bf16.xpose.msra.mxu0 0
        %5771 = vmatprep.subr.bf16.mxu0 0
        %5772 = vmatpush1.bf16.xpose.msra.mxu0 0
        %5773 = vmatprep.subr.bf16.mxu0 0
        %5774 = vmatpush1.bf16.xpose.msra.mxu0 0
        %5775 = vmatprep.subr.bf16.mxu0 0
        %5776 = vmatpush1.bf16.xpose.msra.mxu0 0
        %5777 = vmatprep.subr.bf16.mxu0 0
        %5778 = vmatpush1.bf16.xpose.msra.mxu0 0
        %5779 = vmatprep.subr.bf16.mxu0 0
        %5780 = vmatpush1.bf16.xpose.msra.mxu0 0
        %5781 = vmatprep.subr.bf16.mxu0 0
        %5782 = vmatpush1.bf16.xpose.msra.mxu0 0
        %5783 = vmatprep.subr.bf16.mxu0 0
        %5784 = vmatpush1.bf16.xpose.msra.mxu0 0
        %5785 = vmatprep.subr.bf16.mxu0 0
        %5786 = vmatpush1.bf16.xpose.msra.mxu0 0
        %5787 = vmatprep.subr.bf16.mxu0 0
        %5788 = vmatpush1.bf16.xpose.msra.mxu0 0
        %5789 = vmatprep.subr.bf16.mxu0 0
        %5790 = vmatpush1.bf16.xpose.msra.mxu0 0
        %5791 = vmatprep.subr.bf16.mxu0 0
        %5792 = vmatpush1.bf16.xpose.msra.mxu0 0
        %5793 = vmatprep.subr.bf16.mxu0 0
        %5794 = vmatpush1.bf16.xpose.msra.mxu0 0
        %5795 = vmatprep.mubr.bf16.mxu0 0
        %5796 = vmatmul.mubr.bf16.gmra.mrb[0].mxu0 %v5638
        %v5797 = vpop.f32.mrb[0].mxu0
        %v5798 = vadd.f32 0.0, %v5797
        %v5799 = vpop.f32.mrb[0].mxu0
        %v5800 = vpop.f32.mrb[0].mxu0
        %v5801 = vpop.f32.mrb[0].mxu0
        %5802 = vdwg.mxu0
        %5803 = vmatprep.subr.bf16.mxu0 0
        %5804 = vmatpush1.bf16.xpose.msra.mxu0 %v588
        %5805 = vmatprep.subr.bf16.mxu0 0
        %5806 = vmatpush1.bf16.xpose.msra.mxu0 0
        %5807 = vmatprep.subr.bf16.mxu0 0
        %5808 = vmatpush1.bf16.xpose.msra.mxu0 0
        %5809 = vmatprep.subr.bf16.mxu0 0
        %5810 = vmatpush1.bf16.xpose.msra.mxu0 0
        %5811 = vmatprep.subr.bf16.mxu0 0
        %5812 = vmatpush1.bf16.xpose.msra.mxu0 0
        %5813 = vmatprep.subr.bf16.mxu0 0
        %5814 = vmatpush1.bf16.xpose.msra.mxu0 0
        %5815 = vmatprep.subr.bf16.mxu0 0
        %5816 = vmatpush1.bf16.xpose.msra.mxu0 0
        %5817 = vmatprep.subr.bf16.mxu0 0
        %5818 = vmatpush1.bf16.xpose.msra.mxu0 0
        %5819 = vmatprep.subr.bf16.mxu0 0
        %5820 = vmatpush1.bf16.xpose.msra.mxu0 0
        %5821 = vmatprep.subr.bf16.mxu0 0
        %5822 = vmatpush1.bf16.xpose.msra.mxu0 0
        %5823 = vmatprep.subr.bf16.mxu0 0
        %5824 = vmatpush1.bf16.xpose.msra.mxu0 0
        %5825 = vmatprep.subr.bf16.mxu0 0
        %5826 = vmatpush1.bf16.xpose.msra.mxu0 0
        %5827 = vmatprep.subr.bf16.mxu0 0
        %5828 = vmatpush1.bf16.xpose.msra.mxu0 0
        %5829 = vmatprep.subr.bf16.mxu0 0
        %5830 = vmatpush1.bf16.xpose.msra.mxu0 0
        %5831 = vmatprep.subr.bf16.mxu0 0
        %5832 = vmatpush1.bf16.xpose.msra.mxu0 0
        %5833 = vmatprep.subr.bf16.mxu0 0
        %5834 = vmatpush1.bf16.xpose.msra.mxu0 0
        %5835 = vmatprep.mubr.bf16.mxu0 0
        %5836 = vmatmul.mubr.bf16.gmra.mrb[0].mxu0 %v5639
        %v5837 = vpop.f32.mrb[0].mxu0
        %v5838 = vadd.f32 0.0, %v5837
        %v5839 = vpop.f32.mrb[0].mxu0
        %v5840 = vpop.f32.mrb[0].mxu0
        %v5841 = vpop.f32.mrb[0].mxu0
        %5842 = vdwg.mxu0
        %5843 = vmatprep.subr.bf16.mxu0 0
        %5844 = vmatpush1.bf16.xpose.msra.mxu0 %v589
        %5845 = vmatprep.subr.bf16.mxu0 0
        %5846 = vmatpush1.bf16.xpose.msra.mxu0 0
        %5847 = vmatprep.subr.bf16.mxu0 0
        %5848 = vmatpush1.bf16.xpose.msra.mxu0 0
        %5849 = vmatprep.subr.bf16.mxu0 0
        %5850 = vmatpush1.bf16.xpose.msra.mxu0 0
        %5851 = vmatprep.subr.bf16.mxu0 0
        %5852 = vmatpush1.bf16.xpose.msra.mxu0 0
        %5853 = vmatprep.subr.bf16.mxu0 0
        %5854 = vmatpush1.bf16.xpose.msra.mxu0 0
        %5855 = vmatprep.subr.bf16.mxu0 0
        %5856 = vmatpush1.bf16.xpose.msra.mxu0 0
        %5857 = vmatprep.subr.bf16.mxu0 0
        %5858 = vmatpush1.bf16.xpose.msra.mxu0 0
        %5859 = vmatprep.subr.bf16.mxu0 0
        %5860 = vmatpush1.bf16.xpose.msra.mxu0 0
        %5861 = vmatprep.subr.bf16.mxu0 0
        %5862 = vmatpush1.bf16.xpose.msra.mxu0 0
        %5863 = vmatprep.subr.bf16.mxu0 0
        %5864 = vmatpush1.bf16.xpose.msra.mxu0 0
        %5865 = vmatprep.subr.bf16.mxu0 0
        %5866 = vmatpush1.bf16.xpose.msra.mxu0 0
        %5867 = vmatprep.subr.bf16.mxu0 0
        %5868 = vmatpush1.bf16.xpose.msra.mxu0 0
        %5869 = vmatprep.subr.bf16.mxu0 0
        %5870 = vmatpush1.bf16.xpose.msra.mxu0 0
        %5871 = vmatprep.subr.bf16.mxu0 0
        %5872 = vmatpush1.bf16.xpose.msra.mxu0 0
        %5873 = vmatprep.subr.bf16.mxu0 0
        %5874 = vmatpush1.bf16.xpose.msra.mxu0 0
        %5875 = vmatprep.mubr.bf16.mxu0 0
        %5876 = vmatmul.mubr.bf16.gmra.mrb[0].mxu0 %v5640
        %v5877 = vpop.f32.mrb[0].mxu0
        %v5878 = vadd.f32 0.0, %v5877
        %v5879 = vpop.f32.mrb[0].mxu0
        %v5880 = vpop.f32.mrb[0].mxu0
        %v5881 = vpop.f32.mrb[0].mxu0
        %5882 = vdwg.mxu0
        %5883 = vmatprep.subr.bf16.mxu0 0
        %5884 = vmatpush1.bf16.xpose.msra.mxu0 %v590
        %5885 = vmatprep.subr.bf16.mxu0 0
        %5886 = vmatpush1.bf16.xpose.msra.mxu0 0
        %5887 = vmatprep.subr.bf16.mxu0 0
        %5888 = vmatpush1.bf16.xpose.msra.mxu0 0
        %5889 = vmatprep.subr.bf16.mxu0 0
        %5890 = vmatpush1.bf16.xpose.msra.mxu0 0
        %5891 = vmatprep.subr.bf16.mxu0 0
        %5892 = vmatpush1.bf16.xpose.msra.mxu0 0
        %5893 = vmatprep.subr.bf16.mxu0 0
        %5894 = vmatpush1.bf16.xpose.msra.mxu0 0
        %5895 = vmatprep.subr.bf16.mxu0 0
        %5896 = vmatpush1.bf16.xpose.msra.mxu0 0
        %5897 = vmatprep.subr.bf16.mxu0 0
        %5898 = vmatpush1.bf16.xpose.msra.mxu0 0
        %5899 = vmatprep.subr.bf16.mxu0 0
        %5900 = vmatpush1.bf16.xpose.msra.mxu0 0
        %5901 = vmatprep.subr.bf16.mxu0 0
        %5902 = vmatpush1.bf16.xpose.msra.mxu0 0
        %5903 = vmatprep.subr.bf16.mxu0 0
        %5904 = vmatpush1.bf16.xpose.msra.mxu0 0
        %5905 = vmatprep.subr.bf16.mxu0 0
        %5906 = vmatpush1.bf16.xpose.msra.mxu0 0
        %5907 = vmatprep.subr.bf16.mxu0 0
        %5908 = vmatpush1.bf16.xpose.msra.mxu0 0
        %5909 = vmatprep.subr.bf16.mxu0 0
        %5910 = vmatpush1.bf16.xpose.msra.mxu0 0
        %5911 = vmatprep.subr.bf16.mxu0 0
        %5912 = vmatpush1.bf16.xpose.msra.mxu0 0
        %5913 = vmatprep.subr.bf16.mxu0 0
        %5914 = vmatpush1.bf16.xpose.msra.mxu0 0
        %5915 = vmatprep.mubr.bf16.mxu0 0
        %5916 = vmatmul.mubr.bf16.gmra.mrb[0].mxu0 %v5641
        %v5917 = vpop.f32.mrb[0].mxu0
        %v5918 = vadd.f32 0.0, %v5917
        %v5919 = vpop.f32.mrb[0].mxu0
        %v5920 = vpop.f32.mrb[0].mxu0
        %v5921 = vpop.f32.mrb[0].mxu0
        %5922 = vdwg.mxu0
        %5923 = vmatprep.subr.bf16.mxu0 0
        %5924 = vmatpush1.bf16.xpose.msra.mxu0 %v591
        %5925 = vmatprep.subr.bf16.mxu0 0
        %5926 = vmatpush1.bf16.xpose.msra.mxu0 0
        %5927 = vmatprep.subr.bf16.mxu0 0
        %5928 = vmatpush1.bf16.xpose.msra.mxu0 0
        %5929 = vmatprep.subr.bf16.mxu0 0
        %5930 = vmatpush1.bf16.xpose.msra.mxu0 0
        %5931 = vmatprep.subr.bf16.mxu0 0
        %5932 = vmatpush1.bf16.xpose.msra.mxu0 0
        %5933 = vmatprep.subr.bf16.mxu0 0
        %5934 = vmatpush1.bf16.xpose.msra.mxu0 0
        %5935 = vmatprep.subr.bf16.mxu0 0
        %5936 = vmatpush1.bf16.xpose.msra.mxu0 0
        %5937 = vmatprep.subr.bf16.mxu0 0
        %5938 = vmatpush1.bf16.xpose.msra.mxu0 0
        %5939 = vmatprep.subr.bf16.mxu0 0
        %5940 = vmatpush1.bf16.xpose.msra.mxu0 0
        %5941 = vmatprep.subr.bf16.mxu0 0
        %5942 = vmatpush1.bf16.xpose.msra.mxu0 0
        %5943 = vmatprep.subr.bf16.mxu0 0
        %5944 = vmatpush1.bf16.xpose.msra.mxu0 0
        %5945 = vmatprep.subr.bf16.mxu0 0
        %5946 = vmatpush1.bf16.xpose.msra.mxu0 0
        %5947 = vmatprep.subr.bf16.mxu0 0
        %5948 = vmatpush1.bf16.xpose.msra.mxu0 0
        %5949 = vmatprep.subr.bf16.mxu0 0
        %5950 = vmatpush1.bf16.xpose.msra.mxu0 0
        %5951 = vmatprep.subr.bf16.mxu0 0
        %5952 = vmatpush1.bf16.xpose.msra.mxu0 0
        %5953 = vmatprep.subr.bf16.mxu0 0
        %5954 = vmatpush1.bf16.xpose.msra.mxu0 0
        %5955 = vmatprep.mubr.bf16.mxu0 0
        %5956 = vmatmul.mubr.bf16.gmra.mrb[0].mxu0 %v5642
        %v5957 = vpop.f32.mrb[0].mxu0
        %v5958 = vadd.f32 0.0, %v5957
        %v5959 = vpop.f32.mrb[0].mxu0
        %v5960 = vpop.f32.mrb[0].mxu0
        %v5961 = vpop.f32.mrb[0].mxu0
        %5962 = vdwg.mxu0
        %v5963 = vsel %vm1912, %v5678, -inf
        %5964 = vmax.xlane.f32.xlu0 %v5963
        %v5965 = vpop.xlane.xlu0 %5964
        %v5966 = vsel %vm1912, %v5718, -inf
        %5967 = vmax.xlane.f32.xlu0 %v5966
        %v5968 = vpop.xlane.xlu0 %5967
        %v5969 = vsel %vm1912, %v5758, -inf
        %5970 = vmax.xlane.f32.xlu0 %v5969
        %v5971 = vpop.xlane.xlu0 %5970
        %v5972 = vsel %vm1912, %v5798, -inf
        %5973 = vmax.xlane.f32.xlu0 %v5972
        %v5974 = vpop.xlane.xlu0 %5973
        %v5975 = vsel %vm1912, %v5838, -inf
        %5976 = vmax.xlane.f32.xlu0 %v5975
        %v5977 = vpop.xlane.xlu0 %5976
        %v5978 = vsel %vm1912, %v5878, -inf
        %5979 = vmax.xlane.f32.xlu0 %v5978
        %v5980 = vpop.xlane.xlu0 %5979
        %v5981 = vsel %vm1912, %v5918, -inf
        %5982 = vmax.xlane.f32.xlu0 %v5981
        %v5983 = vpop.xlane.xlu0 %5982
        %v5984 = vsel %vm1912, %v5958, -inf
        %5985 = vmax.xlane.f32.xlu0 %v5984
        %v5986 = vpop.xlane.xlu0 %5985
        %v5987 = vsub.f32 %v5678, %v5965
        %v5988 = vsub.f32 %v5718, %v5968
        %v5989 = vsub.f32 %v5758, %v5971
        %v5990 = vsub.f32 %v5798, %v5974
        %v5991 = vsub.f32 %v5838, %v5977
        %v5992 = vsub.f32 %v5878, %v5980
        %v5993 = vsub.f32 %v5918, %v5983
        %v5994 = vsub.f32 %v5958, %v5986
        %v5995 = vmul.f32 %v5987, 1.442695
        %v5996 = vpow.pop %v5995
        %v5997 = vmul.f32 %v5988, 1.442695
        %v5998 = vpow.pop %v5997
        %v5999 = vmul.f32 %v5989, 1.442695
        %v6000 = vpow.pop %v5999
        %v6001 = vmul.f32 %v5990, 1.442695
        %v6002 = vpow.pop %v6001
        %v6003 = vmul.f32 %v5991, 1.442695
        %v6004 = vpow.pop %v6003
        %v6005 = vmul.f32 %v5992, 1.442695
        %v6006 = vpow.pop %v6005
        %v6007 = vmul.f32 %v5993, 1.442695
        %v6008 = vpow.pop %v6007
        %v6009 = vmul.f32 %v5994, 1.442695
        %v6010 = vpow.pop %v6009
        %v6011 = vsel %vm1912, %v5996, 0.0
        %6012 = vadd.xlane.f32.xlu0 %v6011
        %v6013 = vpop.xlane.xlu0 %6012
        %v6014 = vsel %vm1912, %v5998, 0.0
        %6015 = vadd.xlane.f32.xlu0 %v6014
        %v6016 = vpop.xlane.xlu0 %6015
        %v6017 = vsel %vm1912, %v6000, 0.0
        %6018 = vadd.xlane.f32.xlu0 %v6017
        %v6019 = vpop.xlane.xlu0 %6018
        %v6020 = vsel %vm1912, %v6002, 0.0
        %6021 = vadd.xlane.f32.xlu0 %v6020
        %v6022 = vpop.xlane.xlu0 %6021
        %v6023 = vsel %vm1912, %v6004, 0.0
        %6024 = vadd.xlane.f32.xlu0 %v6023
        %v6025 = vpop.xlane.xlu0 %6024
        %v6026 = vsel %vm1912, %v6006, 0.0
        %6027 = vadd.xlane.f32.xlu0 %v6026
        %v6028 = vpop.xlane.xlu0 %6027
        %v6029 = vsel %vm1912, %v6008, 0.0
        %6030 = vadd.xlane.f32.xlu0 %v6029
        %v6031 = vpop.xlane.xlu0 %6030
        %v6032 = vsel %vm1912, %v6010, 0.0
        %6033 = vadd.xlane.f32.xlu0 %v6032
        %v6034 = vpop.xlane.xlu0 %6033
        %v6035 = vrcp.pop %v6013
        %v6036 = vrcp.pop %v6016
        %v6037 = vrcp.pop %v6019
        %v6038 = vrcp.pop %v6022
        %v6039 = vrcp.pop %v6025
        %v6040 = vrcp.pop %v6028
        %v6041 = vrcp.pop %v6031
        %v6042 = vrcp.pop %v6034
        %v6043 = vmul.f32 %v5996, %v6035
        %v6044 = vmul.f32 %v5998, %v6036
        %v6045 = vmul.f32 %v6000, %v6037
        %v6046 = vmul.f32 %v6002, %v6038
        %v6047 = vmul.f32 %v6004, %v6039
        %v6048 = vmul.f32 %v6006, %v6040
        %v6049 = vmul.f32 %v6008, %v6041
        %v6050 = vmul.f32 %v6010, %v6042
        %v6051 = vpack.c.bf16 %v6043, %v6043
        %v6052 = vpack.c.bf16 %v6044, %v6044
        %v6053 = vpack.c.bf16 %v6045, %v6045
        %v6054 = vpack.c.bf16 %v6046, %v6046
        %v6055 = vpack.c.bf16 %v6047, %v6047
        %v6056 = vpack.c.bf16 %v6048, %v6048
        %v6057 = vpack.c.bf16 %v6049, %v6049
        %v6058 = vpack.c.bf16 %v6050, %v6050
        %v6060 = vsel %vm2009, %v6051, 0
        %6062 = vmatprep.subr.bf16.mxu0 0
        %6063 = vmatpush1.bf16.msra.mxu0 %v2015
        %6064 = vmatprep.subr.bf16.mxu0 0
        %6065 = vmatpush1.bf16.msra.mxu0 0
        %6066 = vmatprep.subr.bf16.mxu0 0
        %6067 = vmatpush1.bf16.msra.mxu0 0
        %6068 = vmatprep.subr.bf16.mxu0 0
        %6069 = vmatpush1.bf16.msra.mxu0 0
        %6070 = vmatprep.subr.bf16.mxu0 0
        %6071 = vmatpush1.bf16.msra.mxu0 0
        %6072 = vmatprep.subr.bf16.mxu0 0
        %6073 = vmatpush1.bf16.msra.mxu0 0
        %6074 = vmatprep.subr.bf16.mxu0 0
        %6075 = vmatpush1.bf16.msra.mxu0 0
        %6076 = vmatprep.subr.bf16.mxu0 0
        %6077 = vmatpush1.bf16.msra.mxu0 0
        %6078 = vmatprep.subr.bf16.mxu0 0
        %6079 = vmatpush1.bf16.msra.mxu0 0
        %6080 = vmatprep.subr.bf16.mxu0 0
        %6081 = vmatpush1.bf16.msra.mxu0 0
        %6082 = vmatprep.subr.bf16.mxu0 0
        %6083 = vmatpush1.bf16.msra.mxu0 0
        %6084 = vmatprep.subr.bf16.mxu0 0
        %6085 = vmatpush1.bf16.msra.mxu0 0
        %6086 = vmatprep.subr.bf16.mxu0 0
        %6087 = vmatpush1.bf16.msra.mxu0 0
        %6088 = vmatprep.subr.bf16.mxu0 0
        %6089 = vmatpush1.bf16.msra.mxu0 0
        %6090 = vmatprep.subr.bf16.mxu0 0
        %6091 = vmatpush1.bf16.msra.mxu0 0
        %6092 = vmatprep.subr.bf16.mxu0 0
        %6093 = vmatpush1.bf16.msra.mxu0 0
        %6094 = vmatprep.mubr.bf16.mxu0 0
        %6095 = vmatmul.mubr.bf16.gmra.mrb[0].mxu0 %v6060
        %v6096 = vpop.f32.mrb[0].mxu0
        %v6097 = vadd.f32 0.0, %v6096
        %v6098 = vpop.f32.mrb[0].mxu0
        %v6099 = vpop.f32.mrb[0].mxu0
        %v6100 = vpop.f32.mrb[0].mxu0
        %6101 = vdwg.mxu0
        %v6103 = vsel %vm2009, %v6052, 0
        %6105 = vmatprep.subr.bf16.mxu0 0
        %6106 = vmatpush1.bf16.msra.mxu0 %v2061
        %6107 = vmatprep.subr.bf16.mxu0 0
        %6108 = vmatpush1.bf16.msra.mxu0 0
        %6109 = vmatprep.subr.bf16.mxu0 0
        %6110 = vmatpush1.bf16.msra.mxu0 0
        %6111 = vmatprep.subr.bf16.mxu0 0
        %6112 = vmatpush1.bf16.msra.mxu0 0
        %6113 = vmatprep.subr.bf16.mxu0 0
        %6114 = vmatpush1.bf16.msra.mxu0 0
        %6115 = vmatprep.subr.bf16.mxu0 0
        %6116 = vmatpush1.bf16.msra.mxu0 0
        %6117 = vmatprep.subr.bf16.mxu0 0
        %6118 = vmatpush1.bf16.msra.mxu0 0
        %6119 = vmatprep.subr.bf16.mxu0 0
        %6120 = vmatpush1.bf16.msra.mxu0 0
        %6121 = vmatprep.subr.bf16.mxu0 0
        %6122 = vmatpush1.bf16.msra.mxu0 0
        %6123 = vmatprep.subr.bf16.mxu0 0
        %6124 = vmatpush1.bf16.msra.mxu0 0
        %6125 = vmatprep.subr.bf16.mxu0 0
        %6126 = vmatpush1.bf16.msra.mxu0 0
        %6127 = vmatprep.subr.bf16.mxu0 0
        %6128 = vmatpush1.bf16.msra.mxu0 0
        %6129 = vmatprep.subr.bf16.mxu0 0
        %6130 = vmatpush1.bf16.msra.mxu0 0
        %6131 = vmatprep.subr.bf16.mxu0 0
        %6132 = vmatpush1.bf16.msra.mxu0 0
        %6133 = vmatprep.subr.bf16.mxu0 0
        %6134 = vmatpush1.bf16.msra.mxu0 0
        %6135 = vmatprep.subr.bf16.mxu0 0
        %6136 = vmatpush1.bf16.msra.mxu0 0
        %6137 = vmatprep.mubr.bf16.mxu0 0
        %6138 = vmatmul.mubr.bf16.gmra.mrb[0].mxu0 %v6103
        %v6139 = vpop.f32.mrb[0].mxu0
        %v6140 = vadd.f32 0.0, %v6139
        %v6141 = vpop.f32.mrb[0].mxu0
        %v6142 = vpop.f32.mrb[0].mxu0
        %v6143 = vpop.f32.mrb[0].mxu0
        %6144 = vdwg.mxu0
        %v6146 = vsel %vm2009, %v6053, 0
        %6148 = vmatprep.subr.bf16.mxu0 0
        %6149 = vmatpush1.bf16.msra.mxu0 %v2107
        %6150 = vmatprep.subr.bf16.mxu0 0
        %6151 = vmatpush1.bf16.msra.mxu0 0
        %6152 = vmatprep.subr.bf16.mxu0 0
        %6153 = vmatpush1.bf16.msra.mxu0 0
        %6154 = vmatprep.subr.bf16.mxu0 0
        %6155 = vmatpush1.bf16.msra.mxu0 0
        %6156 = vmatprep.subr.bf16.mxu0 0
        %6157 = vmatpush1.bf16.msra.mxu0 0
        %6158 = vmatprep.subr.bf16.mxu0 0
        %6159 = vmatpush1.bf16.msra.mxu0 0
        %6160 = vmatprep.subr.bf16.mxu0 0
        %6161 = vmatpush1.bf16.msra.mxu0 0
        %6162 = vmatprep.subr.bf16.mxu0 0
        %6163 = vmatpush1.bf16.msra.mxu0 0
        %6164 = vmatprep.subr.bf16.mxu0 0
        %6165 = vmatpush1.bf16.msra.mxu0 0
        %6166 = vmatprep.subr.bf16.mxu0 0
        %6167 = vmatpush1.bf16.msra.mxu0 0
        %6168 = vmatprep.subr.bf16.mxu0 0
        %6169 = vmatpush1.bf16.msra.mxu0 0
        %6170 = vmatprep.subr.bf16.mxu0 0
        %6171 = vmatpush1.bf16.msra.mxu0 0
        %6172 = vmatprep.subr.bf16.mxu0 0
        %6173 = vmatpush1.bf16.msra.mxu0 0
        %6174 = vmatprep.subr.bf16.mxu0 0
        %6175 = vmatpush1.bf16.msra.mxu0 0
        %6176 = vmatprep.subr.bf16.mxu0 0
        %6177 = vmatpush1.bf16.msra.mxu0 0
        %6178 = vmatprep.subr.bf16.mxu0 0
        %6179 = vmatpush1.bf16.msra.mxu0 0
        %6180 = vmatprep.mubr.bf16.mxu0 0
        %6181 = vmatmul.mubr.bf16.gmra.mrb[0].mxu0 %v6146
        %v6182 = vpop.f32.mrb[0].mxu0
        %v6183 = vadd.f32 0.0, %v6182
        %v6184 = vpop.f32.mrb[0].mxu0
        %v6185 = vpop.f32.mrb[0].mxu0
        %v6186 = vpop.f32.mrb[0].mxu0
        %6187 = vdwg.mxu0
        %v6189 = vsel %vm2009, %v6054, 0
        %6191 = vmatprep.subr.bf16.mxu0 0
        %6192 = vmatpush1.bf16.msra.mxu0 %v2153
        %6193 = vmatprep.subr.bf16.mxu0 0
        %6194 = vmatpush1.bf16.msra.mxu0 0
        %6195 = vmatprep.subr.bf16.mxu0 0
        %6196 = vmatpush1.bf16.msra.mxu0 0
        %6197 = vmatprep.subr.bf16.mxu0 0
        %6198 = vmatpush1.bf16.msra.mxu0 0
        %6199 = vmatprep.subr.bf16.mxu0 0
        %6200 = vmatpush1.bf16.msra.mxu0 0
        %6201 = vmatprep.subr.bf16.mxu0 0
        %6202 = vmatpush1.bf16.msra.mxu0 0
        %6203 = vmatprep.subr.bf16.mxu0 0
        %6204 = vmatpush1.bf16.msra.mxu0 0
        %6205 = vmatprep.subr.bf16.mxu0 0
        %6206 = vmatpush1.bf16.msra.mxu0 0
        %6207 = vmatprep.subr.bf16.mxu0 0
        %6208 = vmatpush1.bf16.msra.mxu0 0
        %6209 = vmatprep.subr.bf16.mxu0 0
        %6210 = vmatpush1.bf16.msra.mxu0 0
        %6211 = vmatprep.subr.bf16.mxu0 0
        %6212 = vmatpush1.bf16.msra.mxu0 0
        %6213 = vmatprep.subr.bf16.mxu0 0
        %6214 = vmatpush1.bf16.msra.mxu0 0
        %6215 = vmatprep.subr.bf16.mxu0 0
        %6216 = vmatpush1.bf16.msra.mxu0 0
        %6217 = vmatprep.subr.bf16.mxu0 0
        %6218 = vmatpush1.bf16.msra.mxu0 0
        %6219 = vmatprep.subr.bf16.mxu0 0
        %6220 = vmatpush1.bf16.msra.mxu0 0
        %6221 = vmatprep.subr.bf16.mxu0 0
        %6222 = vmatpush1.bf16.msra.mxu0 0
        %6223 = vmatprep.mubr.bf16.mxu0 0
        %6224 = vmatmul.mubr.bf16.gmra.mrb[0].mxu0 %v6189
        %v6225 = vpop.f32.mrb[0].mxu0
        %v6226 = vadd.f32 0.0, %v6225
        %v6227 = vpop.f32.mrb[0].mxu0
        %v6228 = vpop.f32.mrb[0].mxu0
        %v6229 = vpop.f32.mrb[0].mxu0
        %6230 = vdwg.mxu0
        %v6232 = vsel %vm2009, %v6055, 0
        %6234 = vmatprep.subr.bf16.mxu0 0
        %6235 = vmatpush1.bf16.msra.mxu0 %v2199
        %6236 = vmatprep.subr.bf16.mxu0 0
        %6237 = vmatpush1.bf16.msra.mxu0 0
        %6238 = vmatprep.subr.bf16.mxu0 0
        %6239 = vmatpush1.bf16.msra.mxu0 0
        %6240 = vmatprep.subr.bf16.mxu0 0
        %6241 = vmatpush1.bf16.msra.mxu0 0
        %6242 = vmatprep.subr.bf16.mxu0 0
        %6243 = vmatpush1.bf16.msra.mxu0 0
        %6244 = vmatprep.subr.bf16.mxu0 0
        %6245 = vmatpush1.bf16.msra.mxu0 0
        %6246 = vmatprep.subr.bf16.mxu0 0
        %6247 = vmatpush1.bf16.msra.mxu0 0
        %6248 = vmatprep.subr.bf16.mxu0 0
        %6249 = vmatpush1.bf16.msra.mxu0 0
        %6250 = vmatprep.subr.bf16.mxu0 0
        %6251 = vmatpush1.bf16.msra.mxu0 0
        %6252 = vmatprep.subr.bf16.mxu0 0
        %6253 = vmatpush1.bf16.msra.mxu0 0
        %6254 = vmatprep.subr.bf16.mxu0 0
        %6255 = vmatpush1.bf16.msra.mxu0 0
        %6256 = vmatprep.subr.bf16.mxu0 0
        %6257 = vmatpush1.bf16.msra.mxu0 0
        %6258 = vmatprep.subr.bf16.mxu0 0
        %6259 = vmatpush1.bf16.msra.mxu0 0
        %6260 = vmatprep.subr.bf16.mxu0 0
        %6261 = vmatpush1.bf16.msra.mxu0 0
        %6262 = vmatprep.subr.bf16.mxu0 0
        %6263 = vmatpush1.bf16.msra.mxu0 0
        %6264 = vmatprep.subr.bf16.mxu0 0
        %6265 = vmatpush1.bf16.msra.mxu0 0
        %6266 = vmatprep.mubr.bf16.mxu0 0
        %6267 = vmatmul.mubr.bf16.gmra.mrb[0].mxu0 %v6232
        %v6268 = vpop.f32.mrb[0].mxu0
        %v6269 = vadd.f32 0.0, %v6268
        %v6270 = vpop.f32.mrb[0].mxu0
        %v6271 = vpop.f32.mrb[0].mxu0
        %v6272 = vpop.f32.mrb[0].mxu0
        %6273 = vdwg.mxu0
        %v6275 = vsel %vm2009, %v6056, 0
        %6277 = vmatprep.subr.bf16.mxu0 0
        %6278 = vmatpush1.bf16.msra.mxu0 %v2245
        %6279 = vmatprep.subr.bf16.mxu0 0
        %6280 = vmatpush1.bf16.msra.mxu0 0
        %6281 = vmatprep.subr.bf16.mxu0 0
        %6282 = vmatpush1.bf16.msra.mxu0 0
        %6283 = vmatprep.subr.bf16.mxu0 0
        %6284 = vmatpush1.bf16.msra.mxu0 0
        %6285 = vmatprep.subr.bf16.mxu0 0
        %6286 = vmatpush1.bf16.msra.mxu0 0
        %6287 = vmatprep.subr.bf16.mxu0 0
        %6288 = vmatpush1.bf16.msra.mxu0 0
        %6289 = vmatprep.subr.bf16.mxu0 0
        %6290 = vmatpush1.bf16.msra.mxu0 0
        %6291 = vmatprep.subr.bf16.mxu0 0
        %6292 = vmatpush1.bf16.msra.mxu0 0
        %6293 = vmatprep.subr.bf16.mxu0 0
        %6294 = vmatpush1.bf16.msra.mxu0 0
        %6295 = vmatprep.subr.bf16.mxu0 0
        %6296 = vmatpush1.bf16.msra.mxu0 0
        %6297 = vmatprep.subr.bf16.mxu0 0
        %6298 = vmatpush1.bf16.msra.mxu0 0
        %6299 = vmatprep.subr.bf16.mxu0 0
        %6300 = vmatpush1.bf16.msra.mxu0 0
        %6301 = vmatprep.subr.bf16.mxu0 0
        %6302 = vmatpush1.bf16.msra.mxu0 0
        %6303 = vmatprep.subr.bf16.mxu0 0
        %6304 = vmatpush1.bf16.msra.mxu0 0
        %6305 = vmatprep.subr.bf16.mxu0 0
        %6306 = vmatpush1.bf16.msra.mxu0 0
        %6307 = vmatprep.subr.bf16.mxu0 0
        %6308 = vmatpush1.bf16.msra.mxu0 0
        %6309 = vmatprep.mubr.bf16.mxu0 0
        %6310 = vmatmul.mubr.bf16.gmra.mrb[0].mxu0 %v6275
        %v6311 = vpop.f32.mrb[0].mxu0
        %v6312 = vadd.f32 0.0, %v6311
        %v6313 = vpop.f32.mrb[0].mxu0
        %v6314 = vpop.f32.mrb[0].mxu0
        %v6315 = vpop.f32.mrb[0].mxu0
        %6316 = vdwg.mxu0
        %v6318 = vsel %vm2009, %v6057, 0
        %6320 = vmatprep.subr.bf16.mxu0 0
        %6321 = vmatpush1.bf16.msra.mxu0 %v2291
        %6322 = vmatprep.subr.bf16.mxu0 0
        %6323 = vmatpush1.bf16.msra.mxu0 0
        %6324 = vmatprep.subr.bf16.mxu0 0
        %6325 = vmatpush1.bf16.msra.mxu0 0
        %6326 = vmatprep.subr.bf16.mxu0 0
        %6327 = vmatpush1.bf16.msra.mxu0 0
        %6328 = vmatprep.subr.bf16.mxu0 0
        %6329 = vmatpush1.bf16.msra.mxu0 0
        %6330 = vmatprep.subr.bf16.mxu0 0
        %6331 = vmatpush1.bf16.msra.mxu0 0
        %6332 = vmatprep.subr.bf16.mxu0 0
        %6333 = vmatpush1.bf16.msra.mxu0 0
        %6334 = vmatprep.subr.bf16.mxu0 0
        %6335 = vmatpush1.bf16.msra.mxu0 0
        %6336 = vmatprep.subr.bf16.mxu0 0
        %6337 = vmatpush1.bf16.msra.mxu0 0
        %6338 = vmatprep.subr.bf16.mxu0 0
        %6339 = vmatpush1.bf16.msra.mxu0 0
        %6340 = vmatprep.subr.bf16.mxu0 0
        %6341 = vmatpush1.bf16.msra.mxu0 0
        %6342 = vmatprep.subr.bf16.mxu0 0
        %6343 = vmatpush1.bf16.msra.mxu0 0
        %6344 = vmatprep.subr.bf16.mxu0 0
        %6345 = vmatpush1.bf16.msra.mxu0 0
        %6346 = vmatprep.subr.bf16.mxu0 0
        %6347 = vmatpush1.bf16.msra.mxu0 0
        %6348 = vmatprep.subr.bf16.mxu0 0
        %6349 = vmatpush1.bf16.msra.mxu0 0
        %6350 = vmatprep.subr.bf16.mxu0 0
        %6351 = vmatpush1.bf16.msra.mxu0 0
        %6352 = vmatprep.mubr.bf16.mxu0 0
        %6353 = vmatmul.mubr.bf16.gmra.mrb[0].mxu0 %v6318
        %v6354 = vpop.f32.mrb[0].mxu0
        %v6355 = vadd.f32 0.0, %v6354
        %v6356 = vpop.f32.mrb[0].mxu0
        %v6357 = vpop.f32.mrb[0].mxu0
        %v6358 = vpop.f32.mrb[0].mxu0
        %6359 = vdwg.mxu0
        %v6361 = vsel %vm2009, %v6058, 0
        %6363 = vmatprep.subr.bf16.mxu0 0
        %6364 = vmatpush1.bf16.msra.mxu0 %v2337
        %6365 = vmatprep.subr.bf16.mxu0 0
        %6366 = vmatpush1.bf16.msra.mxu0 0
        %6367 = vmatprep.subr.bf16.mxu0 0
        %6368 = vmatpush1.bf16.msra.mxu0 0
        %6369 = vmatprep.subr.bf16.mxu0 0
        %6370 = vmatpush1.bf16.msra.mxu0 0
        %6371 = vmatprep.subr.bf16.mxu0 0
        %6372 = vmatpush1.bf16.msra.mxu0 0
        %6373 = vmatprep.subr.bf16.mxu0 0
        %6374 = vmatpush1.bf16.msra.mxu0 0
        %6375 = vmatprep.subr.bf16.mxu0 0
        %6376 = vmatpush1.bf16.msra.mxu0 0
        %6377 = vmatprep.subr.bf16.mxu0 0
        %6378 = vmatpush1.bf16.msra.mxu0 0
        %6379 = vmatprep.subr.bf16.mxu0 0
        %6380 = vmatpush1.bf16.msra.mxu0 0
        %6381 = vmatprep.subr.bf16.mxu0 0
        %6382 = vmatpush1.bf16.msra.mxu0 0
        %6383 = vmatprep.subr.bf16.mxu0 0
        %6384 = vmatpush1.bf16.msra.mxu0 0
        %6385 = vmatprep.subr.bf16.mxu0 0
        %6386 = vmatpush1.bf16.msra.mxu0 0
        %6387 = vmatprep.subr.bf16.mxu0 0
        %6388 = vmatpush1.bf16.msra.mxu0 0
        %6389 = vmatprep.subr.bf16.mxu0 0
        %6390 = vmatpush1.bf16.msra.mxu0 0
        %6391 = vmatprep.subr.bf16.mxu0 0
        %6392 = vmatpush1.bf16.msra.mxu0 0
        %6393 = vmatprep.subr.bf16.mxu0 0
        %6394 = vmatpush1.bf16.msra.mxu0 0
        %6395 = vmatprep.mubr.bf16.mxu0 0
        %6396 = vmatmul.mubr.bf16.gmra.mrb[0].mxu0 %v6361
        %v6397 = vpop.f32.mrb[0].mxu0
        %v6398 = vadd.f32 0.0, %v6397
        %v6399 = vpop.f32.mrb[0].mxu0
        %v6400 = vpop.f32.mrb[0].mxu0
        %v6401 = vpop.f32.mrb[0].mxu0
        %6402 = vdwg.mxu0
        %v6403 = vpack.c.bf16 %v6097, %v6097
        %v6404 = vpack.c.bf16 %v6140, %v6140
        %v6405 = vpack.c.bf16 %v6183, %v6183
        %v6406 = vpack.c.bf16 %v6226, %v6226
        %v6407 = vpack.c.bf16 %v6269, %v6269
        %v6408 = vpack.c.bf16 %v6312, %v6312
        %v6409 = vpack.c.bf16 %v6355, %v6355
        %v6410 = vpack.c.bf16 %v6398, %v6398
        %v6411 = vld [vmem:[#allocation16] sm:$0xf]
        %v6412 = vld [vmem:[#allocation16 + $0x4] sm:$0xf]
        %v6413 = vld [vmem:[#allocation16 + $0x8] sm:$0xf]
        %v6414 = vld [vmem:[#allocation16 + $0xc] sm:$0xf]
        %v6415 = vld [vmem:[#allocation16 + $0x10] sm:$0xf]
        %v6416 = vld [vmem:[#allocation16 + $0x14] sm:$0xf]
        %v6417 = vld [vmem:[#allocation16 + $0x18] sm:$0xf]
        %v6418 = vld [vmem:[#allocation16 + $0x1c] sm:$0xf]
        %v6419 = vld [vmem:[#allocation16 + $0x20] sm:$0xf]
        %v6420 = vld [vmem:[#allocation16 + $0x24] sm:$0xf]
        %v6421 = vld [vmem:[#allocation16 + $0x28] sm:$0xf]
        %v6422 = vld [vmem:[#allocation16 + $0x2c] sm:$0xf]
        %v6423 = vld [vmem:[#allocation16 + $0x30] sm:$0xf]
        %v6424 = vld [vmem:[#allocation16 + $0x34] sm:$0xf]
        %v6425 = vld [vmem:[#allocation16 + $0x38] sm:$0xf]
        %v6426 = vld [vmem:[#allocation16 + $0x3c] sm:$0xf]
        %v6427 = vld [vmem:[#allocation17] sm:$0xf]
        %v6428 = vld [vmem:[#allocation17 + $0x4] sm:$0xf]
        %v6429 = vld [vmem:[#allocation17 + $0x8] sm:$0xf]
        %v6430 = vld [vmem:[#allocation17 + $0xc] sm:$0xf]
        %v6431 = vld [vmem:[#allocation17 + $0x10] sm:$0xf]
        %v6432 = vld [vmem:[#allocation17 + $0x14] sm:$0xf]
        %v6433 = vld [vmem:[#allocation17 + $0x18] sm:$0xf]
        %v6434 = vld [vmem:[#allocation17 + $0x1c] sm:$0xf]
        %v6435 = vld [vmem:[#allocation17 + $0x20] sm:$0xf]
        %v6436 = vld [vmem:[#allocation17 + $0x24] sm:$0xf]
        %v6437 = vld [vmem:[#allocation17 + $0x28] sm:$0xf]
        %v6438 = vld [vmem:[#allocation17 + $0x2c] sm:$0xf]
        %v6439 = vld [vmem:[#allocation17 + $0x30] sm:$0xf]
        %v6440 = vld [vmem:[#allocation17 + $0x34] sm:$0xf]
        %v6441 = vld [vmem:[#allocation17 + $0x38] sm:$0xf]
        %v6442 = vld [vmem:[#allocation17 + $0x3c] sm:$0xf]
        %v6459 = vunpack.c.l.b16 %v6427
        %v6460 = vunpack.c.l.b16 %v6428
        %v6461 = vunpack.c.l.b16 %v6429
        %v6462 = vunpack.c.l.b16 %v6430
        %v6463 = vunpack.c.l.b16 %v6431
        %v6464 = vunpack.c.l.b16 %v6432
        %v6465 = vunpack.c.l.b16 %v6433
        %v6466 = vunpack.c.l.b16 %v6434
        %v6467 = vunpack.c.l.b16 %v6435
        %v6468 = vunpack.c.l.b16 %v6436
        %v6469 = vunpack.c.l.b16 %v6437
        %v6470 = vunpack.c.l.b16 %v6438
        %v6471 = vunpack.c.l.b16 %v6439
        %v6472 = vunpack.c.l.b16 %v6440
        %v6473 = vunpack.c.l.b16 %v6441
        %v6474 = vunpack.c.l.b16 %v6442
        %v6475 = vpack.c.b16 %v6460, %v6459
        %v6476 = vpack.c.b16 %v6462, %v6461
        %v6477 = vpack.c.b16 %v6464, %v6463
        %v6478 = vpack.c.b16 %v6466, %v6465
        %v6479 = vpack.c.b16 %v6468, %v6467
        %v6480 = vpack.c.b16 %v6470, %v6469
        %v6481 = vpack.c.b16 %v6472, %v6471
        %v6482 = vpack.c.b16 %v6474, %v6473
        %6491 = vmatprep.subr.bf16.mxu0 0
        %6492 = vmatpush1.bf16.msra.mxu0 %v6475
        %6493 = vmatprep.subr.bf16.mxu0 0
        %6494 = vmatpush1.bf16.msra.mxu0 %v6476
        %6495 = vmatprep.subr.bf16.mxu0 0
        %6496 = vmatpush1.bf16.msra.mxu0 %v6477
        %6497 = vmatprep.subr.bf16.mxu0 0
        %6498 = vmatpush1.bf16.msra.mxu0 %v6478
        %6499 = vmatprep.subr.bf16.mxu0 0
        %6500 = vmatpush1.bf16.msra.mxu0 %v6479
        %6501 = vmatprep.subr.bf16.mxu0 0
        %6502 = vmatpush1.bf16.msra.mxu0 %v6480
        %6503 = vmatprep.subr.bf16.mxu0 0
        %6504 = vmatpush1.bf16.msra.mxu0 %v6481
        %6505 = vmatprep.subr.bf16.mxu0 0
        %6506 = vmatpush1.bf16.msra.mxu0 %v6482
        %6507 = vmatprep.subr.bf16.mxu0 0
        %6508 = vmatpush1.bf16.msra.mxu0 0
        %6509 = vmatprep.subr.bf16.mxu0 0
        %6510 = vmatpush1.bf16.msra.mxu0 0
        %6511 = vmatprep.subr.bf16.mxu0 0
        %6512 = vmatpush1.bf16.msra.mxu0 0
        %6513 = vmatprep.subr.bf16.mxu0 0
        %6514 = vmatpush1.bf16.msra.mxu0 0
        %6515 = vmatprep.subr.bf16.mxu0 0
        %6516 = vmatpush1.bf16.msra.mxu0 0
        %6517 = vmatprep.subr.bf16.mxu0 0
        %6518 = vmatpush1.bf16.msra.mxu0 0
        %6519 = vmatprep.subr.bf16.mxu0 0
        %6520 = vmatpush1.bf16.msra.mxu0 0
        %6521 = vmatprep.subr.bf16.mxu0 0
        %6522 = vmatpush1.bf16.msra.mxu0 0
        %6523 = vmatprep.mubr.bf16.mxu0 0
        %6524 = vmatmul.mubr.bf16.gmra.mrb[0].mxu0 %v5472
        %v6525 = vpop.f32.mrb[0].mxu0
        %v6526 = vadd.f32 0.0, %v6525
        %v6527 = vpop.f32.mrb[0].mxu0
        %v6528 = vpop.f32.mrb[0].mxu0
        %v6529 = vpop.f32.mrb[0].mxu0
        %6530 = vdwg.mxu0
        %v6539 = vunpack.c.l.b16 %v6403
        %v6540 = vunpack.c.l.b16 %v6404
        %v6541 = vunpack.c.l.b16 %v6405
        %v6542 = vunpack.c.l.b16 %v6406
        %v6543 = vunpack.c.l.b16 %v6407
        %v6544 = vunpack.c.l.b16 %v6408
        %v6545 = vunpack.c.l.b16 %v6409
        %v6546 = vunpack.c.l.b16 %v6410
        %v6547 = vrot.slane %v6540, 7
        %v6548 = vsel %vm2524, %v6547, %v6539
        %v6549 = vrot.slane %v6541, 6
        %v6550 = vsel %vm2527, %v6549, %v6548
        %v6551 = vrot.slane %v6542, 5
        %v6552 = vsel %vm2530, %v6551, %v6550
        %v6553 = vrot.slane %v6543, 4
        %v6554 = vsel %vm2533, %v6553, %v6552
        %v6555 = vrot.slane %v6544, 3
        %v6556 = vsel %vm2536, %v6555, %v6554
        %v6557 = vrot.slane %v6545, 2
        %v6558 = vsel %vm2539, %v6557, %v6556
        %v6559 = vrot.slane %v6546, 1
        %v6560 = vsel %vm2542, %v6559, %v6558
        %v6561 = vpack.c.b16 %v6560, %v6560
        %v6579 = vunpack.c.l.b16 %v6411
        %v6580 = vunpack.c.l.b16 %v6412
        %v6581 = vunpack.c.l.b16 %v6413
        %v6582 = vunpack.c.l.b16 %v6414
        %v6583 = vunpack.c.l.b16 %v6415
        %v6584 = vunpack.c.l.b16 %v6416
        %v6585 = vunpack.c.l.b16 %v6417
        %v6586 = vunpack.c.l.b16 %v6418
        %v6587 = vunpack.c.l.b16 %v6419
        %v6588 = vunpack.c.l.b16 %v6420
        %v6589 = vunpack.c.l.b16 %v6421
        %v6590 = vunpack.c.l.b16 %v6422
        %v6591 = vunpack.c.l.b16 %v6423
        %v6592 = vunpack.c.l.b16 %v6424
        %v6593 = vunpack.c.l.b16 %v6425
        %v6594 = vunpack.c.l.b16 %v6426
        %v6595 = vpack.c.b16 %v6580, %v6579
        %v6596 = vpack.c.b16 %v6582, %v6581
        %v6597 = vpack.c.b16 %v6584, %v6583
        %v6598 = vpack.c.b16 %v6586, %v6585
        %v6599 = vpack.c.b16 %v6588, %v6587
        %v6600 = vpack.c.b16 %v6590, %v6589
        %v6601 = vpack.c.b16 %v6592, %v6591
        %v6602 = vpack.c.b16 %v6594, %v6593
        %6611 = vmatprep.subr.bf16.mxu0 0
        %6612 = vmatpush1.bf16.msra.mxu0 %v6595
        %6613 = vmatprep.subr.bf16.mxu0 0
        %6614 = vmatpush1.bf16.msra.mxu0 %v6596
        %6615 = vmatprep.subr.bf16.mxu0 0
        %6616 = vmatpush1.bf16.msra.mxu0 %v6597
        %6617 = vmatprep.subr.bf16.mxu0 0
        %6618 = vmatpush1.bf16.msra.mxu0 %v6598
        %6619 = vmatprep.subr.bf16.mxu0 0
        %6620 = vmatpush1.bf16.msra.mxu0 %v6599
        %6621 = vmatprep.subr.bf16.mxu0 0
        %6622 = vmatpush1.bf16.msra.mxu0 %v6600
        %6623 = vmatprep.subr.bf16.mxu0 0
        %6624 = vmatpush1.bf16.msra.mxu0 %v6601
        %6625 = vmatprep.subr.bf16.mxu0 0
        %6626 = vmatpush1.bf16.msra.mxu0 %v6602
        %6627 = vmatprep.subr.bf16.mxu0 0
        %6628 = vmatpush1.bf16.msra.mxu0 0
        %6629 = vmatprep.subr.bf16.mxu0 0
        %6630 = vmatpush1.bf16.msra.mxu0 0
        %6631 = vmatprep.subr.bf16.mxu0 0
        %6632 = vmatpush1.bf16.msra.mxu0 0
        %6633 = vmatprep.subr.bf16.mxu0 0
        %6634 = vmatpush1.bf16.msra.mxu0 0
        %6635 = vmatprep.subr.bf16.mxu0 0
        %6636 = vmatpush1.bf16.msra.mxu0 0
        %6637 = vmatprep.subr.bf16.mxu0 0
        %6638 = vmatpush1.bf16.msra.mxu0 0
        %6639 = vmatprep.subr.bf16.mxu0 0
        %6640 = vmatpush1.bf16.msra.mxu0 0
        %6641 = vmatprep.subr.bf16.mxu0 0
        %6642 = vmatpush1.bf16.msra.mxu0 0
        %6643 = vmatprep.mubr.bf16.mxu0 0
        %6644 = vmatmul.mubr.bf16.gmra.mrb[0].mxu0 %v6561
        %v6645 = vpop.f32.mrb[0].mxu0
        %v6646 = vadd.f32 %v6526, %v6645
        %v6647 = vpop.f32.mrb[0].mxu0
        %v6648 = vpop.f32.mrb[0].mxu0
        %v6649 = vpop.f32.mrb[0].mxu0
        %6650 = vdwg.mxu0
        %v6651 = vtanh.pop %v6646
        %s6652 = scalar_lea.vmem %s569, 16 [#allocation19]
        %6653 = vst [vmem:[%s6652] sm:$0xff] %v6651
        %v6654 = vld [vmem:[#allocation20] sm:$0xff]
        %s6655 = scalar_lea.vmem %s497, 72 [#allocation2]
        %v6656 = vld [vmem:[%s6655] sm:$0xff]
        %v6657 = vld [vmem:[%s6655 + $0x8] sm:$0xff]
        %v6658 = vld [vmem:[%s6655 + $0x10] sm:$0xff]
        %v6659 = vpack.c.bf16 %v6654, %v6654
        %v6660 = vld [vmem:[#allocation11] sm:$0xff]
        %v6661 = vld [vmem:[#allocation11 + $0x8] sm:$0xf]
        %v6662 = vld [vmem:[#allocation11 + $0xc] sm:$0xff]
        %v6663 = vld [vmem:[#allocation11 + $0x14] sm:$0xf]
        %v6664 = vld [vmem:[#allocation11 + $0x18] sm:$0xff]
        %v6665 = vld [vmem:[#allocation11 + $0x20] sm:$0xf]
        %v6666 = vld [vmem:[#allocation11 + $0x24] sm:$0xff]
        %v6667 = vld [vmem:[#allocation11 + $0x2c] sm:$0xf]
        %v6668 = vld [vmem:[#allocation11 + $0x30] sm:$0xff]
        %v6669 = vld [vmem:[#allocation11 + $0x38] sm:$0xf]
        %v6670 = vld [vmem:[#allocation11 + $0x3c] sm:$0xff]
        %v6671 = vld [vmem:[#allocation11 + $0x44] sm:$0xf]
        %v6672 = vld [vmem:[#allocation11 + $0x48] sm:$0xff]
        %v6673 = vld [vmem:[#allocation11 + $0x50] sm:$0xf]
        %v6674 = vld [vmem:[#allocation11 + $0x54] sm:$0xff]
        %v6675 = vld [vmem:[#allocation11 + $0x5c] sm:$0xf]
        %v6676 = vld [vmem:[#allocation11 + $0x60] sm:$0xff]
        %v6677 = vld [vmem:[#allocation11 + $0x68] sm:$0xf]
        %v6678 = vld [vmem:[#allocation11 + $0x6c] sm:$0xff]
        %v6679 = vld [vmem:[#allocation11 + $0x74] sm:$0xf]
        %v6680 = vld [vmem:[#allocation11 + $0x78] sm:$0xff]
        %v6681 = vld [vmem:[#allocation11 + $0x80] sm:$0xf]
        %v6682 = vld [vmem:[#allocation11 + $0x84] sm:$0xff]
        %v6683 = vld [vmem:[#allocation11 + $0x8c] sm:$0xf]
        %v6684 = vld [vmem:[#allocation11 + $0x90] sm:$0xff]
        %v6685 = vld [vmem:[#allocation11 + $0x98] sm:$0xf]
        %v6686 = vld [vmem:[#allocation11 + $0x9c] sm:$0xff]
        %v6687 = vld [vmem:[#allocation11 + $0xa4] sm:$0xf]
        %v6688 = vld [vmem:[#allocation11 + $0xa8] sm:$0xff]
        %v6689 = vld [vmem:[#allocation11 + $0xb0] sm:$0xf]
        %v6690 = vld [vmem:[#allocation11 + $0xb4] sm:$0xff]
        %v6691 = vld [vmem:[#allocation11 + $0xbc] sm:$0xf]
        %v6692 = vld [vmem:[#allocation13] sm:$0x7]
        %v6694 = vlaneseq
        %v6695 = vshrl.u32 %v6694, 7
        %v6696 = vsub.s32 0, %v6695
        %v6697 = vrot.slane %v6692, %v6696
        %v6698 = vlaneseq
        %v6699 = vshrl.u32 %v6698, 7
        %v6700 = vsub.s32 1, %v6699
        %v6701 = vrot.slane %v6692, %v6700
        %v6702 = vlaneseq
        %v6703 = vshrl.u32 %v6702, 7
        %v6704 = vsub.s32 2, %v6703
        %v6705 = vrot.slane %v6692, %v6704
        %v6741 = vunpack.c.l.b16 %v6660
        %v6742 = vunpack.c.h.b16 %v6660
        %v6743 = vunpack.c.l.b16 %v6661
        %v6744 = vunpack.c.l.b16 %v6662
        %v6745 = vunpack.c.h.b16 %v6662
        %v6746 = vunpack.c.l.b16 %v6663
        %v6747 = vunpack.c.l.b16 %v6664
        %v6748 = vunpack.c.h.b16 %v6664
        %v6749 = vunpack.c.l.b16 %v6665
        %v6750 = vunpack.c.l.b16 %v6666
        %v6751 = vunpack.c.h.b16 %v6666
        %v6752 = vunpack.c.l.b16 %v6667
        %v6753 = vunpack.c.l.b16 %v6668
        %v6754 = vunpack.c.h.b16 %v6668
        %v6755 = vunpack.c.l.b16 %v6669
        %v6756 = vunpack.c.l.b16 %v6670
        %v6757 = vunpack.c.h.b16 %v6670
        %v6758 = vunpack.c.l.b16 %v6671
        %v6759 = vunpack.c.l.b16 %v6672
        %v6760 = vunpack.c.h.b16 %v6672
        %v6761 = vunpack.c.l.b16 %v6673
        %v6762 = vunpack.c.l.b16 %v6674
        %v6763 = vunpack.c.h.b16 %v6674
        %v6764 = vunpack.c.l.b16 %v6675
        %v6765 = vunpack.c.l.b16 %v6676
        %v6766 = vunpack.c.h.b16 %v6676
        %v6767 = vunpack.c.l.b16 %v6677
        %v6768 = vunpack.c.l.b16 %v6678
        %v6769 = vunpack.c.h.b16 %v6678
        %v6770 = vunpack.c.l.b16 %v6679
        %v6771 = vunpack.c.l.b16 %v6680
        %v6772 = vunpack.c.h.b16 %v6680
        %v6773 = vunpack.c.l.b16 %v6681
        %v6774 = vunpack.c.l.b16 %v6682
        %v6775 = vunpack.c.h.b16 %v6682
        %v6776 = vunpack.c.l.b16 %v6683
        %v6777 = vunpack.c.l.b16 %v6684
        %v6778 = vunpack.c.h.b16 %v6684
        %v6779 = vunpack.c.l.b16 %v6685
        %v6780 = vunpack.c.l.b16 %v6686
        %v6781 = vunpack.c.h.b16 %v6686
        %v6782 = vunpack.c.l.b16 %v6687
        %v6783 = vunpack.c.l.b16 %v6688
        %v6784 = vunpack.c.h.b16 %v6688
        %v6785 = vunpack.c.l.b16 %v6689
        %v6786 = vunpack.c.l.b16 %v6690
        %v6787 = vunpack.c.h.b16 %v6690
        %v6788 = vunpack.c.l.b16 %v6691
        %v6789 = vpack.c.b16 %v6744, %v6741
        %v6790 = vpack.c.b16 %v6745, %v6742
        %v6791 = vpack.c.b16 %v6746, %v6743
        %v6792 = vpack.c.b16 %v6750, %v6747
        %v6793 = vpack.c.b16 %v6751, %v6748
        %v6794 = vpack.c.b16 %v6752, %v6749
        %v6795 = vpack.c.b16 %v6756, %v6753
        %v6796 = vpack.c.b16 %v6757, %v6754
        %v6797 = vpack.c.b16 %v6758, %v6755
        %v6798 = vpack.c.b16 %v6762, %v6759
        %v6799 = vpack.c.b16 %v6763, %v6760
        %v6800 = vpack.c.b16 %v6764, %v6761
        %v6801 = vpack.c.b16 %v6768, %v6765
        %v6802 = vpack.c.b16 %v6769, %v6766
        %v6803 = vpack.c.b16 %v6770, %v6767
        %v6804 = vpack.c.b16 %v6774, %v6771
        %v6805 = vpack.c.b16 %v6775, %v6772
        %v6806 = vpack.c.b16 %v6776, %v6773
        %v6807 = vpack.c.b16 %v6780, %v6777
        %v6808 = vpack.c.b16 %v6781, %v6778
        %v6809 = vpack.c.b16 %v6782, %v6779
        %v6810 = vpack.c.b16 %v6786, %v6783
        %v6811 = vpack.c.b16 %v6787, %v6784
        %v6812 = vpack.c.b16 %v6788, %v6785
        %6837 = vmatprep.subr.bf16.mxu0 %v6790
        %6838 = vmatpush1.bf16.msra.mxu0 %v6789
        %6839 = vmatprep.subr.bf16.mxu0 %v6793
        %6840 = vmatpush1.bf16.msra.mxu0 %v6792
        %6841 = vmatprep.subr.bf16.mxu0 %v6796
        %6842 = vmatpush1.bf16.msra.mxu0 %v6795
        %6843 = vmatprep.subr.bf16.mxu0 %v6799
        %6844 = vmatpush1.bf16.msra.mxu0 %v6798
        %6845 = vmatprep.subr.bf16.mxu0 %v6802
        %6846 = vmatpush1.bf16.msra.mxu0 %v6801
        %6847 = vmatprep.subr.bf16.mxu0 %v6805
        %6848 = vmatpush1.bf16.msra.mxu0 %v6804
        %6849 = vmatprep.subr.bf16.mxu0 %v6808
        %6850 = vmatpush1.bf16.msra.mxu0 %v6807
        %6851 = vmatprep.subr.bf16.mxu0 %v6811
        %6852 = vmatpush1.bf16.msra.mxu0 %v6810
        %6853 = vmatprep.subr.bf16.mxu0 0
        %6854 = vmatpush1.bf16.msra.mxu0 0
        %6855 = vmatprep.subr.bf16.mxu0 0
        %6856 = vmatpush1.bf16.msra.mxu0 0
        %6857 = vmatprep.subr.bf16.mxu0 0
        %6858 = vmatpush1.bf16.msra.mxu0 0
        %6859 = vmatprep.subr.bf16.mxu0 0
        %6860 = vmatpush1.bf16.msra.mxu0 0
        %6861 = vmatprep.subr.bf16.mxu0 0
        %6862 = vmatpush1.bf16.msra.mxu0 0
        %6863 = vmatprep.subr.bf16.mxu0 0
        %6864 = vmatpush1.bf16.msra.mxu0 0
        %6865 = vmatprep.subr.bf16.mxu0 0
        %6866 = vmatpush1.bf16.msra.mxu0 0
        %6867 = vmatprep.subr.bf16.mxu0 0
        %6868 = vmatpush1.bf16.msra.mxu0 0
        %6869 = vmatprep.mubr.bf16.mxu0 0
        %6870 = vmatmul.mubr.bf16.gmra.mrb[0].mxu0 %v6659
        %v6871 = vpop.f32.mrb[0].mxu0
        %v6872 = vadd.f32 %v6697, %v6871
        %v6873 = vpop.f32.mrb[0].mxu0
        %v6874 = vadd.f32 %v6701, %v6873
        %v6875 = vpop.f32.mrb[0].mxu0
        %v6876 = vpop.f32.mrb[0].mxu0
        %6877 = vdwg.mxu0
        %6878 = vmatprep.subr.bf16.mxu0 0
        %6879 = vmatpush1.bf16.msra.mxu0 %v6791
        %6880 = vmatprep.subr.bf16.mxu0 0
        %6881 = vmatpush1.bf16.msra.mxu0 %v6794
        %6882 = vmatprep.subr.bf16.mxu0 0
        %6883 = vmatpush1.bf16.msra.mxu0 %v6797
        %6884 = vmatprep.subr.bf16.mxu0 0
        %6885 = vmatpush1.bf16.msra.mxu0 %v6800
        %6886 = vmatprep.subr.bf16.mxu0 0
        %6887 = vmatpush1.bf16.msra.mxu0 %v6803
        %6888 = vmatprep.subr.bf16.mxu0 0
        %6889 = vmatpush1.bf16.msra.mxu0 %v6806
        %6890 = vmatprep.subr.bf16.mxu0 0
        %6891 = vmatpush1.bf16.msra.mxu0 %v6809
        %6892 = vmatprep.subr.bf16.mxu0 0
        %6893 = vmatpush1.bf16.msra.mxu0 %v6812
        %6894 = vmatprep.subr.bf16.mxu0 0
        %6895 = vmatpush1.bf16.msra.mxu0 0
        %6896 = vmatprep.subr.bf16.mxu0 0
        %6897 = vmatpush1.bf16.msra.mxu0 0
        %6898 = vmatprep.subr.bf16.mxu0 0
        %6899 = vmatpush1.bf16.msra.mxu0 0
        %6900 = vmatprep.subr.bf16.mxu0 0
        %6901 = vmatpush1.bf16.msra.mxu0 0
        %6902 = vmatprep.subr.bf16.mxu0 0
        %6903 = vmatpush1.bf16.msra.mxu0 0
        %6904 = vmatprep.subr.bf16.mxu0 0
        %6905 = vmatpush1.bf16.msra.mxu0 0
        %6906 = vmatprep.subr.bf16.mxu0 0
        %6907 = vmatpush1.bf16.msra.mxu0 0
        %6908 = vmatprep.subr.bf16.mxu0 0
        %6909 = vmatpush1.bf16.msra.mxu0 0
        %6910 = vmatprep.mubr.bf16.mxu0 0
        %6911 = vmatmul.mubr.bf16.gmra.mrb[0].mxu0 %v6659
        %v6912 = vpop.f32.mrb[0].mxu0
        %v6913 = vadd.f32 %v6705, %v6912
        %v6914 = vpop.f32.mrb[0].mxu0
        %v6915 = vpop.f32.mrb[0].mxu0
        %v6916 = vpop.f32.mrb[0].mxu0
        %6917 = vdwg.mxu0
        %v6918 = vadd.f32 %v6656, %v6872
        %v6919 = vxor.u32 %v6918, 2147483648
        %v6920 = vmul.f32 %v6919, 1.442695
        %v6921 = vpow.pop %v6920
        %v6922 = vadd.f32 %v6921, 1.0
        %v6923 = vrcp.pop %v6922
        %v6924 = vmul.f32 1.0, %v6923
        %v6925 = vadd.f32 %v6657, %v6874
        %v6926 = vxor.u32 %v6925, 2147483648
        %v6927 = vmul.f32 %v6926, 1.442695
        %v6928 = vpow.pop %v6927
        %v6929 = vadd.f32 %v6928, 1.0
        %v6930 = vrcp.pop %v6929
        %v6931 = vmul.f32 1.0, %v6930
        %v6932 = vmul.f32 %v6924, %v6913
        %v6933 = vadd.f32 %v6658, %v6932
        %v6934 = vtanh.pop %v6933
        %v6935 = vsub.f32 1.0, %v6931
        %v6936 = vmul.f32 %v6935, %v6934
        %v6937 = vmul.f32 %v6931, %v6654
        %v6938 = vadd.f32 %v6936, %v6937
        %6939 = vst [vmem:[#allocation20] sm:$0xff] %v6938
        %v6940 = vld [vmem:[%s877] sm:$0xff]
        %v6941 = vpack.c.bf16 %v6938, %v6938
        %v6942 = vld [vmem:[#allocation8] sm:$0xff]
        %v6943 = vld [vmem:[#allocation8 + $0x8] sm:$0xf]
        %v6944 = vld [vmem:[#allocation8 + $0xc] sm:$0xff]
        %v6945 = vld [vmem:[#allocation8 + $0x14] sm:$0xf]
        %v6946 = vld [vmem:[#allocation8 + $0x18] sm:$0xff]
        %v6947 = vld [vmem:[#allocation8 + $0x20] sm:$0xf]
        %v6948 = vld [vmem:[#allocation8 + $0x24] sm:$0xff]
        %v6949 = vld [vmem:[#allocation8 + $0x2c] sm:$0xf]
        %v6950 = vld [vmem:[#allocation8 + $0x30] sm:$0xff]
        %v6951 = vld [vmem:[#allocation8 + $0x38] sm:$0xf]
        %v6952 = vld [vmem:[#allocation8 + $0x3c] sm:$0xff]
        %v6953 = vld [vmem:[#allocation8 + $0x44] sm:$0xf]
        %v6954 = vld [vmem:[#allocation8 + $0x48] sm:$0xff]
        %v6955 = vld [vmem:[#allocation8 + $0x50] sm:$0xf]
        %v6956 = vld [vmem:[#allocation8 + $0x54] sm:$0xff]
        %v6957 = vld [vmem:[#allocation8 + $0x5c] sm:$0xf]
        %v6958 = vld [vmem:[#allocation8 + $0x60] sm:$0xff]
        %v6959 = vld [vmem:[#allocation8 + $0x68] sm:$0xf]
        %v6960 = vld [vmem:[#allocation8 + $0x6c] sm:$0xff]
        %v6961 = vld [vmem:[#allocation8 + $0x74] sm:$0xf]
        %v6962 = vld [vmem:[#allocation8 + $0x78] sm:$0xff]
        %v6963 = vld [vmem:[#allocation8 + $0x80] sm:$0xf]
        %v6964 = vld [vmem:[#allocation8 + $0x84] sm:$0xff]
        %v6965 = vld [vmem:[#allocation8 + $0x8c] sm:$0xf]
        %v6966 = vld [vmem:[#allocation8 + $0x90] sm:$0xff]
        %v6967 = vld [vmem:[#allocation8 + $0x98] sm:$0xf]
        %v6968 = vld [vmem:[#allocation8 + $0x9c] sm:$0xff]
        %v6969 = vld [vmem:[#allocation8 + $0xa4] sm:$0xf]
        %v6970 = vld [vmem:[#allocation8 + $0xa8] sm:$0xff]
        %v6971 = vld [vmem:[#allocation8 + $0xb0] sm:$0xf]
        %v6972 = vld [vmem:[#allocation8 + $0xb4] sm:$0xff]
        %v6973 = vld [vmem:[#allocation8 + $0xbc] sm:$0xf]
        %v6974 = vld [vmem:[#allocation10] sm:$0x7]
        %v6976 = vlaneseq
        %v6977 = vshrl.u32 %v6976, 7
        %v6978 = vsub.s32 0, %v6977
        %v6979 = vrot.slane %v6974, %v6978
        %v6980 = vlaneseq
        %v6981 = vshrl.u32 %v6980, 7
        %v6982 = vsub.s32 1, %v6981
        %v6983 = vrot.slane %v6974, %v6982
        %v6984 = vlaneseq
        %v6985 = vshrl.u32 %v6984, 7
        %v6986 = vsub.s32 2, %v6985
        %v6987 = vrot.slane %v6974, %v6986
        %v7023 = vunpack.c.l.b16 %v6942
        %v7024 = vunpack.c.h.b16 %v6942
        %v7025 = vunpack.c.l.b16 %v6943
        %v7026 = vunpack.c.l.b16 %v6944
        %v7027 = vunpack.c.h.b16 %v6944
        %v7028 = vunpack.c.l.b16 %v6945
        %v7029 = vunpack.c.l.b16 %v6946
        %v7030 = vunpack.c.h.b16 %v6946
        %v7031 = vunpack.c.l.b16 %v6947
        %v7032 = vunpack.c.l.b16 %v6948
        %v7033 = vunpack.c.h.b16 %v6948
        %v7034 = vunpack.c.l.b16 %v6949
        %v7035 = vunpack.c.l.b16 %v6950
        %v7036 = vunpack.c.h.b16 %v6950
        %v7037 = vunpack.c.l.b16 %v6951
        %v7038 = vunpack.c.l.b16 %v6952
        %v7039 = vunpack.c.h.b16 %v6952
        %v7040 = vunpack.c.l.b16 %v6953
        %v7041 = vunpack.c.l.b16 %v6954
        %v7042 = vunpack.c.h.b16 %v6954
        %v7043 = vunpack.c.l.b16 %v6955
        %v7044 = vunpack.c.l.b16 %v6956
        %v7045 = vunpack.c.h.b16 %v6956
        %v7046 = vunpack.c.l.b16 %v6957
        %v7047 = vunpack.c.l.b16 %v6958
        %v7048 = vunpack.c.h.b16 %v6958
        %v7049 = vunpack.c.l.b16 %v6959
        %v7050 = vunpack.c.l.b16 %v6960
        %v7051 = vunpack.c.h.b16 %v6960
        %v7052 = vunpack.c.l.b16 %v6961
        %v7053 = vunpack.c.l.b16 %v6962
        %v7054 = vunpack.c.h.b16 %v6962
        %v7055 = vunpack.c.l.b16 %v6963
        %v7056 = vunpack.c.l.b16 %v6964
        %v7057 = vunpack.c.h.b16 %v6964
        %v7058 = vunpack.c.l.b16 %v6965
        %v7059 = vunpack.c.l.b16 %v6966
        %v7060 = vunpack.c.h.b16 %v6966
        %v7061 = vunpack.c.l.b16 %v6967
        %v7062 = vunpack.c.l.b16 %v6968
        %v7063 = vunpack.c.h.b16 %v6968
        %v7064 = vunpack.c.l.b16 %v6969
        %v7065 = vunpack.c.l.b16 %v6970
        %v7066 = vunpack.c.h.b16 %v6970
        %v7067 = vunpack.c.l.b16 %v6971
        %v7068 = vunpack.c.l.b16 %v6972
        %v7069 = vunpack.c.h.b16 %v6972
        %v7070 = vunpack.c.l.b16 %v6973
        %v7071 = vpack.c.b16 %v7026, %v7023
        %v7072 = vpack.c.b16 %v7027, %v7024
        %v7073 = vpack.c.b16 %v7028, %v7025
        %v7074 = vpack.c.b16 %v7032, %v7029
        %v7075 = vpack.c.b16 %v7033, %v7030
        %v7076 = vpack.c.b16 %v7034, %v7031
        %v7077 = vpack.c.b16 %v7038, %v7035
        %v7078 = vpack.c.b16 %v7039, %v7036
        %v7079 = vpack.c.b16 %v7040, %v7037
        %v7080 = vpack.c.b16 %v7044, %v7041
        %v7081 = vpack.c.b16 %v7045, %v7042
        %v7082 = vpack.c.b16 %v7046, %v7043
        %v7083 = vpack.c.b16 %v7050, %v7047
        %v7084 = vpack.c.b16 %v7051, %v7048
        %v7085 = vpack.c.b16 %v7052, %v7049
        %v7086 = vpack.c.b16 %v7056, %v7053
        %v7087 = vpack.c.b16 %v7057, %v7054
        %v7088 = vpack.c.b16 %v7058, %v7055
        %v7089 = vpack.c.b16 %v7062, %v7059
        %v7090 = vpack.c.b16 %v7063, %v7060
        %v7091 = vpack.c.b16 %v7064, %v7061
        %v7092 = vpack.c.b16 %v7068, %v7065
        %v7093 = vpack.c.b16 %v7069, %v7066
        %v7094 = vpack.c.b16 %v7070, %v7067
        %7119 = vmatprep.subr.bf16.mxu0 %v7072
        %7120 = vmatpush1.bf16.msra.mxu0 %v7071
        %7121 = vmatprep.subr.bf16.mxu0 %v7075
        %7122 = vmatpush1.bf16.msra.mxu0 %v7074
        %7123 = vmatprep.subr.bf16.mxu0 %v7078
        %7124 = vmatpush1.bf16.msra.mxu0 %v7077
        %7125 = vmatprep.subr.bf16.mxu0 %v7081
        %7126 = vmatpush1.bf16.msra.mxu0 %v7080
        %7127 = vmatprep.subr.bf16.mxu0 %v7084
        %7128 = vmatpush1.bf16.msra.mxu0 %v7083
        %7129 = vmatprep.subr.bf16.mxu0 %v7087
        %7130 = vmatpush1.bf16.msra.mxu0 %v7086
        %7131 = vmatprep.subr.bf16.mxu0 %v7090
        %7132 = vmatpush1.bf16.msra.mxu0 %v7089
        %7133 = vmatprep.subr.bf16.mxu0 %v7093
        %7134 = vmatpush1.bf16.msra.mxu0 %v7092
        %7135 = vmatprep.subr.bf16.mxu0 0
        %7136 = vmatpush1.bf16.msra.mxu0 0
        %7137 = vmatprep.subr.bf16.mxu0 0
        %7138 = vmatpush1.bf16.msra.mxu0 0
        %7139 = vmatprep.subr.bf16.mxu0 0
        %7140 = vmatpush1.bf16.msra.mxu0 0
        %7141 = vmatprep.subr.bf16.mxu0 0
        %7142 = vmatpush1.bf16.msra.mxu0 0
        %7143 = vmatprep.subr.bf16.mxu0 0
        %7144 = vmatpush1.bf16.msra.mxu0 0
        %7145 = vmatprep.subr.bf16.mxu0 0
        %7146 = vmatpush1.bf16.msra.mxu0 0
        %7147 = vmatprep.subr.bf16.mxu0 0
        %7148 = vmatpush1.bf16.msra.mxu0 0
        %7149 = vmatprep.subr.bf16.mxu0 0
        %7150 = vmatpush1.bf16.msra.mxu0 0
        %7151 = vmatprep.mubr.bf16.mxu0 0
        %7152 = vmatmul.mubr.bf16.gmra.mrb[0].mxu0 %v6941
        %v7153 = vpop.f32.mrb[0].mxu0
        %v7154 = vadd.f32 %v6979, %v7153
        %v7155 = vpop.f32.mrb[0].mxu0
        %v7156 = vadd.f32 %v6983, %v7155
        %v7157 = vpop.f32.mrb[0].mxu0
        %v7158 = vpop.f32.mrb[0].mxu0
        %7159 = vdwg.mxu0
        %7160 = vmatprep.subr.bf16.mxu0 0
        %7161 = vmatpush1.bf16.msra.mxu0 %v7073
        %7162 = vmatprep.subr.bf16.mxu0 0
        %7163 = vmatpush1.bf16.msra.mxu0 %v7076
        %7164 = vmatprep.subr.bf16.mxu0 0
        %7165 = vmatpush1.bf16.msra.mxu0 %v7079
        %7166 = vmatprep.subr.bf16.mxu0 0
        %7167 = vmatpush1.bf16.msra.mxu0 %v7082
        %7168 = vmatprep.subr.bf16.mxu0 0
        %7169 = vmatpush1.bf16.msra.mxu0 %v7085
        %7170 = vmatprep.subr.bf16.mxu0 0
        %7171 = vmatpush1.bf16.msra.mxu0 %v7088
        %7172 = vmatprep.subr.bf16.mxu0 0
        %7173 = vmatpush1.bf16.msra.mxu0 %v7091
        %7174 = vmatprep.subr.bf16.mxu0 0
        %7175 = vmatpush1.bf16.msra.mxu0 %v7094
        %7176 = vmatprep.subr.bf16.mxu0 0
        %7177 = vmatpush1.bf16.msra.mxu0 0
        %7178 = vmatprep.subr.bf16.mxu0 0
        %7179 = vmatpush1.bf16.msra.mxu0 0
        %7180 = vmatprep.subr.bf16.mxu0 0
        %7181 = vmatpush1.bf16.msra.mxu0 0
        %7182 = vmatprep.subr.bf16.mxu0 0
        %7183 = vmatpush1.bf16.msra.mxu0 0
        %7184 = vmatprep.subr.bf16.mxu0 0
        %7185 = vmatpush1.bf16.msra.mxu0 0
        %7186 = vmatprep.subr.bf16.mxu0 0
        %7187 = vmatpush1.bf16.msra.mxu0 0
        %7188 = vmatprep.subr.bf16.mxu0 0
        %7189 = vmatpush1.bf16.msra.mxu0 0
        %7190 = vmatprep.subr.bf16.mxu0 0
        %7191 = vmatpush1.bf16.msra.mxu0 0
        %7192 = vmatprep.mubr.bf16.mxu0 0
        %7193 = vmatmul.mubr.bf16.gmra.mrb[0].mxu0 %v6941
        %v7194 = vpop.f32.mrb[0].mxu0
        %v7195 = vadd.f32 %v6987, %v7194
        %v7196 = vpop.f32.mrb[0].mxu0
        %v7197 = vpop.f32.mrb[0].mxu0
        %v7198 = vpop.f32.mrb[0].mxu0
        %7199 = vdwg.mxu0
        %v7200 = vpack.c.bf16 %v6940, %v6940
        %v7201 = vld [vmem:[%s1139] sm:$0xff]
        %v7202 = vld [vmem:[%s1139 + $0x8] sm:$0xf]
        %v7203 = vld [vmem:[%s1139 + $0xc] sm:$0xff]
        %v7204 = vld [vmem:[%s1139 + $0x14] sm:$0xf]
        %v7205 = vld [vmem:[%s1139 + $0x18] sm:$0xff]
        %v7206 = vld [vmem:[%s1139 + $0x20] sm:$0xf]
        %v7207 = vld [vmem:[%s1139 + $0x24] sm:$0xff]
        %v7208 = vld [vmem:[%s1139 + $0x2c] sm:$0xf]
        %v7209 = vld [vmem:[%s1139 + $0x30] sm:$0xff]
        %v7210 = vld [vmem:[%s1139 + $0x38] sm:$0xf]
        %v7211 = vld [vmem:[%s1139 + $0x3c] sm:$0xff]
        %v7212 = vld [vmem:[%s1139 + $0x44] sm:$0xf]
        %v7213 = vld [vmem:[%s1139 + $0x48] sm:$0xff]
        %v7214 = vld [vmem:[%s1139 + $0x50] sm:$0xf]
        %v7215 = vld [vmem:[%s1139 + $0x54] sm:$0xff]
        %v7216 = vld [vmem:[%s1139 + $0x5c] sm:$0xf]
        %v7217 = vld [vmem:[%s1139 + $0x60] sm:$0xff]
        %v7218 = vld [vmem:[%s1139 + $0x68] sm:$0xf]
        %v7219 = vld [vmem:[%s1139 + $0x6c] sm:$0xff]
        %v7220 = vld [vmem:[%s1139 + $0x74] sm:$0xf]
        %v7221 = vld [vmem:[%s1139 + $0x78] sm:$0xff]
        %v7222 = vld [vmem:[%s1139 + $0x80] sm:$0xf]
        %v7223 = vld [vmem:[%s1139 + $0x84] sm:$0xff]
        %v7224 = vld [vmem:[%s1139 + $0x8c] sm:$0xf]
        %v7225 = vld [vmem:[%s1139 + $0x90] sm:$0xff]
        %v7226 = vld [vmem:[%s1139 + $0x98] sm:$0xf]
        %v7227 = vld [vmem:[%s1139 + $0x9c] sm:$0xff]
        %v7228 = vld [vmem:[%s1139 + $0xa4] sm:$0xf]
        %v7229 = vld [vmem:[%s1139 + $0xa8] sm:$0xff]
        %v7230 = vld [vmem:[%s1139 + $0xb0] sm:$0xf]
        %v7231 = vld [vmem:[%s1139 + $0xb4] sm:$0xff]
        %v7232 = vld [vmem:[%s1139 + $0xbc] sm:$0xf]
        %v7233 = vld [vmem:[%s1172] sm:$0x7]
        %v7235 = vlaneseq
        %v7236 = vshrl.u32 %v7235, 7
        %v7237 = vsub.s32 0, %v7236
        %v7238 = vrot.slane %v7233, %v7237
        %v7239 = vlaneseq
        %v7240 = vshrl.u32 %v7239, 7
        %v7241 = vsub.s32 1, %v7240
        %v7242 = vrot.slane %v7233, %v7241
        %v7243 = vlaneseq
        %v7244 = vshrl.u32 %v7243, 7
        %v7245 = vsub.s32 2, %v7244
        %v7246 = vrot.slane %v7233, %v7245
        %v7282 = vunpack.c.l.b16 %v7201
        %v7283 = vunpack.c.h.b16 %v7201
        %v7284 = vunpack.c.l.b16 %v7202
        %v7285 = vunpack.c.l.b16 %v7203
        %v7286 = vunpack.c.h.b16 %v7203
        %v7287 = vunpack.c.l.b16 %v7204
        %v7288 = vunpack.c.l.b16 %v7205
        %v7289 = vunpack.c.h.b16 %v7205
        %v7290 = vunpack.c.l.b16 %v7206
        %v7291 = vunpack.c.l.b16 %v7207
        %v7292 = vunpack.c.h.b16 %v7207
        %v7293 = vunpack.c.l.b16 %v7208
        %v7294 = vunpack.c.l.b16 %v7209
        %v7295 = vunpack.c.h.b16 %v7209
        %v7296 = vunpack.c.l.b16 %v7210
        %v7297 = vunpack.c.l.b16 %v7211
        %v7298 = vunpack.c.h.b16 %v7211
        %v7299 = vunpack.c.l.b16 %v7212
        %v7300 = vunpack.c.l.b16 %v7213
        %v7301 = vunpack.c.h.b16 %v7213
        %v7302 = vunpack.c.l.b16 %v7214
        %v7303 = vunpack.c.l.b16 %v7215
        %v7304 = vunpack.c.h.b16 %v7215
        %v7305 = vunpack.c.l.b16 %v7216
        %v7306 = vunpack.c.l.b16 %v7217
        %v7307 = vunpack.c.h.b16 %v7217
        %v7308 = vunpack.c.l.b16 %v7218
        %v7309 = vunpack.c.l.b16 %v7219
        %v7310 = vunpack.c.h.b16 %v7219
        %v7311 = vunpack.c.l.b16 %v7220
        %v7312 = vunpack.c.l.b16 %v7221
        %v7313 = vunpack.c.h.b16 %v7221
        %v7314 = vunpack.c.l.b16 %v7222
        %v7315 = vunpack.c.l.b16 %v7223
        %v7316 = vunpack.c.h.b16 %v7223
        %v7317 = vunpack.c.l.b16 %v7224
        %v7318 = vunpack.c.l.b16 %v7225
        %v7319 = vunpack.c.h.b16 %v7225
        %v7320 = vunpack.c.l.b16 %v7226
        %v7321 = vunpack.c.l.b16 %v7227
        %v7322 = vunpack.c.h.b16 %v7227
        %v7323 = vunpack.c.l.b16 %v7228
        %v7324 = vunpack.c.l.b16 %v7229
        %v7325 = vunpack.c.h.b16 %v7229
        %v7326 = vunpack.c.l.b16 %v7230
        %v7327 = vunpack.c.l.b16 %v7231
        %v7328 = vunpack.c.h.b16 %v7231
        %v7329 = vunpack.c.l.b16 %v7232
        %v7330 = vpack.c.b16 %v7285, %v7282
        %v7331 = vpack.c.b16 %v7286, %v7283
        %v7332 = vpack.c.b16 %v7287, %v7284
        %v7333 = vpack.c.b16 %v7291, %v7288
        %v7334 = vpack.c.b16 %v7292, %v7289
        %v7335 = vpack.c.b16 %v7293, %v7290
        %v7336 = vpack.c.b16 %v7297, %v7294
        %v7337 = vpack.c.b16 %v7298, %v7295
        %v7338 = vpack.c.b16 %v7299, %v7296
        %v7339 = vpack.c.b16 %v7303, %v7300
        %v7340 = vpack.c.b16 %v7304, %v7301
        %v7341 = vpack.c.b16 %v7305, %v7302
        %v7342 = vpack.c.b16 %v7309, %v7306
        %v7343 = vpack.c.b16 %v7310, %v7307
        %v7344 = vpack.c.b16 %v7311, %v7308
        %v7345 = vpack.c.b16 %v7315, %v7312
        %v7346 = vpack.c.b16 %v7316, %v7313
        %v7347 = vpack.c.b16 %v7317, %v7314
        %v7348 = vpack.c.b16 %v7321, %v7318
        %v7349 = vpack.c.b16 %v7322, %v7319
        %v7350 = vpack.c.b16 %v7323, %v7320
        %v7351 = vpack.c.b16 %v7327, %v7324
        %v7352 = vpack.c.b16 %v7328, %v7325
        %v7353 = vpack.c.b16 %v7329, %v7326
        %7378 = vmatprep.subr.bf16.mxu0 %v7331
        %7379 = vmatpush1.bf16.msra.mxu0 %v7330
        %7380 = vmatprep.subr.bf16.mxu0 %v7334
        %7381 = vmatpush1.bf16.msra.mxu0 %v7333
        %7382 = vmatprep.subr.bf16.mxu0 %v7337
        %7383 = vmatpush1.bf16.msra.mxu0 %v7336
        %7384 = vmatprep.subr.bf16.mxu0 %v7340
        %7385 = vmatpush1.bf16.msra.mxu0 %v7339
        %7386 = vmatprep.subr.bf16.mxu0 %v7343
        %7387 = vmatpush1.bf16.msra.mxu0 %v7342
        %7388 = vmatprep.subr.bf16.mxu0 %v7346
        %7389 = vmatpush1.bf16.msra.mxu0 %v7345
        %7390 = vmatprep.subr.bf16.mxu0 %v7349
        %7391 = vmatpush1.bf16.msra.mxu0 %v7348
        %7392 = vmatprep.subr.bf16.mxu0 %v7352
        %7393 = vmatpush1.bf16.msra.mxu0 %v7351
        %7394 = vmatprep.subr.bf16.mxu0 0
        %7395 = vmatpush1.bf16.msra.mxu0 0
        %7396 = vmatprep.subr.bf16.mxu0 0
        %7397 = vmatpush1.bf16.msra.mxu0 0
        %7398 = vmatprep.subr.bf16.mxu0 0
        %7399 = vmatpush1.bf16.msra.mxu0 0
        %7400 = vmatprep.subr.bf16.mxu0 0
        %7401 = vmatpush1.bf16.msra.mxu0 0
        %7402 = vmatprep.subr.bf16.mxu0 0
        %7403 = vmatpush1.bf16.msra.mxu0 0
        %7404 = vmatprep.subr.bf16.mxu0 0
        %7405 = vmatpush1.bf16.msra.mxu0 0
        %7406 = vmatprep.subr.bf16.mxu0 0
        %7407 = vmatpush1.bf16.msra.mxu0 0
        %7408 = vmatprep.subr.bf16.mxu0 0
        %7409 = vmatpush1.bf16.msra.mxu0 0
        %7410 = vmatprep.mubr.bf16.mxu0 0
        %7411 = vmatmul.mubr.bf16.gmra.mrb[0].mxu0 %v7200
        %v7412 = vpop.f32.mrb[0].mxu0
        %v7413 = vadd.f32 %v7238, %v7412
        %v7414 = vpop.f32.mrb[0].mxu0
        %v7415 = vadd.f32 %v7242, %v7414
        %v7416 = vpop.f32.mrb[0].mxu0
        %v7417 = vpop.f32.mrb[0].mxu0
        %7418 = vdwg.mxu0
        %7419 = vmatprep.subr.bf16.mxu0 0
        %7420 = vmatpush1.bf16.msra.mxu0 %v7332
        %7421 = vmatprep.subr.bf16.mxu0 0
        %7422 = vmatpush1.bf16.msra.mxu0 %v7335
        %7423 = vmatprep.subr.bf16.mxu0 0
        %7424 = vmatpush1.bf16.msra.mxu0 %v7338
        %7425 = vmatprep.subr.bf16.mxu0 0
        %7426 = vmatpush1.bf16.msra.mxu0 %v7341
        %7427 = vmatprep.subr.bf16.mxu0 0
        %7428 = vmatpush1.bf16.msra.mxu0 %v7344
        %7429 = vmatprep.subr.bf16.mxu0 0
        %7430 = vmatpush1.bf16.msra.mxu0 %v7347
        %7431 = vmatprep.subr.bf16.mxu0 0
        %7432 = vmatpush1.bf16.msra.mxu0 %v7350
        %7433 = vmatprep.subr.bf16.mxu0 0
        %7434 = vmatpush1.bf16.msra.mxu0 %v7353
        %7435 = vmatprep.subr.bf16.mxu0 0
        %7436 = vmatpush1.bf16.msra.mxu0 0
        %7437 = vmatprep.subr.bf16.mxu0 0
        %7438 = vmatpush1.bf16.msra.mxu0 0
        %7439 = vmatprep.subr.bf16.mxu0 0
        %7440 = vmatpush1.bf16.msra.mxu0 0
        %7441 = vmatprep.subr.bf16.mxu0 0
        %7442 = vmatpush1.bf16.msra.mxu0 0
        %7443 = vmatprep.subr.bf16.mxu0 0
        %7444 = vmatpush1.bf16.msra.mxu0 0
        %7445 = vmatprep.subr.bf16.mxu0 0
        %7446 = vmatpush1.bf16.msra.mxu0 0
        %7447 = vmatprep.subr.bf16.mxu0 0
        %7448 = vmatpush1.bf16.msra.mxu0 0
        %7449 = vmatprep.subr.bf16.mxu0 0
        %7450 = vmatpush1.bf16.msra.mxu0 0
        %7451 = vmatprep.mubr.bf16.mxu0 0
        %7452 = vmatmul.mubr.bf16.gmra.mrb[0].mxu0 %v7200
        %v7453 = vpop.f32.mrb[0].mxu0
        %v7454 = vadd.f32 %v7246, %v7453
        %v7455 = vpop.f32.mrb[0].mxu0
        %v7456 = vpop.f32.mrb[0].mxu0
        %v7457 = vpop.f32.mrb[0].mxu0
        %7458 = vdwg.mxu0
        %v7459 = vadd.f32 %v7154, %v7413
        %v7460 = vxor.u32 %v7459, 2147483648
        %v7461 = vmul.f32 %v7460, 1.442695
        %v7462 = vpow.pop %v7461
        %v7463 = vadd.f32 %v7462, 1.0
        %v7464 = vrcp.pop %v7463
        %v7465 = vmul.f32 1.0, %v7464
        %v7466 = vadd.f32 %v7156, %v7415
        %v7467 = vxor.u32 %v7466, 2147483648
        %v7468 = vmul.f32 %v7467, 1.442695
        %v7469 = vpow.pop %v7468
        %v7470 = vadd.f32 %v7469, 1.0
        %v7471 = vrcp.pop %v7470
        %v7472 = vmul.f32 1.0, %v7471
        %v7473 = vmul.f32 %v7465, %v7454
        %v7474 = vadd.f32 %v7195, %v7473
        %v7475 = vtanh.pop %v7474
        %v7476 = vsub.f32 1.0, %v7472
        %v7477 = vmul.f32 %v7476, %v7475
        %v7478 = vmul.f32 %v7472, %v6940
        %v7479 = vadd.f32 %v7477, %v7478
        %7480 = vst [vmem:[%s877] sm:$0xff] %v7479
        %v7481 = vpack.c.bf16 %v7479, %v7479
        %v7482 = vld [vmem:[#allocation14] sm:$0xf]
        %v7483 = vld [vmem:[#allocation14 + $0x4] sm:$0xf]
        %v7484 = vld [vmem:[#allocation14 + $0x8] sm:$0xf]
        %v7485 = vld [vmem:[#allocation14 + $0xc] sm:$0xf]
        %v7486 = vld [vmem:[#allocation14 + $0x10] sm:$0xf]
        %v7487 = vld [vmem:[#allocation14 + $0x14] sm:$0xf]
        %v7488 = vld [vmem:[#allocation14 + $0x18] sm:$0xf]
        %v7489 = vld [vmem:[#allocation14 + $0x1c] sm:$0xf]
        %v7490 = vld [vmem:[#allocation14 + $0x20] sm:$0xf]
        %v7491 = vld [vmem:[#allocation14 + $0x24] sm:$0xf]
        %v7492 = vld [vmem:[#allocation14 + $0x28] sm:$0xf]
        %v7493 = vld [vmem:[#allocation14 + $0x2c] sm:$0xf]
        %v7494 = vld [vmem:[#allocation14 + $0x30] sm:$0xf]
        %v7495 = vld [vmem:[#allocation14 + $0x34] sm:$0xf]
        %v7496 = vld [vmem:[#allocation14 + $0x38] sm:$0xf]
        %v7497 = vld [vmem:[#allocation14 + $0x3c] sm:$0xf]
        %v7514 = vunpack.c.l.b16 %v7482
        %v7515 = vunpack.c.l.b16 %v7483
        %v7516 = vunpack.c.l.b16 %v7484
        %v7517 = vunpack.c.l.b16 %v7485
        %v7518 = vunpack.c.l.b16 %v7486
        %v7519 = vunpack.c.l.b16 %v7487
        %v7520 = vunpack.c.l.b16 %v7488
        %v7521 = vunpack.c.l.b16 %v7489
        %v7522 = vunpack.c.l.b16 %v7490
        %v7523 = vunpack.c.l.b16 %v7491
        %v7524 = vunpack.c.l.b16 %v7492
        %v7525 = vunpack.c.l.b16 %v7493
        %v7526 = vunpack.c.l.b16 %v7494
        %v7527 = vunpack.c.l.b16 %v7495
        %v7528 = vunpack.c.l.b16 %v7496
        %v7529 = vunpack.c.l.b16 %v7497
        %v7530 = vpack.c.b16 %v7515, %v7514
        %v7531 = vpack.c.b16 %v7517, %v7516
        %v7532 = vpack.c.b16 %v7519, %v7518
        %v7533 = vpack.c.b16 %v7521, %v7520
        %v7534 = vpack.c.b16 %v7523, %v7522
        %v7535 = vpack.c.b16 %v7525, %v7524
        %v7536 = vpack.c.b16 %v7527, %v7526
        %v7537 = vpack.c.b16 %v7529, %v7528
        %7546 = vmatprep.subr.bf16.mxu0 0
        %7547 = vmatpush1.bf16.msra.mxu0 %v7530
        %7548 = vmatprep.subr.bf16.mxu0 0
        %7549 = vmatpush1.bf16.msra.mxu0 %v7531
        %7550 = vmatprep.subr.bf16.mxu0 0
        %7551 = vmatpush1.bf16.msra.mxu0 %v7532
        %7552 = vmatprep.subr.bf16.mxu0 0
        %7553 = vmatpush1.bf16.msra.mxu0 %v7533
        %7554 = vmatprep.subr.bf16.mxu0 0
        %7555 = vmatpush1.bf16.msra.mxu0 %v7534
        %7556 = vmatprep.subr.bf16.mxu0 0
        %7557 = vmatpush1.bf16.msra.mxu0 %v7535
        %7558 = vmatprep.subr.bf16.mxu0 0
        %7559 = vmatpush1.bf16.msra.mxu0 %v7536
        %7560 = vmatprep.subr.bf16.mxu0 0
        %7561 = vmatpush1.bf16.msra.mxu0 %v7537
        %7562 = vmatprep.subr.bf16.mxu0 0
        %7563 = vmatpush1.bf16.msra.mxu0 0
        %7564 = vmatprep.subr.bf16.mxu0 0
        %7565 = vmatpush1.bf16.msra.mxu0 0
        %7566 = vmatprep.subr.bf16.mxu0 0
        %7567 = vmatpush1.bf16.msra.mxu0 0
        %7568 = vmatprep.subr.bf16.mxu0 0
        %7569 = vmatpush1.bf16.msra.mxu0 0
        %7570 = vmatprep.subr.bf16.mxu0 0
        %7571 = vmatpush1.bf16.msra.mxu0 0
        %7572 = vmatprep.subr.bf16.mxu0 0
        %7573 = vmatpush1.bf16.msra.mxu0 0
        %7574 = vmatprep.subr.bf16.mxu0 0
        %7575 = vmatpush1.bf16.msra.mxu0 0
        %7576 = vmatprep.subr.bf16.mxu0 0
        %7577 = vmatpush1.bf16.msra.mxu0 0
        %7578 = vmatprep.mubr.bf16.mxu0 0
        %7579 = vmatmul.mubr.bf16.gmra.mrb[0].mxu0 %v7481
        %v7580 = vpop.f32.mrb[0].mxu0
        %v7581 = vadd.f32 0.0, %v7580
        %v7582 = vpop.f32.mrb[0].mxu0
        %v7583 = vpop.f32.mrb[0].mxu0
        %v7584 = vpop.f32.mrb[0].mxu0
        %7585 = vdwg.mxu0
        %v7587 = vcombine.high %v7581, %v7581
        %v7589 = vunpack.c.l.s4 1966171168
        %v7590 = vunpack.c.0.s8 %v7589
        %v7591 = vlaneseq
        %v7592 = vshrl.u32 %v7591, 7
        %v7593 = vsub.s32 %v7590, %v7592
        %v7594 = vrot.slane %v7581, %v7593
        %v7596 = vunpack.c.l.s4 1966171168
        %v7597 = vunpack.c.0.s8 %v7596
        %v7598 = vlaneseq
        %v7599 = vshrl.u32 %v7598, 7
        %v7600 = vsub.s32 %v7597, %v7599
        %v7601 = vrot.slane %v7587, %v7600
        %v7602 = vcombine.high %v7594, %v7594
        %v7603 = vcombine.high %v7601, %v7601
        %v7605 = vunpack.c.l.s4 1966171168
        %v7606 = vunpack.c.0.s8 %v7605
        %v7607 = vlaneseq
        %v7608 = vshrl.u32 %v7607, 7
        %v7609 = vsub.s32 %v7606, %v7608
        %v7610 = vrot.slane %v7594, %v7609
        %v7612 = vunpack.c.l.s4 1966171168
        %v7613 = vunpack.c.0.s8 %v7612
        %v7614 = vlaneseq
        %v7615 = vshrl.u32 %v7614, 7
        %v7616 = vsub.s32 %v7613, %v7615
        %v7617 = vrot.slane %v7601, %v7616
        %v7619 = vunpack.c.l.s4 1966171168
        %v7620 = vunpack.c.0.s8 %v7619
        %v7621 = vlaneseq
        %v7622 = vshrl.u32 %v7621, 7
        %v7623 = vsub.s32 %v7620, %v7622
        %v7624 = vrot.slane %v7602, %v7623
        %v7626 = vunpack.c.l.s4 1966171168
        %v7627 = vunpack.c.0.s8 %v7626
        %v7628 = vlaneseq
        %v7629 = vshrl.u32 %v7628, 7
        %v7630 = vsub.s32 %v7627, %v7629
        %v7631 = vrot.slane %v7603, %v7630
        %v7632 = vcombine.high %v7610, %v7610
        %v7633 = vcombine.high %v7617, %v7617
        %v7634 = vcombine.high %v7624, %v7624
        %v7635 = vcombine.high %v7631, %v7631
        %v7644 = vpack.c.bf16 %v7610, %v7610
        %v7645 = vpack.c.bf16 %v7624, %v7624
        %v7646 = vpack.c.bf16 %v7632, %v7632
        %v7647 = vpack.c.bf16 %v7634, %v7634
        %v7648 = vpack.c.bf16 %v7617, %v7617
        %v7649 = vpack.c.bf16 %v7631, %v7631
        %v7650 = vpack.c.bf16 %v7633, %v7633
        %v7651 = vpack.c.bf16 %v7635, %v7635
        %7652 = vmatprep.subr.bf16.mxu0 0
        %7653 = vmatpush1.bf16.xpose.msra.mxu0 %v584
        %7654 = vmatprep.subr.bf16.mxu0 0
        %7655 = vmatpush1.bf16.xpose.msra.mxu0 0
        %7656 = vmatprep.subr.bf16.mxu0 0
        %7657 = vmatpush1.bf16.xpose.msra.mxu0 0
        %7658 = vmatprep.subr.bf16.mxu0 0
        %7659 = vmatpush1.bf16.xpose.msra.mxu0 0
        %7660 = vmatprep.subr.bf16.mxu0 0
        %7661 = vmatpush1.bf16.xpose.msra.mxu0 0
        %7662 = vmatprep.subr.bf16.mxu0 0
        %7663 = vmatpush1.bf16.xpose.msra.mxu0 0
        %7664 = vmatprep.subr.bf16.mxu0 0
        %7665 = vmatpush1.bf16.xpose.msra.mxu0 0
        %7666 = vmatprep.subr.bf16.mxu0 0
        %7667 = vmatpush1.bf16.xpose.msra.mxu0 0
        %7668 = vmatprep.subr.bf16.mxu0 0
        %7669 = vmatpush1.bf16.xpose.msra.mxu0 0
        %7670 = vmatprep.subr.bf16.mxu0 0
        %7671 = vmatpush1.bf16.xpose.msra.mxu0 0
        %7672 = vmatprep.subr.bf16.mxu0 0
        %7673 = vmatpush1.bf16.xpose.msra.mxu0 0
        %7674 = vmatprep.subr.bf16.mxu0 0
        %7675 = vmatpush1.bf16.xpose.msra.mxu0 0
        %7676 = vmatprep.subr.bf16.mxu0 0
        %7677 = vmatpush1.bf16.xpose.msra.mxu0 0
        %7678 = vmatprep.subr.bf16.mxu0 0
        %7679 = vmatpush1.bf16.xpose.msra.mxu0 0
        %7680 = vmatprep.subr.bf16.mxu0 0
        %7681 = vmatpush1.bf16.xpose.msra.mxu0 0
        %7682 = vmatprep.subr.bf16.mxu0 0
        %7683 = vmatpush1.bf16.xpose.msra.mxu0 0
        %7684 = vmatprep.mubr.bf16.mxu0 0
        %7685 = vmatmul.mubr.bf16.gmra.mrb[0].mxu0 %v7644
        %v7686 = vpop.f32.mrb[0].mxu0
        %v7687 = vadd.f32 0.0, %v7686
        %v7688 = vpop.f32.mrb[0].mxu0
        %v7689 = vpop.f32.mrb[0].mxu0
        %v7690 = vpop.f32.mrb[0].mxu0
        %7691 = vdwg.mxu0
        %7692 = vmatprep.subr.bf16.mxu0 0
        %7693 = vmatpush1.bf16.xpose.msra.mxu0 %v585
        %7694 = vmatprep.subr.bf16.mxu0 0
        %7695 = vmatpush1.bf16.xpose.msra.mxu0 0
        %7696 = vmatprep.subr.bf16.mxu0 0
        %7697 = vmatpush1.bf16.xpose.msra.mxu0 0
        %7698 = vmatprep.subr.bf16.mxu0 0
        %7699 = vmatpush1.bf16.xpose.msra.mxu0 0
        %7700 = vmatprep.subr.bf16.mxu0 0
        %7701 = vmatpush1.bf16.xpose.msra.mxu0 0
        %7702 = vmatprep.subr.bf16.mxu0 0
        %7703 = vmatpush1.bf16.xpose.msra.mxu0 0
        %7704 = vmatprep.subr.bf16.mxu0 0
        %7705 = vmatpush1.bf16.xpose.msra.mxu0 0
        %7706 = vmatprep.subr.bf16.mxu0 0
        %7707 = vmatpush1.bf16.xpose.msra.mxu0 0
        %7708 = vmatprep.subr.bf16.mxu0 0
        %7709 = vmatpush1.bf16.xpose.msra.mxu0 0
        %7710 = vmatprep.subr.bf16.mxu0 0
        %7711 = vmatpush1.bf16.xpose.msra.mxu0 0
        %7712 = vmatprep.subr.bf16.mxu0 0
        %7713 = vmatpush1.bf16.xpose.msra.mxu0 0
        %7714 = vmatprep.subr.bf16.mxu0 0
        %7715 = vmatpush1.bf16.xpose.msra.mxu0 0
        %7716 = vmatprep.subr.bf16.mxu0 0
        %7717 = vmatpush1.bf16.xpose.msra.mxu0 0
        %7718 = vmatprep.subr.bf16.mxu0 0
        %7719 = vmatpush1.bf16.xpose.msra.mxu0 0
        %7720 = vmatprep.subr.bf16.mxu0 0
        %7721 = vmatpush1.bf16.xpose.msra.mxu0 0
        %7722 = vmatprep.subr.bf16.mxu0 0
        %7723 = vmatpush1.bf16.xpose.msra.mxu0 0
        %7724 = vmatprep.mubr.bf16.mxu0 0
        %7725 = vmatmul.mubr.bf16.gmra.mrb[0].mxu0 %v7645
        %v7726 = vpop.f32.mrb[0].mxu0
        %v7727 = vadd.f32 0.0, %v7726
        %v7728 = vpop.f32.mrb[0].mxu0
        %v7729 = vpop.f32.mrb[0].mxu0
        %v7730 = vpop.f32.mrb[0].mxu0
        %7731 = vdwg.mxu0
        %7732 = vmatprep.subr.bf16.mxu0 0
        %7733 = vmatpush1.bf16.xpose.msra.mxu0 %v586
        %7734 = vmatprep.subr.bf16.mxu0 0
        %7735 = vmatpush1.bf16.xpose.msra.mxu0 0
        %7736 = vmatprep.subr.bf16.mxu0 0
        %7737 = vmatpush1.bf16.xpose.msra.mxu0 0
        %7738 = vmatprep.subr.bf16.mxu0 0
        %7739 = vmatpush1.bf16.xpose.msra.mxu0 0
        %7740 = vmatprep.subr.bf16.mxu0 0
        %7741 = vmatpush1.bf16.xpose.msra.mxu0 0
        %7742 = vmatprep.subr.bf16.mxu0 0
        %7743 = vmatpush1.bf16.xpose.msra.mxu0 0
        %7744 = vmatprep.subr.bf16.mxu0 0
        %7745 = vmatpush1.bf16.xpose.msra.mxu0 0
        %7746 = vmatprep.subr.bf16.mxu0 0
        %7747 = vmatpush1.bf16.xpose.msra.mxu0 0
        %7748 = vmatprep.subr.bf16.mxu0 0
        %7749 = vmatpush1.bf16.xpose.msra.mxu0 0
        %7750 = vmatprep.subr.bf16.mxu0 0
        %7751 = vmatpush1.bf16.xpose.msra.mxu0 0
        %7752 = vmatprep.subr.bf16.mxu0 0
        %7753 = vmatpush1.bf16.xpose.msra.mxu0 0
        %7754 = vmatprep.subr.bf16.mxu0 0
        %7755 = vmatpush1.bf16.xpose.msra.mxu0 0
        %7756 = vmatprep.subr.bf16.mxu0 0
        %7757 = vmatpush1.bf16.xpose.msra.mxu0 0
        %7758 = vmatprep.subr.bf16.mxu0 0
        %7759 = vmatpush1.bf16.xpose.msra.mxu0 0
        %7760 = vmatprep.subr.bf16.mxu0 0
        %7761 = vmatpush1.bf16.xpose.msra.mxu0 0
        %7762 = vmatprep.subr.bf16.mxu0 0
        %7763 = vmatpush1.bf16.xpose.msra.mxu0 0
        %7764 = vmatprep.mubr.bf16.mxu0 0
        %7765 = vmatmul.mubr.bf16.gmra.mrb[0].mxu0 %v7646
        %v7766 = vpop.f32.mrb[0].mxu0
        %v7767 = vadd.f32 0.0, %v7766
        %v7768 = vpop.f32.mrb[0].mxu0
        %v7769 = vpop.f32.mrb[0].mxu0
        %v7770 = vpop.f32.mrb[0].mxu0
        %7771 = vdwg.mxu0
        %7772 = vmatprep.subr.bf16.mxu0 0
        %7773 = vmatpush1.bf16.xpose.msra.mxu0 %v587
        %7774 = vmatprep.subr.bf16.mxu0 0
        %7775 = vmatpush1.bf16.xpose.msra.mxu0 0
        %7776 = vmatprep.subr.bf16.mxu0 0
        %7777 = vmatpush1.bf16.xpose.msra.mxu0 0
        %7778 = vmatprep.subr.bf16.mxu0 0
        %7779 = vmatpush1.bf16.xpose.msra.mxu0 0
        %7780 = vmatprep.subr.bf16.mxu0 0
        %7781 = vmatpush1.bf16.xpose.msra.mxu0 0
        %7782 = vmatprep.subr.bf16.mxu0 0
        %7783 = vmatpush1.bf16.xpose.msra.mxu0 0
        %7784 = vmatprep.subr.bf16.mxu0 0
        %7785 = vmatpush1.bf16.xpose.msra.mxu0 0
        %7786 = vmatprep.subr.bf16.mxu0 0
        %7787 = vmatpush1.bf16.xpose.msra.mxu0 0
        %7788 = vmatprep.subr.bf16.mxu0 0
        %7789 = vmatpush1.bf16.xpose.msra.mxu0 0
        %7790 = vmatprep.subr.bf16.mxu0 0
        %7791 = vmatpush1.bf16.xpose.msra.mxu0 0
        %7792 = vmatprep.subr.bf16.mxu0 0
        %7793 = vmatpush1.bf16.xpose.msra.mxu0 0
        %7794 = vmatprep.subr.bf16.mxu0 0
        %7795 = vmatpush1.bf16.xpose.msra.mxu0 0
        %7796 = vmatprep.subr.bf16.mxu0 0
        %7797 = vmatpush1.bf16.xpose.msra.mxu0 0
        %7798 = vmatprep.subr.bf16.mxu0 0
        %7799 = vmatpush1.bf16.xpose.msra.mxu0 0
        %7800 = vmatprep.subr.bf16.mxu0 0
        %7801 = vmatpush1.bf16.xpose.msra.mxu0 0
        %7802 = vmatprep.subr.bf16.mxu0 0
        %7803 = vmatpush1.bf16.xpose.msra.mxu0 0
        %7804 = vmatprep.mubr.bf16.mxu0 0
        %7805 = vmatmul.mubr.bf16.gmra.mrb[0].mxu0 %v7647
        %v7806 = vpop.f32.mrb[0].mxu0
        %v7807 = vadd.f32 0.0, %v7806
        %v7808 = vpop.f32.mrb[0].mxu0
        %v7809 = vpop.f32.mrb[0].mxu0
        %v7810 = vpop.f32.mrb[0].mxu0
        %7811 = vdwg.mxu0
        %7812 = vmatprep.subr.bf16.mxu0 0
        %7813 = vmatpush1.bf16.xpose.msra.mxu0 %v588
        %7814 = vmatprep.subr.bf16.mxu0 0
        %7815 = vmatpush1.bf16.xpose.msra.mxu0 0
        %7816 = vmatprep.subr.bf16.mxu0 0
        %7817 = vmatpush1.bf16.xpose.msra.mxu0 0
        %7818 = vmatprep.subr.bf16.mxu0 0
        %7819 = vmatpush1.bf16.xpose.msra.mxu0 0
        %7820 = vmatprep.subr.bf16.mxu0 0
        %7821 = vmatpush1.bf16.xpose.msra.mxu0 0
        %7822 = vmatprep.subr.bf16.mxu0 0
        %7823 = vmatpush1.bf16.xpose.msra.mxu0 0
        %7824 = vmatprep.subr.bf16.mxu0 0
        %7825 = vmatpush1.bf16.xpose.msra.mxu0 0
        %7826 = vmatprep.subr.bf16.mxu0 0
        %7827 = vmatpush1.bf16.xpose.msra.mxu0 0
        %7828 = vmatprep.subr.bf16.mxu0 0
        %7829 = vmatpush1.bf16.xpose.msra.mxu0 0
        %7830 = vmatprep.subr.bf16.mxu0 0
        %7831 = vmatpush1.bf16.xpose.msra.mxu0 0
        %7832 = vmatprep.subr.bf16.mxu0 0
        %7833 = vmatpush1.bf16.xpose.msra.mxu0 0
        %7834 = vmatprep.subr.bf16.mxu0 0
        %7835 = vmatpush1.bf16.xpose.msra.mxu0 0
        %7836 = vmatprep.subr.bf16.mxu0 0
        %7837 = vmatpush1.bf16.xpose.msra.mxu0 0
        %7838 = vmatprep.subr.bf16.mxu0 0
        %7839 = vmatpush1.bf16.xpose.msra.mxu0 0
        %7840 = vmatprep.subr.bf16.mxu0 0
        %7841 = vmatpush1.bf16.xpose.msra.mxu0 0
        %7842 = vmatprep.subr.bf16.mxu0 0
        %7843 = vmatpush1.bf16.xpose.msra.mxu0 0
        %7844 = vmatprep.mubr.bf16.mxu0 0
        %7845 = vmatmul.mubr.bf16.gmra.mrb[0].mxu0 %v7648
        %v7846 = vpop.f32.mrb[0].mxu0
        %v7847 = vadd.f32 0.0, %v7846
        %v7848 = vpop.f32.mrb[0].mxu0
        %v7849 = vpop.f32.mrb[0].mxu0
        %v7850 = vpop.f32.mrb[0].mxu0
        %7851 = vdwg.mxu0
        %7852 = vmatprep.subr.bf16.mxu0 0
        %7853 = vmatpush1.bf16.xpose.msra.mxu0 %v589
        %7854 = vmatprep.subr.bf16.mxu0 0
        %7855 = vmatpush1.bf16.xpose.msra.mxu0 0
        %7856 = vmatprep.subr.bf16.mxu0 0
        %7857 = vmatpush1.bf16.xpose.msra.mxu0 0
        %7858 = vmatprep.subr.bf16.mxu0 0
        %7859 = vmatpush1.bf16.xpose.msra.mxu0 0
        %7860 = vmatprep.subr.bf16.mxu0 0
        %7861 = vmatpush1.bf16.xpose.msra.mxu0 0
        %7862 = vmatprep.subr.bf16.mxu0 0
        %7863 = vmatpush1.bf16.xpose.msra.mxu0 0
        %7864 = vmatprep.subr.bf16.mxu0 0
        %7865 = vmatpush1.bf16.xpose.msra.mxu0 0
        %7866 = vmatprep.subr.bf16.mxu0 0
        %7867 = vmatpush1.bf16.xpose.msra.mxu0 0
        %7868 = vmatprep.subr.bf16.mxu0 0
        %7869 = vmatpush1.bf16.xpose.msra.mxu0 0
        %7870 = vmatprep.subr.bf16.mxu0 0
        %7871 = vmatpush1.bf16.xpose.msra.mxu0 0
        %7872 = vmatprep.subr.bf16.mxu0 0
        %7873 = vmatpush1.bf16.xpose.msra.mxu0 0
        %7874 = vmatprep.subr.bf16.mxu0 0
        %7875 = vmatpush1.bf16.xpose.msra.mxu0 0
        %7876 = vmatprep.subr.bf16.mxu0 0
        %7877 = vmatpush1.bf16.xpose.msra.mxu0 0
        %7878 = vmatprep.subr.bf16.mxu0 0
        %7879 = vmatpush1.bf16.xpose.msra.mxu0 0
        %7880 = vmatprep.subr.bf16.mxu0 0
        %7881 = vmatpush1.bf16.xpose.msra.mxu0 0
        %7882 = vmatprep.subr.bf16.mxu0 0
        %7883 = vmatpush1.bf16.xpose.msra.mxu0 0
        %7884 = vmatprep.mubr.bf16.mxu0 0
        %7885 = vmatmul.mubr.bf16.gmra.mrb[0].mxu0 %v7649
        %v7886 = vpop.f32.mrb[0].mxu0
        %v7887 = vadd.f32 0.0, %v7886
        %v7888 = vpop.f32.mrb[0].mxu0
        %v7889 = vpop.f32.mrb[0].mxu0
        %v7890 = vpop.f32.mrb[0].mxu0
        %7891 = vdwg.mxu0
        %7892 = vmatprep.subr.bf16.mxu0 0
        %7893 = vmatpush1.bf16.xpose.msra.mxu0 %v590
        %7894 = vmatprep.subr.bf16.mxu0 0
        %7895 = vmatpush1.bf16.xpose.msra.mxu0 0
        %7896 = vmatprep.subr.bf16.mxu0 0
        %7897 = vmatpush1.bf16.xpose.msra.mxu0 0
        %7898 = vmatprep.subr.bf16.mxu0 0
        %7899 = vmatpush1.bf16.xpose.msra.mxu0 0
        %7900 = vmatprep.subr.bf16.mxu0 0
        %7901 = vmatpush1.bf16.xpose.msra.mxu0 0
        %7902 = vmatprep.subr.bf16.mxu0 0
        %7903 = vmatpush1.bf16.xpose.msra.mxu0 0
        %7904 = vmatprep.subr.bf16.mxu0 0
        %7905 = vmatpush1.bf16.xpose.msra.mxu0 0
        %7906 = vmatprep.subr.bf16.mxu0 0
        %7907 = vmatpush1.bf16.xpose.msra.mxu0 0
        %7908 = vmatprep.subr.bf16.mxu0 0
        %7909 = vmatpush1.bf16.xpose.msra.mxu0 0
        %7910 = vmatprep.subr.bf16.mxu0 0
        %7911 = vmatpush1.bf16.xpose.msra.mxu0 0
        %7912 = vmatprep.subr.bf16.mxu0 0
        %7913 = vmatpush1.bf16.xpose.msra.mxu0 0
        %7914 = vmatprep.subr.bf16.mxu0 0
        %7915 = vmatpush1.bf16.xpose.msra.mxu0 0
        %7916 = vmatprep.subr.bf16.mxu0 0
        %7917 = vmatpush1.bf16.xpose.msra.mxu0 0
        %7918 = vmatprep.subr.bf16.mxu0 0
        %7919 = vmatpush1.bf16.xpose.msra.mxu0 0
        %7920 = vmatprep.subr.bf16.mxu0 0
        %7921 = vmatpush1.bf16.xpose.msra.mxu0 0
        %7922 = vmatprep.subr.bf16.mxu0 0
        %7923 = vmatpush1.bf16.xpose.msra.mxu0 0
        %7924 = vmatprep.mubr.bf16.mxu0 0
        %7925 = vmatmul.mubr.bf16.gmra.mrb[0].mxu0 %v7650
        %v7926 = vpop.f32.mrb[0].mxu0
        %v7927 = vadd.f32 0.0, %v7926
        %v7928 = vpop.f32.mrb[0].mxu0
        %v7929 = vpop.f32.mrb[0].mxu0
        %v7930 = vpop.f32.mrb[0].mxu0
        %7931 = vdwg.mxu0
        %7932 = vmatprep.subr.bf16.mxu0 0
        %7933 = vmatpush1.bf16.xpose.msra.mxu0 %v591
        %7934 = vmatprep.subr.bf16.mxu0 0
        %7935 = vmatpush1.bf16.xpose.msra.mxu0 0
        %7936 = vmatprep.subr.bf16.mxu0 0
        %7937 = vmatpush1.bf16.xpose.msra.mxu0 0
        %7938 = vmatprep.subr.bf16.mxu0 0
        %7939 = vmatpush1.bf16.xpose.msra.mxu0 0
        %7940 = vmatprep.subr.bf16.mxu0 0
        %7941 = vmatpush1.bf16.xpose.msra.mxu0 0
        %7942 = vmatprep.subr.bf16.mxu0 0
        %7943 = vmatpush1.bf16.xpose.msra.mxu0 0
        %7944 = vmatprep.subr.bf16.mxu0 0
        %7945 = vmatpush1.bf16.xpose.msra.mxu0 0
        %7946 = vmatprep.subr.bf16.mxu0 0
        %7947 = vmatpush1.bf16.xpose.msra.mxu0 0
        %7948 = vmatprep.subr.bf16.mxu0 0
        %7949 = vmatpush1.bf16.xpose.msra.mxu0 0
        %7950 = vmatprep.subr.bf16.mxu0 0
        %7951 = vmatpush1.bf16.xpose.msra.mxu0 0
        %7952 = vmatprep.subr.bf16.mxu0 0
        %7953 = vmatpush1.bf16.xpose.msra.mxu0 0
        %7954 = vmatprep.subr.bf16.mxu0 0
        %7955 = vmatpush1.bf16.xpose.msra.mxu0 0
        %7956 = vmatprep.subr.bf16.mxu0 0
        %7957 = vmatpush1.bf16.xpose.msra.mxu0 0
        %7958 = vmatprep.subr.bf16.mxu0 0
        %7959 = vmatpush1.bf16.xpose.msra.mxu0 0
        %7960 = vmatprep.subr.bf16.mxu0 0
        %7961 = vmatpush1.bf16.xpose.msra.mxu0 0
        %7962 = vmatprep.subr.bf16.mxu0 0
        %7963 = vmatpush1.bf16.xpose.msra.mxu0 0
        %7964 = vmatprep.mubr.bf16.mxu0 0
        %7965 = vmatmul.mubr.bf16.gmra.mrb[0].mxu0 %v7651
        %v7966 = vpop.f32.mrb[0].mxu0
        %v7967 = vadd.f32 0.0, %v7966
        %v7968 = vpop.f32.mrb[0].mxu0
        %v7969 = vpop.f32.mrb[0].mxu0
        %v7970 = vpop.f32.mrb[0].mxu0
        %7971 = vdwg.mxu0
        %v7972 = vsel %vm1912, %v7687, -inf
        %7973 = vmax.xlane.f32.xlu0 %v7972
        %v7974 = vpop.xlane.xlu0 %7973
        %v7975 = vsel %vm1912, %v7727, -inf
        %7976 = vmax.xlane.f32.xlu0 %v7975
        %v7977 = vpop.xlane.xlu0 %7976
        %v7978 = vsel %vm1912, %v7767, -inf
        %7979 = vmax.xlane.f32.xlu0 %v7978
        %v7980 = vpop.xlane.xlu0 %7979
        %v7981 = vsel %vm1912, %v7807, -inf
        %7982 = vmax.xlane.f32.xlu0 %v7981
        %v7983 = vpop.xlane.xlu0 %7982
        %v7984 = vsel %vm1912, %v7847, -inf
        %7985 = vmax.xlane.f32.xlu0 %v7984
        %v7986 = vpop.xlane.xlu0 %7985
        %v7987 = vsel %vm1912, %v7887, -inf
        %7988 = vmax.xlane.f32.xlu0 %v7987
        %v7989 = vpop.xlane.xlu0 %7988
        %v7990 = vsel %vm1912, %v7927, -inf
        %7991 = vmax.xlane.f32.xlu0 %v7990
        %v7992 = vpop.xlane.xlu0 %7991
        %v7993 = vsel %vm1912, %v7967, -inf
        %7994 = vmax.xlane.f32.xlu0 %v7993
        %v7995 = vpop.xlane.xlu0 %7994
        %v7996 = vsub.f32 %v7687, %v7974
        %v7997 = vsub.f32 %v7727, %v7977
        %v7998 = vsub.f32 %v7767, %v7980
        %v7999 = vsub.f32 %v7807, %v7983
        %v8000 = vsub.f32 %v7847, %v7986
        %v8001 = vsub.f32 %v7887, %v7989
        %v8002 = vsub.f32 %v7927, %v7992
        %v8003 = vsub.f32 %v7967, %v7995
        %v8004 = vmul.f32 %v7996, 1.442695
        %v8005 = vpow.pop %v8004
        %v8006 = vmul.f32 %v7997, 1.442695
        %v8007 = vpow.pop %v8006
        %v8008 = vmul.f32 %v7998, 1.442695
        %v8009 = vpow.pop %v8008
        %v8010 = vmul.f32 %v7999, 1.442695
        %v8011 = vpow.pop %v8010
        %v8012 = vmul.f32 %v8000, 1.442695
        %v8013 = vpow.pop %v8012
        %v8014 = vmul.f32 %v8001, 1.442695
        %v8015 = vpow.pop %v8014
        %v8016 = vmul.f32 %v8002, 1.442695
        %v8017 = vpow.pop %v8016
        %v8018 = vmul.f32 %v8003, 1.442695
        %v8019 = vpow.pop %v8018
        %v8020 = vsel %vm1912, %v8005, 0.0
        %8021 = vadd.xlane.f32.xlu0 %v8020
        %v8022 = vpop.xlane.xlu0 %8021
        %v8023 = vsel %vm1912, %v8007, 0.0
        %8024 = vadd.xlane.f32.xlu0 %v8023
        %v8025 = vpop.xlane.xlu0 %8024
        %v8026 = vsel %vm1912, %v8009, 0.0
        %8027 = vadd.xlane.f32.xlu0 %v8026
        %v8028 = vpop.xlane.xlu0 %8027
        %v8029 = vsel %vm1912, %v8011, 0.0
        %8030 = vadd.xlane.f32.xlu0 %v8029
        %v8031 = vpop.xlane.xlu0 %8030
        %v8032 = vsel %vm1912, %v8013, 0.0
        %8033 = vadd.xlane.f32.xlu0 %v8032
        %v8034 = vpop.xlane.xlu0 %8033
        %v8035 = vsel %vm1912, %v8015, 0.0
        %8036 = vadd.xlane.f32.xlu0 %v8035
        %v8037 = vpop.xlane.xlu0 %8036
        %v8038 = vsel %vm1912, %v8017, 0.0
        %8039 = vadd.xlane.f32.xlu0 %v8038
        %v8040 = vpop.xlane.xlu0 %8039
        %v8041 = vsel %vm1912, %v8019, 0.0
        %8042 = vadd.xlane.f32.xlu0 %v8041
        %v8043 = vpop.xlane.xlu0 %8042
        %v8044 = vrcp.pop %v8022
        %v8045 = vrcp.pop %v8025
        %v8046 = vrcp.pop %v8028
        %v8047 = vrcp.pop %v8031
        %v8048 = vrcp.pop %v8034
        %v8049 = vrcp.pop %v8037
        %v8050 = vrcp.pop %v8040
        %v8051 = vrcp.pop %v8043
        %v8052 = vmul.f32 %v8005, %v8044
        %v8053 = vmul.f32 %v8007, %v8045
        %v8054 = vmul.f32 %v8009, %v8046
        %v8055 = vmul.f32 %v8011, %v8047
        %v8056 = vmul.f32 %v8013, %v8048
        %v8057 = vmul.f32 %v8015, %v8049
        %v8058 = vmul.f32 %v8017, %v8050
        %v8059 = vmul.f32 %v8019, %v8051
        %v8060 = vpack.c.bf16 %v8052, %v8052
        %v8061 = vpack.c.bf16 %v8053, %v8053
        %v8062 = vpack.c.bf16 %v8054, %v8054
        %v8063 = vpack.c.bf16 %v8055, %v8055
        %v8064 = vpack.c.bf16 %v8056, %v8056
        %v8065 = vpack.c.bf16 %v8057, %v8057
        %v8066 = vpack.c.bf16 %v8058, %v8058
        %v8067 = vpack.c.bf16 %v8059, %v8059
        %v8069 = vsel %vm2009, %v8060, 0
        %8071 = vmatprep.subr.bf16.mxu0 0
        %8072 = vmatpush1.bf16.msra.mxu0 %v2015
        %8073 = vmatprep.subr.bf16.mxu0 0
        %8074 = vmatpush1.bf16.msra.mxu0 0
        %8075 = vmatprep.subr.bf16.mxu0 0
        %8076 = vmatpush1.bf16.msra.mxu0 0
        %8077 = vmatprep.subr.bf16.mxu0 0
        %8078 = vmatpush1.bf16.msra.mxu0 0
        %8079 = vmatprep.subr.bf16.mxu0 0
        %8080 = vmatpush1.bf16.msra.mxu0 0
        %8081 = vmatprep.subr.bf16.mxu0 0
        %8082 = vmatpush1.bf16.msra.mxu0 0
        %8083 = vmatprep.subr.bf16.mxu0 0
        %8084 = vmatpush1.bf16.msra.mxu0 0
        %8085 = vmatprep.subr.bf16.mxu0 0
        %8086 = vmatpush1.bf16.msra.mxu0 0
        %8087 = vmatprep.subr.bf16.mxu0 0
        %8088 = vmatpush1.bf16.msra.mxu0 0
        %8089 = vmatprep.subr.bf16.mxu0 0
        %8090 = vmatpush1.bf16.msra.mxu0 0
        %8091 = vmatprep.subr.bf16.mxu0 0
        %8092 = vmatpush1.bf16.msra.mxu0 0
        %8093 = vmatprep.subr.bf16.mxu0 0
        %8094 = vmatpush1.bf16.msra.mxu0 0
        %8095 = vmatprep.subr.bf16.mxu0 0
        %8096 = vmatpush1.bf16.msra.mxu0 0
        %8097 = vmatprep.subr.bf16.mxu0 0
        %8098 = vmatpush1.bf16.msra.mxu0 0
        %8099 = vmatprep.subr.bf16.mxu0 0
        %8100 = vmatpush1.bf16.msra.mxu0 0
        %8101 = vmatprep.subr.bf16.mxu0 0
        %8102 = vmatpush1.bf16.msra.mxu0 0
        %8103 = vmatprep.mubr.bf16.mxu0 0
        %8104 = vmatmul.mubr.bf16.gmra.mrb[0].mxu0 %v8069
        %v8105 = vpop.f32.mrb[0].mxu0
        %v8106 = vadd.f32 0.0, %v8105
        %v8107 = vpop.f32.mrb[0].mxu0
        %v8108 = vpop.f32.mrb[0].mxu0
        %v8109 = vpop.f32.mrb[0].mxu0
        %8110 = vdwg.mxu0
        %v8112 = vsel %vm2009, %v8061, 0
        %8114 = vmatprep.subr.bf16.mxu0 0
        %8115 = vmatpush1.bf16.msra.mxu0 %v2061
        %8116 = vmatprep.subr.bf16.mxu0 0
        %8117 = vmatpush1.bf16.msra.mxu0 0
        %8118 = vmatprep.subr.bf16.mxu0 0
        %8119 = vmatpush1.bf16.msra.mxu0 0
        %8120 = vmatprep.subr.bf16.mxu0 0
        %8121 = vmatpush1.bf16.msra.mxu0 0
        %8122 = vmatprep.subr.bf16.mxu0 0
        %8123 = vmatpush1.bf16.msra.mxu0 0
        %8124 = vmatprep.subr.bf16.mxu0 0
        %8125 = vmatpush1.bf16.msra.mxu0 0
        %8126 = vmatprep.subr.bf16.mxu0 0
        %8127 = vmatpush1.bf16.msra.mxu0 0
        %8128 = vmatprep.subr.bf16.mxu0 0
        %8129 = vmatpush1.bf16.msra.mxu0 0
        %8130 = vmatprep.subr.bf16.mxu0 0
        %8131 = vmatpush1.bf16.msra.mxu0 0
        %8132 = vmatprep.subr.bf16.mxu0 0
        %8133 = vmatpush1.bf16.msra.mxu0 0
        %8134 = vmatprep.subr.bf16.mxu0 0
        %8135 = vmatpush1.bf16.msra.mxu0 0
        %8136 = vmatprep.subr.bf16.mxu0 0
        %8137 = vmatpush1.bf16.msra.mxu0 0
        %8138 = vmatprep.subr.bf16.mxu0 0
        %8139 = vmatpush1.bf16.msra.mxu0 0
        %8140 = vmatprep.subr.bf16.mxu0 0
        %8141 = vmatpush1.bf16.msra.mxu0 0
        %8142 = vmatprep.subr.bf16.mxu0 0
        %8143 = vmatpush1.bf16.msra.mxu0 0
        %8144 = vmatprep.subr.bf16.mxu0 0
        %8145 = vmatpush1.bf16.msra.mxu0 0
        %8146 = vmatprep.mubr.bf16.mxu0 0
        %8147 = vmatmul.mubr.bf16.gmra.mrb[0].mxu0 %v8112
        %v8148 = vpop.f32.mrb[0].mxu0
        %v8149 = vadd.f32 0.0, %v8148
        %v8150 = vpop.f32.mrb[0].mxu0
        %v8151 = vpop.f32.mrb[0].mxu0
        %v8152 = vpop.f32.mrb[0].mxu0
        %8153 = vdwg.mxu0
        %v8155 = vsel %vm2009, %v8062, 0
        %8157 = vmatprep.subr.bf16.mxu0 0
        %8158 = vmatpush1.bf16.msra.mxu0 %v2107
        %8159 = vmatprep.subr.bf16.mxu0 0
        %8160 = vmatpush1.bf16.msra.mxu0 0
        %8161 = vmatprep.subr.bf16.mxu0 0
        %8162 = vmatpush1.bf16.msra.mxu0 0
        %8163 = vmatprep.subr.bf16.mxu0 0
        %8164 = vmatpush1.bf16.msra.mxu0 0
        %8165 = vmatprep.subr.bf16.mxu0 0
        %8166 = vmatpush1.bf16.msra.mxu0 0
        %8167 = vmatprep.subr.bf16.mxu0 0
        %8168 = vmatpush1.bf16.msra.mxu0 0
        %8169 = vmatprep.subr.bf16.mxu0 0
        %8170 = vmatpush1.bf16.msra.mxu0 0
        %8171 = vmatprep.subr.bf16.mxu0 0
        %8172 = vmatpush1.bf16.msra.mxu0 0
        %8173 = vmatprep.subr.bf16.mxu0 0
        %8174 = vmatpush1.bf16.msra.mxu0 0
        %8175 = vmatprep.subr.bf16.mxu0 0
        %8176 = vmatpush1.bf16.msra.mxu0 0
        %8177 = vmatprep.subr.bf16.mxu0 0
        %8178 = vmatpush1.bf16.msra.mxu0 0
        %8179 = vmatprep.subr.bf16.mxu0 0
        %8180 = vmatpush1.bf16.msra.mxu0 0
        %8181 = vmatprep.subr.bf16.mxu0 0
        %8182 = vmatpush1.bf16.msra.mxu0 0
        %8183 = vmatprep.subr.bf16.mxu0 0
        %8184 = vmatpush1.bf16.msra.mxu0 0
        %8185 = vmatprep.subr.bf16.mxu0 0
        %8186 = vmatpush1.bf16.msra.mxu0 0
        %8187 = vmatprep.subr.bf16.mxu0 0
        %8188 = vmatpush1.bf16.msra.mxu0 0
        %8189 = vmatprep.mubr.bf16.mxu0 0
        %8190 = vmatmul.mubr.bf16.gmra.mrb[0].mxu0 %v8155
        %v8191 = vpop.f32.mrb[0].mxu0
        %v8192 = vadd.f32 0.0, %v8191
        %v8193 = vpop.f32.mrb[0].mxu0
        %v8194 = vpop.f32.mrb[0].mxu0
        %v8195 = vpop.f32.mrb[0].mxu0
        %8196 = vdwg.mxu0
        %v8198 = vsel %vm2009, %v8063, 0
        %8200 = vmatprep.subr.bf16.mxu0 0
        %8201 = vmatpush1.bf16.msra.mxu0 %v2153
        %8202 = vmatprep.subr.bf16.mxu0 0
        %8203 = vmatpush1.bf16.msra.mxu0 0
        %8204 = vmatprep.subr.bf16.mxu0 0
        %8205 = vmatpush1.bf16.msra.mxu0 0
        %8206 = vmatprep.subr.bf16.mxu0 0
        %8207 = vmatpush1.bf16.msra.mxu0 0
        %8208 = vmatprep.subr.bf16.mxu0 0
        %8209 = vmatpush1.bf16.msra.mxu0 0
        %8210 = vmatprep.subr.bf16.mxu0 0
        %8211 = vmatpush1.bf16.msra.mxu0 0
        %8212 = vmatprep.subr.bf16.mxu0 0
        %8213 = vmatpush1.bf16.msra.mxu0 0
        %8214 = vmatprep.subr.bf16.mxu0 0
        %8215 = vmatpush1.bf16.msra.mxu0 0
        %8216 = vmatprep.subr.bf16.mxu0 0
        %8217 = vmatpush1.bf16.msra.mxu0 0
        %8218 = vmatprep.subr.bf16.mxu0 0
        %8219 = vmatpush1.bf16.msra.mxu0 0
        %8220 = vmatprep.subr.bf16.mxu0 0
        %8221 = vmatpush1.bf16.msra.mxu0 0
        %8222 = vmatprep.subr.bf16.mxu0 0
        %8223 = vmatpush1.bf16.msra.mxu0 0
        %8224 = vmatprep.subr.bf16.mxu0 0
        %8225 = vmatpush1.bf16.msra.mxu0 0
        %8226 = vmatprep.subr.bf16.mxu0 0
        %8227 = vmatpush1.bf16.msra.mxu0 0
        %8228 = vmatprep.subr.bf16.mxu0 0
        %8229 = vmatpush1.bf16.msra.mxu0 0
        %8230 = vmatprep.subr.bf16.mxu0 0
        %8231 = vmatpush1.bf16.msra.mxu0 0
        %8232 = vmatprep.mubr.bf16.mxu0 0
        %8233 = vmatmul.mubr.bf16.gmra.mrb[0].mxu0 %v8198
        %v8234 = vpop.f32.mrb[0].mxu0
        %v8235 = vadd.f32 0.0, %v8234
        %v8236 = vpop.f32.mrb[0].mxu0
        %v8237 = vpop.f32.mrb[0].mxu0
        %v8238 = vpop.f32.mrb[0].mxu0
        %8239 = vdwg.mxu0
        %v8241 = vsel %vm2009, %v8064, 0
        %8243 = vmatprep.subr.bf16.mxu0 0
        %8244 = vmatpush1.bf16.msra.mxu0 %v2199
        %8245 = vmatprep.subr.bf16.mxu0 0
        %8246 = vmatpush1.bf16.msra.mxu0 0
        %8247 = vmatprep.subr.bf16.mxu0 0
        %8248 = vmatpush1.bf16.msra.mxu0 0
        %8249 = vmatprep.subr.bf16.mxu0 0
        %8250 = vmatpush1.bf16.msra.mxu0 0
        %8251 = vmatprep.subr.bf16.mxu0 0
        %8252 = vmatpush1.bf16.msra.mxu0 0
        %8253 = vmatprep.subr.bf16.mxu0 0
        %8254 = vmatpush1.bf16.msra.mxu0 0
        %8255 = vmatprep.subr.bf16.mxu0 0
        %8256 = vmatpush1.bf16.msra.mxu0 0
        %8257 = vmatprep.subr.bf16.mxu0 0
        %8258 = vmatpush1.bf16.msra.mxu0 0
        %8259 = vmatprep.subr.bf16.mxu0 0
        %8260 = vmatpush1.bf16.msra.mxu0 0
        %8261 = vmatprep.subr.bf16.mxu0 0
        %8262 = vmatpush1.bf16.msra.mxu0 0
        %8263 = vmatprep.subr.bf16.mxu0 0
        %8264 = vmatpush1.bf16.msra.mxu0 0
        %8265 = vmatprep.subr.bf16.mxu0 0
        %8266 = vmatpush1.bf16.msra.mxu0 0
        %8267 = vmatprep.subr.bf16.mxu0 0
        %8268 = vmatpush1.bf16.msra.mxu0 0
        %8269 = vmatprep.subr.bf16.mxu0 0
        %8270 = vmatpush1.bf16.msra.mxu0 0
        %8271 = vmatprep.subr.bf16.mxu0 0
        %8272 = vmatpush1.bf16.msra.mxu0 0
        %8273 = vmatprep.subr.bf16.mxu0 0
        %8274 = vmatpush1.bf16.msra.mxu0 0
        %8275 = vmatprep.mubr.bf16.mxu0 0
        %8276 = vmatmul.mubr.bf16.gmra.mrb[0].mxu0 %v8241
        %v8277 = vpop.f32.mrb[0].mxu0
        %v8278 = vadd.f32 0.0, %v8277
        %v8279 = vpop.f32.mrb[0].mxu0
        %v8280 = vpop.f32.mrb[0].mxu0
        %v8281 = vpop.f32.mrb[0].mxu0
        %8282 = vdwg.mxu0
        %v8284 = vsel %vm2009, %v8065, 0
        %8286 = vmatprep.subr.bf16.mxu0 0
        %8287 = vmatpush1.bf16.msra.mxu0 %v2245
        %8288 = vmatprep.subr.bf16.mxu0 0
        %8289 = vmatpush1.bf16.msra.mxu0 0
        %8290 = vmatprep.subr.bf16.mxu0 0
        %8291 = vmatpush1.bf16.msra.mxu0 0
        %8292 = vmatprep.subr.bf16.mxu0 0
        %8293 = vmatpush1.bf16.msra.mxu0 0
        %8294 = vmatprep.subr.bf16.mxu0 0
        %8295 = vmatpush1.bf16.msra.mxu0 0
        %8296 = vmatprep.subr.bf16.mxu0 0
        %8297 = vmatpush1.bf16.msra.mxu0 0
        %8298 = vmatprep.subr.bf16.mxu0 0
        %8299 = vmatpush1.bf16.msra.mxu0 0
        %8300 = vmatprep.subr.bf16.mxu0 0
        %8301 = vmatpush1.bf16.msra.mxu0 0
        %8302 = vmatprep.subr.bf16.mxu0 0
        %8303 = vmatpush1.bf16.msra.mxu0 0
        %8304 = vmatprep.subr.bf16.mxu0 0
        %8305 = vmatpush1.bf16.msra.mxu0 0
        %8306 = vmatprep.subr.bf16.mxu0 0
        %8307 = vmatpush1.bf16.msra.mxu0 0
        %8308 = vmatprep.subr.bf16.mxu0 0
        %8309 = vmatpush1.bf16.msra.mxu0 0
        %8310 = vmatprep.subr.bf16.mxu0 0
        %8311 = vmatpush1.bf16.msra.mxu0 0
        %8312 = vmatprep.subr.bf16.mxu0 0
        %8313 = vmatpush1.bf16.msra.mxu0 0
        %8314 = vmatprep.subr.bf16.mxu0 0
        %8315 = vmatpush1.bf16.msra.mxu0 0
        %8316 = vmatprep.subr.bf16.mxu0 0
        %8317 = vmatpush1.bf16.msra.mxu0 0
        %8318 = vmatprep.mubr.bf16.mxu0 0
        %8319 = vmatmul.mubr.bf16.gmra.mrb[0].mxu0 %v8284
        %v8320 = vpop.f32.mrb[0].mxu0
        %v8321 = vadd.f32 0.0, %v8320
        %v8322 = vpop.f32.mrb[0].mxu0
        %v8323 = vpop.f32.mrb[0].mxu0
        %v8324 = vpop.f32.mrb[0].mxu0
        %8325 = vdwg.mxu0
        %v8327 = vsel %vm2009, %v8066, 0
        %8329 = vmatprep.subr.bf16.mxu0 0
        %8330 = vmatpush1.bf16.msra.mxu0 %v2291
        %8331 = vmatprep.subr.bf16.mxu0 0
        %8332 = vmatpush1.bf16.msra.mxu0 0
        %8333 = vmatprep.subr.bf16.mxu0 0
        %8334 = vmatpush1.bf16.msra.mxu0 0
        %8335 = vmatprep.subr.bf16.mxu0 0
        %8336 = vmatpush1.bf16.msra.mxu0 0
        %8337 = vmatprep.subr.bf16.mxu0 0
        %8338 = vmatpush1.bf16.msra.mxu0 0
        %8339 = vmatprep.subr.bf16.mxu0 0
        %8340 = vmatpush1.bf16.msra.mxu0 0
        %8341 = vmatprep.subr.bf16.mxu0 0
        %8342 = vmatpush1.bf16.msra.mxu0 0
        %8343 = vmatprep.subr.bf16.mxu0 0
        %8344 = vmatpush1.bf16.msra.mxu0 0
        %8345 = vmatprep.subr.bf16.mxu0 0
        %8346 = vmatpush1.bf16.msra.mxu0 0
        %8347 = vmatprep.subr.bf16.mxu0 0
        %8348 = vmatpush1.bf16.msra.mxu0 0
        %8349 = vmatprep.subr.bf16.mxu0 0
        %8350 = vmatpush1.bf16.msra.mxu0 0
        %8351 = vmatprep.subr.bf16.mxu0 0
        %8352 = vmatpush1.bf16.msra.mxu0 0
        %8353 = vmatprep.subr.bf16.mxu0 0
        %8354 = vmatpush1.bf16.msra.mxu0 0
        %8355 = vmatprep.subr.bf16.mxu0 0
        %8356 = vmatpush1.bf16.msra.mxu0 0
        %8357 = vmatprep.subr.bf16.mxu0 0
        %8358 = vmatpush1.bf16.msra.mxu0 0
        %8359 = vmatprep.subr.bf16.mxu0 0
        %8360 = vmatpush1.bf16.msra.mxu0 0
        %8361 = vmatprep.mubr.bf16.mxu0 0
        %8362 = vmatmul.mubr.bf16.gmra.mrb[0].mxu0 %v8327
        %v8363 = vpop.f32.mrb[0].mxu0
        %v8364 = vadd.f32 0.0, %v8363
        %v8365 = vpop.f32.mrb[0].mxu0
        %v8366 = vpop.f32.mrb[0].mxu0
        %v8367 = vpop.f32.mrb[0].mxu0
        %8368 = vdwg.mxu0
        %v8370 = vsel %vm2009, %v8067, 0
        %8372 = vmatprep.subr.bf16.mxu0 0
        %8373 = vmatpush1.bf16.msra.mxu0 %v2337
        %8374 = vmatprep.subr.bf16.mxu0 0
        %8375 = vmatpush1.bf16.msra.mxu0 0
        %8376 = vmatprep.subr.bf16.mxu0 0
        %8377 = vmatpush1.bf16.msra.mxu0 0
        %8378 = vmatprep.subr.bf16.mxu0 0
        %8379 = vmatpush1.bf16.msra.mxu0 0
        %8380 = vmatprep.subr.bf16.mxu0 0
        %8381 = vmatpush1.bf16.msra.mxu0 0
        %8382 = vmatprep.subr.bf16.mxu0 0
        %8383 = vmatpush1.bf16.msra.mxu0 0
        %8384 = vmatprep.subr.bf16.mxu0 0
        %8385 = vmatpush1.bf16.msra.mxu0 0
        %8386 = vmatprep.subr.bf16.mxu0 0
        %8387 = vmatpush1.bf16.msra.mxu0 0
        %8388 = vmatprep.subr.bf16.mxu0 0
        %8389 = vmatpush1.bf16.msra.mxu0 0
        %8390 = vmatprep.subr.bf16.mxu0 0
        %8391 = vmatpush1.bf16.msra.mxu0 0
        %8392 = vmatprep.subr.bf16.mxu0 0
        %8393 = vmatpush1.bf16.msra.mxu0 0
        %8394 = vmatprep.subr.bf16.mxu0 0
        %8395 = vmatpush1.bf16.msra.mxu0 0
        %8396 = vmatprep.subr.bf16.mxu0 0
        %8397 = vmatpush1.bf16.msra.mxu0 0
        %8398 = vmatprep.subr.bf16.mxu0 0
        %8399 = vmatpush1.bf16.msra.mxu0 0
        %8400 = vmatprep.subr.bf16.mxu0 0
        %8401 = vmatpush1.bf16.msra.mxu0 0
        %8402 = vmatprep.subr.bf16.mxu0 0
        %8403 = vmatpush1.bf16.msra.mxu0 0
        %8404 = vmatprep.mubr.bf16.mxu0 0
        %8405 = vmatmul.mubr.bf16.gmra.mrb[0].mxu0 %v8370
        %v8406 = vpop.f32.mrb[0].mxu0
        %v8407 = vadd.f32 0.0, %v8406
        %v8408 = vpop.f32.mrb[0].mxu0
        %v8409 = vpop.f32.mrb[0].mxu0
        %v8410 = vpop.f32.mrb[0].mxu0
        %8411 = vdwg.mxu0
        %v8412 = vpack.c.bf16 %v8106, %v8106
        %v8413 = vpack.c.bf16 %v8149, %v8149
        %v8414 = vpack.c.bf16 %v8192, %v8192
        %v8415 = vpack.c.bf16 %v8235, %v8235
        %v8416 = vpack.c.bf16 %v8278, %v8278
        %v8417 = vpack.c.bf16 %v8321, %v8321
        %v8418 = vpack.c.bf16 %v8364, %v8364
        %v8419 = vpack.c.bf16 %v8407, %v8407
        %v8420 = vld [vmem:[#allocation16] sm:$0xf]
        %v8421 = vld [vmem:[#allocation16 + $0x4] sm:$0xf]
        %v8422 = vld [vmem:[#allocation16 + $0x8] sm:$0xf]
        %v8423 = vld [vmem:[#allocation16 + $0xc] sm:$0xf]
        %v8424 = vld [vmem:[#allocation16 + $0x10] sm:$0xf]
        %v8425 = vld [vmem:[#allocation16 + $0x14] sm:$0xf]
        %v8426 = vld [vmem:[#allocation16 + $0x18] sm:$0xf]
        %v8427 = vld [vmem:[#allocation16 + $0x1c] sm:$0xf]
        %v8428 = vld [vmem:[#allocation16 + $0x20] sm:$0xf]
        %v8429 = vld [vmem:[#allocation16 + $0x24] sm:$0xf]
        %v8430 = vld [vmem:[#allocation16 + $0x28] sm:$0xf]
        %v8431 = vld [vmem:[#allocation16 + $0x2c] sm:$0xf]
        %v8432 = vld [vmem:[#allocation16 + $0x30] sm:$0xf]
        %v8433 = vld [vmem:[#allocation16 + $0x34] sm:$0xf]
        %v8434 = vld [vmem:[#allocation16 + $0x38] sm:$0xf]
        %v8435 = vld [vmem:[#allocation16 + $0x3c] sm:$0xf]
        %v8436 = vld [vmem:[#allocation17] sm:$0xf]
        %v8437 = vld [vmem:[#allocation17 + $0x4] sm:$0xf]
        %v8438 = vld [vmem:[#allocation17 + $0x8] sm:$0xf]
        %v8439 = vld [vmem:[#allocation17 + $0xc] sm:$0xf]
        %v8440 = vld [vmem:[#allocation17 + $0x10] sm:$0xf]
        %v8441 = vld [vmem:[#allocation17 + $0x14] sm:$0xf]
        %v8442 = vld [vmem:[#allocation17 + $0x18] sm:$0xf]
        %v8443 = vld [vmem:[#allocation17 + $0x1c] sm:$0xf]
        %v8444 = vld [vmem:[#allocation17 + $0x20] sm:$0xf]
        %v8445 = vld [vmem:[#allocation17 + $0x24] sm:$0xf]
        %v8446 = vld [vmem:[#allocation17 + $0x28] sm:$0xf]
        %v8447 = vld [vmem:[#allocation17 + $0x2c] sm:$0xf]
        %v8448 = vld [vmem:[#allocation17 + $0x30] sm:$0xf]
        %v8449 = vld [vmem:[#allocation17 + $0x34] sm:$0xf]
        %v8450 = vld [vmem:[#allocation17 + $0x38] sm:$0xf]
        %v8451 = vld [vmem:[#allocation17 + $0x3c] sm:$0xf]
        %v8468 = vunpack.c.l.b16 %v8436
        %v8469 = vunpack.c.l.b16 %v8437
        %v8470 = vunpack.c.l.b16 %v8438
        %v8471 = vunpack.c.l.b16 %v8439
        %v8472 = vunpack.c.l.b16 %v8440
        %v8473 = vunpack.c.l.b16 %v8441
        %v8474 = vunpack.c.l.b16 %v8442
        %v8475 = vunpack.c.l.b16 %v8443
        %v8476 = vunpack.c.l.b16 %v8444
        %v8477 = vunpack.c.l.b16 %v8445
        %v8478 = vunpack.c.l.b16 %v8446
        %v8479 = vunpack.c.l.b16 %v8447
        %v8480 = vunpack.c.l.b16 %v8448
        %v8481 = vunpack.c.l.b16 %v8449
        %v8482 = vunpack.c.l.b16 %v8450
        %v8483 = vunpack.c.l.b16 %v8451
        %v8484 = vpack.c.b16 %v8469, %v8468
        %v8485 = vpack.c.b16 %v8471, %v8470
        %v8486 = vpack.c.b16 %v8473, %v8472
        %v8487 = vpack.c.b16 %v8475, %v8474
        %v8488 = vpack.c.b16 %v8477, %v8476
        %v8489 = vpack.c.b16 %v8479, %v8478
        %v8490 = vpack.c.b16 %v8481, %v8480
        %v8491 = vpack.c.b16 %v8483, %v8482
        %8500 = vmatprep.subr.bf16.mxu0 0
        %8501 = vmatpush1.bf16.msra.mxu0 %v8484
        %8502 = vmatprep.subr.bf16.mxu0 0
        %8503 = vmatpush1.bf16.msra.mxu0 %v8485
        %8504 = vmatprep.subr.bf16.mxu0 0
        %8505 = vmatpush1.bf16.msra.mxu0 %v8486
        %8506 = vmatprep.subr.bf16.mxu0 0
        %8507 = vmatpush1.bf16.msra.mxu0 %v8487
        %8508 = vmatprep.subr.bf16.mxu0 0
        %8509 = vmatpush1.bf16.msra.mxu0 %v8488
        %8510 = vmatprep.subr.bf16.mxu0 0
        %8511 = vmatpush1.bf16.msra.mxu0 %v8489
        %8512 = vmatprep.subr.bf16.mxu0 0
        %8513 = vmatpush1.bf16.msra.mxu0 %v8490
        %8514 = vmatprep.subr.bf16.mxu0 0
        %8515 = vmatpush1.bf16.msra.mxu0 %v8491
        %8516 = vmatprep.subr.bf16.mxu0 0
        %8517 = vmatpush1.bf16.msra.mxu0 0
        %8518 = vmatprep.subr.bf16.mxu0 0
        %8519 = vmatpush1.bf16.msra.mxu0 0
        %8520 = vmatprep.subr.bf16.mxu0 0
        %8521 = vmatpush1.bf16.msra.mxu0 0
        %8522 = vmatprep.subr.bf16.mxu0 0
        %8523 = vmatpush1.bf16.msra.mxu0 0
        %8524 = vmatprep.subr.bf16.mxu0 0
        %8525 = vmatpush1.bf16.msra.mxu0 0
        %8526 = vmatprep.subr.bf16.mxu0 0
        %8527 = vmatpush1.bf16.msra.mxu0 0
        %8528 = vmatprep.subr.bf16.mxu0 0
        %8529 = vmatpush1.bf16.msra.mxu0 0
        %8530 = vmatprep.subr.bf16.mxu0 0
        %8531 = vmatpush1.bf16.msra.mxu0 0
        %8532 = vmatprep.mubr.bf16.mxu0 0
        %8533 = vmatmul.mubr.bf16.gmra.mrb[0].mxu0 %v7481
        %v8534 = vpop.f32.mrb[0].mxu0
        %v8535 = vadd.f32 0.0, %v8534
        %v8536 = vpop.f32.mrb[0].mxu0
        %v8537 = vpop.f32.mrb[0].mxu0
        %v8538 = vpop.f32.mrb[0].mxu0
        %8539 = vdwg.mxu0
        %v8548 = vunpack.c.l.b16 %v8412
        %v8549 = vunpack.c.l.b16 %v8413
        %v8550 = vunpack.c.l.b16 %v8414
        %v8551 = vunpack.c.l.b16 %v8415
        %v8552 = vunpack.c.l.b16 %v8416
        %v8553 = vunpack.c.l.b16 %v8417
        %v8554 = vunpack.c.l.b16 %v8418
        %v8555 = vunpack.c.l.b16 %v8419
        %v8556 = vrot.slane %v8549, 7
        %v8557 = vsel %vm2524, %v8556, %v8548
        %v8558 = vrot.slane %v8550, 6
        %v8559 = vsel %vm2527, %v8558, %v8557
        %v8560 = vrot.slane %v8551, 5
        %v8561 = vsel %vm2530, %v8560, %v8559
        %v8562 = vrot.slane %v8552, 4
        %v8563 = vsel %vm2533, %v8562, %v8561
        %v8564 = vrot.slane %v8553, 3
        %v8565 = vsel %vm2536, %v8564, %v8563
        %v8566 = vrot.slane %v8554, 2
        %v8567 = vsel %vm2539, %v8566, %v8565
        %v8568 = vrot.slane %v8555, 1
        %v8569 = vsel %vm2542, %v8568, %v8567
        %v8570 = vpack.c.b16 %v8569, %v8569
        %v8588 = vunpack.c.l.b16 %v8420
        %v8589 = vunpack.c.l.b16 %v8421
        %v8590 = vunpack.c.l.b16 %v8422
        %v8591 = vunpack.c.l.b16 %v8423
        %v8592 = vunpack.c.l.b16 %v8424
        %v8593 = vunpack.c.l.b16 %v8425
        %v8594 = vunpack.c.l.b16 %v8426
        %v8595 = vunpack.c.l.b16 %v8427
        %v8596 = vunpack.c.l.b16 %v8428
        %v8597 = vunpack.c.l.b16 %v8429
        %v8598 = vunpack.c.l.b16 %v8430
        %v8599 = vunpack.c.l.b16 %v8431
        %v8600 = vunpack.c.l.b16 %v8432
        %v8601 = vunpack.c.l.b16 %v8433
        %v8602 = vunpack.c.l.b16 %v8434
        %v8603 = vunpack.c.l.b16 %v8435
        %v8604 = vpack.c.b16 %v8589, %v8588
        %v8605 = vpack.c.b16 %v8591, %v8590
        %v8606 = vpack.c.b16 %v8593, %v8592
        %v8607 = vpack.c.b16 %v8595, %v8594
        %v8608 = vpack.c.b16 %v8597, %v8596
        %v8609 = vpack.c.b16 %v8599, %v8598
        %v8610 = vpack.c.b16 %v8601, %v8600
        %v8611 = vpack.c.b16 %v8603, %v8602
        %8620 = vmatprep.subr.bf16.mxu0 0
        %8621 = vmatpush1.bf16.msra.mxu0 %v8604
        %8622 = vmatprep.subr.bf16.mxu0 0
        %8623 = vmatpush1.bf16.msra.mxu0 %v8605
        %8624 = vmatprep.subr.bf16.mxu0 0
        %8625 = vmatpush1.bf16.msra.mxu0 %v8606
        %8626 = vmatprep.subr.bf16.mxu0 0
        %8627 = vmatpush1.bf16.msra.mxu0 %v8607
        %8628 = vmatprep.subr.bf16.mxu0 0
        %8629 = vmatpush1.bf16.msra.mxu0 %v8608
        %8630 = vmatprep.subr.bf16.mxu0 0
        %8631 = vmatpush1.bf16.msra.mxu0 %v8609
        %8632 = vmatprep.subr.bf16.mxu0 0
        %8633 = vmatpush1.bf16.msra.mxu0 %v8610
        %8634 = vmatprep.subr.bf16.mxu0 0
        %8635 = vmatpush1.bf16.msra.mxu0 %v8611
        %8636 = vmatprep.subr.bf16.mxu0 0
        %8637 = vmatpush1.bf16.msra.mxu0 0
        %8638 = vmatprep.subr.bf16.mxu0 0
        %8639 = vmatpush1.bf16.msra.mxu0 0
        %8640 = vmatprep.subr.bf16.mxu0 0
        %8641 = vmatpush1.bf16.msra.mxu0 0
        %8642 = vmatprep.subr.bf16.mxu0 0
        %8643 = vmatpush1.bf16.msra.mxu0 0
        %8644 = vmatprep.subr.bf16.mxu0 0
        %8645 = vmatpush1.bf16.msra.mxu0 0
        %8646 = vmatprep.subr.bf16.mxu0 0
        %8647 = vmatpush1.bf16.msra.mxu0 0
        %8648 = vmatprep.subr.bf16.mxu0 0
        %8649 = vmatpush1.bf16.msra.mxu0 0
        %8650 = vmatprep.subr.bf16.mxu0 0
        %8651 = vmatpush1.bf16.msra.mxu0 0
        %8652 = vmatprep.mubr.bf16.mxu0 0
        %8653 = vmatmul.mubr.bf16.gmra.mrb[0].mxu0 %v8570
        %v8654 = vpop.f32.mrb[0].mxu0
        %v8655 = vadd.f32 %v8535, %v8654
        %v8656 = vpop.f32.mrb[0].mxu0
        %v8657 = vpop.f32.mrb[0].mxu0
        %v8658 = vpop.f32.mrb[0].mxu0
        %8659 = vdwg.mxu0
        %v8660 = vtanh.pop %v8655
        %s8661 = scalar_lea.vmem %s569, 24 [#allocation19]
        %8662 = vst [vmem:[%s8661] sm:$0xff] %v8660
        %s8663 = sand.u32 %s284, 1
        %s8664 = scalar_lea.sflag [#allocation4], %s8663
        %s8665 = sand.u32 %s284, 1
        %s8666 = smul.addr %s8665, 32
        %s8667 = scalar_lea.vmem [#allocation19], %s8666
        // Predicated region
        $region105: #{tpu_custom_call.1} parent=59 // pred_check
          %p8668 = pneg %p294
        $region106: #{tpu_custom_call.1} parent=59 // pred_check_branch
          %8670 = sbr.rel (%p8668) target = $region108
        $region107: #{tpu_custom_call.1} parent=59 // pred_region
          %s8671 = smul.u32 4, %s40
          %s8673 = ssub.s32 512, 512
          %8674 = vsyncadd %s8664, %s8673
          %s8675 = sadd.s32 %s39, %s8671
          %s8676 = smul.addr %s8675, 128
          %s8677 = scalar_lea.hbm %s10, %s8676
          %s8678 = sshll.u32 %s8667, 4
          %s8679 = int_to_ptr.vmem [resolvable:$true] %s8678
          %8684 = dma.vmem_to_hbm [thread:$0]  %s8679, 512, %s8677, %s8664, 128, 128, 8
        $region108: #{tpu_custom_call.1} parent=59 // pred_fallthru
          _
        // Predicated region
        $region109: #{tpu_custom_call.1} parent=59 // pred_check
          %p8685 = pneg %p320
        $region110: #{tpu_custom_call.1} parent=59 // pred_check_branch
          %8687 = sbr.rel (%p8685) target = $region112
        $region111: #{tpu_custom_call.1} parent=59 // pred_region
          %s8689 = ssub.s32 256, 256
          %8690 = vsyncadd [#allocation21], %s8689
          %s8691 = smul.addr %s39, 128
          %s8692 = scalar_lea.hbm %s11, %s8691
          %s8693 = sshll.u32 [#allocation20], 4
          %s8694 = int_to_ptr.vmem [resolvable:$true] %s8693
          %8699 = dma.vmem_to_hbm [thread:$0]  %s8694, 256, %s8692, [#allocation21], 128, 128, 8
        $region112: #{tpu_custom_call.1} parent=59 // pred_fallthru
          _
        // Predicated region
        $region113: #{tpu_custom_call.1} parent=59 // pred_check
          %p8700 = pneg %p320
        $region114: #{tpu_custom_call.1} parent=59 // pred_check_branch
          %8702 = sbr.rel (%p8700) target = $region116
        $region115: #{tpu_custom_call.1} parent=59 // pred_region
          %8703 = dma.done [#allocation21], 256
        $region116: #{tpu_custom_call.1} parent=59 // pred_fallthru
          _
      $region60: #{tpu_custom_call.1} parent=5 // pred_fallthru
        _
      %p8704 = scmp.le.s32.totalorder 2, %s30
      // Predicated region
      $region117: #{tpu_custom_call.1} parent=5 // pred_check
        %p8705 = pneg %p8704
      $region118: #{tpu_custom_call.1} parent=5 // pred_check_branch
        %8707 = sbr.rel (%p8705) target = $region120
      $region119: #{tpu_custom_call.1} parent=5 // pred_region
        %s8708 = ssub.s32 %s30, 2
        // Predicated region
        $region121: #{tpu_custom_call.1} parent=119 // pred_check
          %p8709 = pneg %p300
        $region122: #{tpu_custom_call.1} parent=119 // pred_check_branch
          %8711 = sbr.rel (%p8709) target = $region124
        $region123: #{tpu_custom_call.1} parent=119 // pred_region
          %s8712 = sand.u32 %s285, 1
          %s8713 = scalar_lea.sflag [#allocation4], %s8712
          %s8714 = sand.u32 %s285, 1
          %s8715 = smul.addr %s8714, 32
          %s8716 = scalar_lea.vmem [#allocation19], %s8715
          %8717 = dma.done %s8713, 512
        $region124: #{tpu_custom_call.1} parent=119 // pred_fallthru
          _
      $region120: #{tpu_custom_call.1} parent=5 // pred_fallthru
        _
    $region6: #{tpu_custom_call.1} parent=1 // loop_footer
      %s34 = sadd.s32 1, %s30
    $region7: #{tpu_custom_call.1} parent=1 // loop_footer_branch
      %29 = sbr.rel target = $region3
    $region8: #{tpu_custom_call.1} parent=1 // loop_exit
      _
    %8718 = vsyncpa [#allocation3], 1
    %s8719 = scalar_lea.sflag [#allocation3], 1
    %8720 = vsyncpa %s8719, 1
    %8721 = vsyncpa [#allocation6], 1
    %8722 = vsyncpa [#allocation9], 1
    %8723 = vsyncpa [#allocation12], 1
    %8724 = vsyncpa [#allocation15], 1
    %8725 = vsyncpa [#allocation18], 1
    %8726 = vsyncpa [#allocation4], 1
    %s8727 = scalar_lea.sflag [#allocation4], 1
    %8728 = vsyncpa %s8727, 1
    %8729 = vsyncpa [#allocation21], 1

</llo_original>
